<compile_context>
chip_gen: v7x
topology: tpu7x:2x2x1
jax: 0.10.0
libtpu: 0.0.40
codegen_flags: <defaults>
</compile_context>

<pallas_src>
import jax
import jax.numpy as jnp
import numpy as np
from jax.experimental import pallas as pl
from jax.experimental.pallas import tpu as pltpu

KN = 5        # conv out channels ("kernel_number")
CONV_K = 5    # conv kernel size
POOL = 3      # max-pool kernel/stride
OUT_H = 8     # pooled spatial extent (28 -> 24 -> 8)
NPOS = OUT_H * OUT_H           # 64 pooled positions
NWIN = POOL * POOL             # 9 pool-window offsets
NPATCH = CONV_K * CONV_K       # 25 conv taps
NFEAT = KN * NPOS              # 320 flattened features (PyTorch order oc*64+pq)
NCLS = 10
PAD_CLS = 128                  # class dim padded to full lane width
NEG = -1e30                    # "minus infinity" for padded logits


def mnist_kernel(p_ref, wbig_ref, bcb_ref, wfc_ref, bfc_ref, out_ref):
    # p_ref:   (9*bt, 1600) bf16 im2col patches; row = u*bt + b,
    #          lane = (p*8+q)*25 + (di*5+dj)
    # wbig_ref:(1600, 320)  bf16 block-diag conv weight; col = oc*64 + pq
    # bcb_ref: (1, 320)     f32 conv bias replicated into flat feature order
    # wfc_ref: (320, 128)   f32 fc weight, classes zero-padded 10 -> 128
    # bfc_ref: (1, 128)     f32 fc bias, padded classes set to -1e30
    # out_ref: (bt, 128)    f32 log-softmax tile (first 10 lanes valid)
    bt = out_ref.shape[0]
    wbig = wbig_ref[...]

    # Conv + 3x3 max-pool fused: one bf16 MXU matmul (f32 accumulate) per pool
    # window offset u, with a running VPU max, so the (9*bt, 320) conv
    # temporary is never materialized.
    pooled = jnp.dot(p_ref[0:bt, :], wbig, preferred_element_type=jnp.float32)
    for u in range(1, NWIN):
        cu = jnp.dot(p_ref[u * bt:(u + 1) * bt, :], wbig,
                     preferred_element_type=jnp.float32)
        pooled = jnp.maximum(pooled, cu)
    pooled = pooled + bcb_ref[...]                                # (bt, 320)

    # Fully connected on the MXU (f32); padded classes get bias -1e30.
    logits = jnp.dot(pooled, wfc_ref[...],
                     preferred_element_type=jnp.float32) + bfc_ref[...]

    # log_softmax over classes; padded lanes contribute exp(-1e30 - m) == 0.
    m = jnp.max(logits, axis=-1, keepdims=True)
    z = logits - m
    lse = jnp.log(jnp.sum(jnp.exp(z), axis=-1, keepdims=True))
    out_ref[...] = (z - lse).astype(out_ref.dtype)


def _round_up(n, m):
    return (n + m - 1) // m * m


def _choose_tiling(n):
    # bt multiple of 16 (bf16 sublane packing), capped at 128 so the
    # double-buffered bf16 patch tile + weights fit every generation's default
    # scoped VMEM; always emit >= 2 grid tiles so both v7x TensorCores work.
    bt = min(128, _round_up(max(-(-n // 2), 16), 16))
    n_pad = _round_up(n, bt)
    if n_pad // bt < 2:
        n_pad = 2 * bt
    return bt, n_pad, n_pad // bt


def make_patches(x, n_tiles, bt):
    """x: (N,1,28,28) -> (n_tiles*9*bt, 1600) bf16.

    Row order = (tile, window u=ui*3+vj, image b); lane = (p*8+q)*25 + di*5+dj.
    Exactly one materialized transpose of the inflated tensor, in bf16.
    """
    n_pad = n_tiles * bt
    N = x.shape[0]
    xb = x.astype(jnp.bfloat16)[:, 0]                             # (N, 28, 28)
    xb = jnp.pad(xb, ((0, n_pad - N), (0, 0), (0, 0)))
    cols = [xb[:, di:di + POOL * OUT_H, dj:dj + POOL * OUT_H]
            for di in range(CONV_K) for dj in range(CONV_K)]
    p = jnp.stack(cols, axis=-1)                                  # (n_pad,24,24,25)
    p = p.reshape(n_tiles, bt, OUT_H, POOL, OUT_H, POOL, NPATCH)  # (tl,b,p,ui,q,vj,t)
    p = p.transpose(0, 3, 5, 1, 2, 4, 6)                          # (tl,ui,vj,b,p,q,t)
    return p.reshape(n_tiles * NWIN * bt, NPOS * NPATCH)          # (tl*9*bt, 1600)


def mnist_forward(x, params, batch_tile=None):
    wc, bc, wfc, bfc = params
    N = x.shape[0]
    if batch_tile is None:
        bt, n_pad, n_tiles = _choose_tiling(N)
    else:
        bt = batch_tile
        n_pad = max(_round_up(N, bt), 2 * bt)
        n_tiles = n_pad // bt

    # ---- host-side layout prep (plain JAX / XLA glue, fused under jit) ----
    patches = make_patches(x, n_tiles, bt)                        # bf16

    # block-diagonal conv weight: column oc*64+pq only reads lane block pq*25..+25
    wc_flat = wc.reshape(KN, NPATCH).astype(jnp.float32)          # (5, 25)
    eye = jnp.eye(NPOS, dtype=jnp.float32)                        # (64, 64)
    w_big = jnp.einsum('ot,pP->ptoP', wc_flat, eye)               # (64,25,5,64)
    w_big = w_big.reshape(NPOS * NPATCH, NFEAT).astype(jnp.bfloat16)
    bc_big = jnp.repeat(bc.astype(jnp.float32), NPOS).reshape(1, NFEAT)

    # FC weight in PyTorch flatten order (oc*64+pq), classes padded to 128 lanes
    wfc_pad = jnp.zeros((NFEAT, PAD_CLS), jnp.float32).at[:, :NCLS].set(
        wfc.astype(jnp.float32).T)
    bfc_pad = jnp.full((1, PAD_CLS), NEG, jnp.float32).at[0, :NCLS].set(
        bfc.astype(jnp.float32))

    cost = pl.CostEstimate(
        flops=int(n_tiles * (2 * NWIN * bt * NPOS * NPATCH * NFEAT
                             + 2 * bt * NFEAT * PAD_CLS)),
        transcendentals=int(n_pad * PAD_CLS),
        bytes_accessed=int(patches.size * 2 + w_big.size * 2 + bc_big.size * 4
                           + wfc_pad.size * 4 + bfc_pad.size * 4
                           + n_pad * PAD_CLS * 4),
    )

    out = pl.pallas_call(
        mnist_kernel,
        out_shape=jax.ShapeDtypeStruct((n_pad, PAD_CLS), jnp.float32),
        grid=(n_tiles,),
        in_specs=[
            pl.BlockSpec((NWIN * bt, NPOS * NPATCH), lambda i: (i, 0)),
            pl.BlockSpec((NPOS * NPATCH, NFEAT), lambda i: (0, 0)),
            pl.BlockSpec((1, NFEAT), lambda i: (0, 0)),
            pl.BlockSpec((NFEAT, PAD_CLS), lambda i: (0, 0)),
            pl.BlockSpec((1, PAD_CLS), lambda i: (0, 0)),
        ],
        out_specs=pl.BlockSpec((bt, PAD_CLS), lambda i: (i, 0)),
        compiler_params=pltpu.CompilerParams(
            dimension_semantics=("parallel",)),
        cost_estimate=cost,
    )(patches, w_big, bc_big, wfc_pad, bfc_pad)
    return out[:N, :NCLS]


def reference(x, params):
    """Pure-JAX reference of the PyTorch forward (float32)."""
    wc, bc, wfc, bfc = params
    conv = jax.lax.conv_general_dilated(
        x.astype(jnp.float32), wc.astype(jnp.float32), (1, 1), "VALID",
        dimension_numbers=("NCHW", "OIHW", "NCHW")) + bc.reshape(1, -1, 1, 1)
    pooled = jax.lax.reduce_window(conv, -jnp.inf, jax.lax.max,
                                   (1, 1, POOL, POOL), (1, 1, POOL, POOL), "VALID")
    flat = pooled.reshape(x.shape[0], -1)
    logits = flat @ wfc.T + bfc
    return jax.nn.log_softmax(logits, axis=-1)


if __name__ == "__main__":
    key = jax.random.PRNGKey(0)
    kx, kw1, kb1, kw2, kb2 = jax.random.split(key, 5)

    # batch=2 MNIST-shaped inputs (28x28 is required by the fc1 320-feature assumption)
    x = jax.random.normal(kx, (2, 1, 28, 28), dtype=jnp.float32)

    # deterministic parameter init (shapes from MNISTNet.__init__)
    wc = jax.random.normal(kw1, (KN, 1, CONV_K, CONV_K), dtype=jnp.float32) * 0.1
    bc = jax.random.normal(kb1, (KN,), dtype=jnp.float32) * 0.1
    wfc = jax.random.normal(kw2, (NCLS, NFEAT), dtype=jnp.float32) * 0.05
    bfc = jax.random.normal(kb2, (NCLS,), dtype=jnp.float32) * 0.05
    params = (wc, bc, wfc, bfc)

    fwd = jax.jit(mnist_forward, static_argnames=("batch_tile",))
    out = jax.block_until_ready(fwd(x, params))
    ref = jax.block_until_ready(reference(x, params))
    assert out.shape == (2, NCLS)
    # tolerance re-baselined for bf16 inputs (f32 MXU accumulation); the
    # PyTorch reference is f64 anyway, so this is the documented precision gap.
    np.testing.assert_allclose(np.asarray(out), np.asarray(ref),
                               atol=2e-2, rtol=2e-3)

    print("KERNEL_OK")
</pallas_src>

<mosaic_0001>
module attributes {stable_mosaic.version = 11 : i64} {
  func.func @mnist_kernel(%arg0: i32, %arg1: memref<144x1600xbf16, #tpu.memory_space<vmem>>, %arg2: memref<1600x320xbf16, #tpu.memory_space<vmem>>, %arg3: memref<1x320xf32, #tpu.memory_space<vmem>>, %arg4: memref<320x128xf32, #tpu.memory_space<vmem>>, %arg5: memref<1x128xf32, #tpu.memory_space<vmem>>, %arg6: memref<16x128xf32, #tpu.memory_space<vmem>>) attributes {dimension_semantics = [#tpu.dimension_semantics<parallel>], iteration_bounds = array<i64: 2>, scalar_prefetch = 0 : i64, scratch_operands = 0 : i64, tpu.core_type = #tpu.core_type<tc>, window_params = [{transform_indices = @transform_0, window_bounds = array<i64: 144, 1600>}, {pipeline_mode = #tpu.pipeline_mode<synchronous>, transform_indices = @transform_1, window_bounds = array<i64: 1600, 320>}, {pipeline_mode = #tpu.pipeline_mode<synchronous>, transform_indices = @transform_2, window_bounds = array<i64: 1, 320>}, {pipeline_mode = #tpu.pipeline_mode<synchronous>, transform_indices = @transform_3, window_bounds = array<i64: 320, 128>}, {pipeline_mode = #tpu.pipeline_mode<synchronous>, transform_indices = @transform_4, window_bounds = array<i64: 1, 128>}, {transform_indices = @transform_5, window_bounds = array<i64: 16, 128>}]} {
    %c0 = arith.constant 0 : index
    %c0_0 = arith.constant 0 : index
    %0 = vector.load %arg2[%c0, %c0_0] : memref<1600x320xbf16, #tpu.memory_space<vmem>>, vector<1600x320xbf16>
    %c0_1 = arith.constant 0 : index
    %c0_2 = arith.constant 0 : index
    %1 = vector.load %arg1[%c0_1, %c0_2] : memref<144x1600xbf16, #tpu.memory_space<vmem>>, vector<16x1600xbf16>
    %cst = arith.constant dense<0.000000e+00> : vector<16x320xf32>
    %2 = tpu.matmul %1, %0, %cst {dimension_numbers = #tpu.dot_dimension_numbers<[1], [0], [0], [1], [0, 0, 1, 1], [], []>} : vector<16x1600xbf16>, vector<1600x320xbf16>, vector<16x320xf32> -> vector<16x320xf32>
    %c16 = arith.constant 16 : index
    %c0_3 = arith.constant 0 : index
    %3 = vector.load %arg1[%c16, %c0_3] : memref<144x1600xbf16, #tpu.memory_space<vmem>>, vector<16x1600xbf16>
    %cst_4 = arith.constant dense<0.000000e+00> : vector<16x320xf32>
    %4 = tpu.matmul %3, %0, %cst_4 {dimension_numbers = #tpu.dot_dimension_numbers<[1], [0], [0], [1], [0, 0, 1, 1], [], []>} : vector<16x1600xbf16>, vector<1600x320xbf16>, vector<16x320xf32> -> vector<16x320xf32>
    %5 = arith.maximumf %2, %4 : vector<16x320xf32>
    %c32 = arith.constant 32 : index
    %c0_5 = arith.constant 0 : index
    %6 = vector.load %arg1[%c32, %c0_5] : memref<144x1600xbf16, #tpu.memory_space<vmem>>, vector<16x1600xbf16>
    %cst_6 = arith.constant dense<0.000000e+00> : vector<16x320xf32>
    %7 = tpu.matmul %6, %0, %cst_6 {dimension_numbers = #tpu.dot_dimension_numbers<[1], [0], [0], [1], [0, 0, 1, 1], [], []>} : vector<16x1600xbf16>, vector<1600x320xbf16>, vector<16x320xf32> -> vector<16x320xf32>
    %8 = arith.maximumf %5, %7 : vector<16x320xf32>
    %c48 = arith.constant 48 : index
    %c0_7 = arith.constant 0 : index
    %9 = vector.load %arg1[%c48, %c0_7] : memref<144x1600xbf16, #tpu.memory_space<vmem>>, vector<16x1600xbf16>
    %cst_8 = arith.constant dense<0.000000e+00> : vector<16x320xf32>
    %10 = tpu.matmul %9, %0, %cst_8 {dimension_numbers = #tpu.dot_dimension_numbers<[1], [0], [0], [1], [0, 0, 1, 1], [], []>} : vector<16x1600xbf16>, vector<1600x320xbf16>, vector<16x320xf32> -> vector<16x320xf32>
    %11 = arith.maximumf %8, %10 : vector<16x320xf32>
    %c64 = arith.constant 64 : index
    %c0_9 = arith.constant 0 : index
    %12 = vector.load %arg1[%c64, %c0_9] : memref<144x1600xbf16, #tpu.memory_space<vmem>>, vector<16x1600xbf16>
    %cst_10 = arith.constant dense<0.000000e+00> : vector<16x320xf32>
    %13 = tpu.matmul %12, %0, %cst_10 {dimension_numbers = #tpu.dot_dimension_numbers<[1], [0], [0], [1], [0, 0, 1, 1], [], []>} : vector<16x1600xbf16>, vector<1600x320xbf16>, vector<16x320xf32> -> vector<16x320xf32>
    %14 = arith.maximumf %11, %13 : vector<16x320xf32>
    %c80 = arith.constant 80 : index
    %c0_11 = arith.constant 0 : index
    %15 = vector.load %arg1[%c80, %c0_11] : memref<144x1600xbf16, #tpu.memory_space<vmem>>, vector<16x1600xbf16>
    %cst_12 = arith.constant dense<0.000000e+00> : vector<16x320xf32>
    %16 = tpu.matmul %15, %0, %cst_12 {dimension_numbers = #tpu.dot_dimension_numbers<[1], [0], [0], [1], [0, 0, 1, 1], [], []>} : vector<16x1600xbf16>, vector<1600x320xbf16>, vector<16x320xf32> -> vector<16x320xf32>
    %17 = arith.maximumf %14, %16 : vector<16x320xf32>
    %c96 = arith.constant 96 : index
    %c0_13 = arith.constant 0 : index
    %18 = vector.load %arg1[%c96, %c0_13] : memref<144x1600xbf16, #tpu.memory_space<vmem>>, vector<16x1600xbf16>
    %cst_14 = arith.constant dense<0.000000e+00> : vector<16x320xf32>
    %19 = tpu.matmul %18, %0, %cst_14 {dimension_numbers = #tpu.dot_dimension_numbers<[1], [0], [0], [1], [0, 0, 1, 1], [], []>} : vector<16x1600xbf16>, vector<1600x320xbf16>, vector<16x320xf32> -> vector<16x320xf32>
    %20 = arith.maximumf %17, %19 : vector<16x320xf32>
    %c112 = arith.constant 112 : index
    %c0_15 = arith.constant 0 : index
    %21 = vector.load %arg1[%c112, %c0_15] : memref<144x1600xbf16, #tpu.memory_space<vmem>>, vector<16x1600xbf16>
    %cst_16 = arith.constant dense<0.000000e+00> : vector<16x320xf32>
    %22 = tpu.matmul %21, %0, %cst_16 {dimension_numbers = #tpu.dot_dimension_numbers<[1], [0], [0], [1], [0, 0, 1, 1], [], []>} : vector<16x1600xbf16>, vector<1600x320xbf16>, vector<16x320xf32> -> vector<16x320xf32>
    %23 = arith.maximumf %20, %22 : vector<16x320xf32>
    %c128 = arith.constant 128 : index
    %c0_17 = arith.constant 0 : index
    %24 = vector.load %arg1[%c128, %c0_17] : memref<144x1600xbf16, #tpu.memory_space<vmem>>, vector<16x1600xbf16>
    %cst_18 = arith.constant dense<0.000000e+00> : vector<16x320xf32>
    %25 = tpu.matmul %24, %0, %cst_18 {dimension_numbers = #tpu.dot_dimension_numbers<[1], [0], [0], [1], [0, 0, 1, 1], [], []>} : vector<16x1600xbf16>, vector<1600x320xbf16>, vector<16x320xf32> -> vector<16x320xf32>
    %26 = arith.maximumf %23, %25 : vector<16x320xf32>
    %c0_19 = arith.constant 0 : index
    %c0_20 = arith.constant 0 : index
    %27 = vector.load %arg3[%c0_19, %c0_20] : memref<1x320xf32, #tpu.memory_space<vmem>>, vector<1x320xf32>
    %28 = vector.broadcast %27 : vector<1x320xf32> to vector<16x320xf32>
    %29 = arith.addf %26, %28 : vector<16x320xf32>
    %c0_21 = arith.constant 0 : index
    %c0_22 = arith.constant 0 : index
    %30 = vector.load %arg4[%c0_21, %c0_22] : memref<320x128xf32, #tpu.memory_space<vmem>>, vector<320x128xf32>
    %cst_23 = arith.constant dense<0.000000e+00> : vector<16x128xf32>
    %31 = tpu.matmul %29, %30, %cst_23 {dimension_numbers = #tpu.dot_dimension_numbers<[1], [0], [0], [1], [0, 0, 1, 1], [], []>} : vector<16x320xf32>, vector<320x128xf32>, vector<16x128xf32> -> vector<16x128xf32>
    %c0_24 = arith.constant 0 : index
    %c0_25 = arith.constant 0 : index
    %32 = vector.load %arg5[%c0_24, %c0_25] : memref<1x128xf32, #tpu.memory_space<vmem>>, vector<1x128xf32>
    %33 = vector.broadcast %32 : vector<1x128xf32> to vector<16x128xf32>
    %34 = arith.addf %31, %33 : vector<16x128xf32>
    %cst_26 = arith.constant dense<0xFF800000> : vector<16xf32>
    %35 = vector.multi_reduction <maximumf>, %34, %cst_26 [1] : vector<16x128xf32> to vector<16xf32>
    %36 = vector.shape_cast %35 : vector<16xf32> to vector<16x1xf32>
    %37 = vector.broadcast %36 : vector<16x1xf32> to vector<16x128xf32>
    %38 = arith.subf %34, %37 : vector<16x128xf32>
    %39 = math.exp %38 : vector<16x128xf32>
    %cst_27 = arith.constant dense<0.000000e+00> : vector<16xf32>
    %40 = vector.multi_reduction <add>, %39, %cst_27 [1] : vector<16x128xf32> to vector<16xf32>
    %41 = vector.shape_cast %40 : vector<16xf32> to vector<16x1xf32>
    %42 = math.log %41 : vector<16x1xf32>
    %43 = vector.broadcast %42 : vector<16x1xf32> to vector<16x128xf32>
    %44 = arith.subf %38, %43 : vector<16x128xf32>
    %c0_28 = arith.constant 0 : index
    %c0_29 = arith.constant 0 : index
    %45 = vector.load %arg6[%c0_28, %c0_29] : memref<16x128xf32, #tpu.memory_space<vmem>>, vector<16x128xf32>
    tpu.vector_store %arg6[%c0_28, %c0_29], %44 {strides = array<i32>} : memref<16x128xf32, #tpu.memory_space<vmem>>, vector<16x128xf32>,
    return
  }
  func.func @transform_0(%arg0: i32) -> (i32, i32) {
    %c0_i32 = arith.constant 0 : i32
    %c0_i32_0 = arith.constant 0 : i32
    return %arg0, %c0_i32 : i32, i32
  }
  func.func @transform_1(%arg0: i32) -> (i32, i32) {
    %c0_i32 = arith.constant 0 : i32
    %c0_i32_0 = arith.constant 0 : i32
    %c0_i32_1 = arith.constant 0 : i32
    return %c0_i32, %c0_i32_0 : i32, i32
  }
  func.func @transform_2(%arg0: i32) -> (i32, i32) {
    %c0_i32 = arith.constant 0 : i32
    %c0_i32_0 = arith.constant 0 : i32
    %c0_i32_1 = arith.constant 0 : i32
    return %c0_i32, %c0_i32_0 : i32, i32
  }
  func.func @transform_3(%arg0: i32) -> (i32, i32) {
    %c0_i32 = arith.constant 0 : i32
    %c0_i32_0 = arith.constant 0 : i32
    %c0_i32_1 = arith.constant 0 : i32
    return %c0_i32, %c0_i32_0 : i32, i32
  }
  func.func @transform_4(%arg0: i32) -> (i32, i32) {
    %c0_i32 = arith.constant 0 : i32
    %c0_i32_0 = arith.constant 0 : i32
    %c0_i32_1 = arith.constant 0 : i32
    return %c0_i32, %c0_i32_0 : i32, i32
  }
  func.func @transform_5(%arg0: i32) -> (i32, i32) {
    %c0_i32 = arith.constant 0 : i32
    %c0_i32_0 = arith.constant 0 : i32
    return %arg0, %c0_i32 : i32, i32
  }
}

</mosaic_0001>

<llo_original>
// kernel: mnist_forward.1
$region0: #{mnist_forward.1}
  #allocation0 [shape = 'u32[]', space=smem, size = 0x4, offset = 0x4, fixed_abs, tag = 'smem constant byte address 0x4 - core index']
  #allocation1 [shape = 'u32[144,128]{1,0:T(1,128)}', space=vmem, size = 0x12000, scoped, tag = 'internal scratch']
  %s0 = inlined_call_operand.vmem [shape: bf16[288,1600], index: 0, kind: input, shape index: {}]
  %s1 = inlined_call_operand.vmem [shape: bf16[1600,320], index: 1, kind: input, shape index: {}]
  %s2 = inlined_call_operand.vmem [shape: f32[1,320], index: 2, kind: input, shape index: {}]
  %s3 = inlined_call_operand.vmem [shape: f32[320,128], index: 3, kind: input, shape index: {}]
  %s4 = inlined_call_operand.vmem [shape: f32[1,128], index: 4, kind: input, shape index: {}]
  %s5 = inlined_call_operand.vmem [shape: f32[32,128], index: 5, kind: output, shape index: {}]
  %s6 = sld [smem:[#allocation0]]
  $region53: #{mnist_forward.1} parent=0
    _
  %s8 = ssub.s32 1, %s6
  %s9 = scalar_select 0, %s8, %s6
  loop: start=0, step=1, limit=4
  $region2: #{mnist_forward.1} parent=0 // loop_pre_header
    _
  $region3: #{mnist_forward.1} parent=0 // loop_header
    %s11 = sphi 0, %s15
    %p12 = scmp.ge.s32.totalorder %s11, 4
    %s21 = sphi 0, %s23
    %s24 = sphi 0, %s21
    %s25 = sphi 0, %s24
    %s41 = sphi 0, %s25
    %s45 = sphi 0, %s45
    %s47 = sphi 0, %s45
    %s48 = sphi 0, %s47
    %s62 = sphi 0, %s48
    %s66 = sphi 0, %s66
    %s68 = sphi 0, %s66
    %s69 = sphi 0, %s68
    %s83 = sphi 0, %s69
    %s87 = sphi 0, %s87
    %s89 = sphi 0, %s87
    %s90 = sphi 0, %s89
    %s104 = sphi 0, %s90
    %s108 = sphi 0, %s108
    %s110 = sphi 0, %s108
    %s111 = sphi 0, %s110
    %s125 = sphi 0, %s111
    %s131 = sphi 0, %s133
    %s134 = sphi 0, %s131
    %s135 = sphi 0, %s134
    %s151 = sphi 0, %s135
  $region4: #{mnist_forward.1} parent=0 // loop_header_branch
    %14 = sbr.rel (%p12) target = $region8
  $region5: #{mnist_forward.1} parent=0 // loop_body
    %s16 = ssub.s32 %s11, 1
    %s17 = ssub.s32 %s11, 2
    %s18 = sadd.s32 %s11, 1
    %s19 = ssub.s32 %s11, %s18
    %p20 = scmp.eq.s32.totalorder %s19, 0
    %s22 = sadd.s32 %s21, 1
    %s23 = scalar_select %p20, %s21, %s22
    %p26 = pneg %p20
    %p27 = scmp.eq.s32.totalorder %s11, 1
    %p28 = por %p26, %p27
    %p29 = scmp.ne.s32.totalorder %s21, %s24
    %p30 = scmp.eq.s32.totalorder %s11, 0
    %p31 = por %p29, %p30
    %p32 = scmp.ne.s32.totalorder %s21, %s24
    %p33 = scmp.eq.s32.totalorder %s16, 1
    %p34 = por %p32, %p33
    %p35 = scmp.ne.s32.totalorder %s24, %s25
    %p36 = scmp.eq.s32.totalorder %s16, 0
    %p37 = por %p35, %p36
    %p38 = scmp.ne.s32.totalorder %s24, %s25
    %p39 = scmp.eq.s32.totalorder %s17, 1
    %p40 = por %p38, %p39
    %p42 = scmp.ne.s32.totalorder %s25, %s41
    %p43 = scmp.eq.s32.totalorder %s17, 0
    %p44 = por %p42, %p43
    %s46 = sadd.s32 %s45, 1
    %p49 = scmp.eq.s32.totalorder %s11, 1
    %p50 = scmp.ne.s32.totalorder %s45, %s47
    %p51 = scmp.eq.s32.totalorder %s11, 0
    %p52 = por %p50, %p51
    %p53 = scmp.ne.s32.totalorder %s45, %s47
    %p54 = scmp.eq.s32.totalorder %s16, 1
    %p55 = por %p53, %p54
    %p56 = scmp.ne.s32.totalorder %s47, %s48
    %p57 = scmp.eq.s32.totalorder %s16, 0
    %p58 = por %p56, %p57
    %p59 = scmp.ne.s32.totalorder %s47, %s48
    %p60 = scmp.eq.s32.totalorder %s17, 1
    %p61 = por %p59, %p60
    %p63 = scmp.ne.s32.totalorder %s48, %s62
    %p64 = scmp.eq.s32.totalorder %s17, 0
    %p65 = por %p63, %p64
    %s67 = sadd.s32 %s66, 1
    %p70 = scmp.eq.s32.totalorder %s11, 1
    %p71 = scmp.ne.s32.totalorder %s66, %s68
    %p72 = scmp.eq.s32.totalorder %s11, 0
    %p73 = por %p71, %p72
    %p74 = scmp.ne.s32.totalorder %s66, %s68
    %p75 = scmp.eq.s32.totalorder %s16, 1
    %p76 = por %p74, %p75
    %p77 = scmp.ne.s32.totalorder %s68, %s69
    %p78 = scmp.eq.s32.totalorder %s16, 0
    %p79 = por %p77, %p78
    %p80 = scmp.ne.s32.totalorder %s68, %s69
    %p81 = scmp.eq.s32.totalorder %s17, 1
    %p82 = por %p80, %p81
    %p84 = scmp.ne.s32.totalorder %s69, %s83
    %p85 = scmp.eq.s32.totalorder %s17, 0
    %p86 = por %p84, %p85
    %s88 = sadd.s32 %s87, 1
    %p91 = scmp.eq.s32.totalorder %s11, 1
    %p92 = scmp.ne.s32.totalorder %s87, %s89
    %p93 = scmp.eq.s32.totalorder %s11, 0
    %p94 = por %p92, %p93
    %p95 = scmp.ne.s32.totalorder %s87, %s89
    %p96 = scmp.eq.s32.totalorder %s16, 1
    %p97 = por %p95, %p96
    %p98 = scmp.ne.s32.totalorder %s89, %s90
    %p99 = scmp.eq.s32.totalorder %s16, 0
    %p100 = por %p98, %p99
    %p101 = scmp.ne.s32.totalorder %s89, %s90
    %p102 = scmp.eq.s32.totalorder %s17, 1
    %p103 = por %p101, %p102
    %p105 = scmp.ne.s32.totalorder %s90, %s104
    %p106 = scmp.eq.s32.totalorder %s17, 0
    %p107 = por %p105, %p106
    %s109 = sadd.s32 %s108, 1
    %p112 = scmp.eq.s32.totalorder %s11, 1
    %p113 = scmp.ne.s32.totalorder %s108, %s110
    %p114 = scmp.eq.s32.totalorder %s11, 0
    %p115 = por %p113, %p114
    %p116 = scmp.ne.s32.totalorder %s108, %s110
    %p117 = scmp.eq.s32.totalorder %s16, 1
    %p118 = por %p116, %p117
    %p119 = scmp.ne.s32.totalorder %s110, %s111
    %p120 = scmp.eq.s32.totalorder %s16, 0
    %p121 = por %p119, %p120
    %p122 = scmp.ne.s32.totalorder %s110, %s111
    %p123 = scmp.eq.s32.totalorder %s17, 1
    %p124 = por %p122, %p123
    %p126 = scmp.ne.s32.totalorder %s111, %s125
    %p127 = scmp.eq.s32.totalorder %s17, 0
    %p128 = por %p126, %p127
    %s129 = ssub.s32 %s11, %s18
    %p130 = scmp.eq.s32.totalorder %s129, 0
    %s132 = sadd.s32 %s131, 1
    %s133 = scalar_select %p130, %s131, %s132
    %p136 = pneg %p130
    %p137 = scmp.eq.s32.totalorder %s11, 1
    %p138 = por %p136, %p137
    %p139 = scmp.ne.s32.totalorder %s131, %s134
    %p140 = scmp.eq.s32.totalorder %s11, 0
    %p141 = por %p139, %p140
    %p142 = scmp.ne.s32.totalorder %s131, %s134
    %p143 = scmp.eq.s32.totalorder %s16, 1
    %p144 = por %p142, %p143
    %p145 = scmp.ne.s32.totalorder %s134, %s135
    %p146 = scmp.eq.s32.totalorder %s16, 0
    %p147 = por %p145, %p146
    %p148 = scmp.ne.s32.totalorder %s134, %s135
    %p149 = scmp.eq.s32.totalorder %s17, 1
    %p150 = por %p148, %p149
    %p152 = scmp.ne.s32.totalorder %s135, %s151
    %p153 = scmp.eq.s32.totalorder %s17, 0
    %p154 = por %p152, %p153
    %p155 = scmp.le.s32.totalorder 1, %s11
    %p156 = scmp.lt.s32.totalorder %s11, 3
    %p157 = pnand %p155, %p156
    %p158 = pneg %p157
    // Predicated region
    $region9: #{mnist_forward.1} parent=5 // pred_check
      _
    $region10: #{mnist_forward.1} parent=5 // pred_check_branch
      %160 = sbr.rel (%p157) target = $region12
    $region11: #{mnist_forward.1} parent=5 // pred_region
      %s161 = ssub.s32 %s11, 1
      // Predicated region
      $region13: #{mnist_forward.1} parent=11 // pred_check
        %p162 = pneg %p58
      $region14: #{mnist_forward.1} parent=11 // pred_check_branch
        %164 = sbr.rel (%p162) target = $region16
      $region15: #{mnist_forward.1} parent=11 // pred_region
        _
      $region16: #{mnist_forward.1} parent=11 // pred_fallthru
        _
      // Predicated region
      $region17: #{mnist_forward.1} parent=11 // pred_check
        %p165 = pneg %p79
      $region18: #{mnist_forward.1} parent=11 // pred_check_branch
        %167 = sbr.rel (%p165) target = $region20
      $region19: #{mnist_forward.1} parent=11 // pred_region
        _
      $region20: #{mnist_forward.1} parent=11 // pred_fallthru
        _
      // Predicated region
      $region21: #{mnist_forward.1} parent=11 // pred_check
        %p168 = pneg %p100
      $region22: #{mnist_forward.1} parent=11 // pred_check_branch
        %170 = sbr.rel (%p168) target = $region24
      $region23: #{mnist_forward.1} parent=11 // pred_region
        _
      $region24: #{mnist_forward.1} parent=11 // pred_fallthru
        _
      // Predicated region
      $region25: #{mnist_forward.1} parent=11 // pred_check
        %p171 = pneg %p121
      $region26: #{mnist_forward.1} parent=11 // pred_check_branch
        %173 = sbr.rel (%p171) target = $region28
      $region27: #{mnist_forward.1} parent=11 // pred_region
        _
      $region28: #{mnist_forward.1} parent=11 // pred_fallthru
        _
    $region12: #{mnist_forward.1} parent=5 // pred_fallthru
      _
    %p174 = scmp.lt.s32.totalorder %s11, 2
    // Predicated region
    $region29: #{mnist_forward.1} parent=5 // pred_check
      %p175 = pneg %p174
    $region30: #{mnist_forward.1} parent=5 // pred_check_branch
      %177 = sbr.rel (%p175) target = $region32
    $region31: #{mnist_forward.1} parent=5 // pred_region
      // Predicated region
      $region33: #{mnist_forward.1} parent=31 // pred_check
        %p178 = pneg %p31
      $region34: #{mnist_forward.1} parent=31 // pred_check_branch
        %180 = sbr.rel (%p178) target = $region36
      $region35: #{mnist_forward.1} parent=31 // pred_region
        %s181 = smul.u32 18, %s11
        %p182 = scmp.lt.s32.totalorder %s181, 35
        %s183 = scalar_select %p182, %s181, 35
        %s184 = smul.addr %s183, 13
        %s185 = smul.addr %s184, 4
        %s186 = scalar_lea.vmem %s0, %s185
        %s187 = smul.u32 18, %s11
      $region36: #{mnist_forward.1} parent=31 // pred_fallthru
        _
    $region32: #{mnist_forward.1} parent=5 // pred_fallthru
      _
    %p188 = scmp.le.s32.totalorder 1, %s11
    %p189 = scmp.lt.s32.totalorder %s11, 3
    %p190 = pnand %p188, %p189
    %p191 = pneg %p190
    // Predicated region
    $region37: #{mnist_forward.1} parent=5 // pred_check
      _
    $region38: #{mnist_forward.1} parent=5 // pred_check_branch
      %193 = sbr.rel (%p190) target = $region40
    $region39: #{mnist_forward.1} parent=5 // pred_region
      %s194 = ssub.s32 %s11, 1
      %s195 = smul.u32 18, %s16
      %p196 = scmp.lt.s32.totalorder %s195, 35
      %s197 = scalar_select %p196, %s195, 35
      %s198 = smul.addr %s197, 13
      %s199 = smul.addr %s198, 4
      %s200 = scalar_lea.vmem %s0, %s199
      %p201 = pneg %p37
      %p202 = pneg %p34
      %p203 = pneg %p58
      %p204 = pneg %p55
      %p205 = pneg %p79
      %p206 = pneg %p76
      %p207 = pneg %p100
      %p208 = pneg %p97
      %p209 = pneg %p121
      %p210 = pneg %p118
      %p211 = pneg %p147
      %p212 = pneg %p144
      %s213 = smul.u32 2, %s16
      %p214 = scmp.lt.s32.totalorder %s213, 3
      %s215 = scalar_select %p214, %s213, 3
      %s216 = smul.addr %s215, 8
      %s217 = scalar_lea.vmem %s5, %s216
      %s218 = smul.u32 18, %s16
      %p219 = scmp.lt.s32.totalorder %s218, 35
      %s220 = scalar_select %p219, %s218, 35
      %s221 = smul.addr %s220, 13
      %s222 = smul.addr %s221, 4
      %s223 = scalar_lea.vmem %s0, %s222
      %s224 = smul.u32 18, %s16
      %s225 = smul.u32 2, %s16
      %p226 = scmp.lt.s32.totalorder %s225, 3
      %s227 = scalar_select %p226, %s225, 3
      %s228 = smul.addr %s227, 8
      %s229 = scalar_lea.vmem %s5, %s228
      %s230 = smul.u32 2, %s16
      %v232 = vld [vmem:[%s1] sm:$0xff]
      %v233 = vld [vmem:[%s1 + $0x8] sm:$0xf]
      %v234 = vld [vmem:[%s1 + $0xc] sm:$0xff]
      %v235 = vld [vmem:[%s1 + $0x14] sm:$0xf]
      %v236 = vld [vmem:[%s1 + $0x18] sm:$0xff]
      %v237 = vld [vmem:[%s1 + $0x20] sm:$0xf]
      %v238 = vld [vmem:[%s1 + $0x24] sm:$0xff]
      %v239 = vld [vmem:[%s1 + $0x2c] sm:$0xf]
      %v240 = vld [vmem:[%s1 + $0x30] sm:$0xff]
      %v241 = vld [vmem:[%s1 + $0x38] sm:$0xf]
      %v242 = vld [vmem:[%s1 + $0x3c] sm:$0xff]
      %v243 = vld [vmem:[%s1 + $0x44] sm:$0xf]
      %v244 = vld [vmem:[%s1 + $0x48] sm:$0xff]
      %v245 = vld [vmem:[%s1 + $0x50] sm:$0xf]
      %v246 = vld [vmem:[%s1 + $0x54] sm:$0xff]
      %v247 = vld [vmem:[%s1 + $0x5c] sm:$0xf]
      %v248 = vld [vmem:[%s1 + $0x60] sm:$0xff]
      %v249 = vld [vmem:[%s1 + $0x68] sm:$0xf]
      %v250 = vld [vmem:[%s1 + $0x6c] sm:$0xff]
      %v251 = vld [vmem:[%s1 + $0x74] sm:$0xf]
      %v252 = vld [vmem:[%s1 + $0x78] sm:$0xff]
      %v253 = vld [vmem:[%s1 + $0x80] sm:$0xf]
      %v254 = vld [vmem:[%s1 + $0x84] sm:$0xff]
      %v255 = vld [vmem:[%s1 + $0x8c] sm:$0xf]
      %v256 = vld [vmem:[%s1 + $0x90] sm:$0xff]
      %v257 = vld [vmem:[%s1 + $0x98] sm:$0xf]
      %v258 = vld [vmem:[%s1 + $0x9c] sm:$0xff]
      %v259 = vld [vmem:[%s1 + $0xa4] sm:$0xf]
      %v260 = vld [vmem:[%s1 + $0xa8] sm:$0xff]
      %v261 = vld [vmem:[%s1 + $0xb0] sm:$0xf]
      %v262 = vld [vmem:[%s1 + $0xb4] sm:$0xff]
      %v263 = vld [vmem:[%s1 + $0xbc] sm:$0xf]
      %v264 = vld [vmem:[%s1 + $0xc0] sm:$0xff]
      %v265 = vld [vmem:[%s1 + $0xc8] sm:$0xf]
      %v266 = vld [vmem:[%s1 + $0xcc] sm:$0xff]
      %v267 = vld [vmem:[%s1 + $0xd4] sm:$0xf]
      %v268 = vld [vmem:[%s1 + $0xd8] sm:$0xff]
      %v269 = vld [vmem:[%s1 + $0xe0] sm:$0xf]
      %v270 = vld [vmem:[%s1 + $0xe4] sm:$0xff]
      %v271 = vld [vmem:[%s1 + $0xec] sm:$0xf]
      %v272 = vld [vmem:[%s1 + $0xf0] sm:$0xff]
      %v273 = vld [vmem:[%s1 + $0xf8] sm:$0xf]
      %v274 = vld [vmem:[%s1 + $0xfc] sm:$0xff]
      %v275 = vld [vmem:[%s1 + $0x104] sm:$0xf]
      %v276 = vld [vmem:[%s1 + $0x108] sm:$0xff]
      %v277 = vld [vmem:[%s1 + $0x110] sm:$0xf]
      %v278 = vld [vmem:[%s1 + $0x114] sm:$0xff]
      %v279 = vld [vmem:[%s1 + $0x11c] sm:$0xf]
      %v280 = vld [vmem:[%s1 + $0x120] sm:$0xff]
      %v281 = vld [vmem:[%s1 + $0x128] sm:$0xf]
      %v282 = vld [vmem:[%s1 + $0x12c] sm:$0xff]
      %v283 = vld [vmem:[%s1 + $0x134] sm:$0xf]
      %v284 = vld [vmem:[%s1 + $0x138] sm:$0xff]
      %v285 = vld [vmem:[%s1 + $0x140] sm:$0xf]
      %v286 = vld [vmem:[%s1 + $0x144] sm:$0xff]
      %v287 = vld [vmem:[%s1 + $0x14c] sm:$0xf]
      %v288 = vld [vmem:[%s1 + $0x150] sm:$0xff]
      %v289 = vld [vmem:[%s1 + $0x158] sm:$0xf]
      %v290 = vld [vmem:[%s1 + $0x15c] sm:$0xff]
      %v291 = vld [vmem:[%s1 + $0x164] sm:$0xf]
      %v292 = vld [vmem:[%s1 + $0x168] sm:$0xff]
      %v293 = vld [vmem:[%s1 + $0x170] sm:$0xf]
      %v294 = vld [vmem:[%s1 + $0x174] sm:$0xff]
      %v295 = vld [vmem:[%s1 + $0x17c] sm:$0xf]
      %v296 = vld [vmem:[%s1 + $0x180] sm:$0xff]
      %v297 = vld [vmem:[%s1 + $0x188] sm:$0xf]
      %v298 = vld [vmem:[%s1 + $0x18c] sm:$0xff]
      %v299 = vld [vmem:[%s1 + $0x194] sm:$0xf]
      %v300 = vld [vmem:[%s1 + $0x198] sm:$0xff]
      %v301 = vld [vmem:[%s1 + $0x1a0] sm:$0xf]
      %v302 = vld [vmem:[%s1 + $0x1a4] sm:$0xff]
      %v303 = vld [vmem:[%s1 + $0x1ac] sm:$0xf]
      %v304 = vld [vmem:[%s1 + $0x1b0] sm:$0xff]
      %v305 = vld [vmem:[%s1 + $0x1b8] sm:$0xf]
      %v306 = vld [vmem:[%s1 + $0x1bc] sm:$0xff]
      %v307 = vld [vmem:[%s1 + $0x1c4] sm:$0xf]
      %v308 = vld [vmem:[%s1 + $0x1c8] sm:$0xff]
      %v309 = vld [vmem:[%s1 + $0x1d0] sm:$0xf]
      %v310 = vld [vmem:[%s1 + $0x1d4] sm:$0xff]
      %v311 = vld [vmem:[%s1 + $0x1dc] sm:$0xf]
      %v312 = vld [vmem:[%s1 + $0x1e0] sm:$0xff]
      %v313 = vld [vmem:[%s1 + $0x1e8] sm:$0xf]
      %v314 = vld [vmem:[%s1 + $0x1ec] sm:$0xff]
      %v315 = vld [vmem:[%s1 + $0x1f4] sm:$0xf]
      %v316 = vld [vmem:[%s1 + $0x1f8] sm:$0xff]
      %v317 = vld [vmem:[%s1 + $0x200] sm:$0xf]
      %v318 = vld [vmem:[%s1 + $0x204] sm:$0xff]
      %v319 = vld [vmem:[%s1 + $0x20c] sm:$0xf]
      %v320 = vld [vmem:[%s1 + $0x210] sm:$0xff]
      %v321 = vld [vmem:[%s1 + $0x218] sm:$0xf]
      %v322 = vld [vmem:[%s1 + $0x21c] sm:$0xff]
      %v323 = vld [vmem:[%s1 + $0x224] sm:$0xf]
      %v324 = vld [vmem:[%s1 + $0x228] sm:$0xff]
      %v325 = vld [vmem:[%s1 + $0x230] sm:$0xf]
      %v326 = vld [vmem:[%s1 + $0x234] sm:$0xff]
      %v327 = vld [vmem:[%s1 + $0x23c] sm:$0xf]
      %v328 = vld [vmem:[%s1 + $0x240] sm:$0xff]
      %v329 = vld [vmem:[%s1 + $0x248] sm:$0xf]
      %v330 = vld [vmem:[%s1 + $0x24c] sm:$0xff]
      %v331 = vld [vmem:[%s1 + $0x254] sm:$0xf]
      %v332 = vld [vmem:[%s1 + $0x258] sm:$0xff]
      %v333 = vld [vmem:[%s1 + $0x260] sm:$0xf]
      %v334 = vld [vmem:[%s1 + $0x264] sm:$0xff]
      %v335 = vld [vmem:[%s1 + $0x26c] sm:$0xf]
      %v336 = vld [vmem:[%s1 + $0x270] sm:$0xff]
      %v337 = vld [vmem:[%s1 + $0x278] sm:$0xf]
      %v338 = vld [vmem:[%s1 + $0x27c] sm:$0xff]
      %v339 = vld [vmem:[%s1 + $0x284] sm:$0xf]
      %v340 = vld [vmem:[%s1 + $0x288] sm:$0xff]
      %v341 = vld [vmem:[%s1 + $0x290] sm:$0xf]
      %v342 = vld [vmem:[%s1 + $0x294] sm:$0xff]
      %v343 = vld [vmem:[%s1 + $0x29c] sm:$0xf]
      %v344 = vld [vmem:[%s1 + $0x2a0] sm:$0xff]
      %v345 = vld [vmem:[%s1 + $0x2a8] sm:$0xf]
      %v346 = vld [vmem:[%s1 + $0x2ac] sm:$0xff]
      %v347 = vld [vmem:[%s1 + $0x2b4] sm:$0xf]
      %v348 = vld [vmem:[%s1 + $0x2b8] sm:$0xff]
      %v349 = vld [vmem:[%s1 + $0x2c0] sm:$0xf]
      %v350 = vld [vmem:[%s1 + $0x2c4] sm:$0xff]
      %v351 = vld [vmem:[%s1 + $0x2cc] sm:$0xf]
      %v352 = vld [vmem:[%s1 + $0x2d0] sm:$0xff]
      %v353 = vld [vmem:[%s1 + $0x2d8] sm:$0xf]
      %v354 = vld [vmem:[%s1 + $0x2dc] sm:$0xff]
      %v355 = vld [vmem:[%s1 + $0x2e4] sm:$0xf]
      %v356 = vld [vmem:[%s1 + $0x2e8] sm:$0xff]
      %v357 = vld [vmem:[%s1 + $0x2f0] sm:$0xf]
      %v358 = vld [vmem:[%s1 + $0x2f4] sm:$0xff]
      %v359 = vld [vmem:[%s1 + $0x2fc] sm:$0xf]
      %v360 = vld [vmem:[%s1 + $0x300] sm:$0xff]
      %v361 = vld [vmem:[%s1 + $0x308] sm:$0xf]
      %v362 = vld [vmem:[%s1 + $0x30c] sm:$0xff]
      %v363 = vld [vmem:[%s1 + $0x314] sm:$0xf]
      %v364 = vld [vmem:[%s1 + $0x318] sm:$0xff]
      %v365 = vld [vmem:[%s1 + $0x320] sm:$0xf]
      %v366 = vld [vmem:[%s1 + $0x324] sm:$0xff]
      %v367 = vld [vmem:[%s1 + $0x32c] sm:$0xf]
      %v368 = vld [vmem:[%s1 + $0x330] sm:$0xff]
      %v369 = vld [vmem:[%s1 + $0x338] sm:$0xf]
      %v370 = vld [vmem:[%s1 + $0x33c] sm:$0xff]
      %v371 = vld [vmem:[%s1 + $0x344] sm:$0xf]
      %v372 = vld [vmem:[%s1 + $0x348] sm:$0xff]
      %v373 = vld [vmem:[%s1 + $0x350] sm:$0xf]
      %v374 = vld [vmem:[%s1 + $0x354] sm:$0xff]
      %v375 = vld [vmem:[%s1 + $0x35c] sm:$0xf]
      %v376 = vld [vmem:[%s1 + $0x360] sm:$0xff]
      %v377 = vld [vmem:[%s1 + $0x368] sm:$0xf]
      %v378 = vld [vmem:[%s1 + $0x36c] sm:$0xff]
      %v379 = vld [vmem:[%s1 + $0x374] sm:$0xf]
      %v380 = vld [vmem:[%s1 + $0x378] sm:$0xff]
      %v381 = vld [vmem:[%s1 + $0x380] sm:$0xf]
      %v382 = vld [vmem:[%s1 + $0x384] sm:$0xff]
      %v383 = vld [vmem:[%s1 + $0x38c] sm:$0xf]
      %v384 = vld [vmem:[%s1 + $0x390] sm:$0xff]
      %v385 = vld [vmem:[%s1 + $0x398] sm:$0xf]
      %v386 = vld [vmem:[%s1 + $0x39c] sm:$0xff]
      %v387 = vld [vmem:[%s1 + $0x3a4] sm:$0xf]
      %v388 = vld [vmem:[%s1 + $0x3a8] sm:$0xff]
      %v389 = vld [vmem:[%s1 + $0x3b0] sm:$0xf]
      %v390 = vld [vmem:[%s1 + $0x3b4] sm:$0xff]
      %v391 = vld [vmem:[%s1 + $0x3bc] sm:$0xf]
      %v392 = vld [vmem:[%s1 + $0x3c0] sm:$0xff]
      %v393 = vld [vmem:[%s1 + $0x3c8] sm:$0xf]
      %v394 = vld [vmem:[%s1 + $0x3cc] sm:$0xff]
      %v395 = vld [vmem:[%s1 + $0x3d4] sm:$0xf]
      %v396 = vld [vmem:[%s1 + $0x3d8] sm:$0xff]
      %v397 = vld [vmem:[%s1 + $0x3e0] sm:$0xf]
      %v398 = vld [vmem:[%s1 + $0x3e4] sm:$0xff]
      %v399 = vld [vmem:[%s1 + $0x3ec] sm:$0xf]
      %v400 = vld [vmem:[%s1 + $0x3f0] sm:$0xff]
      %v401 = vld [vmem:[%s1 + $0x3f8] sm:$0xf]
      %v402 = vld [vmem:[%s1 + $0x3fc] sm:$0xff]
      %v403 = vld [vmem:[%s1 + $0x404] sm:$0xf]
      %v404 = vld [vmem:[%s1 + $0x408] sm:$0xff]
      %v405 = vld [vmem:[%s1 + $0x410] sm:$0xf]
      %v406 = vld [vmem:[%s1 + $0x414] sm:$0xff]
      %v407 = vld [vmem:[%s1 + $0x41c] sm:$0xf]
      %v408 = vld [vmem:[%s1 + $0x420] sm:$0xff]
      %v409 = vld [vmem:[%s1 + $0x428] sm:$0xf]
      %v410 = vld [vmem:[%s1 + $0x42c] sm:$0xff]
      %v411 = vld [vmem:[%s1 + $0x434] sm:$0xf]
      %v412 = vld [vmem:[%s1 + $0x438] sm:$0xff]
      %v413 = vld [vmem:[%s1 + $0x440] sm:$0xf]
      %v414 = vld [vmem:[%s1 + $0x444] sm:$0xff]
      %v415 = vld [vmem:[%s1 + $0x44c] sm:$0xf]
      %v416 = vld [vmem:[%s1 + $0x450] sm:$0xff]
      %v417 = vld [vmem:[%s1 + $0x458] sm:$0xf]
      %v418 = vld [vmem:[%s1 + $0x45c] sm:$0xff]
      %v419 = vld [vmem:[%s1 + $0x464] sm:$0xf]
      %v420 = vld [vmem:[%s1 + $0x468] sm:$0xff]
      %v421 = vld [vmem:[%s1 + $0x470] sm:$0xf]
      %v422 = vld [vmem:[%s1 + $0x474] sm:$0xff]
      %v423 = vld [vmem:[%s1 + $0x47c] sm:$0xf]
      %v424 = vld [vmem:[%s1 + $0x480] sm:$0xff]
      %v425 = vld [vmem:[%s1 + $0x488] sm:$0xf]
      %v426 = vld [vmem:[%s1 + $0x48c] sm:$0xff]
      %v427 = vld [vmem:[%s1 + $0x494] sm:$0xf]
      %v428 = vld [vmem:[%s1 + $0x498] sm:$0xff]
      %v429 = vld [vmem:[%s1 + $0x4a0] sm:$0xf]
      %v430 = vld [vmem:[%s1 + $0x4a4] sm:$0xff]
      %v431 = vld [vmem:[%s1 + $0x4ac] sm:$0xf]
      %v432 = vld [vmem:[%s1 + $0x4b0] sm:$0xff]
      %v433 = vld [vmem:[%s1 + $0x4b8] sm:$0xf]
      %v434 = vld [vmem:[%s1 + $0x4bc] sm:$0xff]
      %v435 = vld [vmem:[%s1 + $0x4c4] sm:$0xf]
      %v436 = vld [vmem:[%s1 + $0x4c8] sm:$0xff]
      %v437 = vld [vmem:[%s1 + $0x4d0] sm:$0xf]
      %v438 = vld [vmem:[%s1 + $0x4d4] sm:$0xff]
      %v439 = vld [vmem:[%s1 + $0x4dc] sm:$0xf]
      %v440 = vld [vmem:[%s1 + $0x4e0] sm:$0xff]
      %v441 = vld [vmem:[%s1 + $0x4e8] sm:$0xf]
      %v442 = vld [vmem:[%s1 + $0x4ec] sm:$0xff]
      %v443 = vld [vmem:[%s1 + $0x4f4] sm:$0xf]
      %v444 = vld [vmem:[%s1 + $0x4f8] sm:$0xff]
      %v445 = vld [vmem:[%s1 + $0x500] sm:$0xf]
      %v446 = vld [vmem:[%s1 + $0x504] sm:$0xff]
      %v447 = vld [vmem:[%s1 + $0x50c] sm:$0xf]
      %v448 = vld [vmem:[%s1 + $0x510] sm:$0xff]
      %v449 = vld [vmem:[%s1 + $0x518] sm:$0xf]
      %v450 = vld [vmem:[%s1 + $0x51c] sm:$0xff]
      %v451 = vld [vmem:[%s1 + $0x524] sm:$0xf]
      %v452 = vld [vmem:[%s1 + $0x528] sm:$0xff]
      %v453 = vld [vmem:[%s1 + $0x530] sm:$0xf]
      %v454 = vld [vmem:[%s1 + $0x534] sm:$0xff]
      %v455 = vld [vmem:[%s1 + $0x53c] sm:$0xf]
      %v456 = vld [vmem:[%s1 + $0x540] sm:$0xff]
      %v457 = vld [vmem:[%s1 + $0x548] sm:$0xf]
      %v458 = vld [vmem:[%s1 + $0x54c] sm:$0xff]
      %v459 = vld [vmem:[%s1 + $0x554] sm:$0xf]
      %v460 = vld [vmem:[%s1 + $0x558] sm:$0xff]
      %v461 = vld [vmem:[%s1 + $0x560] sm:$0xf]
      %v462 = vld [vmem:[%s1 + $0x564] sm:$0xff]
      %v463 = vld [vmem:[%s1 + $0x56c] sm:$0xf]
      %v464 = vld [vmem:[%s1 + $0x570] sm:$0xff]
      %v465 = vld [vmem:[%s1 + $0x578] sm:$0xf]
      %v466 = vld [vmem:[%s1 + $0x57c] sm:$0xff]
      %v467 = vld [vmem:[%s1 + $0x584] sm:$0xf]
      %v468 = vld [vmem:[%s1 + $0x588] sm:$0xff]
      %v469 = vld [vmem:[%s1 + $0x590] sm:$0xf]
      %v470 = vld [vmem:[%s1 + $0x594] sm:$0xff]
      %v471 = vld [vmem:[%s1 + $0x59c] sm:$0xf]
      %v472 = vld [vmem:[%s1 + $0x5a0] sm:$0xff]
      %v473 = vld [vmem:[%s1 + $0x5a8] sm:$0xf]
      %v474 = vld [vmem:[%s1 + $0x5ac] sm:$0xff]
      %v475 = vld [vmem:[%s1 + $0x5b4] sm:$0xf]
      %v476 = vld [vmem:[%s1 + $0x5b8] sm:$0xff]
      %v477 = vld [vmem:[%s1 + $0x5c0] sm:$0xf]
      %v478 = vld [vmem:[%s1 + $0x5c4] sm:$0xff]
      %v479 = vld [vmem:[%s1 + $0x5cc] sm:$0xf]
      %v480 = vld [vmem:[%s1 + $0x5d0] sm:$0xff]
      %v481 = vld [vmem:[%s1 + $0x5d8] sm:$0xf]
      %v482 = vld [vmem:[%s1 + $0x5dc] sm:$0xff]
      %v483 = vld [vmem:[%s1 + $0x5e4] sm:$0xf]
      %v484 = vld [vmem:[%s1 + $0x5e8] sm:$0xff]
      %v485 = vld [vmem:[%s1 + $0x5f0] sm:$0xf]
      %v486 = vld [vmem:[%s1 + $0x5f4] sm:$0xff]
      %v487 = vld [vmem:[%s1 + $0x5fc] sm:$0xf]
      %v488 = vld [vmem:[%s1 + $0x600] sm:$0xff]
      %v489 = vld [vmem:[%s1 + $0x608] sm:$0xf]
      %v490 = vld [vmem:[%s1 + $0x60c] sm:$0xff]
      %v491 = vld [vmem:[%s1 + $0x614] sm:$0xf]
      %v492 = vld [vmem:[%s1 + $0x618] sm:$0xff]
      %v493 = vld [vmem:[%s1 + $0x620] sm:$0xf]
      %v494 = vld [vmem:[%s1 + $0x624] sm:$0xff]
      %v495 = vld [vmem:[%s1 + $0x62c] sm:$0xf]
      %v496 = vld [vmem:[%s1 + $0x630] sm:$0xff]
      %v497 = vld [vmem:[%s1 + $0x638] sm:$0xf]
      %v498 = vld [vmem:[%s1 + $0x63c] sm:$0xff]
      %v499 = vld [vmem:[%s1 + $0x644] sm:$0xf]
      %v500 = vld [vmem:[%s1 + $0x648] sm:$0xff]
      %v501 = vld [vmem:[%s1 + $0x650] sm:$0xf]
      %v502 = vld [vmem:[%s1 + $0x654] sm:$0xff]
      %v503 = vld [vmem:[%s1 + $0x65c] sm:$0xf]
      %v504 = vld [vmem:[%s1 + $0x660] sm:$0xff]
      %v505 = vld [vmem:[%s1 + $0x668] sm:$0xf]
      %v506 = vld [vmem:[%s1 + $0x66c] sm:$0xff]
      %v507 = vld [vmem:[%s1 + $0x674] sm:$0xf]
      %v508 = vld [vmem:[%s1 + $0x678] sm:$0xff]
      %v509 = vld [vmem:[%s1 + $0x680] sm:$0xf]
      %v510 = vld [vmem:[%s1 + $0x684] sm:$0xff]
      %v511 = vld [vmem:[%s1 + $0x68c] sm:$0xf]
      %v512 = vld [vmem:[%s1 + $0x690] sm:$0xff]
      %v513 = vld [vmem:[%s1 + $0x698] sm:$0xf]
      %v514 = vld [vmem:[%s1 + $0x69c] sm:$0xff]
      %v515 = vld [vmem:[%s1 + $0x6a4] sm:$0xf]
      %v516 = vld [vmem:[%s1 + $0x6a8] sm:$0xff]
      %v517 = vld [vmem:[%s1 + $0x6b0] sm:$0xf]
      %v518 = vld [vmem:[%s1 + $0x6b4] sm:$0xff]
      %v519 = vld [vmem:[%s1 + $0x6bc] sm:$0xf]
      %v520 = vld [vmem:[%s1 + $0x6c0] sm:$0xff]
      %v521 = vld [vmem:[%s1 + $0x6c8] sm:$0xf]
      %v522 = vld [vmem:[%s1 + $0x6cc] sm:$0xff]
      %v523 = vld [vmem:[%s1 + $0x6d4] sm:$0xf]
      %v524 = vld [vmem:[%s1 + $0x6d8] sm:$0xff]
      %v525 = vld [vmem:[%s1 + $0x6e0] sm:$0xf]
      %v526 = vld [vmem:[%s1 + $0x6e4] sm:$0xff]
      %v527 = vld [vmem:[%s1 + $0x6ec] sm:$0xf]
      %v528 = vld [vmem:[%s1 + $0x6f0] sm:$0xff]
      %v529 = vld [vmem:[%s1 + $0x6f8] sm:$0xf]
      %v530 = vld [vmem:[%s1 + $0x6fc] sm:$0xff]
      %v531 = vld [vmem:[%s1 + $0x704] sm:$0xf]
      %v532 = vld [vmem:[%s1 + $0x708] sm:$0xff]
      %v533 = vld [vmem:[%s1 + $0x710] sm:$0xf]
      %v534 = vld [vmem:[%s1 + $0x714] sm:$0xff]
      %v535 = vld [vmem:[%s1 + $0x71c] sm:$0xf]
      %v536 = vld [vmem:[%s1 + $0x720] sm:$0xff]
      %v537 = vld [vmem:[%s1 + $0x728] sm:$0xf]
      %v538 = vld [vmem:[%s1 + $0x72c] sm:$0xff]
      %v539 = vld [vmem:[%s1 + $0x734] sm:$0xf]
      %v540 = vld [vmem:[%s1 + $0x738] sm:$0xff]
      %v541 = vld [vmem:[%s1 + $0x740] sm:$0xf]
      %v542 = vld [vmem:[%s1 + $0x744] sm:$0xff]
      %v543 = vld [vmem:[%s1 + $0x74c] sm:$0xf]
      %v544 = vld [vmem:[%s1 + $0x750] sm:$0xff]
      %v545 = vld [vmem:[%s1 + $0x758] sm:$0xf]
      %v546 = vld [vmem:[%s1 + $0x75c] sm:$0xff]
      %v547 = vld [vmem:[%s1 + $0x764] sm:$0xf]
      %v548 = vld [vmem:[%s1 + $0x768] sm:$0xff]
      %v549 = vld [vmem:[%s1 + $0x770] sm:$0xf]
      %v550 = vld [vmem:[%s1 + $0x774] sm:$0xff]
      %v551 = vld [vmem:[%s1 + $0x77c] sm:$0xf]
      %v552 = vld [vmem:[%s1 + $0x780] sm:$0xff]
      %v553 = vld [vmem:[%s1 + $0x788] sm:$0xf]
      %v554 = vld [vmem:[%s1 + $0x78c] sm:$0xff]
      %v555 = vld [vmem:[%s1 + $0x794] sm:$0xf]
      %v556 = vld [vmem:[%s1 + $0x798] sm:$0xff]
      %v557 = vld [vmem:[%s1 + $0x7a0] sm:$0xf]
      %v558 = vld [vmem:[%s1 + $0x7a4] sm:$0xff]
      %v559 = vld [vmem:[%s1 + $0x7ac] sm:$0xf]
      %v560 = vld [vmem:[%s1 + $0x7b0] sm:$0xff]
      %v561 = vld [vmem:[%s1 + $0x7b8] sm:$0xf]
      %v562 = vld [vmem:[%s1 + $0x7bc] sm:$0xff]
      %v563 = vld [vmem:[%s1 + $0x7c4] sm:$0xf]
      %v564 = vld [vmem:[%s1 + $0x7c8] sm:$0xff]
      %v565 = vld [vmem:[%s1 + $0x7d0] sm:$0xf]
      %v566 = vld [vmem:[%s1 + $0x7d4] sm:$0xff]
      %v567 = vld [vmem:[%s1 + $0x7dc] sm:$0xf]
      %v568 = vld [vmem:[%s1 + $0x7e0] sm:$0xff]
      %v569 = vld [vmem:[%s1 + $0x7e8] sm:$0xf]
      %v570 = vld [vmem:[%s1 + $0x7ec] sm:$0xff]
      %v571 = vld [vmem:[%s1 + $0x7f4] sm:$0xf]
      %v572 = vld [vmem:[%s1 + $0x7f8] sm:$0xff]
      %v573 = vld [vmem:[%s1 + $0x800] sm:$0xf]
      %v574 = vld [vmem:[%s1 + $0x804] sm:$0xff]
      %v575 = vld [vmem:[%s1 + $0x80c] sm:$0xf]
      %v576 = vld [vmem:[%s1 + $0x810] sm:$0xff]
      %v577 = vld [vmem:[%s1 + $0x818] sm:$0xf]
      %v578 = vld [vmem:[%s1 + $0x81c] sm:$0xff]
      %v579 = vld [vmem:[%s1 + $0x824] sm:$0xf]
      %v580 = vld [vmem:[%s1 + $0x828] sm:$0xff]
      %v581 = vld [vmem:[%s1 + $0x830] sm:$0xf]
      %v582 = vld [vmem:[%s1 + $0x834] sm:$0xff]
      %v583 = vld [vmem:[%s1 + $0x83c] sm:$0xf]
      %v584 = vld [vmem:[%s1 + $0x840] sm:$0xff]
      %v585 = vld [vmem:[%s1 + $0x848] sm:$0xf]
      %v586 = vld [vmem:[%s1 + $0x84c] sm:$0xff]
      %v587 = vld [vmem:[%s1 + $0x854] sm:$0xf]
      %v588 = vld [vmem:[%s1 + $0x858] sm:$0xff]
      %v589 = vld [vmem:[%s1 + $0x860] sm:$0xf]
      %v590 = vld [vmem:[%s1 + $0x864] sm:$0xff]
      %v591 = vld [vmem:[%s1 + $0x86c] sm:$0xf]
      %v592 = vld [vmem:[%s1 + $0x870] sm:$0xff]
      %v593 = vld [vmem:[%s1 + $0x878] sm:$0xf]
      %v594 = vld [vmem:[%s1 + $0x87c] sm:$0xff]
      %v595 = vld [vmem:[%s1 + $0x884] sm:$0xf]
      %v596 = vld [vmem:[%s1 + $0x888] sm:$0xff]
      %v597 = vld [vmem:[%s1 + $0x890] sm:$0xf]
      %v598 = vld [vmem:[%s1 + $0x894] sm:$0xff]
      %v599 = vld [vmem:[%s1 + $0x89c] sm:$0xf]
      %v600 = vld [vmem:[%s1 + $0x8a0] sm:$0xff]
      %v601 = vld [vmem:[%s1 + $0x8a8] sm:$0xf]
      %v602 = vld [vmem:[%s1 + $0x8ac] sm:$0xff]
      %v603 = vld [vmem:[%s1 + $0x8b4] sm:$0xf]
      %v604 = vld [vmem:[%s1 + $0x8b8] sm:$0xff]
      %v605 = vld [vmem:[%s1 + $0x8c0] sm:$0xf]
      %v606 = vld [vmem:[%s1 + $0x8c4] sm:$0xff]
      %v607 = vld [vmem:[%s1 + $0x8cc] sm:$0xf]
      %v608 = vld [vmem:[%s1 + $0x8d0] sm:$0xff]
      %v609 = vld [vmem:[%s1 + $0x8d8] sm:$0xf]
      %v610 = vld [vmem:[%s1 + $0x8dc] sm:$0xff]
      %v611 = vld [vmem:[%s1 + $0x8e4] sm:$0xf]
      %v612 = vld [vmem:[%s1 + $0x8e8] sm:$0xff]
      %v613 = vld [vmem:[%s1 + $0x8f0] sm:$0xf]
      %v614 = vld [vmem:[%s1 + $0x8f4] sm:$0xff]
      %v615 = vld [vmem:[%s1 + $0x8fc] sm:$0xf]
      %v616 = vld [vmem:[%s1 + $0x900] sm:$0xff]
      %v617 = vld [vmem:[%s1 + $0x908] sm:$0xf]
      %v618 = vld [vmem:[%s1 + $0x90c] sm:$0xff]
      %v619 = vld [vmem:[%s1 + $0x914] sm:$0xf]
      %v620 = vld [vmem:[%s1 + $0x918] sm:$0xff]
      %v621 = vld [vmem:[%s1 + $0x920] sm:$0xf]
      %v622 = vld [vmem:[%s1 + $0x924] sm:$0xff]
      %v623 = vld [vmem:[%s1 + $0x92c] sm:$0xf]
      %v624 = vld [vmem:[%s1 + $0x930] sm:$0xff]
      %v625 = vld [vmem:[%s1 + $0x938] sm:$0xf]
      %v626 = vld [vmem:[%s1 + $0x93c] sm:$0xff]
      %v627 = vld [vmem:[%s1 + $0x944] sm:$0xf]
      %v628 = vld [vmem:[%s1 + $0x948] sm:$0xff]
      %v629 = vld [vmem:[%s1 + $0x950] sm:$0xf]
      %v630 = vld [vmem:[%s1 + $0x954] sm:$0xff]
      %v631 = vld [vmem:[%s1 + $0x95c] sm:$0xf]
      %v632 = vld [vmem:[%s223] sm:$0xff]
      %v633 = vld [vmem:[%s223 + $0x8] sm:$0xff]
      %v634 = vld [vmem:[%s223 + $0x10] sm:$0xff]
      %v635 = vld [vmem:[%s223 + $0x18] sm:$0xff]
      %v636 = vld [vmem:[%s223 + $0x20] sm:$0xff]
      %v637 = vld [vmem:[%s223 + $0x28] sm:$0xff]
      %v638 = vld [vmem:[%s223 + $0x30] sm:$0xf]
      %v639 = vld [vmem:[%s223 + $0x34] sm:$0xff]
      %v640 = vld [vmem:[%s223 + $0x3c] sm:$0xff]
      %v641 = vld [vmem:[%s223 + $0x44] sm:$0xff]
      %v642 = vld [vmem:[%s223 + $0x4c] sm:$0xff]
      %v643 = vld [vmem:[%s223 + $0x54] sm:$0xff]
      %v644 = vld [vmem:[%s223 + $0x5c] sm:$0xff]
      %v645 = vld [vmem:[%s223 + $0x64] sm:$0xf]
      %v660 = vunpack.c.l.b16 %v632
      %v661 = vunpack.c.h.b16 %v632
      %v662 = vunpack.c.l.b16 %v633
      %v663 = vunpack.c.h.b16 %v633
      %v664 = vunpack.c.l.b16 %v634
      %v665 = vunpack.c.h.b16 %v634
      %v666 = vunpack.c.l.b16 %v635
      %v667 = vunpack.c.h.b16 %v635
      %v668 = vunpack.c.l.b16 %v636
      %v669 = vunpack.c.h.b16 %v636
      %v670 = vunpack.c.l.b16 %v637
      %v671 = vunpack.c.h.b16 %v637
      %v672 = vunpack.c.l.b16 %v638
      %v673 = vunpack.c.l.b16 %v639
      %v674 = vunpack.c.h.b16 %v639
      %v675 = vunpack.c.l.b16 %v640
      %v676 = vunpack.c.h.b16 %v640
      %v677 = vunpack.c.l.b16 %v641
      %v678 = vunpack.c.h.b16 %v641
      %v679 = vunpack.c.l.b16 %v642
      %v680 = vunpack.c.h.b16 %v642
      %v681 = vunpack.c.l.b16 %v643
      %v682 = vunpack.c.h.b16 %v643
      %v683 = vunpack.c.l.b16 %v644
      %v684 = vunpack.c.h.b16 %v644
      %v685 = vunpack.c.l.b16 %v645
      %v686 = vpack.c.b16 %v673, %v660
      %v687 = vpack.c.b16 %v674, %v661
      %v688 = vpack.c.b16 %v675, %v662
      %v689 = vpack.c.b16 %v676, %v663
      %v690 = vpack.c.b16 %v677, %v664
      %v691 = vpack.c.b16 %v678, %v665
      %v692 = vpack.c.b16 %v679, %v666
      %v693 = vpack.c.b16 %v680, %v667
      %v694 = vpack.c.b16 %v681, %v668
      %v695 = vpack.c.b16 %v682, %v669
      %v696 = vpack.c.b16 %v683, %v670
      %v697 = vpack.c.b16 %v684, %v671
      %v698 = vpack.c.b16 %v685, %v672
      %v1111 = vunpack.c.l.b16 %v232
      %v1112 = vunpack.c.h.b16 %v232
      %v1113 = vunpack.c.l.b16 %v233
      %v1114 = vunpack.c.l.b16 %v234
      %v1115 = vunpack.c.h.b16 %v234
      %v1116 = vunpack.c.l.b16 %v235
      %v1117 = vunpack.c.l.b16 %v236
      %v1118 = vunpack.c.h.b16 %v236
      %v1119 = vunpack.c.l.b16 %v237
      %v1120 = vunpack.c.l.b16 %v238
      %v1121 = vunpack.c.h.b16 %v238
      %v1122 = vunpack.c.l.b16 %v239
      %v1123 = vunpack.c.l.b16 %v240
      %v1124 = vunpack.c.h.b16 %v240
      %v1125 = vunpack.c.l.b16 %v241
      %v1126 = vunpack.c.l.b16 %v242
      %v1127 = vunpack.c.h.b16 %v242
      %v1128 = vunpack.c.l.b16 %v243
      %v1129 = vunpack.c.l.b16 %v244
      %v1130 = vunpack.c.h.b16 %v244
      %v1131 = vunpack.c.l.b16 %v245
      %v1132 = vunpack.c.l.b16 %v246
      %v1133 = vunpack.c.h.b16 %v246
      %v1134 = vunpack.c.l.b16 %v247
      %v1135 = vunpack.c.l.b16 %v248
      %v1136 = vunpack.c.h.b16 %v248
      %v1137 = vunpack.c.l.b16 %v249
      %v1138 = vunpack.c.l.b16 %v250
      %v1139 = vunpack.c.h.b16 %v250
      %v1140 = vunpack.c.l.b16 %v251
      %v1141 = vunpack.c.l.b16 %v252
      %v1142 = vunpack.c.h.b16 %v252
      %v1143 = vunpack.c.l.b16 %v253
      %v1144 = vunpack.c.l.b16 %v254
      %v1145 = vunpack.c.h.b16 %v254
      %v1146 = vunpack.c.l.b16 %v255
      %v1147 = vunpack.c.l.b16 %v256
      %v1148 = vunpack.c.h.b16 %v256
      %v1149 = vunpack.c.l.b16 %v257
      %v1150 = vunpack.c.l.b16 %v258
      %v1151 = vunpack.c.h.b16 %v258
      %v1152 = vunpack.c.l.b16 %v259
      %v1153 = vunpack.c.l.b16 %v260
      %v1154 = vunpack.c.h.b16 %v260
      %v1155 = vunpack.c.l.b16 %v261
      %v1156 = vunpack.c.l.b16 %v262
      %v1157 = vunpack.c.h.b16 %v262
      %v1158 = vunpack.c.l.b16 %v263
      %v1159 = vunpack.c.l.b16 %v264
      %v1160 = vunpack.c.h.b16 %v264
      %v1161 = vunpack.c.l.b16 %v265
      %v1162 = vunpack.c.l.b16 %v266
      %v1163 = vunpack.c.h.b16 %v266
      %v1164 = vunpack.c.l.b16 %v267
      %v1165 = vunpack.c.l.b16 %v268
      %v1166 = vunpack.c.h.b16 %v268
      %v1167 = vunpack.c.l.b16 %v269
      %v1168 = vunpack.c.l.b16 %v270
      %v1169 = vunpack.c.h.b16 %v270
      %v1170 = vunpack.c.l.b16 %v271
      %v1171 = vunpack.c.l.b16 %v272
      %v1172 = vunpack.c.h.b16 %v272
      %v1173 = vunpack.c.l.b16 %v273
      %v1174 = vunpack.c.l.b16 %v274
      %v1175 = vunpack.c.h.b16 %v274
      %v1176 = vunpack.c.l.b16 %v275
      %v1177 = vunpack.c.l.b16 %v276
      %v1178 = vunpack.c.h.b16 %v276
      %v1179 = vunpack.c.l.b16 %v277
      %v1180 = vunpack.c.l.b16 %v278
      %v1181 = vunpack.c.h.b16 %v278
      %v1182 = vunpack.c.l.b16 %v279
      %v1183 = vunpack.c.l.b16 %v280
      %v1184 = vunpack.c.h.b16 %v280
      %v1185 = vunpack.c.l.b16 %v281
      %v1186 = vunpack.c.l.b16 %v282
      %v1187 = vunpack.c.h.b16 %v282
      %v1188 = vunpack.c.l.b16 %v283
      %v1189 = vunpack.c.l.b16 %v284
      %v1190 = vunpack.c.h.b16 %v284
      %v1191 = vunpack.c.l.b16 %v285
      %v1192 = vunpack.c.l.b16 %v286
      %v1193 = vunpack.c.h.b16 %v286
      %v1194 = vunpack.c.l.b16 %v287
      %v1195 = vunpack.c.l.b16 %v288
      %v1196 = vunpack.c.h.b16 %v288
      %v1197 = vunpack.c.l.b16 %v289
      %v1198 = vunpack.c.l.b16 %v290
      %v1199 = vunpack.c.h.b16 %v290
      %v1200 = vunpack.c.l.b16 %v291
      %v1201 = vunpack.c.l.b16 %v292
      %v1202 = vunpack.c.h.b16 %v292
      %v1203 = vunpack.c.l.b16 %v293
      %v1204 = vunpack.c.l.b16 %v294
      %v1205 = vunpack.c.h.b16 %v294
      %v1206 = vunpack.c.l.b16 %v295
      %v1207 = vunpack.c.l.b16 %v296
      %v1208 = vunpack.c.h.b16 %v296
      %v1209 = vunpack.c.l.b16 %v297
      %v1210 = vunpack.c.l.b16 %v298
      %v1211 = vunpack.c.h.b16 %v298
      %v1212 = vunpack.c.l.b16 %v299
      %v1213 = vunpack.c.l.b16 %v300
      %v1214 = vunpack.c.h.b16 %v300
      %v1215 = vunpack.c.l.b16 %v301
      %v1216 = vunpack.c.l.b16 %v302
      %v1217 = vunpack.c.h.b16 %v302
      %v1218 = vunpack.c.l.b16 %v303
      %v1219 = vunpack.c.l.b16 %v304
      %v1220 = vunpack.c.h.b16 %v304
      %v1221 = vunpack.c.l.b16 %v305
      %v1222 = vunpack.c.l.b16 %v306
      %v1223 = vunpack.c.h.b16 %v306
      %v1224 = vunpack.c.l.b16 %v307
      %v1225 = vunpack.c.l.b16 %v308
      %v1226 = vunpack.c.h.b16 %v308
      %v1227 = vunpack.c.l.b16 %v309
      %v1228 = vunpack.c.l.b16 %v310
      %v1229 = vunpack.c.h.b16 %v310
      %v1230 = vunpack.c.l.b16 %v311
      %v1231 = vunpack.c.l.b16 %v312
      %v1232 = vunpack.c.h.b16 %v312
      %v1233 = vunpack.c.l.b16 %v313
      %v1234 = vunpack.c.l.b16 %v314
      %v1235 = vunpack.c.h.b16 %v314
      %v1236 = vunpack.c.l.b16 %v315
      %v1237 = vunpack.c.l.b16 %v316
      %v1238 = vunpack.c.h.b16 %v316
      %v1239 = vunpack.c.l.b16 %v317
      %v1240 = vunpack.c.l.b16 %v318
      %v1241 = vunpack.c.h.b16 %v318
      %v1242 = vunpack.c.l.b16 %v319
      %v1243 = vunpack.c.l.b16 %v320
      %v1244 = vunpack.c.h.b16 %v320
      %v1245 = vunpack.c.l.b16 %v321
      %v1246 = vunpack.c.l.b16 %v322
      %v1247 = vunpack.c.h.b16 %v322
      %v1248 = vunpack.c.l.b16 %v323
      %v1249 = vunpack.c.l.b16 %v324
      %v1250 = vunpack.c.h.b16 %v324
      %v1251 = vunpack.c.l.b16 %v325
      %v1252 = vunpack.c.l.b16 %v326
      %v1253 = vunpack.c.h.b16 %v326
      %v1254 = vunpack.c.l.b16 %v327
      %v1255 = vunpack.c.l.b16 %v328
      %v1256 = vunpack.c.h.b16 %v328
      %v1257 = vunpack.c.l.b16 %v329
      %v1258 = vunpack.c.l.b16 %v330
      %v1259 = vunpack.c.h.b16 %v330
      %v1260 = vunpack.c.l.b16 %v331
      %v1261 = vunpack.c.l.b16 %v332
      %v1262 = vunpack.c.h.b16 %v332
      %v1263 = vunpack.c.l.b16 %v333
      %v1264 = vunpack.c.l.b16 %v334
      %v1265 = vunpack.c.h.b16 %v334
      %v1266 = vunpack.c.l.b16 %v335
      %v1267 = vunpack.c.l.b16 %v336
      %v1268 = vunpack.c.h.b16 %v336
      %v1269 = vunpack.c.l.b16 %v337
      %v1270 = vunpack.c.l.b16 %v338
      %v1271 = vunpack.c.h.b16 %v338
      %v1272 = vunpack.c.l.b16 %v339
      %v1273 = vunpack.c.l.b16 %v340
      %v1274 = vunpack.c.h.b16 %v340
      %v1275 = vunpack.c.l.b16 %v341
      %v1276 = vunpack.c.l.b16 %v342
      %v1277 = vunpack.c.h.b16 %v342
      %v1278 = vunpack.c.l.b16 %v343
      %v1279 = vunpack.c.l.b16 %v344
      %v1280 = vunpack.c.h.b16 %v344
      %v1281 = vunpack.c.l.b16 %v345
      %v1282 = vunpack.c.l.b16 %v346
      %v1283 = vunpack.c.h.b16 %v346
      %v1284 = vunpack.c.l.b16 %v347
      %v1285 = vunpack.c.l.b16 %v348
      %v1286 = vunpack.c.h.b16 %v348
      %v1287 = vunpack.c.l.b16 %v349
      %v1288 = vunpack.c.l.b16 %v350
      %v1289 = vunpack.c.h.b16 %v350
      %v1290 = vunpack.c.l.b16 %v351
      %v1291 = vunpack.c.l.b16 %v352
      %v1292 = vunpack.c.h.b16 %v352
      %v1293 = vunpack.c.l.b16 %v353
      %v1294 = vunpack.c.l.b16 %v354
      %v1295 = vunpack.c.h.b16 %v354
      %v1296 = vunpack.c.l.b16 %v355
      %v1297 = vunpack.c.l.b16 %v356
      %v1298 = vunpack.c.h.b16 %v356
      %v1299 = vunpack.c.l.b16 %v357
      %v1300 = vunpack.c.l.b16 %v358
      %v1301 = vunpack.c.h.b16 %v358
      %v1302 = vunpack.c.l.b16 %v359
      %v1303 = vunpack.c.l.b16 %v360
      %v1304 = vunpack.c.h.b16 %v360
      %v1305 = vunpack.c.l.b16 %v361
      %v1306 = vunpack.c.l.b16 %v362
      %v1307 = vunpack.c.h.b16 %v362
      %v1308 = vunpack.c.l.b16 %v363
      %v1309 = vunpack.c.l.b16 %v364
      %v1310 = vunpack.c.h.b16 %v364
      %v1311 = vunpack.c.l.b16 %v365
      %v1312 = vunpack.c.l.b16 %v366
      %v1313 = vunpack.c.h.b16 %v366
      %v1314 = vunpack.c.l.b16 %v367
      %v1315 = vunpack.c.l.b16 %v368
      %v1316 = vunpack.c.h.b16 %v368
      %v1317 = vunpack.c.l.b16 %v369
      %v1318 = vunpack.c.l.b16 %v370
      %v1319 = vunpack.c.h.b16 %v370
      %v1320 = vunpack.c.l.b16 %v371
      %v1321 = vunpack.c.l.b16 %v372
      %v1322 = vunpack.c.h.b16 %v372
      %v1323 = vunpack.c.l.b16 %v373
      %v1324 = vunpack.c.l.b16 %v374
      %v1325 = vunpack.c.h.b16 %v374
      %v1326 = vunpack.c.l.b16 %v375
      %v1327 = vunpack.c.l.b16 %v376
      %v1328 = vunpack.c.h.b16 %v376
      %v1329 = vunpack.c.l.b16 %v377
      %v1330 = vunpack.c.l.b16 %v378
      %v1331 = vunpack.c.h.b16 %v378
      %v1332 = vunpack.c.l.b16 %v379
      %v1333 = vunpack.c.l.b16 %v380
      %v1334 = vunpack.c.h.b16 %v380
      %v1335 = vunpack.c.l.b16 %v381
      %v1336 = vunpack.c.l.b16 %v382
      %v1337 = vunpack.c.h.b16 %v382
      %v1338 = vunpack.c.l.b16 %v383
      %v1339 = vunpack.c.l.b16 %v384
      %v1340 = vunpack.c.h.b16 %v384
      %v1341 = vunpack.c.l.b16 %v385
      %v1342 = vunpack.c.l.b16 %v386
      %v1343 = vunpack.c.h.b16 %v386
      %v1344 = vunpack.c.l.b16 %v387
      %v1345 = vunpack.c.l.b16 %v388
      %v1346 = vunpack.c.h.b16 %v388
      %v1347 = vunpack.c.l.b16 %v389
      %v1348 = vunpack.c.l.b16 %v390
      %v1349 = vunpack.c.h.b16 %v390
      %v1350 = vunpack.c.l.b16 %v391
      %v1351 = vunpack.c.l.b16 %v392
      %v1352 = vunpack.c.h.b16 %v392
      %v1353 = vunpack.c.l.b16 %v393
      %v1354 = vunpack.c.l.b16 %v394
      %v1355 = vunpack.c.h.b16 %v394
      %v1356 = vunpack.c.l.b16 %v395
      %v1357 = vunpack.c.l.b16 %v396
      %v1358 = vunpack.c.h.b16 %v396
      %v1359 = vunpack.c.l.b16 %v397
      %v1360 = vunpack.c.l.b16 %v398
      %v1361 = vunpack.c.h.b16 %v398
      %v1362 = vunpack.c.l.b16 %v399
      %v1363 = vunpack.c.l.b16 %v400
      %v1364 = vunpack.c.h.b16 %v400
      %v1365 = vunpack.c.l.b16 %v401
      %v1366 = vunpack.c.l.b16 %v402
      %v1367 = vunpack.c.h.b16 %v402
      %v1368 = vunpack.c.l.b16 %v403
      %v1369 = vunpack.c.l.b16 %v404
      %v1370 = vunpack.c.h.b16 %v404
      %v1371 = vunpack.c.l.b16 %v405
      %v1372 = vunpack.c.l.b16 %v406
      %v1373 = vunpack.c.h.b16 %v406
      %v1374 = vunpack.c.l.b16 %v407
      %v1375 = vunpack.c.l.b16 %v408
      %v1376 = vunpack.c.h.b16 %v408
      %v1377 = vunpack.c.l.b16 %v409
      %v1378 = vunpack.c.l.b16 %v410
      %v1379 = vunpack.c.h.b16 %v410
      %v1380 = vunpack.c.l.b16 %v411
      %v1381 = vunpack.c.l.b16 %v412
      %v1382 = vunpack.c.h.b16 %v412
      %v1383 = vunpack.c.l.b16 %v413
      %v1384 = vunpack.c.l.b16 %v414
      %v1385 = vunpack.c.h.b16 %v414
      %v1386 = vunpack.c.l.b16 %v415
      %v1387 = vunpack.c.l.b16 %v416
      %v1388 = vunpack.c.h.b16 %v416
      %v1389 = vunpack.c.l.b16 %v417
      %v1390 = vunpack.c.l.b16 %v418
      %v1391 = vunpack.c.h.b16 %v418
      %v1392 = vunpack.c.l.b16 %v419
      %v1393 = vunpack.c.l.b16 %v420
      %v1394 = vunpack.c.h.b16 %v420
      %v1395 = vunpack.c.l.b16 %v421
      %v1396 = vunpack.c.l.b16 %v422
      %v1397 = vunpack.c.h.b16 %v422
      %v1398 = vunpack.c.l.b16 %v423
      %v1399 = vunpack.c.l.b16 %v424
      %v1400 = vunpack.c.h.b16 %v424
      %v1401 = vunpack.c.l.b16 %v425
      %v1402 = vunpack.c.l.b16 %v426
      %v1403 = vunpack.c.h.b16 %v426
      %v1404 = vunpack.c.l.b16 %v427
      %v1405 = vunpack.c.l.b16 %v428
      %v1406 = vunpack.c.h.b16 %v428
      %v1407 = vunpack.c.l.b16 %v429
      %v1408 = vunpack.c.l.b16 %v430
      %v1409 = vunpack.c.h.b16 %v430
      %v1410 = vunpack.c.l.b16 %v431
      %v1411 = vunpack.c.l.b16 %v432
      %v1412 = vunpack.c.h.b16 %v432
      %v1413 = vunpack.c.l.b16 %v433
      %v1414 = vunpack.c.l.b16 %v434
      %v1415 = vunpack.c.h.b16 %v434
      %v1416 = vunpack.c.l.b16 %v435
      %v1417 = vunpack.c.l.b16 %v436
      %v1418 = vunpack.c.h.b16 %v436
      %v1419 = vunpack.c.l.b16 %v437
      %v1420 = vunpack.c.l.b16 %v438
      %v1421 = vunpack.c.h.b16 %v438
      %v1422 = vunpack.c.l.b16 %v439
      %v1423 = vunpack.c.l.b16 %v440
      %v1424 = vunpack.c.h.b16 %v440
      %v1425 = vunpack.c.l.b16 %v441
      %v1426 = vunpack.c.l.b16 %v442
      %v1427 = vunpack.c.h.b16 %v442
      %v1428 = vunpack.c.l.b16 %v443
      %v1429 = vunpack.c.l.b16 %v444
      %v1430 = vunpack.c.h.b16 %v444
      %v1431 = vunpack.c.l.b16 %v445
      %v1432 = vunpack.c.l.b16 %v446
      %v1433 = vunpack.c.h.b16 %v446
      %v1434 = vunpack.c.l.b16 %v447
      %v1435 = vunpack.c.l.b16 %v448
      %v1436 = vunpack.c.h.b16 %v448
      %v1437 = vunpack.c.l.b16 %v449
      %v1438 = vunpack.c.l.b16 %v450
      %v1439 = vunpack.c.h.b16 %v450
      %v1440 = vunpack.c.l.b16 %v451
      %v1441 = vunpack.c.l.b16 %v452
      %v1442 = vunpack.c.h.b16 %v452
      %v1443 = vunpack.c.l.b16 %v453
      %v1444 = vunpack.c.l.b16 %v454
      %v1445 = vunpack.c.h.b16 %v454
      %v1446 = vunpack.c.l.b16 %v455
      %v1447 = vunpack.c.l.b16 %v456
      %v1448 = vunpack.c.h.b16 %v456
      %v1449 = vunpack.c.l.b16 %v457
      %v1450 = vunpack.c.l.b16 %v458
      %v1451 = vunpack.c.h.b16 %v458
      %v1452 = vunpack.c.l.b16 %v459
      %v1453 = vunpack.c.l.b16 %v460
      %v1454 = vunpack.c.h.b16 %v460
      %v1455 = vunpack.c.l.b16 %v461
      %v1456 = vunpack.c.l.b16 %v462
      %v1457 = vunpack.c.h.b16 %v462
      %v1458 = vunpack.c.l.b16 %v463
      %v1459 = vunpack.c.l.b16 %v464
      %v1460 = vunpack.c.h.b16 %v464
      %v1461 = vunpack.c.l.b16 %v465
      %v1462 = vunpack.c.l.b16 %v466
      %v1463 = vunpack.c.h.b16 %v466
      %v1464 = vunpack.c.l.b16 %v467
      %v1465 = vunpack.c.l.b16 %v468
      %v1466 = vunpack.c.h.b16 %v468
      %v1467 = vunpack.c.l.b16 %v469
      %v1468 = vunpack.c.l.b16 %v470
      %v1469 = vunpack.c.h.b16 %v470
      %v1470 = vunpack.c.l.b16 %v471
      %v1471 = vunpack.c.l.b16 %v472
      %v1472 = vunpack.c.h.b16 %v472
      %v1473 = vunpack.c.l.b16 %v473
      %v1474 = vunpack.c.l.b16 %v474
      %v1475 = vunpack.c.h.b16 %v474
      %v1476 = vunpack.c.l.b16 %v475
      %v1477 = vunpack.c.l.b16 %v476
      %v1478 = vunpack.c.h.b16 %v476
      %v1479 = vunpack.c.l.b16 %v477
      %v1480 = vunpack.c.l.b16 %v478
      %v1481 = vunpack.c.h.b16 %v478
      %v1482 = vunpack.c.l.b16 %v479
      %v1483 = vunpack.c.l.b16 %v480
      %v1484 = vunpack.c.h.b16 %v480
      %v1485 = vunpack.c.l.b16 %v481
      %v1486 = vunpack.c.l.b16 %v482
      %v1487 = vunpack.c.h.b16 %v482
      %v1488 = vunpack.c.l.b16 %v483
      %v1489 = vunpack.c.l.b16 %v484
      %v1490 = vunpack.c.h.b16 %v484
      %v1491 = vunpack.c.l.b16 %v485
      %v1492 = vunpack.c.l.b16 %v486
      %v1493 = vunpack.c.h.b16 %v486
      %v1494 = vunpack.c.l.b16 %v487
      %v1495 = vunpack.c.l.b16 %v488
      %v1496 = vunpack.c.h.b16 %v488
      %v1497 = vunpack.c.l.b16 %v489
      %v1498 = vunpack.c.l.b16 %v490
      %v1499 = vunpack.c.h.b16 %v490
      %v1500 = vunpack.c.l.b16 %v491
      %v1501 = vunpack.c.l.b16 %v492
      %v1502 = vunpack.c.h.b16 %v492
      %v1503 = vunpack.c.l.b16 %v493
      %v1504 = vunpack.c.l.b16 %v494
      %v1505 = vunpack.c.h.b16 %v494
      %v1506 = vunpack.c.l.b16 %v495
      %v1507 = vunpack.c.l.b16 %v496
      %v1508 = vunpack.c.h.b16 %v496
      %v1509 = vunpack.c.l.b16 %v497
      %v1510 = vunpack.c.l.b16 %v498
      %v1511 = vunpack.c.h.b16 %v498
      %v1512 = vunpack.c.l.b16 %v499
      %v1513 = vunpack.c.l.b16 %v500
      %v1514 = vunpack.c.h.b16 %v500
      %v1515 = vunpack.c.l.b16 %v501
      %v1516 = vunpack.c.l.b16 %v502
      %v1517 = vunpack.c.h.b16 %v502
      %v1518 = vunpack.c.l.b16 %v503
      %v1519 = vunpack.c.l.b16 %v504
      %v1520 = vunpack.c.h.b16 %v504
      %v1521 = vunpack.c.l.b16 %v505
      %v1522 = vunpack.c.l.b16 %v506
      %v1523 = vunpack.c.h.b16 %v506
      %v1524 = vunpack.c.l.b16 %v507
      %v1525 = vunpack.c.l.b16 %v508
      %v1526 = vunpack.c.h.b16 %v508
      %v1527 = vunpack.c.l.b16 %v509
      %v1528 = vunpack.c.l.b16 %v510
      %v1529 = vunpack.c.h.b16 %v510
      %v1530 = vunpack.c.l.b16 %v511
      %v1531 = vunpack.c.l.b16 %v512
      %v1532 = vunpack.c.h.b16 %v512
      %v1533 = vunpack.c.l.b16 %v513
      %v1534 = vunpack.c.l.b16 %v514
      %v1535 = vunpack.c.h.b16 %v514
      %v1536 = vunpack.c.l.b16 %v515
      %v1537 = vunpack.c.l.b16 %v516
      %v1538 = vunpack.c.h.b16 %v516
      %v1539 = vunpack.c.l.b16 %v517
      %v1540 = vunpack.c.l.b16 %v518
      %v1541 = vunpack.c.h.b16 %v518
      %v1542 = vunpack.c.l.b16 %v519
      %v1543 = vunpack.c.l.b16 %v520
      %v1544 = vunpack.c.h.b16 %v520
      %v1545 = vunpack.c.l.b16 %v521
      %v1546 = vunpack.c.l.b16 %v522
      %v1547 = vunpack.c.h.b16 %v522
      %v1548 = vunpack.c.l.b16 %v523
      %v1549 = vunpack.c.l.b16 %v524
      %v1550 = vunpack.c.h.b16 %v524
      %v1551 = vunpack.c.l.b16 %v525
      %v1552 = vunpack.c.l.b16 %v526
      %v1553 = vunpack.c.h.b16 %v526
      %v1554 = vunpack.c.l.b16 %v527
      %v1555 = vunpack.c.l.b16 %v528
      %v1556 = vunpack.c.h.b16 %v528
      %v1557 = vunpack.c.l.b16 %v529
      %v1558 = vunpack.c.l.b16 %v530
      %v1559 = vunpack.c.h.b16 %v530
      %v1560 = vunpack.c.l.b16 %v531
      %v1561 = vunpack.c.l.b16 %v532
      %v1562 = vunpack.c.h.b16 %v532
      %v1563 = vunpack.c.l.b16 %v533
      %v1564 = vunpack.c.l.b16 %v534
      %v1565 = vunpack.c.h.b16 %v534
      %v1566 = vunpack.c.l.b16 %v535
      %v1567 = vunpack.c.l.b16 %v536
      %v1568 = vunpack.c.h.b16 %v536
      %v1569 = vunpack.c.l.b16 %v537
      %v1570 = vunpack.c.l.b16 %v538
      %v1571 = vunpack.c.h.b16 %v538
      %v1572 = vunpack.c.l.b16 %v539
      %v1573 = vunpack.c.l.b16 %v540
      %v1574 = vunpack.c.h.b16 %v540
      %v1575 = vunpack.c.l.b16 %v541
      %v1576 = vunpack.c.l.b16 %v542
      %v1577 = vunpack.c.h.b16 %v542
      %v1578 = vunpack.c.l.b16 %v543
      %v1579 = vunpack.c.l.b16 %v544
      %v1580 = vunpack.c.h.b16 %v544
      %v1581 = vunpack.c.l.b16 %v545
      %v1582 = vunpack.c.l.b16 %v546
      %v1583 = vunpack.c.h.b16 %v546
      %v1584 = vunpack.c.l.b16 %v547
      %v1585 = vunpack.c.l.b16 %v548
      %v1586 = vunpack.c.h.b16 %v548
      %v1587 = vunpack.c.l.b16 %v549
      %v1588 = vunpack.c.l.b16 %v550
      %v1589 = vunpack.c.h.b16 %v550
      %v1590 = vunpack.c.l.b16 %v551
      %v1591 = vunpack.c.l.b16 %v552
      %v1592 = vunpack.c.h.b16 %v552
      %v1593 = vunpack.c.l.b16 %v553
      %v1594 = vunpack.c.l.b16 %v554
      %v1595 = vunpack.c.h.b16 %v554
      %v1596 = vunpack.c.l.b16 %v555
      %v1597 = vunpack.c.l.b16 %v556
      %v1598 = vunpack.c.h.b16 %v556
      %v1599 = vunpack.c.l.b16 %v557
      %v1600 = vunpack.c.l.b16 %v558
      %v1601 = vunpack.c.h.b16 %v558
      %v1602 = vunpack.c.l.b16 %v559
      %v1603 = vunpack.c.l.b16 %v560
      %v1604 = vunpack.c.h.b16 %v560
      %v1605 = vunpack.c.l.b16 %v561
      %v1606 = vunpack.c.l.b16 %v562
      %v1607 = vunpack.c.h.b16 %v562
      %v1608 = vunpack.c.l.b16 %v563
      %v1609 = vunpack.c.l.b16 %v564
      %v1610 = vunpack.c.h.b16 %v564
      %v1611 = vunpack.c.l.b16 %v565
      %v1612 = vunpack.c.l.b16 %v566
      %v1613 = vunpack.c.h.b16 %v566
      %v1614 = vunpack.c.l.b16 %v567
      %v1615 = vunpack.c.l.b16 %v568
      %v1616 = vunpack.c.h.b16 %v568
      %v1617 = vunpack.c.l.b16 %v569
      %v1618 = vunpack.c.l.b16 %v570
      %v1619 = vunpack.c.h.b16 %v570
      %v1620 = vunpack.c.l.b16 %v571
      %v1621 = vunpack.c.l.b16 %v572
      %v1622 = vunpack.c.h.b16 %v572
      %v1623 = vunpack.c.l.b16 %v573
      %v1624 = vunpack.c.l.b16 %v574
      %v1625 = vunpack.c.h.b16 %v574
      %v1626 = vunpack.c.l.b16 %v575
      %v1627 = vunpack.c.l.b16 %v576
      %v1628 = vunpack.c.h.b16 %v576
      %v1629 = vunpack.c.l.b16 %v577
      %v1630 = vunpack.c.l.b16 %v578
      %v1631 = vunpack.c.h.b16 %v578
      %v1632 = vunpack.c.l.b16 %v579
      %v1633 = vunpack.c.l.b16 %v580
      %v1634 = vunpack.c.h.b16 %v580
      %v1635 = vunpack.c.l.b16 %v581
      %v1636 = vunpack.c.l.b16 %v582
      %v1637 = vunpack.c.h.b16 %v582
      %v1638 = vunpack.c.l.b16 %v583
      %v1639 = vunpack.c.l.b16 %v584
      %v1640 = vunpack.c.h.b16 %v584
      %v1641 = vunpack.c.l.b16 %v585
      %v1642 = vunpack.c.l.b16 %v586
      %v1643 = vunpack.c.h.b16 %v586
      %v1644 = vunpack.c.l.b16 %v587
      %v1645 = vunpack.c.l.b16 %v588
      %v1646 = vunpack.c.h.b16 %v588
      %v1647 = vunpack.c.l.b16 %v589
      %v1648 = vunpack.c.l.b16 %v590
      %v1649 = vunpack.c.h.b16 %v590
      %v1650 = vunpack.c.l.b16 %v591
      %v1651 = vunpack.c.l.b16 %v592
      %v1652 = vunpack.c.h.b16 %v592
      %v1653 = vunpack.c.l.b16 %v593
      %v1654 = vunpack.c.l.b16 %v594
      %v1655 = vunpack.c.h.b16 %v594
      %v1656 = vunpack.c.l.b16 %v595
      %v1657 = vunpack.c.l.b16 %v596
      %v1658 = vunpack.c.h.b16 %v596
      %v1659 = vunpack.c.l.b16 %v597
      %v1660 = vunpack.c.l.b16 %v598
      %v1661 = vunpack.c.h.b16 %v598
      %v1662 = vunpack.c.l.b16 %v599
      %v1663 = vunpack.c.l.b16 %v600
      %v1664 = vunpack.c.h.b16 %v600
      %v1665 = vunpack.c.l.b16 %v601
      %v1666 = vunpack.c.l.b16 %v602
      %v1667 = vunpack.c.h.b16 %v602
      %v1668 = vunpack.c.l.b16 %v603
      %v1669 = vunpack.c.l.b16 %v604
      %v1670 = vunpack.c.h.b16 %v604
      %v1671 = vunpack.c.l.b16 %v605
      %v1672 = vunpack.c.l.b16 %v606
      %v1673 = vunpack.c.h.b16 %v606
      %v1674 = vunpack.c.l.b16 %v607
      %v1675 = vunpack.c.l.b16 %v608
      %v1676 = vunpack.c.h.b16 %v608
      %v1677 = vunpack.c.l.b16 %v609
      %v1678 = vunpack.c.l.b16 %v610
      %v1679 = vunpack.c.h.b16 %v610
      %v1680 = vunpack.c.l.b16 %v611
      %v1681 = vunpack.c.l.b16 %v612
      %v1682 = vunpack.c.h.b16 %v612
      %v1683 = vunpack.c.l.b16 %v613
      %v1684 = vunpack.c.l.b16 %v614
      %v1685 = vunpack.c.h.b16 %v614
      %v1686 = vunpack.c.l.b16 %v615
      %v1687 = vunpack.c.l.b16 %v616
      %v1688 = vunpack.c.h.b16 %v616
      %v1689 = vunpack.c.l.b16 %v617
      %v1690 = vunpack.c.l.b16 %v618
      %v1691 = vunpack.c.h.b16 %v618
      %v1692 = vunpack.c.l.b16 %v619
      %v1693 = vunpack.c.l.b16 %v620
      %v1694 = vunpack.c.h.b16 %v620
      %v1695 = vunpack.c.l.b16 %v621
      %v1696 = vunpack.c.l.b16 %v622
      %v1697 = vunpack.c.h.b16 %v622
      %v1698 = vunpack.c.l.b16 %v623
      %v1699 = vunpack.c.l.b16 %v624
      %v1700 = vunpack.c.h.b16 %v624
      %v1701 = vunpack.c.l.b16 %v625
      %v1702 = vunpack.c.l.b16 %v626
      %v1703 = vunpack.c.h.b16 %v626
      %v1704 = vunpack.c.l.b16 %v627
      %v1705 = vunpack.c.l.b16 %v628
      %v1706 = vunpack.c.h.b16 %v628
      %v1707 = vunpack.c.l.b16 %v629
      %v1708 = vunpack.c.l.b16 %v630
      %v1709 = vunpack.c.h.b16 %v630
      %v1710 = vunpack.c.l.b16 %v631
      %v1711 = vpack.c.b16 %v1114, %v1111
      %v1712 = vpack.c.b16 %v1115, %v1112
      %v1713 = vpack.c.b16 %v1116, %v1113
      %v1714 = vpack.c.b16 %v1120, %v1117
      %v1715 = vpack.c.b16 %v1121, %v1118
      %v1716 = vpack.c.b16 %v1122, %v1119
      %v1717 = vpack.c.b16 %v1126, %v1123
      %v1718 = vpack.c.b16 %v1127, %v1124
      %v1719 = vpack.c.b16 %v1128, %v1125
      %v1720 = vpack.c.b16 %v1132, %v1129
      %v1721 = vpack.c.b16 %v1133, %v1130
      %v1722 = vpack.c.b16 %v1134, %v1131
      %v1723 = vpack.c.b16 %v1138, %v1135
      %v1724 = vpack.c.b16 %v1139, %v1136
      %v1725 = vpack.c.b16 %v1140, %v1137
      %v1726 = vpack.c.b16 %v1144, %v1141
      %v1727 = vpack.c.b16 %v1145, %v1142
      %v1728 = vpack.c.b16 %v1146, %v1143
      %v1729 = vpack.c.b16 %v1150, %v1147
      %v1730 = vpack.c.b16 %v1151, %v1148
      %v1731 = vpack.c.b16 %v1152, %v1149
      %v1732 = vpack.c.b16 %v1156, %v1153
      %v1733 = vpack.c.b16 %v1157, %v1154
      %v1734 = vpack.c.b16 %v1158, %v1155
      %v1735 = vpack.c.b16 %v1162, %v1159
      %v1736 = vpack.c.b16 %v1163, %v1160
      %v1737 = vpack.c.b16 %v1164, %v1161
      %v1738 = vpack.c.b16 %v1168, %v1165
      %v1739 = vpack.c.b16 %v1169, %v1166
      %v1740 = vpack.c.b16 %v1170, %v1167
      %v1741 = vpack.c.b16 %v1174, %v1171
      %v1742 = vpack.c.b16 %v1175, %v1172
      %v1743 = vpack.c.b16 %v1176, %v1173
      %v1744 = vpack.c.b16 %v1180, %v1177
      %v1745 = vpack.c.b16 %v1181, %v1178
      %v1746 = vpack.c.b16 %v1182, %v1179
      %v1747 = vpack.c.b16 %v1186, %v1183
      %v1748 = vpack.c.b16 %v1187, %v1184
      %v1749 = vpack.c.b16 %v1188, %v1185
      %v1750 = vpack.c.b16 %v1192, %v1189
      %v1751 = vpack.c.b16 %v1193, %v1190
      %v1752 = vpack.c.b16 %v1194, %v1191
      %v1753 = vpack.c.b16 %v1198, %v1195
      %v1754 = vpack.c.b16 %v1199, %v1196
      %v1755 = vpack.c.b16 %v1200, %v1197
      %v1756 = vpack.c.b16 %v1204, %v1201
      %v1757 = vpack.c.b16 %v1205, %v1202
      %v1758 = vpack.c.b16 %v1206, %v1203
      %v1759 = vpack.c.b16 %v1210, %v1207
      %v1760 = vpack.c.b16 %v1211, %v1208
      %v1761 = vpack.c.b16 %v1212, %v1209
      %v1762 = vpack.c.b16 %v1216, %v1213
      %v1763 = vpack.c.b16 %v1217, %v1214
      %v1764 = vpack.c.b16 %v1218, %v1215
      %v1765 = vpack.c.b16 %v1222, %v1219
      %v1766 = vpack.c.b16 %v1223, %v1220
      %v1767 = vpack.c.b16 %v1224, %v1221
      %v1768 = vpack.c.b16 %v1228, %v1225
      %v1769 = vpack.c.b16 %v1229, %v1226
      %v1770 = vpack.c.b16 %v1230, %v1227
      %v1771 = vpack.c.b16 %v1234, %v1231
      %v1772 = vpack.c.b16 %v1235, %v1232
      %v1773 = vpack.c.b16 %v1236, %v1233
      %v1774 = vpack.c.b16 %v1240, %v1237
      %v1775 = vpack.c.b16 %v1241, %v1238
      %v1776 = vpack.c.b16 %v1242, %v1239
      %v1777 = vpack.c.b16 %v1246, %v1243
      %v1778 = vpack.c.b16 %v1247, %v1244
      %v1779 = vpack.c.b16 %v1248, %v1245
      %v1780 = vpack.c.b16 %v1252, %v1249
      %v1781 = vpack.c.b16 %v1253, %v1250
      %v1782 = vpack.c.b16 %v1254, %v1251
      %v1783 = vpack.c.b16 %v1258, %v1255
      %v1784 = vpack.c.b16 %v1259, %v1256
      %v1785 = vpack.c.b16 %v1260, %v1257
      %v1786 = vpack.c.b16 %v1264, %v1261
      %v1787 = vpack.c.b16 %v1265, %v1262
      %v1788 = vpack.c.b16 %v1266, %v1263
      %v1789 = vpack.c.b16 %v1270, %v1267
      %v1790 = vpack.c.b16 %v1271, %v1268
      %v1791 = vpack.c.b16 %v1272, %v1269
      %v1792 = vpack.c.b16 %v1276, %v1273
      %v1793 = vpack.c.b16 %v1277, %v1274
      %v1794 = vpack.c.b16 %v1278, %v1275
      %v1795 = vpack.c.b16 %v1282, %v1279
      %v1796 = vpack.c.b16 %v1283, %v1280
      %v1797 = vpack.c.b16 %v1284, %v1281
      %v1798 = vpack.c.b16 %v1288, %v1285
      %v1799 = vpack.c.b16 %v1289, %v1286
      %v1800 = vpack.c.b16 %v1290, %v1287
      %v1801 = vpack.c.b16 %v1294, %v1291
      %v1802 = vpack.c.b16 %v1295, %v1292
      %v1803 = vpack.c.b16 %v1296, %v1293
      %v1804 = vpack.c.b16 %v1300, %v1297
      %v1805 = vpack.c.b16 %v1301, %v1298
      %v1806 = vpack.c.b16 %v1302, %v1299
      %v1807 = vpack.c.b16 %v1306, %v1303
      %v1808 = vpack.c.b16 %v1307, %v1304
      %v1809 = vpack.c.b16 %v1308, %v1305
      %v1810 = vpack.c.b16 %v1312, %v1309
      %v1811 = vpack.c.b16 %v1313, %v1310
      %v1812 = vpack.c.b16 %v1314, %v1311
      %v1813 = vpack.c.b16 %v1318, %v1315
      %v1814 = vpack.c.b16 %v1319, %v1316
      %v1815 = vpack.c.b16 %v1320, %v1317
      %v1816 = vpack.c.b16 %v1324, %v1321
      %v1817 = vpack.c.b16 %v1325, %v1322
      %v1818 = vpack.c.b16 %v1326, %v1323
      %v1819 = vpack.c.b16 %v1330, %v1327
      %v1820 = vpack.c.b16 %v1331, %v1328
      %v1821 = vpack.c.b16 %v1332, %v1329
      %v1822 = vpack.c.b16 %v1336, %v1333
      %v1823 = vpack.c.b16 %v1337, %v1334
      %v1824 = vpack.c.b16 %v1338, %v1335
      %v1825 = vpack.c.b16 %v1342, %v1339
      %v1826 = vpack.c.b16 %v1343, %v1340
      %v1827 = vpack.c.b16 %v1344, %v1341
      %v1828 = vpack.c.b16 %v1348, %v1345
      %v1829 = vpack.c.b16 %v1349, %v1346
      %v1830 = vpack.c.b16 %v1350, %v1347
      %v1831 = vpack.c.b16 %v1354, %v1351
      %v1832 = vpack.c.b16 %v1355, %v1352
      %v1833 = vpack.c.b16 %v1356, %v1353
      %v1834 = vpack.c.b16 %v1360, %v1357
      %v1835 = vpack.c.b16 %v1361, %v1358
      %v1836 = vpack.c.b16 %v1362, %v1359
      %v1837 = vpack.c.b16 %v1366, %v1363
      %v1838 = vpack.c.b16 %v1367, %v1364
      %v1839 = vpack.c.b16 %v1368, %v1365
      %v1840 = vpack.c.b16 %v1372, %v1369
      %v1841 = vpack.c.b16 %v1373, %v1370
      %v1842 = vpack.c.b16 %v1374, %v1371
      %v1843 = vpack.c.b16 %v1378, %v1375
      %v1844 = vpack.c.b16 %v1379, %v1376
      %v1845 = vpack.c.b16 %v1380, %v1377
      %v1846 = vpack.c.b16 %v1384, %v1381
      %v1847 = vpack.c.b16 %v1385, %v1382
      %v1848 = vpack.c.b16 %v1386, %v1383
      %v1849 = vpack.c.b16 %v1390, %v1387
      %v1850 = vpack.c.b16 %v1391, %v1388
      %v1851 = vpack.c.b16 %v1392, %v1389
      %v1852 = vpack.c.b16 %v1396, %v1393
      %v1853 = vpack.c.b16 %v1397, %v1394
      %v1854 = vpack.c.b16 %v1398, %v1395
      %v1855 = vpack.c.b16 %v1402, %v1399
      %v1856 = vpack.c.b16 %v1403, %v1400
      %v1857 = vpack.c.b16 %v1404, %v1401
      %v1858 = vpack.c.b16 %v1408, %v1405
      %v1859 = vpack.c.b16 %v1409, %v1406
      %v1860 = vpack.c.b16 %v1410, %v1407
      %v1861 = vpack.c.b16 %v1414, %v1411
      %v1862 = vpack.c.b16 %v1415, %v1412
      %v1863 = vpack.c.b16 %v1416, %v1413
      %v1864 = vpack.c.b16 %v1420, %v1417
      %v1865 = vpack.c.b16 %v1421, %v1418
      %v1866 = vpack.c.b16 %v1422, %v1419
      %v1867 = vpack.c.b16 %v1426, %v1423
      %v1868 = vpack.c.b16 %v1427, %v1424
      %v1869 = vpack.c.b16 %v1428, %v1425
      %v1870 = vpack.c.b16 %v1432, %v1429
      %v1871 = vpack.c.b16 %v1433, %v1430
      %v1872 = vpack.c.b16 %v1434, %v1431
      %v1873 = vpack.c.b16 %v1438, %v1435
      %v1874 = vpack.c.b16 %v1439, %v1436
      %v1875 = vpack.c.b16 %v1440, %v1437
      %v1876 = vpack.c.b16 %v1444, %v1441
      %v1877 = vpack.c.b16 %v1445, %v1442
      %v1878 = vpack.c.b16 %v1446, %v1443
      %v1879 = vpack.c.b16 %v1450, %v1447
      %v1880 = vpack.c.b16 %v1451, %v1448
      %v1881 = vpack.c.b16 %v1452, %v1449
      %v1882 = vpack.c.b16 %v1456, %v1453
      %v1883 = vpack.c.b16 %v1457, %v1454
      %v1884 = vpack.c.b16 %v1458, %v1455
      %v1885 = vpack.c.b16 %v1462, %v1459
      %v1886 = vpack.c.b16 %v1463, %v1460
      %v1887 = vpack.c.b16 %v1464, %v1461
      %v1888 = vpack.c.b16 %v1468, %v1465
      %v1889 = vpack.c.b16 %v1469, %v1466
      %v1890 = vpack.c.b16 %v1470, %v1467
      %v1891 = vpack.c.b16 %v1474, %v1471
      %v1892 = vpack.c.b16 %v1475, %v1472
      %v1893 = vpack.c.b16 %v1476, %v1473
      %v1894 = vpack.c.b16 %v1480, %v1477
      %v1895 = vpack.c.b16 %v1481, %v1478
      %v1896 = vpack.c.b16 %v1482, %v1479
      %v1897 = vpack.c.b16 %v1486, %v1483
      %v1898 = vpack.c.b16 %v1487, %v1484
      %v1899 = vpack.c.b16 %v1488, %v1485
      %v1900 = vpack.c.b16 %v1492, %v1489
      %v1901 = vpack.c.b16 %v1493, %v1490
      %v1902 = vpack.c.b16 %v1494, %v1491
      %v1903 = vpack.c.b16 %v1498, %v1495
      %v1904 = vpack.c.b16 %v1499, %v1496
      %v1905 = vpack.c.b16 %v1500, %v1497
      %v1906 = vpack.c.b16 %v1504, %v1501
      %v1907 = vpack.c.b16 %v1505, %v1502
      %v1908 = vpack.c.b16 %v1506, %v1503
      %v1909 = vpack.c.b16 %v1510, %v1507
      %v1910 = vpack.c.b16 %v1511, %v1508
      %v1911 = vpack.c.b16 %v1512, %v1509
      %v1912 = vpack.c.b16 %v1516, %v1513
      %v1913 = vpack.c.b16 %v1517, %v1514
      %v1914 = vpack.c.b16 %v1518, %v1515
      %v1915 = vpack.c.b16 %v1522, %v1519
      %v1916 = vpack.c.b16 %v1523, %v1520
      %v1917 = vpack.c.b16 %v1524, %v1521
      %v1918 = vpack.c.b16 %v1528, %v1525
      %v1919 = vpack.c.b16 %v1529, %v1526
      %v1920 = vpack.c.b16 %v1530, %v1527
      %v1921 = vpack.c.b16 %v1534, %v1531
      %v1922 = vpack.c.b16 %v1535, %v1532
      %v1923 = vpack.c.b16 %v1536, %v1533
      %v1924 = vpack.c.b16 %v1540, %v1537
      %v1925 = vpack.c.b16 %v1541, %v1538
      %v1926 = vpack.c.b16 %v1542, %v1539
      %v1927 = vpack.c.b16 %v1546, %v1543
      %v1928 = vpack.c.b16 %v1547, %v1544
      %v1929 = vpack.c.b16 %v1548, %v1545
      %v1930 = vpack.c.b16 %v1552, %v1549
      %v1931 = vpack.c.b16 %v1553, %v1550
      %v1932 = vpack.c.b16 %v1554, %v1551
      %v1933 = vpack.c.b16 %v1558, %v1555
      %v1934 = vpack.c.b16 %v1559, %v1556
      %v1935 = vpack.c.b16 %v1560, %v1557
      %v1936 = vpack.c.b16 %v1564, %v1561
      %v1937 = vpack.c.b16 %v1565, %v1562
      %v1938 = vpack.c.b16 %v1566, %v1563
      %v1939 = vpack.c.b16 %v1570, %v1567
      %v1940 = vpack.c.b16 %v1571, %v1568
      %v1941 = vpack.c.b16 %v1572, %v1569
      %v1942 = vpack.c.b16 %v1576, %v1573
      %v1943 = vpack.c.b16 %v1577, %v1574
      %v1944 = vpack.c.b16 %v1578, %v1575
      %v1945 = vpack.c.b16 %v1582, %v1579
      %v1946 = vpack.c.b16 %v1583, %v1580
      %v1947 = vpack.c.b16 %v1584, %v1581
      %v1948 = vpack.c.b16 %v1588, %v1585
      %v1949 = vpack.c.b16 %v1589, %v1586
      %v1950 = vpack.c.b16 %v1590, %v1587
      %v1951 = vpack.c.b16 %v1594, %v1591
      %v1952 = vpack.c.b16 %v1595, %v1592
      %v1953 = vpack.c.b16 %v1596, %v1593
      %v1954 = vpack.c.b16 %v1600, %v1597
      %v1955 = vpack.c.b16 %v1601, %v1598
      %v1956 = vpack.c.b16 %v1602, %v1599
      %v1957 = vpack.c.b16 %v1606, %v1603
      %v1958 = vpack.c.b16 %v1607, %v1604
      %v1959 = vpack.c.b16 %v1608, %v1605
      %v1960 = vpack.c.b16 %v1612, %v1609
      %v1961 = vpack.c.b16 %v1613, %v1610
      %v1962 = vpack.c.b16 %v1614, %v1611
      %v1963 = vpack.c.b16 %v1618, %v1615
      %v1964 = vpack.c.b16 %v1619, %v1616
      %v1965 = vpack.c.b16 %v1620, %v1617
      %v1966 = vpack.c.b16 %v1624, %v1621
      %v1967 = vpack.c.b16 %v1625, %v1622
      %v1968 = vpack.c.b16 %v1626, %v1623
      %v1969 = vpack.c.b16 %v1630, %v1627
      %v1970 = vpack.c.b16 %v1631, %v1628
      %v1971 = vpack.c.b16 %v1632, %v1629
      %v1972 = vpack.c.b16 %v1636, %v1633
      %v1973 = vpack.c.b16 %v1637, %v1634
      %v1974 = vpack.c.b16 %v1638, %v1635
      %v1975 = vpack.c.b16 %v1642, %v1639
      %v1976 = vpack.c.b16 %v1643, %v1640
      %v1977 = vpack.c.b16 %v1644, %v1641
      %v1978 = vpack.c.b16 %v1648, %v1645
      %v1979 = vpack.c.b16 %v1649, %v1646
      %v1980 = vpack.c.b16 %v1650, %v1647
      %v1981 = vpack.c.b16 %v1654, %v1651
      %v1982 = vpack.c.b16 %v1655, %v1652
      %v1983 = vpack.c.b16 %v1656, %v1653
      %v1984 = vpack.c.b16 %v1660, %v1657
      %v1985 = vpack.c.b16 %v1661, %v1658
      %v1986 = vpack.c.b16 %v1662, %v1659
      %v1987 = vpack.c.b16 %v1666, %v1663
      %v1988 = vpack.c.b16 %v1667, %v1664
      %v1989 = vpack.c.b16 %v1668, %v1665
      %v1990 = vpack.c.b16 %v1672, %v1669
      %v1991 = vpack.c.b16 %v1673, %v1670
      %v1992 = vpack.c.b16 %v1674, %v1671
      %v1993 = vpack.c.b16 %v1678, %v1675
      %v1994 = vpack.c.b16 %v1679, %v1676
      %v1995 = vpack.c.b16 %v1680, %v1677
      %v1996 = vpack.c.b16 %v1684, %v1681
      %v1997 = vpack.c.b16 %v1685, %v1682
      %v1998 = vpack.c.b16 %v1686, %v1683
      %v1999 = vpack.c.b16 %v1690, %v1687
      %v2000 = vpack.c.b16 %v1691, %v1688
      %v2001 = vpack.c.b16 %v1692, %v1689
      %v2002 = vpack.c.b16 %v1696, %v1693
      %v2003 = vpack.c.b16 %v1697, %v1694
      %v2004 = vpack.c.b16 %v1698, %v1695
      %v2005 = vpack.c.b16 %v1702, %v1699
      %v2006 = vpack.c.b16 %v1703, %v1700
      %v2007 = vpack.c.b16 %v1704, %v1701
      %v2008 = vpack.c.b16 %v1708, %v1705
      %v2009 = vpack.c.b16 %v1709, %v1706
      %v2010 = vpack.c.b16 %v1710, %v1707
      %vm2311 = vcmask 523264
      %v2313 = vsel %vm2311, %v698, 0
      %2315 = vmatprep.subr.bf16.mxu0 %v1712
      %2316 = vmatpush1.bf16.msra.mxu0 %v1711
      %2317 = vmatprep.subr.bf16.mxu0 %v1715
      %2318 = vmatpush1.bf16.msra.mxu0 %v1714
      %2319 = vmatprep.subr.bf16.mxu0 %v1718
      %2320 = vmatpush1.bf16.msra.mxu0 %v1717
      %2321 = vmatprep.subr.bf16.mxu0 %v1721
      %2322 = vmatpush1.bf16.msra.mxu0 %v1720
      %2323 = vmatprep.subr.bf16.mxu0 %v1724
      %2324 = vmatpush1.bf16.msra.mxu0 %v1723
      %2325 = vmatprep.subr.bf16.mxu0 %v1727
      %2326 = vmatpush1.bf16.msra.mxu0 %v1726
      %2327 = vmatprep.subr.bf16.mxu0 %v1730
      %2328 = vmatpush1.bf16.msra.mxu0 %v1729
      %2329 = vmatprep.subr.bf16.mxu0 %v1733
      %2330 = vmatpush1.bf16.msra.mxu0 %v1732
      %2331 = vmatprep.subr.bf16.mxu0 %v1736
      %2332 = vmatpush1.bf16.msra.mxu0 %v1735
      %2333 = vmatprep.subr.bf16.mxu0 %v1739
      %2334 = vmatpush1.bf16.msra.mxu0 %v1738
      %2335 = vmatprep.subr.bf16.mxu0 %v1742
      %2336 = vmatpush1.bf16.msra.mxu0 %v1741
      %2337 = vmatprep.subr.bf16.mxu0 %v1745
      %2338 = vmatpush1.bf16.msra.mxu0 %v1744
      %2339 = vmatprep.subr.bf16.mxu0 %v1748
      %2340 = vmatpush1.bf16.msra.mxu0 %v1747
      %2341 = vmatprep.subr.bf16.mxu0 %v1751
      %2342 = vmatpush1.bf16.msra.mxu0 %v1750
      %2343 = vmatprep.subr.bf16.mxu0 %v1754
      %2344 = vmatpush1.bf16.msra.mxu0 %v1753
      %2345 = vmatprep.subr.bf16.mxu0 %v1757
      %2346 = vmatpush1.bf16.msra.mxu0 %v1756
      %2347 = vmatprep.mubr.bf16.mxu0 %v687
      %2348 = vmatmul.mubr.bf16.gmra.mrb[0].mxu0 %v686
      %v2349 = vpop.f32.mrb[0].mxu0
      %v2350 = vadd.f32 0.0, %v2349
      %v2351 = vpop.f32.mrb[0].mxu0
      %v2352 = vadd.f32 0.0, %v2351
      %v2353 = vpop.f32.mrb[0].mxu0
      %v2354 = vadd.f32 0.0, %v2353
      %v2355 = vpop.f32.mrb[0].mxu0
      %v2356 = vadd.f32 0.0, %v2355
      %2357 = vdwg.mxu0
      %2358 = vmatprep.subr.bf16.mxu0 %v1760
      %2359 = vmatpush1.bf16.msra.mxu0 %v1759
      %2360 = vmatprep.subr.bf16.mxu0 %v1763
      %2361 = vmatpush1.bf16.msra.mxu0 %v1762
      %2362 = vmatprep.subr.bf16.mxu0 %v1766
      %2363 = vmatpush1.bf16.msra.mxu0 %v1765
      %2364 = vmatprep.subr.bf16.mxu0 %v1769
      %2365 = vmatpush1.bf16.msra.mxu0 %v1768
      %2366 = vmatprep.subr.bf16.mxu0 %v1772
      %2367 = vmatpush1.bf16.msra.mxu0 %v1771
      %2368 = vmatprep.subr.bf16.mxu0 %v1775
      %2369 = vmatpush1.bf16.msra.mxu0 %v1774
      %2370 = vmatprep.subr.bf16.mxu0 %v1778
      %2371 = vmatpush1.bf16.msra.mxu0 %v1777
      %2372 = vmatprep.subr.bf16.mxu0 %v1781
      %2373 = vmatpush1.bf16.msra.mxu0 %v1780
      %2374 = vmatprep.subr.bf16.mxu0 %v1784
      %2375 = vmatpush1.bf16.msra.mxu0 %v1783
      %2376 = vmatprep.subr.bf16.mxu0 %v1787
      %2377 = vmatpush1.bf16.msra.mxu0 %v1786
      %2378 = vmatprep.subr.bf16.mxu0 %v1790
      %2379 = vmatpush1.bf16.msra.mxu0 %v1789
      %2380 = vmatprep.subr.bf16.mxu0 %v1793
      %2381 = vmatpush1.bf16.msra.mxu0 %v1792
      %2382 = vmatprep.subr.bf16.mxu0 %v1796
      %2383 = vmatpush1.bf16.msra.mxu0 %v1795
      %2384 = vmatprep.subr.bf16.mxu0 %v1799
      %2385 = vmatpush1.bf16.msra.mxu0 %v1798
      %2386 = vmatprep.subr.bf16.mxu0 %v1802
      %2387 = vmatpush1.bf16.msra.mxu0 %v1801
      %2388 = vmatprep.subr.bf16.mxu0 %v1805
      %2389 = vmatpush1.bf16.msra.mxu0 %v1804
      %2390 = vmatprep.mubr.bf16.mxu0 %v689
      %2391 = vmatmul.mubr.bf16.gmra.mrb[0].mxu0 %v688
      %v2392 = vpop.f32.mrb[0].mxu0
      %v2393 = vadd.f32 %v2350, %v2392
      %v2394 = vpop.f32.mrb[0].mxu0
      %v2395 = vadd.f32 %v2352, %v2394
      %v2396 = vpop.f32.mrb[0].mxu0
      %v2397 = vadd.f32 %v2354, %v2396
      %v2398 = vpop.f32.mrb[0].mxu0
      %v2399 = vadd.f32 %v2356, %v2398
      %2400 = vdwg.mxu0
      %2401 = vmatprep.subr.bf16.mxu0 %v1808
      %2402 = vmatpush1.bf16.msra.mxu0 %v1807
      %2403 = vmatprep.subr.bf16.mxu0 %v1811
      %2404 = vmatpush1.bf16.msra.mxu0 %v1810
      %2405 = vmatprep.subr.bf16.mxu0 %v1814
      %2406 = vmatpush1.bf16.msra.mxu0 %v1813
      %2407 = vmatprep.subr.bf16.mxu0 %v1817
      %2408 = vmatpush1.bf16.msra.mxu0 %v1816
      %2409 = vmatprep.subr.bf16.mxu0 %v1820
      %2410 = vmatpush1.bf16.msra.mxu0 %v1819
      %2411 = vmatprep.subr.bf16.mxu0 %v1823
      %2412 = vmatpush1.bf16.msra.mxu0 %v1822
      %2413 = vmatprep.subr.bf16.mxu0 %v1826
      %2414 = vmatpush1.bf16.msra.mxu0 %v1825
      %2415 = vmatprep.subr.bf16.mxu0 %v1829
      %2416 = vmatpush1.bf16.msra.mxu0 %v1828
      %2417 = vmatprep.subr.bf16.mxu0 %v1832
      %2418 = vmatpush1.bf16.msra.mxu0 %v1831
      %2419 = vmatprep.subr.bf16.mxu0 %v1835
      %2420 = vmatpush1.bf16.msra.mxu0 %v1834
      %2421 = vmatprep.subr.bf16.mxu0 %v1838
      %2422 = vmatpush1.bf16.msra.mxu0 %v1837
      %2423 = vmatprep.subr.bf16.mxu0 %v1841
      %2424 = vmatpush1.bf16.msra.mxu0 %v1840
      %2425 = vmatprep.subr.bf16.mxu0 %v1844
      %2426 = vmatpush1.bf16.msra.mxu0 %v1843
      %2427 = vmatprep.subr.bf16.mxu0 %v1847
      %2428 = vmatpush1.bf16.msra.mxu0 %v1846
      %2429 = vmatprep.subr.bf16.mxu0 %v1850
      %2430 = vmatpush1.bf16.msra.mxu0 %v1849
      %2431 = vmatprep.subr.bf16.mxu0 %v1853
      %2432 = vmatpush1.bf16.msra.mxu0 %v1852
      %2433 = vmatprep.mubr.bf16.mxu0 %v691
      %2434 = vmatmul.mubr.bf16.gmra.mrb[0].mxu0 %v690
      %v2435 = vpop.f32.mrb[0].mxu0
      %v2436 = vadd.f32 %v2393, %v2435
      %v2437 = vpop.f32.mrb[0].mxu0
      %v2438 = vadd.f32 %v2395, %v2437
      %v2439 = vpop.f32.mrb[0].mxu0
      %v2440 = vadd.f32 %v2397, %v2439
      %v2441 = vpop.f32.mrb[0].mxu0
      %v2442 = vadd.f32 %v2399, %v2441
      %2443 = vdwg.mxu0
      %2444 = vmatprep.subr.bf16.mxu0 %v1856
      %2445 = vmatpush1.bf16.msra.mxu0 %v1855
      %2446 = vmatprep.subr.bf16.mxu0 %v1859
      %2447 = vmatpush1.bf16.msra.mxu0 %v1858
      %2448 = vmatprep.subr.bf16.mxu0 %v1862
      %2449 = vmatpush1.bf16.msra.mxu0 %v1861
      %2450 = vmatprep.subr.bf16.mxu0 %v1865
      %2451 = vmatpush1.bf16.msra.mxu0 %v1864
      %2452 = vmatprep.subr.bf16.mxu0 %v1868
      %2453 = vmatpush1.bf16.msra.mxu0 %v1867
      %2454 = vmatprep.subr.bf16.mxu0 %v1871
      %2455 = vmatpush1.bf16.msra.mxu0 %v1870
      %2456 = vmatprep.subr.bf16.mxu0 %v1874
      %2457 = vmatpush1.bf16.msra.mxu0 %v1873
      %2458 = vmatprep.subr.bf16.mxu0 %v1877
      %2459 = vmatpush1.bf16.msra.mxu0 %v1876
      %2460 = vmatprep.subr.bf16.mxu0 %v1880
      %2461 = vmatpush1.bf16.msra.mxu0 %v1879
      %2462 = vmatprep.subr.bf16.mxu0 %v1883
      %2463 = vmatpush1.bf16.msra.mxu0 %v1882
      %2464 = vmatprep.subr.bf16.mxu0 %v1886
      %2465 = vmatpush1.bf16.msra.mxu0 %v1885
      %2466 = vmatprep.subr.bf16.mxu0 %v1889
      %2467 = vmatpush1.bf16.msra.mxu0 %v1888
      %2468 = vmatprep.subr.bf16.mxu0 %v1892
      %2469 = vmatpush1.bf16.msra.mxu0 %v1891
      %2470 = vmatprep.subr.bf16.mxu0 %v1895
      %2471 = vmatpush1.bf16.msra.mxu0 %v1894
      %2472 = vmatprep.subr.bf16.mxu0 %v1898
      %2473 = vmatpush1.bf16.msra.mxu0 %v1897
      %2474 = vmatprep.subr.bf16.mxu0 %v1901
      %2475 = vmatpush1.bf16.msra.mxu0 %v1900
      %2476 = vmatprep.mubr.bf16.mxu0 %v693
      %2477 = vmatmul.mubr.bf16.gmra.mrb[0].mxu0 %v692
      %v2478 = vpop.f32.mrb[0].mxu0
      %v2479 = vadd.f32 %v2436, %v2478
      %v2480 = vpop.f32.mrb[0].mxu0
      %v2481 = vadd.f32 %v2438, %v2480
      %v2482 = vpop.f32.mrb[0].mxu0
      %v2483 = vadd.f32 %v2440, %v2482
      %v2484 = vpop.f32.mrb[0].mxu0
      %v2485 = vadd.f32 %v2442, %v2484
      %2486 = vdwg.mxu0
      %2487 = vmatprep.subr.bf16.mxu0 %v1904
      %2488 = vmatpush1.bf16.msra.mxu0 %v1903
      %2489 = vmatprep.subr.bf16.mxu0 %v1907
      %2490 = vmatpush1.bf16.msra.mxu0 %v1906
      %2491 = vmatprep.subr.bf16.mxu0 %v1910
      %2492 = vmatpush1.bf16.msra.mxu0 %v1909
      %2493 = vmatprep.subr.bf16.mxu0 %v1913
      %2494 = vmatpush1.bf16.msra.mxu0 %v1912
      %2495 = vmatprep.subr.bf16.mxu0 %v1916
      %2496 = vmatpush1.bf16.msra.mxu0 %v1915
      %2497 = vmatprep.subr.bf16.mxu0 %v1919
      %2498 = vmatpush1.bf16.msra.mxu0 %v1918
      %2499 = vmatprep.subr.bf16.mxu0 %v1922
      %2500 = vmatpush1.bf16.msra.mxu0 %v1921
      %2501 = vmatprep.subr.bf16.mxu0 %v1925
      %2502 = vmatpush1.bf16.msra.mxu0 %v1924
      %2503 = vmatprep.subr.bf16.mxu0 %v1928
      %2504 = vmatpush1.bf16.msra.mxu0 %v1927
      %2505 = vmatprep.subr.bf16.mxu0 %v1931
      %2506 = vmatpush1.bf16.msra.mxu0 %v1930
      %2507 = vmatprep.subr.bf16.mxu0 %v1934
      %2508 = vmatpush1.bf16.msra.mxu0 %v1933
      %2509 = vmatprep.subr.bf16.mxu0 %v1937
      %2510 = vmatpush1.bf16.msra.mxu0 %v1936
      %2511 = vmatprep.subr.bf16.mxu0 %v1940
      %2512 = vmatpush1.bf16.msra.mxu0 %v1939
      %2513 = vmatprep.subr.bf16.mxu0 %v1943
      %2514 = vmatpush1.bf16.msra.mxu0 %v1942
      %2515 = vmatprep.subr.bf16.mxu0 %v1946
      %2516 = vmatpush1.bf16.msra.mxu0 %v1945
      %2517 = vmatprep.subr.bf16.mxu0 %v1949
      %2518 = vmatpush1.bf16.msra.mxu0 %v1948
      %2519 = vmatprep.mubr.bf16.mxu0 %v695
      %2520 = vmatmul.mubr.bf16.gmra.mrb[0].mxu0 %v694
      %v2521 = vpop.f32.mrb[0].mxu0
      %v2522 = vadd.f32 %v2479, %v2521
      %v2523 = vpop.f32.mrb[0].mxu0
      %v2524 = vadd.f32 %v2481, %v2523
      %v2525 = vpop.f32.mrb[0].mxu0
      %v2526 = vadd.f32 %v2483, %v2525
      %v2527 = vpop.f32.mrb[0].mxu0
      %v2528 = vadd.f32 %v2485, %v2527
      %2529 = vdwg.mxu0
      %2530 = vmatprep.subr.bf16.mxu0 %v1952
      %2531 = vmatpush1.bf16.msra.mxu0 %v1951
      %2532 = vmatprep.subr.bf16.mxu0 %v1955
      %2533 = vmatpush1.bf16.msra.mxu0 %v1954
      %2534 = vmatprep.subr.bf16.mxu0 %v1958
      %2535 = vmatpush1.bf16.msra.mxu0 %v1957
      %2536 = vmatprep.subr.bf16.mxu0 %v1961
      %2537 = vmatpush1.bf16.msra.mxu0 %v1960
      %2538 = vmatprep.subr.bf16.mxu0 %v1964
      %2539 = vmatpush1.bf16.msra.mxu0 %v1963
      %2540 = vmatprep.subr.bf16.mxu0 %v1967
      %2541 = vmatpush1.bf16.msra.mxu0 %v1966
      %2542 = vmatprep.subr.bf16.mxu0 %v1970
      %2543 = vmatpush1.bf16.msra.mxu0 %v1969
      %2544 = vmatprep.subr.bf16.mxu0 %v1973
      %2545 = vmatpush1.bf16.msra.mxu0 %v1972
      %2546 = vmatprep.subr.bf16.mxu0 %v1976
      %2547 = vmatpush1.bf16.msra.mxu0 %v1975
      %2548 = vmatprep.subr.bf16.mxu0 %v1979
      %2549 = vmatpush1.bf16.msra.mxu0 %v1978
      %2550 = vmatprep.subr.bf16.mxu0 %v1982
      %2551 = vmatpush1.bf16.msra.mxu0 %v1981
      %2552 = vmatprep.subr.bf16.mxu0 %v1985
      %2553 = vmatpush1.bf16.msra.mxu0 %v1984
      %2554 = vmatprep.subr.bf16.mxu0 %v1988
      %2555 = vmatpush1.bf16.msra.mxu0 %v1987
      %2556 = vmatprep.subr.bf16.mxu0 %v1991
      %2557 = vmatpush1.bf16.msra.mxu0 %v1990
      %2558 = vmatprep.subr.bf16.mxu0 %v1994
      %2559 = vmatpush1.bf16.msra.mxu0 %v1993
      %2560 = vmatprep.subr.bf16.mxu0 %v1997
      %2561 = vmatpush1.bf16.msra.mxu0 %v1996
      %2562 = vmatprep.mubr.bf16.mxu0 %v697
      %2563 = vmatmul.mubr.bf16.gmra.mrb[0].mxu0 %v696
      %v2564 = vpop.f32.mrb[0].mxu0
      %v2565 = vadd.f32 %v2522, %v2564
      %v2566 = vpop.f32.mrb[0].mxu0
      %v2567 = vadd.f32 %v2524, %v2566
      %v2568 = vpop.f32.mrb[0].mxu0
      %v2569 = vadd.f32 %v2526, %v2568
      %v2570 = vpop.f32.mrb[0].mxu0
      %v2571 = vadd.f32 %v2528, %v2570
      %2572 = vdwg.mxu0
      %2573 = vmatprep.subr.bf16.mxu0 %v2000
      %2574 = vmatpush1.bf16.msra.mxu0 %v1999
      %2575 = vmatprep.subr.bf16.mxu0 %v2003
      %2576 = vmatpush1.bf16.msra.mxu0 %v2002
      %2577 = vmatprep.subr.bf16.mxu0 %v2006
      %2578 = vmatpush1.bf16.msra.mxu0 %v2005
      %2579 = vmatprep.subr.bf16.mxu0 %v2009
      %2580 = vmatpush1.bf16.msra.mxu0 %v2008
      %2581 = vmatprep.subr.bf16.mxu0 0
      %2582 = vmatpush1.bf16.msra.mxu0 0
      %2583 = vmatprep.subr.bf16.mxu0 0
      %2584 = vmatpush1.bf16.msra.mxu0 0
      %2585 = vmatprep.subr.bf16.mxu0 0
      %2586 = vmatpush1.bf16.msra.mxu0 0
      %2587 = vmatprep.subr.bf16.mxu0 0
      %2588 = vmatpush1.bf16.msra.mxu0 0
      %2589 = vmatprep.subr.bf16.mxu0 0
      %2590 = vmatpush1.bf16.msra.mxu0 0
      %2591 = vmatprep.subr.bf16.mxu0 0
      %2592 = vmatpush1.bf16.msra.mxu0 0
      %2593 = vmatprep.subr.bf16.mxu0 0
      %2594 = vmatpush1.bf16.msra.mxu0 0
      %2595 = vmatprep.subr.bf16.mxu0 0
      %2596 = vmatpush1.bf16.msra.mxu0 0
      %2597 = vmatprep.subr.bf16.mxu0 0
      %2598 = vmatpush1.bf16.msra.mxu0 0
      %2599 = vmatprep.subr.bf16.mxu0 0
      %2600 = vmatpush1.bf16.msra.mxu0 0
      %2601 = vmatprep.subr.bf16.mxu0 0
      %2602 = vmatpush1.bf16.msra.mxu0 0
      %2603 = vmatprep.subr.bf16.mxu0 0
      %2604 = vmatpush1.bf16.msra.mxu0 0
      %2605 = vmatprep.mubr.bf16.mxu0 0
      %2606 = vmatmul.mubr.bf16.gmra.mrb[0].mxu0 %v2313
      %v2607 = vpop.f32.mrb[0].mxu0
      %v2608 = vadd.f32 %v2565, %v2607
      %v2609 = vpop.f32.mrb[0].mxu0
      %v2610 = vadd.f32 %v2567, %v2609
      %v2611 = vpop.f32.mrb[0].mxu0
      %v2612 = vadd.f32 %v2569, %v2611
      %v2613 = vpop.f32.mrb[0].mxu0
      %v2614 = vadd.f32 %v2571, %v2613
      %2615 = vdwg.mxu0
      %2616 = vmatprep.subr.bf16.mxu0 0
      %2617 = vmatpush1.bf16.msra.mxu0 %v1713
      %2618 = vmatprep.subr.bf16.mxu0 0
      %2619 = vmatpush1.bf16.msra.mxu0 %v1716
      %2620 = vmatprep.subr.bf16.mxu0 0
      %2621 = vmatpush1.bf16.msra.mxu0 %v1719
      %2622 = vmatprep.subr.bf16.mxu0 0
      %2623 = vmatpush1.bf16.msra.mxu0 %v1722
      %2624 = vmatprep.subr.bf16.mxu0 0
      %2625 = vmatpush1.bf16.msra.mxu0 %v1725
      %2626 = vmatprep.subr.bf16.mxu0 0
      %2627 = vmatpush1.bf16.msra.mxu0 %v1728
      %2628 = vmatprep.subr.bf16.mxu0 0
      %2629 = vmatpush1.bf16.msra.mxu0 %v1731
      %2630 = vmatprep.subr.bf16.mxu0 0
      %2631 = vmatpush1.bf16.msra.mxu0 %v1734
      %2632 = vmatprep.subr.bf16.mxu0 0
      %2633 = vmatpush1.bf16.msra.mxu0 %v1737
      %2634 = vmatprep.subr.bf16.mxu0 0
      %2635 = vmatpush1.bf16.msra.mxu0 %v1740
      %2636 = vmatprep.subr.bf16.mxu0 0
      %2637 = vmatpush1.bf16.msra.mxu0 %v1743
      %2638 = vmatprep.subr.bf16.mxu0 0
      %2639 = vmatpush1.bf16.msra.mxu0 %v1746
      %2640 = vmatprep.subr.bf16.mxu0 0
      %2641 = vmatpush1.bf16.msra.mxu0 %v1749
      %2642 = vmatprep.subr.bf16.mxu0 0
      %2643 = vmatpush1.bf16.msra.mxu0 %v1752
      %2644 = vmatprep.subr.bf16.mxu0 0
      %2645 = vmatpush1.bf16.msra.mxu0 %v1755
      %2646 = vmatprep.subr.bf16.mxu0 0
      %2647 = vmatpush1.bf16.msra.mxu0 %v1758
      %2648 = vmatprep.mubr.bf16.mxu0 %v687
      %2649 = vmatmul.mubr.bf16.gmra.mrb[0].mxu0 %v686
      %v2650 = vpop.f32.mrb[0].mxu0
      %v2651 = vadd.f32 0.0, %v2650
      %v2652 = vpop.f32.mrb[0].mxu0
      %v2653 = vpop.f32.mrb[0].mxu0
      %v2654 = vadd.f32 0.0, %v2653
      %v2655 = vpop.f32.mrb[0].mxu0
      %2656 = vdwg.mxu0
      %2657 = vmatprep.subr.bf16.mxu0 0
      %2658 = vmatpush1.bf16.msra.mxu0 %v1761
      %2659 = vmatprep.subr.bf16.mxu0 0
      %2660 = vmatpush1.bf16.msra.mxu0 %v1764
      %2661 = vmatprep.subr.bf16.mxu0 0
      %2662 = vmatpush1.bf16.msra.mxu0 %v1767
      %2663 = vmatprep.subr.bf16.mxu0 0
      %2664 = vmatpush1.bf16.msra.mxu0 %v1770
      %2665 = vmatprep.subr.bf16.mxu0 0
      %2666 = vmatpush1.bf16.msra.mxu0 %v1773
      %2667 = vmatprep.subr.bf16.mxu0 0
      %2668 = vmatpush1.bf16.msra.mxu0 %v1776
      %2669 = vmatprep.subr.bf16.mxu0 0
      %2670 = vmatpush1.bf16.msra.mxu0 %v1779
      %2671 = vmatprep.subr.bf16.mxu0 0
      %2672 = vmatpush1.bf16.msra.mxu0 %v1782
      %2673 = vmatprep.subr.bf16.mxu0 0
      %2674 = vmatpush1.bf16.msra.mxu0 %v1785
      %2675 = vmatprep.subr.bf16.mxu0 0
      %2676 = vmatpush1.bf16.msra.mxu0 %v1788
      %2677 = vmatprep.subr.bf16.mxu0 0
      %2678 = vmatpush1.bf16.msra.mxu0 %v1791
      %2679 = vmatprep.subr.bf16.mxu0 0
      %2680 = vmatpush1.bf16.msra.mxu0 %v1794
      %2681 = vmatprep.subr.bf16.mxu0 0
      %2682 = vmatpush1.bf16.msra.mxu0 %v1797
      %2683 = vmatprep.subr.bf16.mxu0 0
      %2684 = vmatpush1.bf16.msra.mxu0 %v1800
      %2685 = vmatprep.subr.bf16.mxu0 0
      %2686 = vmatpush1.bf16.msra.mxu0 %v1803
      %2687 = vmatprep.subr.bf16.mxu0 0
      %2688 = vmatpush1.bf16.msra.mxu0 %v1806
      %2689 = vmatprep.mubr.bf16.mxu0 %v689
      %2690 = vmatmul.mubr.bf16.gmra.mrb[0].mxu0 %v688
      %v2691 = vpop.f32.mrb[0].mxu0
      %v2692 = vadd.f32 %v2651, %v2691
      %v2693 = vpop.f32.mrb[0].mxu0
      %v2694 = vpop.f32.mrb[0].mxu0
      %v2695 = vadd.f32 %v2654, %v2694
      %v2696 = vpop.f32.mrb[0].mxu0
      %2697 = vdwg.mxu0
      %2698 = vmatprep.subr.bf16.mxu0 0
      %2699 = vmatpush1.bf16.msra.mxu0 %v1809
      %2700 = vmatprep.subr.bf16.mxu0 0
      %2701 = vmatpush1.bf16.msra.mxu0 %v1812
      %2702 = vmatprep.subr.bf16.mxu0 0
      %2703 = vmatpush1.bf16.msra.mxu0 %v1815
      %2704 = vmatprep.subr.bf16.mxu0 0
      %2705 = vmatpush1.bf16.msra.mxu0 %v1818
      %2706 = vmatprep.subr.bf16.mxu0 0
      %2707 = vmatpush1.bf16.msra.mxu0 %v1821
      %2708 = vmatprep.subr.bf16.mxu0 0
      %2709 = vmatpush1.bf16.msra.mxu0 %v1824
      %2710 = vmatprep.subr.bf16.mxu0 0
      %2711 = vmatpush1.bf16.msra.mxu0 %v1827
      %2712 = vmatprep.subr.bf16.mxu0 0
      %2713 = vmatpush1.bf16.msra.mxu0 %v1830
      %2714 = vmatprep.subr.bf16.mxu0 0
      %2715 = vmatpush1.bf16.msra.mxu0 %v1833
      %2716 = vmatprep.subr.bf16.mxu0 0
      %2717 = vmatpush1.bf16.msra.mxu0 %v1836
      %2718 = vmatprep.subr.bf16.mxu0 0
      %2719 = vmatpush1.bf16.msra.mxu0 %v1839
      %2720 = vmatprep.subr.bf16.mxu0 0
      %2721 = vmatpush1.bf16.msra.mxu0 %v1842
      %2722 = vmatprep.subr.bf16.mxu0 0
      %2723 = vmatpush1.bf16.msra.mxu0 %v1845
      %2724 = vmatprep.subr.bf16.mxu0 0
      %2725 = vmatpush1.bf16.msra.mxu0 %v1848
      %2726 = vmatprep.subr.bf16.mxu0 0
      %2727 = vmatpush1.bf16.msra.mxu0 %v1851
      %2728 = vmatprep.subr.bf16.mxu0 0
      %2729 = vmatpush1.bf16.msra.mxu0 %v1854
      %2730 = vmatprep.mubr.bf16.mxu0 %v691
      %2731 = vmatmul.mubr.bf16.gmra.mrb[0].mxu0 %v690
      %v2732 = vpop.f32.mrb[0].mxu0
      %v2733 = vadd.f32 %v2692, %v2732
      %v2734 = vpop.f32.mrb[0].mxu0
      %v2735 = vpop.f32.mrb[0].mxu0
      %v2736 = vadd.f32 %v2695, %v2735
      %v2737 = vpop.f32.mrb[0].mxu0
      %2738 = vdwg.mxu0
      %2739 = vmatprep.subr.bf16.mxu0 0
      %2740 = vmatpush1.bf16.msra.mxu0 %v1857
      %2741 = vmatprep.subr.bf16.mxu0 0
      %2742 = vmatpush1.bf16.msra.mxu0 %v1860
      %2743 = vmatprep.subr.bf16.mxu0 0
      %2744 = vmatpush1.bf16.msra.mxu0 %v1863
      %2745 = vmatprep.subr.bf16.mxu0 0
      %2746 = vmatpush1.bf16.msra.mxu0 %v1866
      %2747 = vmatprep.subr.bf16.mxu0 0
      %2748 = vmatpush1.bf16.msra.mxu0 %v1869
      %2749 = vmatprep.subr.bf16.mxu0 0
      %2750 = vmatpush1.bf16.msra.mxu0 %v1872
      %2751 = vmatprep.subr.bf16.mxu0 0
      %2752 = vmatpush1.bf16.msra.mxu0 %v1875
      %2753 = vmatprep.subr.bf16.mxu0 0
      %2754 = vmatpush1.bf16.msra.mxu0 %v1878
      %2755 = vmatprep.subr.bf16.mxu0 0
      %2756 = vmatpush1.bf16.msra.mxu0 %v1881
      %2757 = vmatprep.subr.bf16.mxu0 0
      %2758 = vmatpush1.bf16.msra.mxu0 %v1884
      %2759 = vmatprep.subr.bf16.mxu0 0
      %2760 = vmatpush1.bf16.msra.mxu0 %v1887
      %2761 = vmatprep.subr.bf16.mxu0 0
      %2762 = vmatpush1.bf16.msra.mxu0 %v1890
      %2763 = vmatprep.subr.bf16.mxu0 0
      %2764 = vmatpush1.bf16.msra.mxu0 %v1893
      %2765 = vmatprep.subr.bf16.mxu0 0
      %2766 = vmatpush1.bf16.msra.mxu0 %v1896
      %2767 = vmatprep.subr.bf16.mxu0 0
      %2768 = vmatpush1.bf16.msra.mxu0 %v1899
      %2769 = vmatprep.subr.bf16.mxu0 0
      %2770 = vmatpush1.bf16.msra.mxu0 %v1902
      %2771 = vmatprep.mubr.bf16.mxu0 %v693
      %2772 = vmatmul.mubr.bf16.gmra.mrb[0].mxu0 %v692
      %v2773 = vpop.f32.mrb[0].mxu0
      %v2774 = vadd.f32 %v2733, %v2773
      %v2775 = vpop.f32.mrb[0].mxu0
      %v2776 = vpop.f32.mrb[0].mxu0
      %v2777 = vadd.f32 %v2736, %v2776
      %v2778 = vpop.f32.mrb[0].mxu0
      %2779 = vdwg.mxu0
      %2780 = vmatprep.subr.bf16.mxu0 0
      %2781 = vmatpush1.bf16.msra.mxu0 %v1905
      %2782 = vmatprep.subr.bf16.mxu0 0
      %2783 = vmatpush1.bf16.msra.mxu0 %v1908
      %2784 = vmatprep.subr.bf16.mxu0 0
      %2785 = vmatpush1.bf16.msra.mxu0 %v1911
      %2786 = vmatprep.subr.bf16.mxu0 0
      %2787 = vmatpush1.bf16.msra.mxu0 %v1914
      %2788 = vmatprep.subr.bf16.mxu0 0
      %2789 = vmatpush1.bf16.msra.mxu0 %v1917
      %2790 = vmatprep.subr.bf16.mxu0 0
      %2791 = vmatpush1.bf16.msra.mxu0 %v1920
      %2792 = vmatprep.subr.bf16.mxu0 0
      %2793 = vmatpush1.bf16.msra.mxu0 %v1923
      %2794 = vmatprep.subr.bf16.mxu0 0
      %2795 = vmatpush1.bf16.msra.mxu0 %v1926
      %2796 = vmatprep.subr.bf16.mxu0 0
      %2797 = vmatpush1.bf16.msra.mxu0 %v1929
      %2798 = vmatprep.subr.bf16.mxu0 0
      %2799 = vmatpush1.bf16.msra.mxu0 %v1932
      %2800 = vmatprep.subr.bf16.mxu0 0
      %2801 = vmatpush1.bf16.msra.mxu0 %v1935
      %2802 = vmatprep.subr.bf16.mxu0 0
      %2803 = vmatpush1.bf16.msra.mxu0 %v1938
      %2804 = vmatprep.subr.bf16.mxu0 0
      %2805 = vmatpush1.bf16.msra.mxu0 %v1941
      %2806 = vmatprep.subr.bf16.mxu0 0
      %2807 = vmatpush1.bf16.msra.mxu0 %v1944
      %2808 = vmatprep.subr.bf16.mxu0 0
      %2809 = vmatpush1.bf16.msra.mxu0 %v1947
      %2810 = vmatprep.subr.bf16.mxu0 0
      %2811 = vmatpush1.bf16.msra.mxu0 %v1950
      %2812 = vmatprep.mubr.bf16.mxu0 %v695
      %2813 = vmatmul.mubr.bf16.gmra.mrb[0].mxu0 %v694
      %v2814 = vpop.f32.mrb[0].mxu0
      %v2815 = vadd.f32 %v2774, %v2814
      %v2816 = vpop.f32.mrb[0].mxu0
      %v2817 = vpop.f32.mrb[0].mxu0
      %v2818 = vadd.f32 %v2777, %v2817
      %v2819 = vpop.f32.mrb[0].mxu0
      %2820 = vdwg.mxu0
      %2821 = vmatprep.subr.bf16.mxu0 0
      %2822 = vmatpush1.bf16.msra.mxu0 %v1953
      %2823 = vmatprep.subr.bf16.mxu0 0
      %2824 = vmatpush1.bf16.msra.mxu0 %v1956
      %2825 = vmatprep.subr.bf16.mxu0 0
      %2826 = vmatpush1.bf16.msra.mxu0 %v1959
      %2827 = vmatprep.subr.bf16.mxu0 0
      %2828 = vmatpush1.bf16.msra.mxu0 %v1962
      %2829 = vmatprep.subr.bf16.mxu0 0
      %2830 = vmatpush1.bf16.msra.mxu0 %v1965
      %2831 = vmatprep.subr.bf16.mxu0 0
      %2832 = vmatpush1.bf16.msra.mxu0 %v1968
      %2833 = vmatprep.subr.bf16.mxu0 0
      %2834 = vmatpush1.bf16.msra.mxu0 %v1971
      %2835 = vmatprep.subr.bf16.mxu0 0
      %2836 = vmatpush1.bf16.msra.mxu0 %v1974
      %2837 = vmatprep.subr.bf16.mxu0 0
      %2838 = vmatpush1.bf16.msra.mxu0 %v1977
      %2839 = vmatprep.subr.bf16.mxu0 0
      %2840 = vmatpush1.bf16.msra.mxu0 %v1980
      %2841 = vmatprep.subr.bf16.mxu0 0
      %2842 = vmatpush1.bf16.msra.mxu0 %v1983
      %2843 = vmatprep.subr.bf16.mxu0 0
      %2844 = vmatpush1.bf16.msra.mxu0 %v1986
      %2845 = vmatprep.subr.bf16.mxu0 0
      %2846 = vmatpush1.bf16.msra.mxu0 %v1989
      %2847 = vmatprep.subr.bf16.mxu0 0
      %2848 = vmatpush1.bf16.msra.mxu0 %v1992
      %2849 = vmatprep.subr.bf16.mxu0 0
      %2850 = vmatpush1.bf16.msra.mxu0 %v1995
      %2851 = vmatprep.subr.bf16.mxu0 0
      %2852 = vmatpush1.bf16.msra.mxu0 %v1998
      %2853 = vmatprep.mubr.bf16.mxu0 %v697
      %2854 = vmatmul.mubr.bf16.gmra.mrb[0].mxu0 %v696
      %v2855 = vpop.f32.mrb[0].mxu0
      %v2856 = vadd.f32 %v2815, %v2855
      %v2857 = vpop.f32.mrb[0].mxu0
      %v2858 = vpop.f32.mrb[0].mxu0
      %v2859 = vadd.f32 %v2818, %v2858
      %v2860 = vpop.f32.mrb[0].mxu0
      %2861 = vdwg.mxu0
      %2862 = vmatprep.subr.bf16.mxu0 0
      %2863 = vmatpush1.bf16.msra.mxu0 %v2001
      %2864 = vmatprep.subr.bf16.mxu0 0
      %2865 = vmatpush1.bf16.msra.mxu0 %v2004
      %2866 = vmatprep.subr.bf16.mxu0 0
      %2867 = vmatpush1.bf16.msra.mxu0 %v2007
      %2868 = vmatprep.subr.bf16.mxu0 0
      %2869 = vmatpush1.bf16.msra.mxu0 %v2010
      %2870 = vmatprep.subr.bf16.mxu0 0
      %2871 = vmatpush1.bf16.msra.mxu0 0
      %2872 = vmatprep.subr.bf16.mxu0 0
      %2873 = vmatpush1.bf16.msra.mxu0 0
      %2874 = vmatprep.subr.bf16.mxu0 0
      %2875 = vmatpush1.bf16.msra.mxu0 0
      %2876 = vmatprep.subr.bf16.mxu0 0
      %2877 = vmatpush1.bf16.msra.mxu0 0
      %2878 = vmatprep.subr.bf16.mxu0 0
      %2879 = vmatpush1.bf16.msra.mxu0 0
      %2880 = vmatprep.subr.bf16.mxu0 0
      %2881 = vmatpush1.bf16.msra.mxu0 0
      %2882 = vmatprep.subr.bf16.mxu0 0
      %2883 = vmatpush1.bf16.msra.mxu0 0
      %2884 = vmatprep.subr.bf16.mxu0 0
      %2885 = vmatpush1.bf16.msra.mxu0 0
      %2886 = vmatprep.subr.bf16.mxu0 0
      %2887 = vmatpush1.bf16.msra.mxu0 0
      %2888 = vmatprep.subr.bf16.mxu0 0
      %2889 = vmatpush1.bf16.msra.mxu0 0
      %2890 = vmatprep.subr.bf16.mxu0 0
      %2891 = vmatpush1.bf16.msra.mxu0 0
      %2892 = vmatprep.subr.bf16.mxu0 0
      %2893 = vmatpush1.bf16.msra.mxu0 0
      %2894 = vmatprep.mubr.bf16.mxu0 0
      %2895 = vmatmul.mubr.bf16.gmra.mrb[0].mxu0 %v2313
      %v2896 = vpop.f32.mrb[0].mxu0
      %v2897 = vadd.f32 %v2856, %v2896
      %v2898 = vpop.f32.mrb[0].mxu0
      %v2899 = vpop.f32.mrb[0].mxu0
      %v2900 = vadd.f32 %v2859, %v2899
      %v2901 = vpop.f32.mrb[0].mxu0
      %2902 = vdwg.mxu0
      %v2903 = vld [vmem:[%s223 + $0x68] sm:$0xff]
      %v2904 = vld [vmem:[%s223 + $0x70] sm:$0xff]
      %v2905 = vld [vmem:[%s223 + $0x78] sm:$0xff]
      %v2906 = vld [vmem:[%s223 + $0x80] sm:$0xff]
      %v2907 = vld [vmem:[%s223 + $0x88] sm:$0xff]
      %v2908 = vld [vmem:[%s223 + $0x90] sm:$0xff]
      %v2909 = vld [vmem:[%s223 + $0x98] sm:$0xf]
      %v2910 = vld [vmem:[%s223 + $0x9c] sm:$0xff]
      %v2911 = vld [vmem:[%s223 + $0xa4] sm:$0xff]
      %v2912 = vld [vmem:[%s223 + $0xac] sm:$0xff]
      %v2913 = vld [vmem:[%s223 + $0xb4] sm:$0xff]
      %v2914 = vld [vmem:[%s223 + $0xbc] sm:$0xff]
      %v2915 = vld [vmem:[%s223 + $0xc4] sm:$0xff]
      %v2916 = vld [vmem:[%s223 + $0xcc] sm:$0xf]
      %v2931 = vunpack.c.l.b16 %v2903
      %v2932 = vunpack.c.h.b16 %v2903
      %v2933 = vunpack.c.l.b16 %v2904
      %v2934 = vunpack.c.h.b16 %v2904
      %v2935 = vunpack.c.l.b16 %v2905
      %v2936 = vunpack.c.h.b16 %v2905
      %v2937 = vunpack.c.l.b16 %v2906
      %v2938 = vunpack.c.h.b16 %v2906
      %v2939 = vunpack.c.l.b16 %v2907
      %v2940 = vunpack.c.h.b16 %v2907
      %v2941 = vunpack.c.l.b16 %v2908
      %v2942 = vunpack.c.h.b16 %v2908
      %v2943 = vunpack.c.l.b16 %v2909
      %v2944 = vunpack.c.l.b16 %v2910
      %v2945 = vunpack.c.h.b16 %v2910
      %v2946 = vunpack.c.l.b16 %v2911
      %v2947 = vunpack.c.h.b16 %v2911
      %v2948 = vunpack.c.l.b16 %v2912
      %v2949 = vunpack.c.h.b16 %v2912
      %v2950 = vunpack.c.l.b16 %v2913
      %v2951 = vunpack.c.h.b16 %v2913
      %v2952 = vunpack.c.l.b16 %v2914
      %v2953 = vunpack.c.h.b16 %v2914
      %v2954 = vunpack.c.l.b16 %v2915
      %v2955 = vunpack.c.h.b16 %v2915
      %v2956 = vunpack.c.l.b16 %v2916
      %v2957 = vpack.c.b16 %v2944, %v2931
      %v2958 = vpack.c.b16 %v2945, %v2932
      %v2959 = vpack.c.b16 %v2946, %v2933
      %v2960 = vpack.c.b16 %v2947, %v2934
      %v2961 = vpack.c.b16 %v2948, %v2935
      %v2962 = vpack.c.b16 %v2949, %v2936
      %v2963 = vpack.c.b16 %v2950, %v2937
      %v2964 = vpack.c.b16 %v2951, %v2938
      %v2965 = vpack.c.b16 %v2952, %v2939
      %v2966 = vpack.c.b16 %v2953, %v2940
      %v2967 = vpack.c.b16 %v2954, %v2941
      %v2968 = vpack.c.b16 %v2955, %v2942
      %v2969 = vpack.c.b16 %v2956, %v2943
      %v2983 = vsel %vm2311, %v2969, 0
      %2985 = vmatprep.subr.bf16.mxu0 %v1712
      %2986 = vmatpush1.bf16.msra.mxu0 %v1711
      %2987 = vmatprep.subr.bf16.mxu0 %v1715
      %2988 = vmatpush1.bf16.msra.mxu0 %v1714
      %2989 = vmatprep.subr.bf16.mxu0 %v1718
      %2990 = vmatpush1.bf16.msra.mxu0 %v1717
      %2991 = vmatprep.subr.bf16.mxu0 %v1721
      %2992 = vmatpush1.bf16.msra.mxu0 %v1720
      %2993 = vmatprep.subr.bf16.mxu0 %v1724
      %2994 = vmatpush1.bf16.msra.mxu0 %v1723
      %2995 = vmatprep.subr.bf16.mxu0 %v1727
      %2996 = vmatpush1.bf16.msra.mxu0 %v1726
      %2997 = vmatprep.subr.bf16.mxu0 %v1730
      %2998 = vmatpush1.bf16.msra.mxu0 %v1729
      %2999 = vmatprep.subr.bf16.mxu0 %v1733
      %3000 = vmatpush1.bf16.msra.mxu0 %v1732
      %3001 = vmatprep.subr.bf16.mxu0 %v1736
      %3002 = vmatpush1.bf16.msra.mxu0 %v1735
      %3003 = vmatprep.subr.bf16.mxu0 %v1739
      %3004 = vmatpush1.bf16.msra.mxu0 %v1738
      %3005 = vmatprep.subr.bf16.mxu0 %v1742
      %3006 = vmatpush1.bf16.msra.mxu0 %v1741
      %3007 = vmatprep.subr.bf16.mxu0 %v1745
      %3008 = vmatpush1.bf16.msra.mxu0 %v1744
      %3009 = vmatprep.subr.bf16.mxu0 %v1748
      %3010 = vmatpush1.bf16.msra.mxu0 %v1747
      %3011 = vmatprep.subr.bf16.mxu0 %v1751
      %3012 = vmatpush1.bf16.msra.mxu0 %v1750
      %3013 = vmatprep.subr.bf16.mxu0 %v1754
      %3014 = vmatpush1.bf16.msra.mxu0 %v1753
      %3015 = vmatprep.subr.bf16.mxu0 %v1757
      %3016 = vmatpush1.bf16.msra.mxu0 %v1756
      %3017 = vmatprep.mubr.bf16.mxu0 %v2958
      %3018 = vmatmul.mubr.bf16.gmra.mrb[0].mxu0 %v2957
      %v3019 = vpop.f32.mrb[0].mxu0
      %v3020 = vadd.f32 0.0, %v3019
      %v3021 = vpop.f32.mrb[0].mxu0
      %v3022 = vadd.f32 0.0, %v3021
      %v3023 = vpop.f32.mrb[0].mxu0
      %v3024 = vadd.f32 0.0, %v3023
      %v3025 = vpop.f32.mrb[0].mxu0
      %v3026 = vadd.f32 0.0, %v3025
      %3027 = vdwg.mxu0
      %3028 = vmatprep.subr.bf16.mxu0 %v1760
      %3029 = vmatpush1.bf16.msra.mxu0 %v1759
      %3030 = vmatprep.subr.bf16.mxu0 %v1763
      %3031 = vmatpush1.bf16.msra.mxu0 %v1762
      %3032 = vmatprep.subr.bf16.mxu0 %v1766
      %3033 = vmatpush1.bf16.msra.mxu0 %v1765
      %3034 = vmatprep.subr.bf16.mxu0 %v1769
      %3035 = vmatpush1.bf16.msra.mxu0 %v1768
      %3036 = vmatprep.subr.bf16.mxu0 %v1772
      %3037 = vmatpush1.bf16.msra.mxu0 %v1771
      %3038 = vmatprep.subr.bf16.mxu0 %v1775
      %3039 = vmatpush1.bf16.msra.mxu0 %v1774
      %3040 = vmatprep.subr.bf16.mxu0 %v1778
      %3041 = vmatpush1.bf16.msra.mxu0 %v1777
      %3042 = vmatprep.subr.bf16.mxu0 %v1781
      %3043 = vmatpush1.bf16.msra.mxu0 %v1780
      %3044 = vmatprep.subr.bf16.mxu0 %v1784
      %3045 = vmatpush1.bf16.msra.mxu0 %v1783
      %3046 = vmatprep.subr.bf16.mxu0 %v1787
      %3047 = vmatpush1.bf16.msra.mxu0 %v1786
      %3048 = vmatprep.subr.bf16.mxu0 %v1790
      %3049 = vmatpush1.bf16.msra.mxu0 %v1789
      %3050 = vmatprep.subr.bf16.mxu0 %v1793
      %3051 = vmatpush1.bf16.msra.mxu0 %v1792
      %3052 = vmatprep.subr.bf16.mxu0 %v1796
      %3053 = vmatpush1.bf16.msra.mxu0 %v1795
      %3054 = vmatprep.subr.bf16.mxu0 %v1799
      %3055 = vmatpush1.bf16.msra.mxu0 %v1798
      %3056 = vmatprep.subr.bf16.mxu0 %v1802
      %3057 = vmatpush1.bf16.msra.mxu0 %v1801
      %3058 = vmatprep.subr.bf16.mxu0 %v1805
      %3059 = vmatpush1.bf16.msra.mxu0 %v1804
      %3060 = vmatprep.mubr.bf16.mxu0 %v2960
      %3061 = vmatmul.mubr.bf16.gmra.mrb[0].mxu0 %v2959
      %v3062 = vpop.f32.mrb[0].mxu0
      %v3063 = vadd.f32 %v3020, %v3062
      %v3064 = vpop.f32.mrb[0].mxu0
      %v3065 = vadd.f32 %v3022, %v3064
      %v3066 = vpop.f32.mrb[0].mxu0
      %v3067 = vadd.f32 %v3024, %v3066
      %v3068 = vpop.f32.mrb[0].mxu0
      %v3069 = vadd.f32 %v3026, %v3068
      %3070 = vdwg.mxu0
      %3071 = vmatprep.subr.bf16.mxu0 %v1808
      %3072 = vmatpush1.bf16.msra.mxu0 %v1807
      %3073 = vmatprep.subr.bf16.mxu0 %v1811
      %3074 = vmatpush1.bf16.msra.mxu0 %v1810
      %3075 = vmatprep.subr.bf16.mxu0 %v1814
      %3076 = vmatpush1.bf16.msra.mxu0 %v1813
      %3077 = vmatprep.subr.bf16.mxu0 %v1817
      %3078 = vmatpush1.bf16.msra.mxu0 %v1816
      %3079 = vmatprep.subr.bf16.mxu0 %v1820
      %3080 = vmatpush1.bf16.msra.mxu0 %v1819
      %3081 = vmatprep.subr.bf16.mxu0 %v1823
      %3082 = vmatpush1.bf16.msra.mxu0 %v1822
      %3083 = vmatprep.subr.bf16.mxu0 %v1826
      %3084 = vmatpush1.bf16.msra.mxu0 %v1825
      %3085 = vmatprep.subr.bf16.mxu0 %v1829
      %3086 = vmatpush1.bf16.msra.mxu0 %v1828
      %3087 = vmatprep.subr.bf16.mxu0 %v1832
      %3088 = vmatpush1.bf16.msra.mxu0 %v1831
      %3089 = vmatprep.subr.bf16.mxu0 %v1835
      %3090 = vmatpush1.bf16.msra.mxu0 %v1834
      %3091 = vmatprep.subr.bf16.mxu0 %v1838
      %3092 = vmatpush1.bf16.msra.mxu0 %v1837
      %3093 = vmatprep.subr.bf16.mxu0 %v1841
      %3094 = vmatpush1.bf16.msra.mxu0 %v1840
      %3095 = vmatprep.subr.bf16.mxu0 %v1844
      %3096 = vmatpush1.bf16.msra.mxu0 %v1843
      %3097 = vmatprep.subr.bf16.mxu0 %v1847
      %3098 = vmatpush1.bf16.msra.mxu0 %v1846
      %3099 = vmatprep.subr.bf16.mxu0 %v1850
      %3100 = vmatpush1.bf16.msra.mxu0 %v1849
      %3101 = vmatprep.subr.bf16.mxu0 %v1853
      %3102 = vmatpush1.bf16.msra.mxu0 %v1852
      %3103 = vmatprep.mubr.bf16.mxu0 %v2962
      %3104 = vmatmul.mubr.bf16.gmra.mrb[0].mxu0 %v2961
      %v3105 = vpop.f32.mrb[0].mxu0
      %v3106 = vadd.f32 %v3063, %v3105
      %v3107 = vpop.f32.mrb[0].mxu0
      %v3108 = vadd.f32 %v3065, %v3107
      %v3109 = vpop.f32.mrb[0].mxu0
      %v3110 = vadd.f32 %v3067, %v3109
      %v3111 = vpop.f32.mrb[0].mxu0
      %v3112 = vadd.f32 %v3069, %v3111
      %3113 = vdwg.mxu0
      %3114 = vmatprep.subr.bf16.mxu0 %v1856
      %3115 = vmatpush1.bf16.msra.mxu0 %v1855
      %3116 = vmatprep.subr.bf16.mxu0 %v1859
      %3117 = vmatpush1.bf16.msra.mxu0 %v1858
      %3118 = vmatprep.subr.bf16.mxu0 %v1862
      %3119 = vmatpush1.bf16.msra.mxu0 %v1861
      %3120 = vmatprep.subr.bf16.mxu0 %v1865
      %3121 = vmatpush1.bf16.msra.mxu0 %v1864
      %3122 = vmatprep.subr.bf16.mxu0 %v1868
      %3123 = vmatpush1.bf16.msra.mxu0 %v1867
      %3124 = vmatprep.subr.bf16.mxu0 %v1871
      %3125 = vmatpush1.bf16.msra.mxu0 %v1870
      %3126 = vmatprep.subr.bf16.mxu0 %v1874
      %3127 = vmatpush1.bf16.msra.mxu0 %v1873
      %3128 = vmatprep.subr.bf16.mxu0 %v1877
      %3129 = vmatpush1.bf16.msra.mxu0 %v1876
      %3130 = vmatprep.subr.bf16.mxu0 %v1880
      %3131 = vmatpush1.bf16.msra.mxu0 %v1879
      %3132 = vmatprep.subr.bf16.mxu0 %v1883
      %3133 = vmatpush1.bf16.msra.mxu0 %v1882
      %3134 = vmatprep.subr.bf16.mxu0 %v1886
      %3135 = vmatpush1.bf16.msra.mxu0 %v1885
      %3136 = vmatprep.subr.bf16.mxu0 %v1889
      %3137 = vmatpush1.bf16.msra.mxu0 %v1888
      %3138 = vmatprep.subr.bf16.mxu0 %v1892
      %3139 = vmatpush1.bf16.msra.mxu0 %v1891
      %3140 = vmatprep.subr.bf16.mxu0 %v1895
      %3141 = vmatpush1.bf16.msra.mxu0 %v1894
      %3142 = vmatprep.subr.bf16.mxu0 %v1898
      %3143 = vmatpush1.bf16.msra.mxu0 %v1897
      %3144 = vmatprep.subr.bf16.mxu0 %v1901
      %3145 = vmatpush1.bf16.msra.mxu0 %v1900
      %3146 = vmatprep.mubr.bf16.mxu0 %v2964
      %3147 = vmatmul.mubr.bf16.gmra.mrb[0].mxu0 %v2963
      %v3148 = vpop.f32.mrb[0].mxu0
      %v3149 = vadd.f32 %v3106, %v3148
      %v3150 = vpop.f32.mrb[0].mxu0
      %v3151 = vadd.f32 %v3108, %v3150
      %v3152 = vpop.f32.mrb[0].mxu0
      %v3153 = vadd.f32 %v3110, %v3152
      %v3154 = vpop.f32.mrb[0].mxu0
      %v3155 = vadd.f32 %v3112, %v3154
      %3156 = vdwg.mxu0
      %3157 = vmatprep.subr.bf16.mxu0 %v1904
      %3158 = vmatpush1.bf16.msra.mxu0 %v1903
      %3159 = vmatprep.subr.bf16.mxu0 %v1907
      %3160 = vmatpush1.bf16.msra.mxu0 %v1906
      %3161 = vmatprep.subr.bf16.mxu0 %v1910
      %3162 = vmatpush1.bf16.msra.mxu0 %v1909
      %3163 = vmatprep.subr.bf16.mxu0 %v1913
      %3164 = vmatpush1.bf16.msra.mxu0 %v1912
      %3165 = vmatprep.subr.bf16.mxu0 %v1916
      %3166 = vmatpush1.bf16.msra.mxu0 %v1915
      %3167 = vmatprep.subr.bf16.mxu0 %v1919
      %3168 = vmatpush1.bf16.msra.mxu0 %v1918
      %3169 = vmatprep.subr.bf16.mxu0 %v1922
      %3170 = vmatpush1.bf16.msra.mxu0 %v1921
      %3171 = vmatprep.subr.bf16.mxu0 %v1925
      %3172 = vmatpush1.bf16.msra.mxu0 %v1924
      %3173 = vmatprep.subr.bf16.mxu0 %v1928
      %3174 = vmatpush1.bf16.msra.mxu0 %v1927
      %3175 = vmatprep.subr.bf16.mxu0 %v1931
      %3176 = vmatpush1.bf16.msra.mxu0 %v1930
      %3177 = vmatprep.subr.bf16.mxu0 %v1934
      %3178 = vmatpush1.bf16.msra.mxu0 %v1933
      %3179 = vmatprep.subr.bf16.mxu0 %v1937
      %3180 = vmatpush1.bf16.msra.mxu0 %v1936
      %3181 = vmatprep.subr.bf16.mxu0 %v1940
      %3182 = vmatpush1.bf16.msra.mxu0 %v1939
      %3183 = vmatprep.subr.bf16.mxu0 %v1943
      %3184 = vmatpush1.bf16.msra.mxu0 %v1942
      %3185 = vmatprep.subr.bf16.mxu0 %v1946
      %3186 = vmatpush1.bf16.msra.mxu0 %v1945
      %3187 = vmatprep.subr.bf16.mxu0 %v1949
      %3188 = vmatpush1.bf16.msra.mxu0 %v1948
      %3189 = vmatprep.mubr.bf16.mxu0 %v2966
      %3190 = vmatmul.mubr.bf16.gmra.mrb[0].mxu0 %v2965
      %v3191 = vpop.f32.mrb[0].mxu0
      %v3192 = vadd.f32 %v3149, %v3191
      %v3193 = vpop.f32.mrb[0].mxu0
      %v3194 = vadd.f32 %v3151, %v3193
      %v3195 = vpop.f32.mrb[0].mxu0
      %v3196 = vadd.f32 %v3153, %v3195
      %v3197 = vpop.f32.mrb[0].mxu0
      %v3198 = vadd.f32 %v3155, %v3197
      %3199 = vdwg.mxu0
      %3200 = vmatprep.subr.bf16.mxu0 %v1952
      %3201 = vmatpush1.bf16.msra.mxu0 %v1951
      %3202 = vmatprep.subr.bf16.mxu0 %v1955
      %3203 = vmatpush1.bf16.msra.mxu0 %v1954
      %3204 = vmatprep.subr.bf16.mxu0 %v1958
      %3205 = vmatpush1.bf16.msra.mxu0 %v1957
      %3206 = vmatprep.subr.bf16.mxu0 %v1961
      %3207 = vmatpush1.bf16.msra.mxu0 %v1960
      %3208 = vmatprep.subr.bf16.mxu0 %v1964
      %3209 = vmatpush1.bf16.msra.mxu0 %v1963
      %3210 = vmatprep.subr.bf16.mxu0 %v1967
      %3211 = vmatpush1.bf16.msra.mxu0 %v1966
      %3212 = vmatprep.subr.bf16.mxu0 %v1970
      %3213 = vmatpush1.bf16.msra.mxu0 %v1969
      %3214 = vmatprep.subr.bf16.mxu0 %v1973
      %3215 = vmatpush1.bf16.msra.mxu0 %v1972
      %3216 = vmatprep.subr.bf16.mxu0 %v1976
      %3217 = vmatpush1.bf16.msra.mxu0 %v1975
      %3218 = vmatprep.subr.bf16.mxu0 %v1979
      %3219 = vmatpush1.bf16.msra.mxu0 %v1978
      %3220 = vmatprep.subr.bf16.mxu0 %v1982
      %3221 = vmatpush1.bf16.msra.mxu0 %v1981
      %3222 = vmatprep.subr.bf16.mxu0 %v1985
      %3223 = vmatpush1.bf16.msra.mxu0 %v1984
      %3224 = vmatprep.subr.bf16.mxu0 %v1988
      %3225 = vmatpush1.bf16.msra.mxu0 %v1987
      %3226 = vmatprep.subr.bf16.mxu0 %v1991
      %3227 = vmatpush1.bf16.msra.mxu0 %v1990
      %3228 = vmatprep.subr.bf16.mxu0 %v1994
      %3229 = vmatpush1.bf16.msra.mxu0 %v1993
      %3230 = vmatprep.subr.bf16.mxu0 %v1997
      %3231 = vmatpush1.bf16.msra.mxu0 %v1996
      %3232 = vmatprep.mubr.bf16.mxu0 %v2968
      %3233 = vmatmul.mubr.bf16.gmra.mrb[0].mxu0 %v2967
      %v3234 = vpop.f32.mrb[0].mxu0
      %v3235 = vadd.f32 %v3192, %v3234
      %v3236 = vpop.f32.mrb[0].mxu0
      %v3237 = vadd.f32 %v3194, %v3236
      %v3238 = vpop.f32.mrb[0].mxu0
      %v3239 = vadd.f32 %v3196, %v3238
      %v3240 = vpop.f32.mrb[0].mxu0
      %v3241 = vadd.f32 %v3198, %v3240
      %3242 = vdwg.mxu0
      %3243 = vmatprep.subr.bf16.mxu0 %v2000
      %3244 = vmatpush1.bf16.msra.mxu0 %v1999
      %3245 = vmatprep.subr.bf16.mxu0 %v2003
      %3246 = vmatpush1.bf16.msra.mxu0 %v2002
      %3247 = vmatprep.subr.bf16.mxu0 %v2006
      %3248 = vmatpush1.bf16.msra.mxu0 %v2005
      %3249 = vmatprep.subr.bf16.mxu0 %v2009
      %3250 = vmatpush1.bf16.msra.mxu0 %v2008
      %3251 = vmatprep.subr.bf16.mxu0 0
      %3252 = vmatpush1.bf16.msra.mxu0 0
      %3253 = vmatprep.subr.bf16.mxu0 0
      %3254 = vmatpush1.bf16.msra.mxu0 0
      %3255 = vmatprep.subr.bf16.mxu0 0
      %3256 = vmatpush1.bf16.msra.mxu0 0
      %3257 = vmatprep.subr.bf16.mxu0 0
      %3258 = vmatpush1.bf16.msra.mxu0 0
      %3259 = vmatprep.subr.bf16.mxu0 0
      %3260 = vmatpush1.bf16.msra.mxu0 0
      %3261 = vmatprep.subr.bf16.mxu0 0
      %3262 = vmatpush1.bf16.msra.mxu0 0
      %3263 = vmatprep.subr.bf16.mxu0 0
      %3264 = vmatpush1.bf16.msra.mxu0 0
      %3265 = vmatprep.subr.bf16.mxu0 0
      %3266 = vmatpush1.bf16.msra.mxu0 0
      %3267 = vmatprep.subr.bf16.mxu0 0
      %3268 = vmatpush1.bf16.msra.mxu0 0
      %3269 = vmatprep.subr.bf16.mxu0 0
      %3270 = vmatpush1.bf16.msra.mxu0 0
      %3271 = vmatprep.subr.bf16.mxu0 0
      %3272 = vmatpush1.bf16.msra.mxu0 0
      %3273 = vmatprep.subr.bf16.mxu0 0
      %3274 = vmatpush1.bf16.msra.mxu0 0
      %3275 = vmatprep.mubr.bf16.mxu0 0
      %3276 = vmatmul.mubr.bf16.gmra.mrb[0].mxu0 %v2983
      %v3277 = vpop.f32.mrb[0].mxu0
      %v3278 = vadd.f32 %v3235, %v3277
      %v3279 = vpop.f32.mrb[0].mxu0
      %v3280 = vadd.f32 %v3237, %v3279
      %v3281 = vpop.f32.mrb[0].mxu0
      %v3282 = vadd.f32 %v3239, %v3281
      %v3283 = vpop.f32.mrb[0].mxu0
      %v3284 = vadd.f32 %v3241, %v3283
      %3285 = vdwg.mxu0
      %3286 = vmatprep.subr.bf16.mxu0 0
      %3287 = vmatpush1.bf16.msra.mxu0 %v1713
      %3288 = vmatprep.subr.bf16.mxu0 0
      %3289 = vmatpush1.bf16.msra.mxu0 %v1716
      %3290 = vmatprep.subr.bf16.mxu0 0
      %3291 = vmatpush1.bf16.msra.mxu0 %v1719
      %3292 = vmatprep.subr.bf16.mxu0 0
      %3293 = vmatpush1.bf16.msra.mxu0 %v1722
      %3294 = vmatprep.subr.bf16.mxu0 0
      %3295 = vmatpush1.bf16.msra.mxu0 %v1725
      %3296 = vmatprep.subr.bf16.mxu0 0
      %3297 = vmatpush1.bf16.msra.mxu0 %v1728
      %3298 = vmatprep.subr.bf16.mxu0 0
      %3299 = vmatpush1.bf16.msra.mxu0 %v1731
      %3300 = vmatprep.subr.bf16.mxu0 0
      %3301 = vmatpush1.bf16.msra.mxu0 %v1734
      %3302 = vmatprep.subr.bf16.mxu0 0
      %3303 = vmatpush1.bf16.msra.mxu0 %v1737
      %3304 = vmatprep.subr.bf16.mxu0 0
      %3305 = vmatpush1.bf16.msra.mxu0 %v1740
      %3306 = vmatprep.subr.bf16.mxu0 0
      %3307 = vmatpush1.bf16.msra.mxu0 %v1743
      %3308 = vmatprep.subr.bf16.mxu0 0
      %3309 = vmatpush1.bf16.msra.mxu0 %v1746
      %3310 = vmatprep.subr.bf16.mxu0 0
      %3311 = vmatpush1.bf16.msra.mxu0 %v1749
      %3312 = vmatprep.subr.bf16.mxu0 0
      %3313 = vmatpush1.bf16.msra.mxu0 %v1752
      %3314 = vmatprep.subr.bf16.mxu0 0
      %3315 = vmatpush1.bf16.msra.mxu0 %v1755
      %3316 = vmatprep.subr.bf16.mxu0 0
      %3317 = vmatpush1.bf16.msra.mxu0 %v1758
      %3318 = vmatprep.mubr.bf16.mxu0 %v2958
      %3319 = vmatmul.mubr.bf16.gmra.mrb[0].mxu0 %v2957
      %v3320 = vpop.f32.mrb[0].mxu0
      %v3321 = vadd.f32 0.0, %v3320
      %v3322 = vpop.f32.mrb[0].mxu0
      %v3323 = vpop.f32.mrb[0].mxu0
      %v3324 = vadd.f32 0.0, %v3323
      %v3325 = vpop.f32.mrb[0].mxu0
      %3326 = vdwg.mxu0
      %3327 = vmatprep.subr.bf16.mxu0 0
      %3328 = vmatpush1.bf16.msra.mxu0 %v1761
      %3329 = vmatprep.subr.bf16.mxu0 0
      %3330 = vmatpush1.bf16.msra.mxu0 %v1764
      %3331 = vmatprep.subr.bf16.mxu0 0
      %3332 = vmatpush1.bf16.msra.mxu0 %v1767
      %3333 = vmatprep.subr.bf16.mxu0 0
      %3334 = vmatpush1.bf16.msra.mxu0 %v1770
      %3335 = vmatprep.subr.bf16.mxu0 0
      %3336 = vmatpush1.bf16.msra.mxu0 %v1773
      %3337 = vmatprep.subr.bf16.mxu0 0
      %3338 = vmatpush1.bf16.msra.mxu0 %v1776
      %3339 = vmatprep.subr.bf16.mxu0 0
      %3340 = vmatpush1.bf16.msra.mxu0 %v1779
      %3341 = vmatprep.subr.bf16.mxu0 0
      %3342 = vmatpush1.bf16.msra.mxu0 %v1782
      %3343 = vmatprep.subr.bf16.mxu0 0
      %3344 = vmatpush1.bf16.msra.mxu0 %v1785
      %3345 = vmatprep.subr.bf16.mxu0 0
      %3346 = vmatpush1.bf16.msra.mxu0 %v1788
      %3347 = vmatprep.subr.bf16.mxu0 0
      %3348 = vmatpush1.bf16.msra.mxu0 %v1791
      %3349 = vmatprep.subr.bf16.mxu0 0
      %3350 = vmatpush1.bf16.msra.mxu0 %v1794
      %3351 = vmatprep.subr.bf16.mxu0 0
      %3352 = vmatpush1.bf16.msra.mxu0 %v1797
      %3353 = vmatprep.subr.bf16.mxu0 0
      %3354 = vmatpush1.bf16.msra.mxu0 %v1800
      %3355 = vmatprep.subr.bf16.mxu0 0
      %3356 = vmatpush1.bf16.msra.mxu0 %v1803
      %3357 = vmatprep.subr.bf16.mxu0 0
      %3358 = vmatpush1.bf16.msra.mxu0 %v1806
      %3359 = vmatprep.mubr.bf16.mxu0 %v2960
      %3360 = vmatmul.mubr.bf16.gmra.mrb[0].mxu0 %v2959
      %v3361 = vpop.f32.mrb[0].mxu0
      %v3362 = vadd.f32 %v3321, %v3361
      %v3363 = vpop.f32.mrb[0].mxu0
      %v3364 = vpop.f32.mrb[0].mxu0
      %v3365 = vadd.f32 %v3324, %v3364
      %v3366 = vpop.f32.mrb[0].mxu0
      %3367 = vdwg.mxu0
      %3368 = vmatprep.subr.bf16.mxu0 0
      %3369 = vmatpush1.bf16.msra.mxu0 %v1809
      %3370 = vmatprep.subr.bf16.mxu0 0
      %3371 = vmatpush1.bf16.msra.mxu0 %v1812
      %3372 = vmatprep.subr.bf16.mxu0 0
      %3373 = vmatpush1.bf16.msra.mxu0 %v1815
      %3374 = vmatprep.subr.bf16.mxu0 0
      %3375 = vmatpush1.bf16.msra.mxu0 %v1818
      %3376 = vmatprep.subr.bf16.mxu0 0
      %3377 = vmatpush1.bf16.msra.mxu0 %v1821
      %3378 = vmatprep.subr.bf16.mxu0 0
      %3379 = vmatpush1.bf16.msra.mxu0 %v1824
      %3380 = vmatprep.subr.bf16.mxu0 0
      %3381 = vmatpush1.bf16.msra.mxu0 %v1827
      %3382 = vmatprep.subr.bf16.mxu0 0
      %3383 = vmatpush1.bf16.msra.mxu0 %v1830
      %3384 = vmatprep.subr.bf16.mxu0 0
      %3385 = vmatpush1.bf16.msra.mxu0 %v1833
      %3386 = vmatprep.subr.bf16.mxu0 0
      %3387 = vmatpush1.bf16.msra.mxu0 %v1836
      %3388 = vmatprep.subr.bf16.mxu0 0
      %3389 = vmatpush1.bf16.msra.mxu0 %v1839
      %3390 = vmatprep.subr.bf16.mxu0 0
      %3391 = vmatpush1.bf16.msra.mxu0 %v1842
      %3392 = vmatprep.subr.bf16.mxu0 0
      %3393 = vmatpush1.bf16.msra.mxu0 %v1845
      %3394 = vmatprep.subr.bf16.mxu0 0
      %3395 = vmatpush1.bf16.msra.mxu0 %v1848
      %3396 = vmatprep.subr.bf16.mxu0 0
      %3397 = vmatpush1.bf16.msra.mxu0 %v1851
      %3398 = vmatprep.subr.bf16.mxu0 0
      %3399 = vmatpush1.bf16.msra.mxu0 %v1854
      %3400 = vmatprep.mubr.bf16.mxu0 %v2962
      %3401 = vmatmul.mubr.bf16.gmra.mrb[0].mxu0 %v2961
      %v3402 = vpop.f32.mrb[0].mxu0
      %v3403 = vadd.f32 %v3362, %v3402
      %v3404 = vpop.f32.mrb[0].mxu0
      %v3405 = vpop.f32.mrb[0].mxu0
      %v3406 = vadd.f32 %v3365, %v3405
      %v3407 = vpop.f32.mrb[0].mxu0
      %3408 = vdwg.mxu0
      %3409 = vmatprep.subr.bf16.mxu0 0
      %3410 = vmatpush1.bf16.msra.mxu0 %v1857
      %3411 = vmatprep.subr.bf16.mxu0 0
      %3412 = vmatpush1.bf16.msra.mxu0 %v1860
      %3413 = vmatprep.subr.bf16.mxu0 0
      %3414 = vmatpush1.bf16.msra.mxu0 %v1863
      %3415 = vmatprep.subr.bf16.mxu0 0
      %3416 = vmatpush1.bf16.msra.mxu0 %v1866
      %3417 = vmatprep.subr.bf16.mxu0 0
      %3418 = vmatpush1.bf16.msra.mxu0 %v1869
      %3419 = vmatprep.subr.bf16.mxu0 0
      %3420 = vmatpush1.bf16.msra.mxu0 %v1872
      %3421 = vmatprep.subr.bf16.mxu0 0
      %3422 = vmatpush1.bf16.msra.mxu0 %v1875
      %3423 = vmatprep.subr.bf16.mxu0 0
      %3424 = vmatpush1.bf16.msra.mxu0 %v1878
      %3425 = vmatprep.subr.bf16.mxu0 0
      %3426 = vmatpush1.bf16.msra.mxu0 %v1881
      %3427 = vmatprep.subr.bf16.mxu0 0
      %3428 = vmatpush1.bf16.msra.mxu0 %v1884
      %3429 = vmatprep.subr.bf16.mxu0 0
      %3430 = vmatpush1.bf16.msra.mxu0 %v1887
      %3431 = vmatprep.subr.bf16.mxu0 0
      %3432 = vmatpush1.bf16.msra.mxu0 %v1890
      %3433 = vmatprep.subr.bf16.mxu0 0
      %3434 = vmatpush1.bf16.msra.mxu0 %v1893
      %3435 = vmatprep.subr.bf16.mxu0 0
      %3436 = vmatpush1.bf16.msra.mxu0 %v1896
      %3437 = vmatprep.subr.bf16.mxu0 0
      %3438 = vmatpush1.bf16.msra.mxu0 %v1899
      %3439 = vmatprep.subr.bf16.mxu0 0
      %3440 = vmatpush1.bf16.msra.mxu0 %v1902
      %3441 = vmatprep.mubr.bf16.mxu0 %v2964
      %3442 = vmatmul.mubr.bf16.gmra.mrb[0].mxu0 %v2963
      %v3443 = vpop.f32.mrb[0].mxu0
      %v3444 = vadd.f32 %v3403, %v3443
      %v3445 = vpop.f32.mrb[0].mxu0
      %v3446 = vpop.f32.mrb[0].mxu0
      %v3447 = vadd.f32 %v3406, %v3446
      %v3448 = vpop.f32.mrb[0].mxu0
      %3449 = vdwg.mxu0
      %3450 = vmatprep.subr.bf16.mxu0 0
      %3451 = vmatpush1.bf16.msra.mxu0 %v1905
      %3452 = vmatprep.subr.bf16.mxu0 0
      %3453 = vmatpush1.bf16.msra.mxu0 %v1908
      %3454 = vmatprep.subr.bf16.mxu0 0
      %3455 = vmatpush1.bf16.msra.mxu0 %v1911
      %3456 = vmatprep.subr.bf16.mxu0 0
      %3457 = vmatpush1.bf16.msra.mxu0 %v1914
      %3458 = vmatprep.subr.bf16.mxu0 0
      %3459 = vmatpush1.bf16.msra.mxu0 %v1917
      %3460 = vmatprep.subr.bf16.mxu0 0
      %3461 = vmatpush1.bf16.msra.mxu0 %v1920
      %3462 = vmatprep.subr.bf16.mxu0 0
      %3463 = vmatpush1.bf16.msra.mxu0 %v1923
      %3464 = vmatprep.subr.bf16.mxu0 0
      %3465 = vmatpush1.bf16.msra.mxu0 %v1926
      %3466 = vmatprep.subr.bf16.mxu0 0
      %3467 = vmatpush1.bf16.msra.mxu0 %v1929
      %3468 = vmatprep.subr.bf16.mxu0 0
      %3469 = vmatpush1.bf16.msra.mxu0 %v1932
      %3470 = vmatprep.subr.bf16.mxu0 0
      %3471 = vmatpush1.bf16.msra.mxu0 %v1935
      %3472 = vmatprep.subr.bf16.mxu0 0
      %3473 = vmatpush1.bf16.msra.mxu0 %v1938
      %3474 = vmatprep.subr.bf16.mxu0 0
      %3475 = vmatpush1.bf16.msra.mxu0 %v1941
      %3476 = vmatprep.subr.bf16.mxu0 0
      %3477 = vmatpush1.bf16.msra.mxu0 %v1944
      %3478 = vmatprep.subr.bf16.mxu0 0
      %3479 = vmatpush1.bf16.msra.mxu0 %v1947
      %3480 = vmatprep.subr.bf16.mxu0 0
      %3481 = vmatpush1.bf16.msra.mxu0 %v1950
      %3482 = vmatprep.mubr.bf16.mxu0 %v2966
      %3483 = vmatmul.mubr.bf16.gmra.mrb[0].mxu0 %v2965
      %v3484 = vpop.f32.mrb[0].mxu0
      %v3485 = vadd.f32 %v3444, %v3484
      %v3486 = vpop.f32.mrb[0].mxu0
      %v3487 = vpop.f32.mrb[0].mxu0
      %v3488 = vadd.f32 %v3447, %v3487
      %v3489 = vpop.f32.mrb[0].mxu0
      %3490 = vdwg.mxu0
      %3491 = vmatprep.subr.bf16.mxu0 0
      %3492 = vmatpush1.bf16.msra.mxu0 %v1953
      %3493 = vmatprep.subr.bf16.mxu0 0
      %3494 = vmatpush1.bf16.msra.mxu0 %v1956
      %3495 = vmatprep.subr.bf16.mxu0 0
      %3496 = vmatpush1.bf16.msra.mxu0 %v1959
      %3497 = vmatprep.subr.bf16.mxu0 0
      %3498 = vmatpush1.bf16.msra.mxu0 %v1962
      %3499 = vmatprep.subr.bf16.mxu0 0
      %3500 = vmatpush1.bf16.msra.mxu0 %v1965
      %3501 = vmatprep.subr.bf16.mxu0 0
      %3502 = vmatpush1.bf16.msra.mxu0 %v1968
      %3503 = vmatprep.subr.bf16.mxu0 0
      %3504 = vmatpush1.bf16.msra.mxu0 %v1971
      %3505 = vmatprep.subr.bf16.mxu0 0
      %3506 = vmatpush1.bf16.msra.mxu0 %v1974
      %3507 = vmatprep.subr.bf16.mxu0 0
      %3508 = vmatpush1.bf16.msra.mxu0 %v1977
      %3509 = vmatprep.subr.bf16.mxu0 0
      %3510 = vmatpush1.bf16.msra.mxu0 %v1980
      %3511 = vmatprep.subr.bf16.mxu0 0
      %3512 = vmatpush1.bf16.msra.mxu0 %v1983
      %3513 = vmatprep.subr.bf16.mxu0 0
      %3514 = vmatpush1.bf16.msra.mxu0 %v1986
      %3515 = vmatprep.subr.bf16.mxu0 0
      %3516 = vmatpush1.bf16.msra.mxu0 %v1989
      %3517 = vmatprep.subr.bf16.mxu0 0
      %3518 = vmatpush1.bf16.msra.mxu0 %v1992
      %3519 = vmatprep.subr.bf16.mxu0 0
      %3520 = vmatpush1.bf16.msra.mxu0 %v1995
      %3521 = vmatprep.subr.bf16.mxu0 0
      %3522 = vmatpush1.bf16.msra.mxu0 %v1998
      %3523 = vmatprep.mubr.bf16.mxu0 %v2968
      %3524 = vmatmul.mubr.bf16.gmra.mrb[0].mxu0 %v2967
      %v3525 = vpop.f32.mrb[0].mxu0
      %v3526 = vadd.f32 %v3485, %v3525
      %v3527 = vpop.f32.mrb[0].mxu0
      %v3528 = vpop.f32.mrb[0].mxu0
      %v3529 = vadd.f32 %v3488, %v3528
      %v3530 = vpop.f32.mrb[0].mxu0
      %3531 = vdwg.mxu0
      %3532 = vmatprep.subr.bf16.mxu0 0
      %3533 = vmatpush1.bf16.msra.mxu0 %v2001
      %3534 = vmatprep.subr.bf16.mxu0 0
      %3535 = vmatpush1.bf16.msra.mxu0 %v2004
      %3536 = vmatprep.subr.bf16.mxu0 0
      %3537 = vmatpush1.bf16.msra.mxu0 %v2007
      %3538 = vmatprep.subr.bf16.mxu0 0
      %3539 = vmatpush1.bf16.msra.mxu0 %v2010
      %3540 = vmatprep.subr.bf16.mxu0 0
      %3541 = vmatpush1.bf16.msra.mxu0 0
      %3542 = vmatprep.subr.bf16.mxu0 0
      %3543 = vmatpush1.bf16.msra.mxu0 0
      %3544 = vmatprep.subr.bf16.mxu0 0
      %3545 = vmatpush1.bf16.msra.mxu0 0
      %3546 = vmatprep.subr.bf16.mxu0 0
      %3547 = vmatpush1.bf16.msra.mxu0 0
      %3548 = vmatprep.subr.bf16.mxu0 0
      %3549 = vmatpush1.bf16.msra.mxu0 0
      %3550 = vmatprep.subr.bf16.mxu0 0
      %3551 = vmatpush1.bf16.msra.mxu0 0
      %3552 = vmatprep.subr.bf16.mxu0 0
      %3553 = vmatpush1.bf16.msra.mxu0 0
      %3554 = vmatprep.subr.bf16.mxu0 0
      %3555 = vmatpush1.bf16.msra.mxu0 0
      %3556 = vmatprep.subr.bf16.mxu0 0
      %3557 = vmatpush1.bf16.msra.mxu0 0
      %3558 = vmatprep.subr.bf16.mxu0 0
      %3559 = vmatpush1.bf16.msra.mxu0 0
      %3560 = vmatprep.subr.bf16.mxu0 0
      %3561 = vmatpush1.bf16.msra.mxu0 0
      %3562 = vmatprep.subr.bf16.mxu0 0
      %3563 = vmatpush1.bf16.msra.mxu0 0
      %3564 = vmatprep.mubr.bf16.mxu0 0
      %3565 = vmatmul.mubr.bf16.gmra.mrb[0].mxu0 %v2983
      %v3566 = vpop.f32.mrb[0].mxu0
      %v3567 = vadd.f32 %v3526, %v3566
      %v3568 = vpop.f32.mrb[0].mxu0
      %v3569 = vpop.f32.mrb[0].mxu0
      %v3570 = vadd.f32 %v3529, %v3569
      %v3571 = vpop.f32.mrb[0].mxu0
      %3572 = vdwg.mxu0
      %v3573 = vmax.f32 %v2608, %v3278
      %v3574 = vmax.f32 %v2610, %v3280
      %v3575 = vmax.f32 %v2897, %v3567
      %v3576 = vmax.f32 %v2612, %v3282
      %v3577 = vmax.f32 %v2614, %v3284
      %v3578 = vmax.f32 %v2900, %v3570
      %v3579 = vld [vmem:[%s223 + $0xd0] sm:$0xff]
      %v3580 = vld [vmem:[%s223 + $0xd8] sm:$0xff]
      %v3581 = vld [vmem:[%s223 + $0xe0] sm:$0xff]
      %v3582 = vld [vmem:[%s223 + $0xe8] sm:$0xff]
      %v3583 = vld [vmem:[%s223 + $0xf0] sm:$0xff]
      %v3584 = vld [vmem:[%s223 + $0xf8] sm:$0xff]
      %v3585 = vld [vmem:[%s223 + $0x100] sm:$0xf]
      %v3586 = vld [vmem:[%s223 + $0x104] sm:$0xff]
      %v3587 = vld [vmem:[%s223 + $0x10c] sm:$0xff]
      %v3588 = vld [vmem:[%s223 + $0x114] sm:$0xff]
      %v3589 = vld [vmem:[%s223 + $0x11c] sm:$0xff]
      %v3590 = vld [vmem:[%s223 + $0x124] sm:$0xff]
      %v3591 = vld [vmem:[%s223 + $0x12c] sm:$0xff]
      %v3592 = vld [vmem:[%s223 + $0x134] sm:$0xf]
      %v3607 = vunpack.c.l.b16 %v3579
      %v3608 = vunpack.c.h.b16 %v3579
      %v3609 = vunpack.c.l.b16 %v3580
      %v3610 = vunpack.c.h.b16 %v3580
      %v3611 = vunpack.c.l.b16 %v3581
      %v3612 = vunpack.c.h.b16 %v3581
      %v3613 = vunpack.c.l.b16 %v3582
      %v3614 = vunpack.c.h.b16 %v3582
      %v3615 = vunpack.c.l.b16 %v3583
      %v3616 = vunpack.c.h.b16 %v3583
      %v3617 = vunpack.c.l.b16 %v3584
      %v3618 = vunpack.c.h.b16 %v3584
      %v3619 = vunpack.c.l.b16 %v3585
      %v3620 = vunpack.c.l.b16 %v3586
      %v3621 = vunpack.c.h.b16 %v3586
      %v3622 = vunpack.c.l.b16 %v3587
      %v3623 = vunpack.c.h.b16 %v3587
      %v3624 = vunpack.c.l.b16 %v3588
      %v3625 = vunpack.c.h.b16 %v3588
      %v3626 = vunpack.c.l.b16 %v3589
      %v3627 = vunpack.c.h.b16 %v3589
      %v3628 = vunpack.c.l.b16 %v3590
      %v3629 = vunpack.c.h.b16 %v3590
      %v3630 = vunpack.c.l.b16 %v3591
      %v3631 = vunpack.c.h.b16 %v3591
      %v3632 = vunpack.c.l.b16 %v3592
      %v3633 = vpack.c.b16 %v3620, %v3607
      %v3634 = vpack.c.b16 %v3621, %v3608
      %v3635 = vpack.c.b16 %v3622, %v3609
      %v3636 = vpack.c.b16 %v3623, %v3610
      %v3637 = vpack.c.b16 %v3624, %v3611
      %v3638 = vpack.c.b16 %v3625, %v3612
      %v3639 = vpack.c.b16 %v3626, %v3613
      %v3640 = vpack.c.b16 %v3627, %v3614
      %v3641 = vpack.c.b16 %v3628, %v3615
      %v3642 = vpack.c.b16 %v3629, %v3616
      %v3643 = vpack.c.b16 %v3630, %v3617
      %v3644 = vpack.c.b16 %v3631, %v3618
      %v3645 = vpack.c.b16 %v3632, %v3619
      %v3659 = vsel %vm2311, %v3645, 0
      %3661 = vmatprep.subr.bf16.mxu0 %v1712
      %3662 = vmatpush1.bf16.msra.mxu0 %v1711
      %3663 = vmatprep.subr.bf16.mxu0 %v1715
      %3664 = vmatpush1.bf16.msra.mxu0 %v1714
      %3665 = vmatprep.subr.bf16.mxu0 %v1718
      %3666 = vmatpush1.bf16.msra.mxu0 %v1717
      %3667 = vmatprep.subr.bf16.mxu0 %v1721
      %3668 = vmatpush1.bf16.msra.mxu0 %v1720
      %3669 = vmatprep.subr.bf16.mxu0 %v1724
      %3670 = vmatpush1.bf16.msra.mxu0 %v1723
      %3671 = vmatprep.subr.bf16.mxu0 %v1727
      %3672 = vmatpush1.bf16.msra.mxu0 %v1726
      %3673 = vmatprep.subr.bf16.mxu0 %v1730
      %3674 = vmatpush1.bf16.msra.mxu0 %v1729
      %3675 = vmatprep.subr.bf16.mxu0 %v1733
      %3676 = vmatpush1.bf16.msra.mxu0 %v1732
      %3677 = vmatprep.subr.bf16.mxu0 %v1736
      %3678 = vmatpush1.bf16.msra.mxu0 %v1735
      %3679 = vmatprep.subr.bf16.mxu0 %v1739
      %3680 = vmatpush1.bf16.msra.mxu0 %v1738
      %3681 = vmatprep.subr.bf16.mxu0 %v1742
      %3682 = vmatpush1.bf16.msra.mxu0 %v1741
      %3683 = vmatprep.subr.bf16.mxu0 %v1745
      %3684 = vmatpush1.bf16.msra.mxu0 %v1744
      %3685 = vmatprep.subr.bf16.mxu0 %v1748
      %3686 = vmatpush1.bf16.msra.mxu0 %v1747
      %3687 = vmatprep.subr.bf16.mxu0 %v1751
      %3688 = vmatpush1.bf16.msra.mxu0 %v1750
      %3689 = vmatprep.subr.bf16.mxu0 %v1754
      %3690 = vmatpush1.bf16.msra.mxu0 %v1753
      %3691 = vmatprep.subr.bf16.mxu0 %v1757
      %3692 = vmatpush1.bf16.msra.mxu0 %v1756
      %3693 = vmatprep.mubr.bf16.mxu0 %v3634
      %3694 = vmatmul.mubr.bf16.gmra.mrb[0].mxu0 %v3633
      %v3695 = vpop.f32.mrb[0].mxu0
      %v3696 = vadd.f32 0.0, %v3695
      %v3697 = vpop.f32.mrb[0].mxu0
      %v3698 = vadd.f32 0.0, %v3697
      %v3699 = vpop.f32.mrb[0].mxu0
      %v3700 = vadd.f32 0.0, %v3699
      %v3701 = vpop.f32.mrb[0].mxu0
      %v3702 = vadd.f32 0.0, %v3701
      %3703 = vdwg.mxu0
      %3704 = vmatprep.subr.bf16.mxu0 %v1760
      %3705 = vmatpush1.bf16.msra.mxu0 %v1759
      %3706 = vmatprep.subr.bf16.mxu0 %v1763
      %3707 = vmatpush1.bf16.msra.mxu0 %v1762
      %3708 = vmatprep.subr.bf16.mxu0 %v1766
      %3709 = vmatpush1.bf16.msra.mxu0 %v1765
      %3710 = vmatprep.subr.bf16.mxu0 %v1769
      %3711 = vmatpush1.bf16.msra.mxu0 %v1768
      %3712 = vmatprep.subr.bf16.mxu0 %v1772
      %3713 = vmatpush1.bf16.msra.mxu0 %v1771
      %3714 = vmatprep.subr.bf16.mxu0 %v1775
      %3715 = vmatpush1.bf16.msra.mxu0 %v1774
      %3716 = vmatprep.subr.bf16.mxu0 %v1778
      %3717 = vmatpush1.bf16.msra.mxu0 %v1777
      %3718 = vmatprep.subr.bf16.mxu0 %v1781
      %3719 = vmatpush1.bf16.msra.mxu0 %v1780
      %3720 = vmatprep.subr.bf16.mxu0 %v1784
      %3721 = vmatpush1.bf16.msra.mxu0 %v1783
      %3722 = vmatprep.subr.bf16.mxu0 %v1787
      %3723 = vmatpush1.bf16.msra.mxu0 %v1786
      %3724 = vmatprep.subr.bf16.mxu0 %v1790
      %3725 = vmatpush1.bf16.msra.mxu0 %v1789
      %3726 = vmatprep.subr.bf16.mxu0 %v1793
      %3727 = vmatpush1.bf16.msra.mxu0 %v1792
      %3728 = vmatprep.subr.bf16.mxu0 %v1796
      %3729 = vmatpush1.bf16.msra.mxu0 %v1795
      %3730 = vmatprep.subr.bf16.mxu0 %v1799
      %3731 = vmatpush1.bf16.msra.mxu0 %v1798
      %3732 = vmatprep.subr.bf16.mxu0 %v1802
      %3733 = vmatpush1.bf16.msra.mxu0 %v1801
      %3734 = vmatprep.subr.bf16.mxu0 %v1805
      %3735 = vmatpush1.bf16.msra.mxu0 %v1804
      %3736 = vmatprep.mubr.bf16.mxu0 %v3636
      %3737 = vmatmul.mubr.bf16.gmra.mrb[0].mxu0 %v3635
      %v3738 = vpop.f32.mrb[0].mxu0
      %v3739 = vadd.f32 %v3696, %v3738
      %v3740 = vpop.f32.mrb[0].mxu0
      %v3741 = vadd.f32 %v3698, %v3740
      %v3742 = vpop.f32.mrb[0].mxu0
      %v3743 = vadd.f32 %v3700, %v3742
      %v3744 = vpop.f32.mrb[0].mxu0
      %v3745 = vadd.f32 %v3702, %v3744
      %3746 = vdwg.mxu0
      %3747 = vmatprep.subr.bf16.mxu0 %v1808
      %3748 = vmatpush1.bf16.msra.mxu0 %v1807
      %3749 = vmatprep.subr.bf16.mxu0 %v1811
      %3750 = vmatpush1.bf16.msra.mxu0 %v1810
      %3751 = vmatprep.subr.bf16.mxu0 %v1814
      %3752 = vmatpush1.bf16.msra.mxu0 %v1813
      %3753 = vmatprep.subr.bf16.mxu0 %v1817
      %3754 = vmatpush1.bf16.msra.mxu0 %v1816
      %3755 = vmatprep.subr.bf16.mxu0 %v1820
      %3756 = vmatpush1.bf16.msra.mxu0 %v1819
      %3757 = vmatprep.subr.bf16.mxu0 %v1823
      %3758 = vmatpush1.bf16.msra.mxu0 %v1822
      %3759 = vmatprep.subr.bf16.mxu0 %v1826
      %3760 = vmatpush1.bf16.msra.mxu0 %v1825
      %3761 = vmatprep.subr.bf16.mxu0 %v1829
      %3762 = vmatpush1.bf16.msra.mxu0 %v1828
      %3763 = vmatprep.subr.bf16.mxu0 %v1832
      %3764 = vmatpush1.bf16.msra.mxu0 %v1831
      %3765 = vmatprep.subr.bf16.mxu0 %v1835
      %3766 = vmatpush1.bf16.msra.mxu0 %v1834
      %3767 = vmatprep.subr.bf16.mxu0 %v1838
      %3768 = vmatpush1.bf16.msra.mxu0 %v1837
      %3769 = vmatprep.subr.bf16.mxu0 %v1841
      %3770 = vmatpush1.bf16.msra.mxu0 %v1840
      %3771 = vmatprep.subr.bf16.mxu0 %v1844
      %3772 = vmatpush1.bf16.msra.mxu0 %v1843
      %3773 = vmatprep.subr.bf16.mxu0 %v1847
      %3774 = vmatpush1.bf16.msra.mxu0 %v1846
      %3775 = vmatprep.subr.bf16.mxu0 %v1850
      %3776 = vmatpush1.bf16.msra.mxu0 %v1849
      %3777 = vmatprep.subr.bf16.mxu0 %v1853
      %3778 = vmatpush1.bf16.msra.mxu0 %v1852
      %3779 = vmatprep.mubr.bf16.mxu0 %v3638
      %3780 = vmatmul.mubr.bf16.gmra.mrb[0].mxu0 %v3637
      %v3781 = vpop.f32.mrb[0].mxu0
      %v3782 = vadd.f32 %v3739, %v3781
      %v3783 = vpop.f32.mrb[0].mxu0
      %v3784 = vadd.f32 %v3741, %v3783
      %v3785 = vpop.f32.mrb[0].mxu0
      %v3786 = vadd.f32 %v3743, %v3785
      %v3787 = vpop.f32.mrb[0].mxu0
      %v3788 = vadd.f32 %v3745, %v3787
      %3789 = vdwg.mxu0
      %3790 = vmatprep.subr.bf16.mxu0 %v1856
      %3791 = vmatpush1.bf16.msra.mxu0 %v1855
      %3792 = vmatprep.subr.bf16.mxu0 %v1859
      %3793 = vmatpush1.bf16.msra.mxu0 %v1858
      %3794 = vmatprep.subr.bf16.mxu0 %v1862
      %3795 = vmatpush1.bf16.msra.mxu0 %v1861
      %3796 = vmatprep.subr.bf16.mxu0 %v1865
      %3797 = vmatpush1.bf16.msra.mxu0 %v1864
      %3798 = vmatprep.subr.bf16.mxu0 %v1868
      %3799 = vmatpush1.bf16.msra.mxu0 %v1867
      %3800 = vmatprep.subr.bf16.mxu0 %v1871
      %3801 = vmatpush1.bf16.msra.mxu0 %v1870
      %3802 = vmatprep.subr.bf16.mxu0 %v1874
      %3803 = vmatpush1.bf16.msra.mxu0 %v1873
      %3804 = vmatprep.subr.bf16.mxu0 %v1877
      %3805 = vmatpush1.bf16.msra.mxu0 %v1876
      %3806 = vmatprep.subr.bf16.mxu0 %v1880
      %3807 = vmatpush1.bf16.msra.mxu0 %v1879
      %3808 = vmatprep.subr.bf16.mxu0 %v1883
      %3809 = vmatpush1.bf16.msra.mxu0 %v1882
      %3810 = vmatprep.subr.bf16.mxu0 %v1886
      %3811 = vmatpush1.bf16.msra.mxu0 %v1885
      %3812 = vmatprep.subr.bf16.mxu0 %v1889
      %3813 = vmatpush1.bf16.msra.mxu0 %v1888
      %3814 = vmatprep.subr.bf16.mxu0 %v1892
      %3815 = vmatpush1.bf16.msra.mxu0 %v1891
      %3816 = vmatprep.subr.bf16.mxu0 %v1895
      %3817 = vmatpush1.bf16.msra.mxu0 %v1894
      %3818 = vmatprep.subr.bf16.mxu0 %v1898
      %3819 = vmatpush1.bf16.msra.mxu0 %v1897
      %3820 = vmatprep.subr.bf16.mxu0 %v1901
      %3821 = vmatpush1.bf16.msra.mxu0 %v1900
      %3822 = vmatprep.mubr.bf16.mxu0 %v3640
      %3823 = vmatmul.mubr.bf16.gmra.mrb[0].mxu0 %v3639
      %v3824 = vpop.f32.mrb[0].mxu0
      %v3825 = vadd.f32 %v3782, %v3824
      %v3826 = vpop.f32.mrb[0].mxu0
      %v3827 = vadd.f32 %v3784, %v3826
      %v3828 = vpop.f32.mrb[0].mxu0
      %v3829 = vadd.f32 %v3786, %v3828
      %v3830 = vpop.f32.mrb[0].mxu0
      %v3831 = vadd.f32 %v3788, %v3830
      %3832 = vdwg.mxu0
      %3833 = vmatprep.subr.bf16.mxu0 %v1904
      %3834 = vmatpush1.bf16.msra.mxu0 %v1903
      %3835 = vmatprep.subr.bf16.mxu0 %v1907
      %3836 = vmatpush1.bf16.msra.mxu0 %v1906
      %3837 = vmatprep.subr.bf16.mxu0 %v1910
      %3838 = vmatpush1.bf16.msra.mxu0 %v1909
      %3839 = vmatprep.subr.bf16.mxu0 %v1913
      %3840 = vmatpush1.bf16.msra.mxu0 %v1912
      %3841 = vmatprep.subr.bf16.mxu0 %v1916
      %3842 = vmatpush1.bf16.msra.mxu0 %v1915
      %3843 = vmatprep.subr.bf16.mxu0 %v1919
      %3844 = vmatpush1.bf16.msra.mxu0 %v1918
      %3845 = vmatprep.subr.bf16.mxu0 %v1922
      %3846 = vmatpush1.bf16.msra.mxu0 %v1921
      %3847 = vmatprep.subr.bf16.mxu0 %v1925
      %3848 = vmatpush1.bf16.msra.mxu0 %v1924
      %3849 = vmatprep.subr.bf16.mxu0 %v1928
      %3850 = vmatpush1.bf16.msra.mxu0 %v1927
      %3851 = vmatprep.subr.bf16.mxu0 %v1931
      %3852 = vmatpush1.bf16.msra.mxu0 %v1930
      %3853 = vmatprep.subr.bf16.mxu0 %v1934
      %3854 = vmatpush1.bf16.msra.mxu0 %v1933
      %3855 = vmatprep.subr.bf16.mxu0 %v1937
      %3856 = vmatpush1.bf16.msra.mxu0 %v1936
      %3857 = vmatprep.subr.bf16.mxu0 %v1940
      %3858 = vmatpush1.bf16.msra.mxu0 %v1939
      %3859 = vmatprep.subr.bf16.mxu0 %v1943
      %3860 = vmatpush1.bf16.msra.mxu0 %v1942
      %3861 = vmatprep.subr.bf16.mxu0 %v1946
      %3862 = vmatpush1.bf16.msra.mxu0 %v1945
      %3863 = vmatprep.subr.bf16.mxu0 %v1949
      %3864 = vmatpush1.bf16.msra.mxu0 %v1948
      %3865 = vmatprep.mubr.bf16.mxu0 %v3642
      %3866 = vmatmul.mubr.bf16.gmra.mrb[0].mxu0 %v3641
      %v3867 = vpop.f32.mrb[0].mxu0
      %v3868 = vadd.f32 %v3825, %v3867
      %v3869 = vpop.f32.mrb[0].mxu0
      %v3870 = vadd.f32 %v3827, %v3869
      %v3871 = vpop.f32.mrb[0].mxu0
      %v3872 = vadd.f32 %v3829, %v3871
      %v3873 = vpop.f32.mrb[0].mxu0
      %v3874 = vadd.f32 %v3831, %v3873
      %3875 = vdwg.mxu0
      %3876 = vmatprep.subr.bf16.mxu0 %v1952
      %3877 = vmatpush1.bf16.msra.mxu0 %v1951
      %3878 = vmatprep.subr.bf16.mxu0 %v1955
      %3879 = vmatpush1.bf16.msra.mxu0 %v1954
      %3880 = vmatprep.subr.bf16.mxu0 %v1958
      %3881 = vmatpush1.bf16.msra.mxu0 %v1957
      %3882 = vmatprep.subr.bf16.mxu0 %v1961
      %3883 = vmatpush1.bf16.msra.mxu0 %v1960
      %3884 = vmatprep.subr.bf16.mxu0 %v1964
      %3885 = vmatpush1.bf16.msra.mxu0 %v1963
      %3886 = vmatprep.subr.bf16.mxu0 %v1967
      %3887 = vmatpush1.bf16.msra.mxu0 %v1966
      %3888 = vmatprep.subr.bf16.mxu0 %v1970
      %3889 = vmatpush1.bf16.msra.mxu0 %v1969
      %3890 = vmatprep.subr.bf16.mxu0 %v1973
      %3891 = vmatpush1.bf16.msra.mxu0 %v1972
      %3892 = vmatprep.subr.bf16.mxu0 %v1976
      %3893 = vmatpush1.bf16.msra.mxu0 %v1975
      %3894 = vmatprep.subr.bf16.mxu0 %v1979
      %3895 = vmatpush1.bf16.msra.mxu0 %v1978
      %3896 = vmatprep.subr.bf16.mxu0 %v1982
      %3897 = vmatpush1.bf16.msra.mxu0 %v1981
      %3898 = vmatprep.subr.bf16.mxu0 %v1985
      %3899 = vmatpush1.bf16.msra.mxu0 %v1984
      %3900 = vmatprep.subr.bf16.mxu0 %v1988
      %3901 = vmatpush1.bf16.msra.mxu0 %v1987
      %3902 = vmatprep.subr.bf16.mxu0 %v1991
      %3903 = vmatpush1.bf16.msra.mxu0 %v1990
      %3904 = vmatprep.subr.bf16.mxu0 %v1994
      %3905 = vmatpush1.bf16.msra.mxu0 %v1993
      %3906 = vmatprep.subr.bf16.mxu0 %v1997
      %3907 = vmatpush1.bf16.msra.mxu0 %v1996
      %3908 = vmatprep.mubr.bf16.mxu0 %v3644
      %3909 = vmatmul.mubr.bf16.gmra.mrb[0].mxu0 %v3643
      %v3910 = vpop.f32.mrb[0].mxu0
      %v3911 = vadd.f32 %v3868, %v3910
      %v3912 = vpop.f32.mrb[0].mxu0
      %v3913 = vadd.f32 %v3870, %v3912
      %v3914 = vpop.f32.mrb[0].mxu0
      %v3915 = vadd.f32 %v3872, %v3914
      %v3916 = vpop.f32.mrb[0].mxu0
      %v3917 = vadd.f32 %v3874, %v3916
      %3918 = vdwg.mxu0
      %3919 = vmatprep.subr.bf16.mxu0 %v2000
      %3920 = vmatpush1.bf16.msra.mxu0 %v1999
      %3921 = vmatprep.subr.bf16.mxu0 %v2003
      %3922 = vmatpush1.bf16.msra.mxu0 %v2002
      %3923 = vmatprep.subr.bf16.mxu0 %v2006
      %3924 = vmatpush1.bf16.msra.mxu0 %v2005
      %3925 = vmatprep.subr.bf16.mxu0 %v2009
      %3926 = vmatpush1.bf16.msra.mxu0 %v2008
      %3927 = vmatprep.subr.bf16.mxu0 0
      %3928 = vmatpush1.bf16.msra.mxu0 0
      %3929 = vmatprep.subr.bf16.mxu0 0
      %3930 = vmatpush1.bf16.msra.mxu0 0
      %3931 = vmatprep.subr.bf16.mxu0 0
      %3932 = vmatpush1.bf16.msra.mxu0 0
      %3933 = vmatprep.subr.bf16.mxu0 0
      %3934 = vmatpush1.bf16.msra.mxu0 0
      %3935 = vmatprep.subr.bf16.mxu0 0
      %3936 = vmatpush1.bf16.msra.mxu0 0
      %3937 = vmatprep.subr.bf16.mxu0 0
      %3938 = vmatpush1.bf16.msra.mxu0 0
      %3939 = vmatprep.subr.bf16.mxu0 0
      %3940 = vmatpush1.bf16.msra.mxu0 0
      %3941 = vmatprep.subr.bf16.mxu0 0
      %3942 = vmatpush1.bf16.msra.mxu0 0
      %3943 = vmatprep.subr.bf16.mxu0 0
      %3944 = vmatpush1.bf16.msra.mxu0 0
      %3945 = vmatprep.subr.bf16.mxu0 0
      %3946 = vmatpush1.bf16.msra.mxu0 0
      %3947 = vmatprep.subr.bf16.mxu0 0
      %3948 = vmatpush1.bf16.msra.mxu0 0
      %3949 = vmatprep.subr.bf16.mxu0 0
      %3950 = vmatpush1.bf16.msra.mxu0 0
      %3951 = vmatprep.mubr.bf16.mxu0 0
      %3952 = vmatmul.mubr.bf16.gmra.mrb[0].mxu0 %v3659
      %v3953 = vpop.f32.mrb[0].mxu0
      %v3954 = vadd.f32 %v3911, %v3953
      %v3955 = vpop.f32.mrb[0].mxu0
      %v3956 = vadd.f32 %v3913, %v3955
      %v3957 = vpop.f32.mrb[0].mxu0
      %v3958 = vadd.f32 %v3915, %v3957
      %v3959 = vpop.f32.mrb[0].mxu0
      %v3960 = vadd.f32 %v3917, %v3959
      %3961 = vdwg.mxu0
      %3962 = vmatprep.subr.bf16.mxu0 0
      %3963 = vmatpush1.bf16.msra.mxu0 %v1713
      %3964 = vmatprep.subr.bf16.mxu0 0
      %3965 = vmatpush1.bf16.msra.mxu0 %v1716
      %3966 = vmatprep.subr.bf16.mxu0 0
      %3967 = vmatpush1.bf16.msra.mxu0 %v1719
      %3968 = vmatprep.subr.bf16.mxu0 0
      %3969 = vmatpush1.bf16.msra.mxu0 %v1722
      %3970 = vmatprep.subr.bf16.mxu0 0
      %3971 = vmatpush1.bf16.msra.mxu0 %v1725
      %3972 = vmatprep.subr.bf16.mxu0 0
      %3973 = vmatpush1.bf16.msra.mxu0 %v1728
      %3974 = vmatprep.subr.bf16.mxu0 0
      %3975 = vmatpush1.bf16.msra.mxu0 %v1731
      %3976 = vmatprep.subr.bf16.mxu0 0
      %3977 = vmatpush1.bf16.msra.mxu0 %v1734
      %3978 = vmatprep.subr.bf16.mxu0 0
      %3979 = vmatpush1.bf16.msra.mxu0 %v1737
      %3980 = vmatprep.subr.bf16.mxu0 0
      %3981 = vmatpush1.bf16.msra.mxu0 %v1740
      %3982 = vmatprep.subr.bf16.mxu0 0
      %3983 = vmatpush1.bf16.msra.mxu0 %v1743
      %3984 = vmatprep.subr.bf16.mxu0 0
      %3985 = vmatpush1.bf16.msra.mxu0 %v1746
      %3986 = vmatprep.subr.bf16.mxu0 0
      %3987 = vmatpush1.bf16.msra.mxu0 %v1749
      %3988 = vmatprep.subr.bf16.mxu0 0
      %3989 = vmatpush1.bf16.msra.mxu0 %v1752
      %3990 = vmatprep.subr.bf16.mxu0 0
      %3991 = vmatpush1.bf16.msra.mxu0 %v1755
      %3992 = vmatprep.subr.bf16.mxu0 0
      %3993 = vmatpush1.bf16.msra.mxu0 %v1758
      %3994 = vmatprep.mubr.bf16.mxu0 %v3634
      %3995 = vmatmul.mubr.bf16.gmra.mrb[0].mxu0 %v3633
      %v3996 = vpop.f32.mrb[0].mxu0
      %v3997 = vadd.f32 0.0, %v3996
      %v3998 = vpop.f32.mrb[0].mxu0
      %v3999 = vpop.f32.mrb[0].mxu0
      %v4000 = vadd.f32 0.0, %v3999
      %v4001 = vpop.f32.mrb[0].mxu0
      %4002 = vdwg.mxu0
      %4003 = vmatprep.subr.bf16.mxu0 0
      %4004 = vmatpush1.bf16.msra.mxu0 %v1761
      %4005 = vmatprep.subr.bf16.mxu0 0
      %4006 = vmatpush1.bf16.msra.mxu0 %v1764
      %4007 = vmatprep.subr.bf16.mxu0 0
      %4008 = vmatpush1.bf16.msra.mxu0 %v1767
      %4009 = vmatprep.subr.bf16.mxu0 0
      %4010 = vmatpush1.bf16.msra.mxu0 %v1770
      %4011 = vmatprep.subr.bf16.mxu0 0
      %4012 = vmatpush1.bf16.msra.mxu0 %v1773
      %4013 = vmatprep.subr.bf16.mxu0 0
      %4014 = vmatpush1.bf16.msra.mxu0 %v1776
      %4015 = vmatprep.subr.bf16.mxu0 0
      %4016 = vmatpush1.bf16.msra.mxu0 %v1779
      %4017 = vmatprep.subr.bf16.mxu0 0
      %4018 = vmatpush1.bf16.msra.mxu0 %v1782
      %4019 = vmatprep.subr.bf16.mxu0 0
      %4020 = vmatpush1.bf16.msra.mxu0 %v1785
      %4021 = vmatprep.subr.bf16.mxu0 0
      %4022 = vmatpush1.bf16.msra.mxu0 %v1788
      %4023 = vmatprep.subr.bf16.mxu0 0
      %4024 = vmatpush1.bf16.msra.mxu0 %v1791
      %4025 = vmatprep.subr.bf16.mxu0 0
      %4026 = vmatpush1.bf16.msra.mxu0 %v1794
      %4027 = vmatprep.subr.bf16.mxu0 0
      %4028 = vmatpush1.bf16.msra.mxu0 %v1797
      %4029 = vmatprep.subr.bf16.mxu0 0
      %4030 = vmatpush1.bf16.msra.mxu0 %v1800
      %4031 = vmatprep.subr.bf16.mxu0 0
      %4032 = vmatpush1.bf16.msra.mxu0 %v1803
      %4033 = vmatprep.subr.bf16.mxu0 0
      %4034 = vmatpush1.bf16.msra.mxu0 %v1806
      %4035 = vmatprep.mubr.bf16.mxu0 %v3636
      %4036 = vmatmul.mubr.bf16.gmra.mrb[0].mxu0 %v3635
      %v4037 = vpop.f32.mrb[0].mxu0
      %v4038 = vadd.f32 %v3997, %v4037
      %v4039 = vpop.f32.mrb[0].mxu0
      %v4040 = vpop.f32.mrb[0].mxu0
      %v4041 = vadd.f32 %v4000, %v4040
      %v4042 = vpop.f32.mrb[0].mxu0
      %4043 = vdwg.mxu0
      %4044 = vmatprep.subr.bf16.mxu0 0
      %4045 = vmatpush1.bf16.msra.mxu0 %v1809
      %4046 = vmatprep.subr.bf16.mxu0 0
      %4047 = vmatpush1.bf16.msra.mxu0 %v1812
      %4048 = vmatprep.subr.bf16.mxu0 0
      %4049 = vmatpush1.bf16.msra.mxu0 %v1815
      %4050 = vmatprep.subr.bf16.mxu0 0
      %4051 = vmatpush1.bf16.msra.mxu0 %v1818
      %4052 = vmatprep.subr.bf16.mxu0 0
      %4053 = vmatpush1.bf16.msra.mxu0 %v1821
      %4054 = vmatprep.subr.bf16.mxu0 0
      %4055 = vmatpush1.bf16.msra.mxu0 %v1824
      %4056 = vmatprep.subr.bf16.mxu0 0
      %4057 = vmatpush1.bf16.msra.mxu0 %v1827
      %4058 = vmatprep.subr.bf16.mxu0 0
      %4059 = vmatpush1.bf16.msra.mxu0 %v1830
      %4060 = vmatprep.subr.bf16.mxu0 0
      %4061 = vmatpush1.bf16.msra.mxu0 %v1833
      %4062 = vmatprep.subr.bf16.mxu0 0
      %4063 = vmatpush1.bf16.msra.mxu0 %v1836
      %4064 = vmatprep.subr.bf16.mxu0 0
      %4065 = vmatpush1.bf16.msra.mxu0 %v1839
      %4066 = vmatprep.subr.bf16.mxu0 0
      %4067 = vmatpush1.bf16.msra.mxu0 %v1842
      %4068 = vmatprep.subr.bf16.mxu0 0
      %4069 = vmatpush1.bf16.msra.mxu0 %v1845
      %4070 = vmatprep.subr.bf16.mxu0 0
      %4071 = vmatpush1.bf16.msra.mxu0 %v1848
      %4072 = vmatprep.subr.bf16.mxu0 0
      %4073 = vmatpush1.bf16.msra.mxu0 %v1851
      %4074 = vmatprep.subr.bf16.mxu0 0
      %4075 = vmatpush1.bf16.msra.mxu0 %v1854
      %4076 = vmatprep.mubr.bf16.mxu0 %v3638
      %4077 = vmatmul.mubr.bf16.gmra.mrb[0].mxu0 %v3637
      %v4078 = vpop.f32.mrb[0].mxu0
      %v4079 = vadd.f32 %v4038, %v4078
      %v4080 = vpop.f32.mrb[0].mxu0
      %v4081 = vpop.f32.mrb[0].mxu0
      %v4082 = vadd.f32 %v4041, %v4081
      %v4083 = vpop.f32.mrb[0].mxu0
      %4084 = vdwg.mxu0
      %4085 = vmatprep.subr.bf16.mxu0 0
      %4086 = vmatpush1.bf16.msra.mxu0 %v1857
      %4087 = vmatprep.subr.bf16.mxu0 0
      %4088 = vmatpush1.bf16.msra.mxu0 %v1860
      %4089 = vmatprep.subr.bf16.mxu0 0
      %4090 = vmatpush1.bf16.msra.mxu0 %v1863
      %4091 = vmatprep.subr.bf16.mxu0 0
      %4092 = vmatpush1.bf16.msra.mxu0 %v1866
      %4093 = vmatprep.subr.bf16.mxu0 0
      %4094 = vmatpush1.bf16.msra.mxu0 %v1869
      %4095 = vmatprep.subr.bf16.mxu0 0
      %4096 = vmatpush1.bf16.msra.mxu0 %v1872
      %4097 = vmatprep.subr.bf16.mxu0 0
      %4098 = vmatpush1.bf16.msra.mxu0 %v1875
      %4099 = vmatprep.subr.bf16.mxu0 0
      %4100 = vmatpush1.bf16.msra.mxu0 %v1878
      %4101 = vmatprep.subr.bf16.mxu0 0
      %4102 = vmatpush1.bf16.msra.mxu0 %v1881
      %4103 = vmatprep.subr.bf16.mxu0 0
      %4104 = vmatpush1.bf16.msra.mxu0 %v1884
      %4105 = vmatprep.subr.bf16.mxu0 0
      %4106 = vmatpush1.bf16.msra.mxu0 %v1887
      %4107 = vmatprep.subr.bf16.mxu0 0
      %4108 = vmatpush1.bf16.msra.mxu0 %v1890
      %4109 = vmatprep.subr.bf16.mxu0 0
      %4110 = vmatpush1.bf16.msra.mxu0 %v1893
      %4111 = vmatprep.subr.bf16.mxu0 0
      %4112 = vmatpush1.bf16.msra.mxu0 %v1896
      %4113 = vmatprep.subr.bf16.mxu0 0
      %4114 = vmatpush1.bf16.msra.mxu0 %v1899
      %4115 = vmatprep.subr.bf16.mxu0 0
      %4116 = vmatpush1.bf16.msra.mxu0 %v1902
      %4117 = vmatprep.mubr.bf16.mxu0 %v3640
      %4118 = vmatmul.mubr.bf16.gmra.mrb[0].mxu0 %v3639
      %v4119 = vpop.f32.mrb[0].mxu0
      %v4120 = vadd.f32 %v4079, %v4119
      %v4121 = vpop.f32.mrb[0].mxu0
      %v4122 = vpop.f32.mrb[0].mxu0
      %v4123 = vadd.f32 %v4082, %v4122
      %v4124 = vpop.f32.mrb[0].mxu0
      %4125 = vdwg.mxu0
      %4126 = vmatprep.subr.bf16.mxu0 0
      %4127 = vmatpush1.bf16.msra.mxu0 %v1905
      %4128 = vmatprep.subr.bf16.mxu0 0
      %4129 = vmatpush1.bf16.msra.mxu0 %v1908
      %4130 = vmatprep.subr.bf16.mxu0 0
      %4131 = vmatpush1.bf16.msra.mxu0 %v1911
      %4132 = vmatprep.subr.bf16.mxu0 0
      %4133 = vmatpush1.bf16.msra.mxu0 %v1914
      %4134 = vmatprep.subr.bf16.mxu0 0
      %4135 = vmatpush1.bf16.msra.mxu0 %v1917
      %4136 = vmatprep.subr.bf16.mxu0 0
      %4137 = vmatpush1.bf16.msra.mxu0 %v1920
      %4138 = vmatprep.subr.bf16.mxu0 0
      %4139 = vmatpush1.bf16.msra.mxu0 %v1923
      %4140 = vmatprep.subr.bf16.mxu0 0
      %4141 = vmatpush1.bf16.msra.mxu0 %v1926
      %4142 = vmatprep.subr.bf16.mxu0 0
      %4143 = vmatpush1.bf16.msra.mxu0 %v1929
      %4144 = vmatprep.subr.bf16.mxu0 0
      %4145 = vmatpush1.bf16.msra.mxu0 %v1932
      %4146 = vmatprep.subr.bf16.mxu0 0
      %4147 = vmatpush1.bf16.msra.mxu0 %v1935
      %4148 = vmatprep.subr.bf16.mxu0 0
      %4149 = vmatpush1.bf16.msra.mxu0 %v1938
      %4150 = vmatprep.subr.bf16.mxu0 0
      %4151 = vmatpush1.bf16.msra.mxu0 %v1941
      %4152 = vmatprep.subr.bf16.mxu0 0
      %4153 = vmatpush1.bf16.msra.mxu0 %v1944
      %4154 = vmatprep.subr.bf16.mxu0 0
      %4155 = vmatpush1.bf16.msra.mxu0 %v1947
      %4156 = vmatprep.subr.bf16.mxu0 0
      %4157 = vmatpush1.bf16.msra.mxu0 %v1950
      %4158 = vmatprep.mubr.bf16.mxu0 %v3642
      %4159 = vmatmul.mubr.bf16.gmra.mrb[0].mxu0 %v3641
      %v4160 = vpop.f32.mrb[0].mxu0
      %v4161 = vadd.f32 %v4120, %v4160
      %v4162 = vpop.f32.mrb[0].mxu0
      %v4163 = vpop.f32.mrb[0].mxu0
      %v4164 = vadd.f32 %v4123, %v4163
      %v4165 = vpop.f32.mrb[0].mxu0
      %4166 = vdwg.mxu0
      %4167 = vmatprep.subr.bf16.mxu0 0
      %4168 = vmatpush1.bf16.msra.mxu0 %v1953
      %4169 = vmatprep.subr.bf16.mxu0 0
      %4170 = vmatpush1.bf16.msra.mxu0 %v1956
      %4171 = vmatprep.subr.bf16.mxu0 0
      %4172 = vmatpush1.bf16.msra.mxu0 %v1959
      %4173 = vmatprep.subr.bf16.mxu0 0
      %4174 = vmatpush1.bf16.msra.mxu0 %v1962
      %4175 = vmatprep.subr.bf16.mxu0 0
      %4176 = vmatpush1.bf16.msra.mxu0 %v1965
      %4177 = vmatprep.subr.bf16.mxu0 0
      %4178 = vmatpush1.bf16.msra.mxu0 %v1968
      %4179 = vmatprep.subr.bf16.mxu0 0
      %4180 = vmatpush1.bf16.msra.mxu0 %v1971
      %4181 = vmatprep.subr.bf16.mxu0 0
      %4182 = vmatpush1.bf16.msra.mxu0 %v1974
      %4183 = vmatprep.subr.bf16.mxu0 0
      %4184 = vmatpush1.bf16.msra.mxu0 %v1977
      %4185 = vmatprep.subr.bf16.mxu0 0
      %4186 = vmatpush1.bf16.msra.mxu0 %v1980
      %4187 = vmatprep.subr.bf16.mxu0 0
      %4188 = vmatpush1.bf16.msra.mxu0 %v1983
      %4189 = vmatprep.subr.bf16.mxu0 0
      %4190 = vmatpush1.bf16.msra.mxu0 %v1986
      %4191 = vmatprep.subr.bf16.mxu0 0
      %4192 = vmatpush1.bf16.msra.mxu0 %v1989
      %4193 = vmatprep.subr.bf16.mxu0 0
      %4194 = vmatpush1.bf16.msra.mxu0 %v1992
      %4195 = vmatprep.subr.bf16.mxu0 0
      %4196 = vmatpush1.bf16.msra.mxu0 %v1995
      %4197 = vmatprep.subr.bf16.mxu0 0
      %4198 = vmatpush1.bf16.msra.mxu0 %v1998
      %4199 = vmatprep.mubr.bf16.mxu0 %v3644
      %4200 = vmatmul.mubr.bf16.gmra.mrb[0].mxu0 %v3643
      %v4201 = vpop.f32.mrb[0].mxu0
      %v4202 = vadd.f32 %v4161, %v4201
      %v4203 = vpop.f32.mrb[0].mxu0
      %v4204 = vpop.f32.mrb[0].mxu0
      %v4205 = vadd.f32 %v4164, %v4204
      %v4206 = vpop.f32.mrb[0].mxu0
      %4207 = vdwg.mxu0
      %4208 = vmatprep.subr.bf16.mxu0 0
      %4209 = vmatpush1.bf16.msra.mxu0 %v2001
      %4210 = vmatprep.subr.bf16.mxu0 0
      %4211 = vmatpush1.bf16.msra.mxu0 %v2004
      %4212 = vmatprep.subr.bf16.mxu0 0
      %4213 = vmatpush1.bf16.msra.mxu0 %v2007
      %4214 = vmatprep.subr.bf16.mxu0 0
      %4215 = vmatpush1.bf16.msra.mxu0 %v2010
      %4216 = vmatprep.subr.bf16.mxu0 0
      %4217 = vmatpush1.bf16.msra.mxu0 0
      %4218 = vmatprep.subr.bf16.mxu0 0
      %4219 = vmatpush1.bf16.msra.mxu0 0
      %4220 = vmatprep.subr.bf16.mxu0 0
      %4221 = vmatpush1.bf16.msra.mxu0 0
      %4222 = vmatprep.subr.bf16.mxu0 0
      %4223 = vmatpush1.bf16.msra.mxu0 0
      %4224 = vmatprep.subr.bf16.mxu0 0
      %4225 = vmatpush1.bf16.msra.mxu0 0
      %4226 = vmatprep.subr.bf16.mxu0 0
      %4227 = vmatpush1.bf16.msra.mxu0 0
      %4228 = vmatprep.subr.bf16.mxu0 0
      %4229 = vmatpush1.bf16.msra.mxu0 0
      %4230 = vmatprep.subr.bf16.mxu0 0
      %4231 = vmatpush1.bf16.msra.mxu0 0
      %4232 = vmatprep.subr.bf16.mxu0 0
      %4233 = vmatpush1.bf16.msra.mxu0 0
      %4234 = vmatprep.subr.bf16.mxu0 0
      %4235 = vmatpush1.bf16.msra.mxu0 0
      %4236 = vmatprep.subr.bf16.mxu0 0
      %4237 = vmatpush1.bf16.msra.mxu0 0
      %4238 = vmatprep.subr.bf16.mxu0 0
      %4239 = vmatpush1.bf16.msra.mxu0 0
      %4240 = vmatprep.mubr.bf16.mxu0 0
      %4241 = vmatmul.mubr.bf16.gmra.mrb[0].mxu0 %v3659
      %v4242 = vpop.f32.mrb[0].mxu0
      %v4243 = vadd.f32 %v4202, %v4242
      %v4244 = vpop.f32.mrb[0].mxu0
      %v4245 = vpop.f32.mrb[0].mxu0
      %v4246 = vadd.f32 %v4205, %v4245
      %v4247 = vpop.f32.mrb[0].mxu0
      %4248 = vdwg.mxu0
      %v4249 = vmax.f32 %v3573, %v3954
      %v4250 = vmax.f32 %v3574, %v3956
      %v4251 = vmax.f32 %v3575, %v4243
      %v4252 = vmax.f32 %v3576, %v3958
      %v4253 = vmax.f32 %v3577, %v3960
      %v4254 = vmax.f32 %v3578, %v4246
      %v4255 = vld [vmem:[%s223 + $0x138] sm:$0xff]
      %v4256 = vld [vmem:[%s223 + $0x140] sm:$0xff]
      %v4257 = vld [vmem:[%s223 + $0x148] sm:$0xff]
      %v4258 = vld [vmem:[%s223 + $0x150] sm:$0xff]
      %v4259 = vld [vmem:[%s223 + $0x158] sm:$0xff]
      %v4260 = vld [vmem:[%s223 + $0x160] sm:$0xff]
      %v4261 = vld [vmem:[%s223 + $0x168] sm:$0xf]
      %v4262 = vld [vmem:[%s223 + $0x16c] sm:$0xff]
      %v4263 = vld [vmem:[%s223 + $0x174] sm:$0xff]
      %v4264 = vld [vmem:[%s223 + $0x17c] sm:$0xff]
      %v4265 = vld [vmem:[%s223 + $0x184] sm:$0xff]
      %v4266 = vld [vmem:[%s223 + $0x18c] sm:$0xff]
      %v4267 = vld [vmem:[%s223 + $0x194] sm:$0xff]
      %v4268 = vld [vmem:[%s223 + $0x19c] sm:$0xf]
      %v4283 = vunpack.c.l.b16 %v4255
      %v4284 = vunpack.c.h.b16 %v4255
      %v4285 = vunpack.c.l.b16 %v4256
      %v4286 = vunpack.c.h.b16 %v4256
      %v4287 = vunpack.c.l.b16 %v4257
      %v4288 = vunpack.c.h.b16 %v4257
      %v4289 = vunpack.c.l.b16 %v4258
      %v4290 = vunpack.c.h.b16 %v4258
      %v4291 = vunpack.c.l.b16 %v4259
      %v4292 = vunpack.c.h.b16 %v4259
      %v4293 = vunpack.c.l.b16 %v4260
      %v4294 = vunpack.c.h.b16 %v4260
      %v4295 = vunpack.c.l.b16 %v4261
      %v4296 = vunpack.c.l.b16 %v4262
      %v4297 = vunpack.c.h.b16 %v4262
      %v4298 = vunpack.c.l.b16 %v4263
      %v4299 = vunpack.c.h.b16 %v4263
      %v4300 = vunpack.c.l.b16 %v4264
      %v4301 = vunpack.c.h.b16 %v4264
      %v4302 = vunpack.c.l.b16 %v4265
      %v4303 = vunpack.c.h.b16 %v4265
      %v4304 = vunpack.c.l.b16 %v4266
      %v4305 = vunpack.c.h.b16 %v4266
      %v4306 = vunpack.c.l.b16 %v4267
      %v4307 = vunpack.c.h.b16 %v4267
      %v4308 = vunpack.c.l.b16 %v4268
      %v4309 = vpack.c.b16 %v4296, %v4283
      %v4310 = vpack.c.b16 %v4297, %v4284
      %v4311 = vpack.c.b16 %v4298, %v4285
      %v4312 = vpack.c.b16 %v4299, %v4286
      %v4313 = vpack.c.b16 %v4300, %v4287
      %v4314 = vpack.c.b16 %v4301, %v4288
      %v4315 = vpack.c.b16 %v4302, %v4289
      %v4316 = vpack.c.b16 %v4303, %v4290
      %v4317 = vpack.c.b16 %v4304, %v4291
      %v4318 = vpack.c.b16 %v4305, %v4292
      %v4319 = vpack.c.b16 %v4306, %v4293
      %v4320 = vpack.c.b16 %v4307, %v4294
      %v4321 = vpack.c.b16 %v4308, %v4295
      %v4335 = vsel %vm2311, %v4321, 0
      %4337 = vmatprep.subr.bf16.mxu0 %v1712
      %4338 = vmatpush1.bf16.msra.mxu0 %v1711
      %4339 = vmatprep.subr.bf16.mxu0 %v1715
      %4340 = vmatpush1.bf16.msra.mxu0 %v1714
      %4341 = vmatprep.subr.bf16.mxu0 %v1718
      %4342 = vmatpush1.bf16.msra.mxu0 %v1717
      %4343 = vmatprep.subr.bf16.mxu0 %v1721
      %4344 = vmatpush1.bf16.msra.mxu0 %v1720
      %4345 = vmatprep.subr.bf16.mxu0 %v1724
      %4346 = vmatpush1.bf16.msra.mxu0 %v1723
      %4347 = vmatprep.subr.bf16.mxu0 %v1727
      %4348 = vmatpush1.bf16.msra.mxu0 %v1726
      %4349 = vmatprep.subr.bf16.mxu0 %v1730
      %4350 = vmatpush1.bf16.msra.mxu0 %v1729
      %4351 = vmatprep.subr.bf16.mxu0 %v1733
      %4352 = vmatpush1.bf16.msra.mxu0 %v1732
      %4353 = vmatprep.subr.bf16.mxu0 %v1736
      %4354 = vmatpush1.bf16.msra.mxu0 %v1735
      %4355 = vmatprep.subr.bf16.mxu0 %v1739
      %4356 = vmatpush1.bf16.msra.mxu0 %v1738
      %4357 = vmatprep.subr.bf16.mxu0 %v1742
      %4358 = vmatpush1.bf16.msra.mxu0 %v1741
      %4359 = vmatprep.subr.bf16.mxu0 %v1745
      %4360 = vmatpush1.bf16.msra.mxu0 %v1744
      %4361 = vmatprep.subr.bf16.mxu0 %v1748
      %4362 = vmatpush1.bf16.msra.mxu0 %v1747
      %4363 = vmatprep.subr.bf16.mxu0 %v1751
      %4364 = vmatpush1.bf16.msra.mxu0 %v1750
      %4365 = vmatprep.subr.bf16.mxu0 %v1754
      %4366 = vmatpush1.bf16.msra.mxu0 %v1753
      %4367 = vmatprep.subr.bf16.mxu0 %v1757
      %4368 = vmatpush1.bf16.msra.mxu0 %v1756
      %4369 = vmatprep.mubr.bf16.mxu0 %v4310
      %4370 = vmatmul.mubr.bf16.gmra.mrb[0].mxu0 %v4309
      %v4371 = vpop.f32.mrb[0].mxu0
      %v4372 = vadd.f32 0.0, %v4371
      %v4373 = vpop.f32.mrb[0].mxu0
      %v4374 = vadd.f32 0.0, %v4373
      %v4375 = vpop.f32.mrb[0].mxu0
      %v4376 = vadd.f32 0.0, %v4375
      %v4377 = vpop.f32.mrb[0].mxu0
      %v4378 = vadd.f32 0.0, %v4377
      %4379 = vdwg.mxu0
      %4380 = vmatprep.subr.bf16.mxu0 %v1760
      %4381 = vmatpush1.bf16.msra.mxu0 %v1759
      %4382 = vmatprep.subr.bf16.mxu0 %v1763
      %4383 = vmatpush1.bf16.msra.mxu0 %v1762
      %4384 = vmatprep.subr.bf16.mxu0 %v1766
      %4385 = vmatpush1.bf16.msra.mxu0 %v1765
      %4386 = vmatprep.subr.bf16.mxu0 %v1769
      %4387 = vmatpush1.bf16.msra.mxu0 %v1768
      %4388 = vmatprep.subr.bf16.mxu0 %v1772
      %4389 = vmatpush1.bf16.msra.mxu0 %v1771
      %4390 = vmatprep.subr.bf16.mxu0 %v1775
      %4391 = vmatpush1.bf16.msra.mxu0 %v1774
      %4392 = vmatprep.subr.bf16.mxu0 %v1778
      %4393 = vmatpush1.bf16.msra.mxu0 %v1777
      %4394 = vmatprep.subr.bf16.mxu0 %v1781
      %4395 = vmatpush1.bf16.msra.mxu0 %v1780
      %4396 = vmatprep.subr.bf16.mxu0 %v1784
      %4397 = vmatpush1.bf16.msra.mxu0 %v1783
      %4398 = vmatprep.subr.bf16.mxu0 %v1787
      %4399 = vmatpush1.bf16.msra.mxu0 %v1786
      %4400 = vmatprep.subr.bf16.mxu0 %v1790
      %4401 = vmatpush1.bf16.msra.mxu0 %v1789
      %4402 = vmatprep.subr.bf16.mxu0 %v1793
      %4403 = vmatpush1.bf16.msra.mxu0 %v1792
      %4404 = vmatprep.subr.bf16.mxu0 %v1796
      %4405 = vmatpush1.bf16.msra.mxu0 %v1795
      %4406 = vmatprep.subr.bf16.mxu0 %v1799
      %4407 = vmatpush1.bf16.msra.mxu0 %v1798
      %4408 = vmatprep.subr.bf16.mxu0 %v1802
      %4409 = vmatpush1.bf16.msra.mxu0 %v1801
      %4410 = vmatprep.subr.bf16.mxu0 %v1805
      %4411 = vmatpush1.bf16.msra.mxu0 %v1804
      %4412 = vmatprep.mubr.bf16.mxu0 %v4312
      %4413 = vmatmul.mubr.bf16.gmra.mrb[0].mxu0 %v4311
      %v4414 = vpop.f32.mrb[0].mxu0
      %v4415 = vadd.f32 %v4372, %v4414
      %v4416 = vpop.f32.mrb[0].mxu0
      %v4417 = vadd.f32 %v4374, %v4416
      %v4418 = vpop.f32.mrb[0].mxu0
      %v4419 = vadd.f32 %v4376, %v4418
      %v4420 = vpop.f32.mrb[0].mxu0
      %v4421 = vadd.f32 %v4378, %v4420
      %4422 = vdwg.mxu0
      %4423 = vmatprep.subr.bf16.mxu0 %v1808
      %4424 = vmatpush1.bf16.msra.mxu0 %v1807
      %4425 = vmatprep.subr.bf16.mxu0 %v1811
      %4426 = vmatpush1.bf16.msra.mxu0 %v1810
      %4427 = vmatprep.subr.bf16.mxu0 %v1814
      %4428 = vmatpush1.bf16.msra.mxu0 %v1813
      %4429 = vmatprep.subr.bf16.mxu0 %v1817
      %4430 = vmatpush1.bf16.msra.mxu0 %v1816
      %4431 = vmatprep.subr.bf16.mxu0 %v1820
      %4432 = vmatpush1.bf16.msra.mxu0 %v1819
      %4433 = vmatprep.subr.bf16.mxu0 %v1823
      %4434 = vmatpush1.bf16.msra.mxu0 %v1822
      %4435 = vmatprep.subr.bf16.mxu0 %v1826
      %4436 = vmatpush1.bf16.msra.mxu0 %v1825
      %4437 = vmatprep.subr.bf16.mxu0 %v1829
      %4438 = vmatpush1.bf16.msra.mxu0 %v1828
      %4439 = vmatprep.subr.bf16.mxu0 %v1832
      %4440 = vmatpush1.bf16.msra.mxu0 %v1831
      %4441 = vmatprep.subr.bf16.mxu0 %v1835
      %4442 = vmatpush1.bf16.msra.mxu0 %v1834
      %4443 = vmatprep.subr.bf16.mxu0 %v1838
      %4444 = vmatpush1.bf16.msra.mxu0 %v1837
      %4445 = vmatprep.subr.bf16.mxu0 %v1841
      %4446 = vmatpush1.bf16.msra.mxu0 %v1840
      %4447 = vmatprep.subr.bf16.mxu0 %v1844
      %4448 = vmatpush1.bf16.msra.mxu0 %v1843
      %4449 = vmatprep.subr.bf16.mxu0 %v1847
      %4450 = vmatpush1.bf16.msra.mxu0 %v1846
      %4451 = vmatprep.subr.bf16.mxu0 %v1850
      %4452 = vmatpush1.bf16.msra.mxu0 %v1849
      %4453 = vmatprep.subr.bf16.mxu0 %v1853
      %4454 = vmatpush1.bf16.msra.mxu0 %v1852
      %4455 = vmatprep.mubr.bf16.mxu0 %v4314
      %4456 = vmatmul.mubr.bf16.gmra.mrb[0].mxu0 %v4313
      %v4457 = vpop.f32.mrb[0].mxu0
      %v4458 = vadd.f32 %v4415, %v4457
      %v4459 = vpop.f32.mrb[0].mxu0
      %v4460 = vadd.f32 %v4417, %v4459
      %v4461 = vpop.f32.mrb[0].mxu0
      %v4462 = vadd.f32 %v4419, %v4461
      %v4463 = vpop.f32.mrb[0].mxu0
      %v4464 = vadd.f32 %v4421, %v4463
      %4465 = vdwg.mxu0
      %4466 = vmatprep.subr.bf16.mxu0 %v1856
      %4467 = vmatpush1.bf16.msra.mxu0 %v1855
      %4468 = vmatprep.subr.bf16.mxu0 %v1859
      %4469 = vmatpush1.bf16.msra.mxu0 %v1858
      %4470 = vmatprep.subr.bf16.mxu0 %v1862
      %4471 = vmatpush1.bf16.msra.mxu0 %v1861
      %4472 = vmatprep.subr.bf16.mxu0 %v1865
      %4473 = vmatpush1.bf16.msra.mxu0 %v1864
      %4474 = vmatprep.subr.bf16.mxu0 %v1868
      %4475 = vmatpush1.bf16.msra.mxu0 %v1867
      %4476 = vmatprep.subr.bf16.mxu0 %v1871
      %4477 = vmatpush1.bf16.msra.mxu0 %v1870
      %4478 = vmatprep.subr.bf16.mxu0 %v1874
      %4479 = vmatpush1.bf16.msra.mxu0 %v1873
      %4480 = vmatprep.subr.bf16.mxu0 %v1877
      %4481 = vmatpush1.bf16.msra.mxu0 %v1876
      %4482 = vmatprep.subr.bf16.mxu0 %v1880
      %4483 = vmatpush1.bf16.msra.mxu0 %v1879
      %4484 = vmatprep.subr.bf16.mxu0 %v1883
      %4485 = vmatpush1.bf16.msra.mxu0 %v1882
      %4486 = vmatprep.subr.bf16.mxu0 %v1886
      %4487 = vmatpush1.bf16.msra.mxu0 %v1885
      %4488 = vmatprep.subr.bf16.mxu0 %v1889
      %4489 = vmatpush1.bf16.msra.mxu0 %v1888
      %4490 = vmatprep.subr.bf16.mxu0 %v1892
      %4491 = vmatpush1.bf16.msra.mxu0 %v1891
      %4492 = vmatprep.subr.bf16.mxu0 %v1895
      %4493 = vmatpush1.bf16.msra.mxu0 %v1894
      %4494 = vmatprep.subr.bf16.mxu0 %v1898
      %4495 = vmatpush1.bf16.msra.mxu0 %v1897
      %4496 = vmatprep.subr.bf16.mxu0 %v1901
      %4497 = vmatpush1.bf16.msra.mxu0 %v1900
      %4498 = vmatprep.mubr.bf16.mxu0 %v4316
      %4499 = vmatmul.mubr.bf16.gmra.mrb[0].mxu0 %v4315
      %v4500 = vpop.f32.mrb[0].mxu0
      %v4501 = vadd.f32 %v4458, %v4500
      %v4502 = vpop.f32.mrb[0].mxu0
      %v4503 = vadd.f32 %v4460, %v4502
      %v4504 = vpop.f32.mrb[0].mxu0
      %v4505 = vadd.f32 %v4462, %v4504
      %v4506 = vpop.f32.mrb[0].mxu0
      %v4507 = vadd.f32 %v4464, %v4506
      %4508 = vdwg.mxu0
      %4509 = vmatprep.subr.bf16.mxu0 %v1904
      %4510 = vmatpush1.bf16.msra.mxu0 %v1903
      %4511 = vmatprep.subr.bf16.mxu0 %v1907
      %4512 = vmatpush1.bf16.msra.mxu0 %v1906
      %4513 = vmatprep.subr.bf16.mxu0 %v1910
      %4514 = vmatpush1.bf16.msra.mxu0 %v1909
      %4515 = vmatprep.subr.bf16.mxu0 %v1913
      %4516 = vmatpush1.bf16.msra.mxu0 %v1912
      %4517 = vmatprep.subr.bf16.mxu0 %v1916
      %4518 = vmatpush1.bf16.msra.mxu0 %v1915
      %4519 = vmatprep.subr.bf16.mxu0 %v1919
      %4520 = vmatpush1.bf16.msra.mxu0 %v1918
      %4521 = vmatprep.subr.bf16.mxu0 %v1922
      %4522 = vmatpush1.bf16.msra.mxu0 %v1921
      %4523 = vmatprep.subr.bf16.mxu0 %v1925
      %4524 = vmatpush1.bf16.msra.mxu0 %v1924
      %4525 = vmatprep.subr.bf16.mxu0 %v1928
      %4526 = vmatpush1.bf16.msra.mxu0 %v1927
      %4527 = vmatprep.subr.bf16.mxu0 %v1931
      %4528 = vmatpush1.bf16.msra.mxu0 %v1930
      %4529 = vmatprep.subr.bf16.mxu0 %v1934
      %4530 = vmatpush1.bf16.msra.mxu0 %v1933
      %4531 = vmatprep.subr.bf16.mxu0 %v1937
      %4532 = vmatpush1.bf16.msra.mxu0 %v1936
      %4533 = vmatprep.subr.bf16.mxu0 %v1940
      %4534 = vmatpush1.bf16.msra.mxu0 %v1939
      %4535 = vmatprep.subr.bf16.mxu0 %v1943
      %4536 = vmatpush1.bf16.msra.mxu0 %v1942
      %4537 = vmatprep.subr.bf16.mxu0 %v1946
      %4538 = vmatpush1.bf16.msra.mxu0 %v1945
      %4539 = vmatprep.subr.bf16.mxu0 %v1949
      %4540 = vmatpush1.bf16.msra.mxu0 %v1948
      %4541 = vmatprep.mubr.bf16.mxu0 %v4318
      %4542 = vmatmul.mubr.bf16.gmra.mrb[0].mxu0 %v4317
      %v4543 = vpop.f32.mrb[0].mxu0
      %v4544 = vadd.f32 %v4501, %v4543
      %v4545 = vpop.f32.mrb[0].mxu0
      %v4546 = vadd.f32 %v4503, %v4545
      %v4547 = vpop.f32.mrb[0].mxu0
      %v4548 = vadd.f32 %v4505, %v4547
      %v4549 = vpop.f32.mrb[0].mxu0
      %v4550 = vadd.f32 %v4507, %v4549
      %4551 = vdwg.mxu0
      %4552 = vmatprep.subr.bf16.mxu0 %v1952
      %4553 = vmatpush1.bf16.msra.mxu0 %v1951
      %4554 = vmatprep.subr.bf16.mxu0 %v1955
      %4555 = vmatpush1.bf16.msra.mxu0 %v1954
      %4556 = vmatprep.subr.bf16.mxu0 %v1958
      %4557 = vmatpush1.bf16.msra.mxu0 %v1957
      %4558 = vmatprep.subr.bf16.mxu0 %v1961
      %4559 = vmatpush1.bf16.msra.mxu0 %v1960
      %4560 = vmatprep.subr.bf16.mxu0 %v1964
      %4561 = vmatpush1.bf16.msra.mxu0 %v1963
      %4562 = vmatprep.subr.bf16.mxu0 %v1967
      %4563 = vmatpush1.bf16.msra.mxu0 %v1966
      %4564 = vmatprep.subr.bf16.mxu0 %v1970
      %4565 = vmatpush1.bf16.msra.mxu0 %v1969
      %4566 = vmatprep.subr.bf16.mxu0 %v1973
      %4567 = vmatpush1.bf16.msra.mxu0 %v1972
      %4568 = vmatprep.subr.bf16.mxu0 %v1976
      %4569 = vmatpush1.bf16.msra.mxu0 %v1975
      %4570 = vmatprep.subr.bf16.mxu0 %v1979
      %4571 = vmatpush1.bf16.msra.mxu0 %v1978
      %4572 = vmatprep.subr.bf16.mxu0 %v1982
      %4573 = vmatpush1.bf16.msra.mxu0 %v1981
      %4574 = vmatprep.subr.bf16.mxu0 %v1985
      %4575 = vmatpush1.bf16.msra.mxu0 %v1984
      %4576 = vmatprep.subr.bf16.mxu0 %v1988
      %4577 = vmatpush1.bf16.msra.mxu0 %v1987
      %4578 = vmatprep.subr.bf16.mxu0 %v1991
      %4579 = vmatpush1.bf16.msra.mxu0 %v1990
      %4580 = vmatprep.subr.bf16.mxu0 %v1994
      %4581 = vmatpush1.bf16.msra.mxu0 %v1993
      %4582 = vmatprep.subr.bf16.mxu0 %v1997
      %4583 = vmatpush1.bf16.msra.mxu0 %v1996
      %4584 = vmatprep.mubr.bf16.mxu0 %v4320
      %4585 = vmatmul.mubr.bf16.gmra.mrb[0].mxu0 %v4319
      %v4586 = vpop.f32.mrb[0].mxu0
      %v4587 = vadd.f32 %v4544, %v4586
      %v4588 = vpop.f32.mrb[0].mxu0
      %v4589 = vadd.f32 %v4546, %v4588
      %v4590 = vpop.f32.mrb[0].mxu0
      %v4591 = vadd.f32 %v4548, %v4590
      %v4592 = vpop.f32.mrb[0].mxu0
      %v4593 = vadd.f32 %v4550, %v4592
      %4594 = vdwg.mxu0
      %4595 = vmatprep.subr.bf16.mxu0 %v2000
      %4596 = vmatpush1.bf16.msra.mxu0 %v1999
      %4597 = vmatprep.subr.bf16.mxu0 %v2003
      %4598 = vmatpush1.bf16.msra.mxu0 %v2002
      %4599 = vmatprep.subr.bf16.mxu0 %v2006
      %4600 = vmatpush1.bf16.msra.mxu0 %v2005
      %4601 = vmatprep.subr.bf16.mxu0 %v2009
      %4602 = vmatpush1.bf16.msra.mxu0 %v2008
      %4603 = vmatprep.subr.bf16.mxu0 0
      %4604 = vmatpush1.bf16.msra.mxu0 0
      %4605 = vmatprep.subr.bf16.mxu0 0
      %4606 = vmatpush1.bf16.msra.mxu0 0
      %4607 = vmatprep.subr.bf16.mxu0 0
      %4608 = vmatpush1.bf16.msra.mxu0 0
      %4609 = vmatprep.subr.bf16.mxu0 0
      %4610 = vmatpush1.bf16.msra.mxu0 0
      %4611 = vmatprep.subr.bf16.mxu0 0
      %4612 = vmatpush1.bf16.msra.mxu0 0
      %4613 = vmatprep.subr.bf16.mxu0 0
      %4614 = vmatpush1.bf16.msra.mxu0 0
      %4615 = vmatprep.subr.bf16.mxu0 0
      %4616 = vmatpush1.bf16.msra.mxu0 0
      %4617 = vmatprep.subr.bf16.mxu0 0
      %4618 = vmatpush1.bf16.msra.mxu0 0
      %4619 = vmatprep.subr.bf16.mxu0 0
      %4620 = vmatpush1.bf16.msra.mxu0 0
      %4621 = vmatprep.subr.bf16.mxu0 0
      %4622 = vmatpush1.bf16.msra.mxu0 0
      %4623 = vmatprep.subr.bf16.mxu0 0
      %4624 = vmatpush1.bf16.msra.mxu0 0
      %4625 = vmatprep.subr.bf16.mxu0 0
      %4626 = vmatpush1.bf16.msra.mxu0 0
      %4627 = vmatprep.mubr.bf16.mxu0 0
      %4628 = vmatmul.mubr.bf16.gmra.mrb[0].mxu0 %v4335
      %v4629 = vpop.f32.mrb[0].mxu0
      %v4630 = vadd.f32 %v4587, %v4629
      %v4631 = vpop.f32.mrb[0].mxu0
      %v4632 = vadd.f32 %v4589, %v4631
      %v4633 = vpop.f32.mrb[0].mxu0
      %v4634 = vadd.f32 %v4591, %v4633
      %v4635 = vpop.f32.mrb[0].mxu0
      %v4636 = vadd.f32 %v4593, %v4635
      %4637 = vdwg.mxu0
      %4638 = vmatprep.subr.bf16.mxu0 0
      %4639 = vmatpush1.bf16.msra.mxu0 %v1713
      %4640 = vmatprep.subr.bf16.mxu0 0
      %4641 = vmatpush1.bf16.msra.mxu0 %v1716
      %4642 = vmatprep.subr.bf16.mxu0 0
      %4643 = vmatpush1.bf16.msra.mxu0 %v1719
      %4644 = vmatprep.subr.bf16.mxu0 0
      %4645 = vmatpush1.bf16.msra.mxu0 %v1722
      %4646 = vmatprep.subr.bf16.mxu0 0
      %4647 = vmatpush1.bf16.msra.mxu0 %v1725
      %4648 = vmatprep.subr.bf16.mxu0 0
      %4649 = vmatpush1.bf16.msra.mxu0 %v1728
      %4650 = vmatprep.subr.bf16.mxu0 0
      %4651 = vmatpush1.bf16.msra.mxu0 %v1731
      %4652 = vmatprep.subr.bf16.mxu0 0
      %4653 = vmatpush1.bf16.msra.mxu0 %v1734
      %4654 = vmatprep.subr.bf16.mxu0 0
      %4655 = vmatpush1.bf16.msra.mxu0 %v1737
      %4656 = vmatprep.subr.bf16.mxu0 0
      %4657 = vmatpush1.bf16.msra.mxu0 %v1740
      %4658 = vmatprep.subr.bf16.mxu0 0
      %4659 = vmatpush1.bf16.msra.mxu0 %v1743
      %4660 = vmatprep.subr.bf16.mxu0 0
      %4661 = vmatpush1.bf16.msra.mxu0 %v1746
      %4662 = vmatprep.subr.bf16.mxu0 0
      %4663 = vmatpush1.bf16.msra.mxu0 %v1749
      %4664 = vmatprep.subr.bf16.mxu0 0
      %4665 = vmatpush1.bf16.msra.mxu0 %v1752
      %4666 = vmatprep.subr.bf16.mxu0 0
      %4667 = vmatpush1.bf16.msra.mxu0 %v1755
      %4668 = vmatprep.subr.bf16.mxu0 0
      %4669 = vmatpush1.bf16.msra.mxu0 %v1758
      %4670 = vmatprep.mubr.bf16.mxu0 %v4310
      %4671 = vmatmul.mubr.bf16.gmra.mrb[0].mxu0 %v4309
      %v4672 = vpop.f32.mrb[0].mxu0
      %v4673 = vadd.f32 0.0, %v4672
      %v4674 = vpop.f32.mrb[0].mxu0
      %v4675 = vpop.f32.mrb[0].mxu0
      %v4676 = vadd.f32 0.0, %v4675
      %v4677 = vpop.f32.mrb[0].mxu0
      %4678 = vdwg.mxu0
      %4679 = vmatprep.subr.bf16.mxu0 0
      %4680 = vmatpush1.bf16.msra.mxu0 %v1761
      %4681 = vmatprep.subr.bf16.mxu0 0
      %4682 = vmatpush1.bf16.msra.mxu0 %v1764
      %4683 = vmatprep.subr.bf16.mxu0 0
      %4684 = vmatpush1.bf16.msra.mxu0 %v1767
      %4685 = vmatprep.subr.bf16.mxu0 0
      %4686 = vmatpush1.bf16.msra.mxu0 %v1770
      %4687 = vmatprep.subr.bf16.mxu0 0
      %4688 = vmatpush1.bf16.msra.mxu0 %v1773
      %4689 = vmatprep.subr.bf16.mxu0 0
      %4690 = vmatpush1.bf16.msra.mxu0 %v1776
      %4691 = vmatprep.subr.bf16.mxu0 0
      %4692 = vmatpush1.bf16.msra.mxu0 %v1779
      %4693 = vmatprep.subr.bf16.mxu0 0
      %4694 = vmatpush1.bf16.msra.mxu0 %v1782
      %4695 = vmatprep.subr.bf16.mxu0 0
      %4696 = vmatpush1.bf16.msra.mxu0 %v1785
      %4697 = vmatprep.subr.bf16.mxu0 0
      %4698 = vmatpush1.bf16.msra.mxu0 %v1788
      %4699 = vmatprep.subr.bf16.mxu0 0
      %4700 = vmatpush1.bf16.msra.mxu0 %v1791
      %4701 = vmatprep.subr.bf16.mxu0 0
      %4702 = vmatpush1.bf16.msra.mxu0 %v1794
      %4703 = vmatprep.subr.bf16.mxu0 0
      %4704 = vmatpush1.bf16.msra.mxu0 %v1797
      %4705 = vmatprep.subr.bf16.mxu0 0
      %4706 = vmatpush1.bf16.msra.mxu0 %v1800
      %4707 = vmatprep.subr.bf16.mxu0 0
      %4708 = vmatpush1.bf16.msra.mxu0 %v1803
      %4709 = vmatprep.subr.bf16.mxu0 0
      %4710 = vmatpush1.bf16.msra.mxu0 %v1806
      %4711 = vmatprep.mubr.bf16.mxu0 %v4312
      %4712 = vmatmul.mubr.bf16.gmra.mrb[0].mxu0 %v4311
      %v4713 = vpop.f32.mrb[0].mxu0
      %v4714 = vadd.f32 %v4673, %v4713
      %v4715 = vpop.f32.mrb[0].mxu0
      %v4716 = vpop.f32.mrb[0].mxu0
      %v4717 = vadd.f32 %v4676, %v4716
      %v4718 = vpop.f32.mrb[0].mxu0
      %4719 = vdwg.mxu0
      %4720 = vmatprep.subr.bf16.mxu0 0
      %4721 = vmatpush1.bf16.msra.mxu0 %v1809
      %4722 = vmatprep.subr.bf16.mxu0 0
      %4723 = vmatpush1.bf16.msra.mxu0 %v1812
      %4724 = vmatprep.subr.bf16.mxu0 0
      %4725 = vmatpush1.bf16.msra.mxu0 %v1815
      %4726 = vmatprep.subr.bf16.mxu0 0
      %4727 = vmatpush1.bf16.msra.mxu0 %v1818
      %4728 = vmatprep.subr.bf16.mxu0 0
      %4729 = vmatpush1.bf16.msra.mxu0 %v1821
      %4730 = vmatprep.subr.bf16.mxu0 0
      %4731 = vmatpush1.bf16.msra.mxu0 %v1824
      %4732 = vmatprep.subr.bf16.mxu0 0
      %4733 = vmatpush1.bf16.msra.mxu0 %v1827
      %4734 = vmatprep.subr.bf16.mxu0 0
      %4735 = vmatpush1.bf16.msra.mxu0 %v1830
      %4736 = vmatprep.subr.bf16.mxu0 0
      %4737 = vmatpush1.bf16.msra.mxu0 %v1833
      %4738 = vmatprep.subr.bf16.mxu0 0
      %4739 = vmatpush1.bf16.msra.mxu0 %v1836
      %4740 = vmatprep.subr.bf16.mxu0 0
      %4741 = vmatpush1.bf16.msra.mxu0 %v1839
      %4742 = vmatprep.subr.bf16.mxu0 0
      %4743 = vmatpush1.bf16.msra.mxu0 %v1842
      %4744 = vmatprep.subr.bf16.mxu0 0
      %4745 = vmatpush1.bf16.msra.mxu0 %v1845
      %4746 = vmatprep.subr.bf16.mxu0 0
      %4747 = vmatpush1.bf16.msra.mxu0 %v1848
      %4748 = vmatprep.subr.bf16.mxu0 0
      %4749 = vmatpush1.bf16.msra.mxu0 %v1851
      %4750 = vmatprep.subr.bf16.mxu0 0
      %4751 = vmatpush1.bf16.msra.mxu0 %v1854
      %4752 = vmatprep.mubr.bf16.mxu0 %v4314
      %4753 = vmatmul.mubr.bf16.gmra.mrb[0].mxu0 %v4313
      %v4754 = vpop.f32.mrb[0].mxu0
      %v4755 = vadd.f32 %v4714, %v4754
      %v4756 = vpop.f32.mrb[0].mxu0
      %v4757 = vpop.f32.mrb[0].mxu0
      %v4758 = vadd.f32 %v4717, %v4757
      %v4759 = vpop.f32.mrb[0].mxu0
      %4760 = vdwg.mxu0
      %4761 = vmatprep.subr.bf16.mxu0 0
      %4762 = vmatpush1.bf16.msra.mxu0 %v1857
      %4763 = vmatprep.subr.bf16.mxu0 0
      %4764 = vmatpush1.bf16.msra.mxu0 %v1860
      %4765 = vmatprep.subr.bf16.mxu0 0
      %4766 = vmatpush1.bf16.msra.mxu0 %v1863
      %4767 = vmatprep.subr.bf16.mxu0 0
      %4768 = vmatpush1.bf16.msra.mxu0 %v1866
      %4769 = vmatprep.subr.bf16.mxu0 0
      %4770 = vmatpush1.bf16.msra.mxu0 %v1869
      %4771 = vmatprep.subr.bf16.mxu0 0
      %4772 = vmatpush1.bf16.msra.mxu0 %v1872
      %4773 = vmatprep.subr.bf16.mxu0 0
      %4774 = vmatpush1.bf16.msra.mxu0 %v1875
      %4775 = vmatprep.subr.bf16.mxu0 0
      %4776 = vmatpush1.bf16.msra.mxu0 %v1878
      %4777 = vmatprep.subr.bf16.mxu0 0
      %4778 = vmatpush1.bf16.msra.mxu0 %v1881
      %4779 = vmatprep.subr.bf16.mxu0 0
      %4780 = vmatpush1.bf16.msra.mxu0 %v1884
      %4781 = vmatprep.subr.bf16.mxu0 0
      %4782 = vmatpush1.bf16.msra.mxu0 %v1887
      %4783 = vmatprep.subr.bf16.mxu0 0
      %4784 = vmatpush1.bf16.msra.mxu0 %v1890
      %4785 = vmatprep.subr.bf16.mxu0 0
      %4786 = vmatpush1.bf16.msra.mxu0 %v1893
      %4787 = vmatprep.subr.bf16.mxu0 0
      %4788 = vmatpush1.bf16.msra.mxu0 %v1896
      %4789 = vmatprep.subr.bf16.mxu0 0
      %4790 = vmatpush1.bf16.msra.mxu0 %v1899
      %4791 = vmatprep.subr.bf16.mxu0 0
      %4792 = vmatpush1.bf16.msra.mxu0 %v1902
      %4793 = vmatprep.mubr.bf16.mxu0 %v4316
      %4794 = vmatmul.mubr.bf16.gmra.mrb[0].mxu0 %v4315
      %v4795 = vpop.f32.mrb[0].mxu0
      %v4796 = vadd.f32 %v4755, %v4795
      %v4797 = vpop.f32.mrb[0].mxu0
      %v4798 = vpop.f32.mrb[0].mxu0
      %v4799 = vadd.f32 %v4758, %v4798
      %v4800 = vpop.f32.mrb[0].mxu0
      %4801 = vdwg.mxu0
      %4802 = vmatprep.subr.bf16.mxu0 0
      %4803 = vmatpush1.bf16.msra.mxu0 %v1905
      %4804 = vmatprep.subr.bf16.mxu0 0
      %4805 = vmatpush1.bf16.msra.mxu0 %v1908
      %4806 = vmatprep.subr.bf16.mxu0 0
      %4807 = vmatpush1.bf16.msra.mxu0 %v1911
      %4808 = vmatprep.subr.bf16.mxu0 0
      %4809 = vmatpush1.bf16.msra.mxu0 %v1914
      %4810 = vmatprep.subr.bf16.mxu0 0
      %4811 = vmatpush1.bf16.msra.mxu0 %v1917
      %4812 = vmatprep.subr.bf16.mxu0 0
      %4813 = vmatpush1.bf16.msra.mxu0 %v1920
      %4814 = vmatprep.subr.bf16.mxu0 0
      %4815 = vmatpush1.bf16.msra.mxu0 %v1923
      %4816 = vmatprep.subr.bf16.mxu0 0
      %4817 = vmatpush1.bf16.msra.mxu0 %v1926
      %4818 = vmatprep.subr.bf16.mxu0 0
      %4819 = vmatpush1.bf16.msra.mxu0 %v1929
      %4820 = vmatprep.subr.bf16.mxu0 0
      %4821 = vmatpush1.bf16.msra.mxu0 %v1932
      %4822 = vmatprep.subr.bf16.mxu0 0
      %4823 = vmatpush1.bf16.msra.mxu0 %v1935
      %4824 = vmatprep.subr.bf16.mxu0 0
      %4825 = vmatpush1.bf16.msra.mxu0 %v1938
      %4826 = vmatprep.subr.bf16.mxu0 0
      %4827 = vmatpush1.bf16.msra.mxu0 %v1941
      %4828 = vmatprep.subr.bf16.mxu0 0
      %4829 = vmatpush1.bf16.msra.mxu0 %v1944
      %4830 = vmatprep.subr.bf16.mxu0 0
      %4831 = vmatpush1.bf16.msra.mxu0 %v1947
      %4832 = vmatprep.subr.bf16.mxu0 0
      %4833 = vmatpush1.bf16.msra.mxu0 %v1950
      %4834 = vmatprep.mubr.bf16.mxu0 %v4318
      %4835 = vmatmul.mubr.bf16.gmra.mrb[0].mxu0 %v4317
      %v4836 = vpop.f32.mrb[0].mxu0
      %v4837 = vadd.f32 %v4796, %v4836
      %v4838 = vpop.f32.mrb[0].mxu0
      %v4839 = vpop.f32.mrb[0].mxu0
      %v4840 = vadd.f32 %v4799, %v4839
      %v4841 = vpop.f32.mrb[0].mxu0
      %4842 = vdwg.mxu0
      %4843 = vmatprep.subr.bf16.mxu0 0
      %4844 = vmatpush1.bf16.msra.mxu0 %v1953
      %4845 = vmatprep.subr.bf16.mxu0 0
      %4846 = vmatpush1.bf16.msra.mxu0 %v1956
      %4847 = vmatprep.subr.bf16.mxu0 0
      %4848 = vmatpush1.bf16.msra.mxu0 %v1959
      %4849 = vmatprep.subr.bf16.mxu0 0
      %4850 = vmatpush1.bf16.msra.mxu0 %v1962
      %4851 = vmatprep.subr.bf16.mxu0 0
      %4852 = vmatpush1.bf16.msra.mxu0 %v1965
      %4853 = vmatprep.subr.bf16.mxu0 0
      %4854 = vmatpush1.bf16.msra.mxu0 %v1968
      %4855 = vmatprep.subr.bf16.mxu0 0
      %4856 = vmatpush1.bf16.msra.mxu0 %v1971
      %4857 = vmatprep.subr.bf16.mxu0 0
      %4858 = vmatpush1.bf16.msra.mxu0 %v1974
      %4859 = vmatprep.subr.bf16.mxu0 0
      %4860 = vmatpush1.bf16.msra.mxu0 %v1977
      %4861 = vmatprep.subr.bf16.mxu0 0
      %4862 = vmatpush1.bf16.msra.mxu0 %v1980
      %4863 = vmatprep.subr.bf16.mxu0 0
      %4864 = vmatpush1.bf16.msra.mxu0 %v1983
      %4865 = vmatprep.subr.bf16.mxu0 0
      %4866 = vmatpush1.bf16.msra.mxu0 %v1986
      %4867 = vmatprep.subr.bf16.mxu0 0
      %4868 = vmatpush1.bf16.msra.mxu0 %v1989
      %4869 = vmatprep.subr.bf16.mxu0 0
      %4870 = vmatpush1.bf16.msra.mxu0 %v1992
      %4871 = vmatprep.subr.bf16.mxu0 0
      %4872 = vmatpush1.bf16.msra.mxu0 %v1995
      %4873 = vmatprep.subr.bf16.mxu0 0
      %4874 = vmatpush1.bf16.msra.mxu0 %v1998
      %4875 = vmatprep.mubr.bf16.mxu0 %v4320
      %4876 = vmatmul.mubr.bf16.gmra.mrb[0].mxu0 %v4319
      %v4877 = vpop.f32.mrb[0].mxu0
      %v4878 = vadd.f32 %v4837, %v4877
      %v4879 = vpop.f32.mrb[0].mxu0
      %v4880 = vpop.f32.mrb[0].mxu0
      %v4881 = vadd.f32 %v4840, %v4880
      %v4882 = vpop.f32.mrb[0].mxu0
      %4883 = vdwg.mxu0
      %4884 = vmatprep.subr.bf16.mxu0 0
      %4885 = vmatpush1.bf16.msra.mxu0 %v2001
      %4886 = vmatprep.subr.bf16.mxu0 0
      %4887 = vmatpush1.bf16.msra.mxu0 %v2004
      %4888 = vmatprep.subr.bf16.mxu0 0
      %4889 = vmatpush1.bf16.msra.mxu0 %v2007
      %4890 = vmatprep.subr.bf16.mxu0 0
      %4891 = vmatpush1.bf16.msra.mxu0 %v2010
      %4892 = vmatprep.subr.bf16.mxu0 0
      %4893 = vmatpush1.bf16.msra.mxu0 0
      %4894 = vmatprep.subr.bf16.mxu0 0
      %4895 = vmatpush1.bf16.msra.mxu0 0
      %4896 = vmatprep.subr.bf16.mxu0 0
      %4897 = vmatpush1.bf16.msra.mxu0 0
      %4898 = vmatprep.subr.bf16.mxu0 0
      %4899 = vmatpush1.bf16.msra.mxu0 0
      %4900 = vmatprep.subr.bf16.mxu0 0
      %4901 = vmatpush1.bf16.msra.mxu0 0
      %4902 = vmatprep.subr.bf16.mxu0 0
      %4903 = vmatpush1.bf16.msra.mxu0 0
      %4904 = vmatprep.subr.bf16.mxu0 0
      %4905 = vmatpush1.bf16.msra.mxu0 0
      %4906 = vmatprep.subr.bf16.mxu0 0
      %4907 = vmatpush1.bf16.msra.mxu0 0
      %4908 = vmatprep.subr.bf16.mxu0 0
      %4909 = vmatpush1.bf16.msra.mxu0 0
      %4910 = vmatprep.subr.bf16.mxu0 0
      %4911 = vmatpush1.bf16.msra.mxu0 0
      %4912 = vmatprep.subr.bf16.mxu0 0
      %4913 = vmatpush1.bf16.msra.mxu0 0
      %4914 = vmatprep.subr.bf16.mxu0 0
      %4915 = vmatpush1.bf16.msra.mxu0 0
      %4916 = vmatprep.mubr.bf16.mxu0 0
      %4917 = vmatmul.mubr.bf16.gmra.mrb[0].mxu0 %v4335
      %v4918 = vpop.f32.mrb[0].mxu0
      %v4919 = vadd.f32 %v4878, %v4918
      %v4920 = vpop.f32.mrb[0].mxu0
      %v4921 = vpop.f32.mrb[0].mxu0
      %v4922 = vadd.f32 %v4881, %v4921
      %v4923 = vpop.f32.mrb[0].mxu0
      %4924 = vdwg.mxu0
      %v4925 = vmax.f32 %v4249, %v4630
      %v4926 = vmax.f32 %v4250, %v4632
      %v4927 = vmax.f32 %v4251, %v4919
      %v4928 = vmax.f32 %v4252, %v4634
      %v4929 = vmax.f32 %v4253, %v4636
      %v4930 = vmax.f32 %v4254, %v4922
      %v4931 = vld [vmem:[%s223 + $0x1a0] sm:$0xff]
      %v4932 = vld [vmem:[%s223 + $0x1a8] sm:$0xff]
      %v4933 = vld [vmem:[%s223 + $0x1b0] sm:$0xff]
      %v4934 = vld [vmem:[%s223 + $0x1b8] sm:$0xff]
      %v4935 = vld [vmem:[%s223 + $0x1c0] sm:$0xff]
      %v4936 = vld [vmem:[%s223 + $0x1c8] sm:$0xff]
      %v4937 = vld [vmem:[%s223 + $0x1d0] sm:$0xf]
      %v4938 = vld [vmem:[%s223 + $0x1d4] sm:$0xff]
      %v4939 = vld [vmem:[%s223 + $0x1dc] sm:$0xff]
      %v4940 = vld [vmem:[%s223 + $0x1e4] sm:$0xff]
      %v4941 = vld [vmem:[%s223 + $0x1ec] sm:$0xff]
      %v4942 = vld [vmem:[%s223 + $0x1f4] sm:$0xff]
      %v4943 = vld [vmem:[%s223 + $0x1fc] sm:$0xff]
      %v4944 = vld [vmem:[%s223 + $0x204] sm:$0xf]
      %v4959 = vunpack.c.l.b16 %v4931
      %v4960 = vunpack.c.h.b16 %v4931
      %v4961 = vunpack.c.l.b16 %v4932
      %v4962 = vunpack.c.h.b16 %v4932
      %v4963 = vunpack.c.l.b16 %v4933
      %v4964 = vunpack.c.h.b16 %v4933
      %v4965 = vunpack.c.l.b16 %v4934
      %v4966 = vunpack.c.h.b16 %v4934
      %v4967 = vunpack.c.l.b16 %v4935
      %v4968 = vunpack.c.h.b16 %v4935
      %v4969 = vunpack.c.l.b16 %v4936
      %v4970 = vunpack.c.h.b16 %v4936
      %v4971 = vunpack.c.l.b16 %v4937
      %v4972 = vunpack.c.l.b16 %v4938
      %v4973 = vunpack.c.h.b16 %v4938
      %v4974 = vunpack.c.l.b16 %v4939
      %v4975 = vunpack.c.h.b16 %v4939
      %v4976 = vunpack.c.l.b16 %v4940
      %v4977 = vunpack.c.h.b16 %v4940
      %v4978 = vunpack.c.l.b16 %v4941
      %v4979 = vunpack.c.h.b16 %v4941
      %v4980 = vunpack.c.l.b16 %v4942
      %v4981 = vunpack.c.h.b16 %v4942
      %v4982 = vunpack.c.l.b16 %v4943
      %v4983 = vunpack.c.h.b16 %v4943
      %v4984 = vunpack.c.l.b16 %v4944
      %v4985 = vpack.c.b16 %v4972, %v4959
      %v4986 = vpack.c.b16 %v4973, %v4960
      %v4987 = vpack.c.b16 %v4974, %v4961
      %v4988 = vpack.c.b16 %v4975, %v4962
      %v4989 = vpack.c.b16 %v4976, %v4963
      %v4990 = vpack.c.b16 %v4977, %v4964
      %v4991 = vpack.c.b16 %v4978, %v4965
      %v4992 = vpack.c.b16 %v4979, %v4966
      %v4993 = vpack.c.b16 %v4980, %v4967
      %v4994 = vpack.c.b16 %v4981, %v4968
      %v4995 = vpack.c.b16 %v4982, %v4969
      %v4996 = vpack.c.b16 %v4983, %v4970
      %v4997 = vpack.c.b16 %v4984, %v4971
      %v5011 = vsel %vm2311, %v4997, 0
      %5013 = vmatprep.subr.bf16.mxu0 %v1712
      %5014 = vmatpush1.bf16.msra.mxu0 %v1711
      %5015 = vmatprep.subr.bf16.mxu0 %v1715
      %5016 = vmatpush1.bf16.msra.mxu0 %v1714
      %5017 = vmatprep.subr.bf16.mxu0 %v1718
      %5018 = vmatpush1.bf16.msra.mxu0 %v1717
      %5019 = vmatprep.subr.bf16.mxu0 %v1721
      %5020 = vmatpush1.bf16.msra.mxu0 %v1720
      %5021 = vmatprep.subr.bf16.mxu0 %v1724
      %5022 = vmatpush1.bf16.msra.mxu0 %v1723
      %5023 = vmatprep.subr.bf16.mxu0 %v1727
      %5024 = vmatpush1.bf16.msra.mxu0 %v1726
      %5025 = vmatprep.subr.bf16.mxu0 %v1730
      %5026 = vmatpush1.bf16.msra.mxu0 %v1729
      %5027 = vmatprep.subr.bf16.mxu0 %v1733
      %5028 = vmatpush1.bf16.msra.mxu0 %v1732
      %5029 = vmatprep.subr.bf16.mxu0 %v1736
      %5030 = vmatpush1.bf16.msra.mxu0 %v1735
      %5031 = vmatprep.subr.bf16.mxu0 %v1739
      %5032 = vmatpush1.bf16.msra.mxu0 %v1738
      %5033 = vmatprep.subr.bf16.mxu0 %v1742
      %5034 = vmatpush1.bf16.msra.mxu0 %v1741
      %5035 = vmatprep.subr.bf16.mxu0 %v1745
      %5036 = vmatpush1.bf16.msra.mxu0 %v1744
      %5037 = vmatprep.subr.bf16.mxu0 %v1748
      %5038 = vmatpush1.bf16.msra.mxu0 %v1747
      %5039 = vmatprep.subr.bf16.mxu0 %v1751
      %5040 = vmatpush1.bf16.msra.mxu0 %v1750
      %5041 = vmatprep.subr.bf16.mxu0 %v1754
      %5042 = vmatpush1.bf16.msra.mxu0 %v1753
      %5043 = vmatprep.subr.bf16.mxu0 %v1757
      %5044 = vmatpush1.bf16.msra.mxu0 %v1756
      %5045 = vmatprep.mubr.bf16.mxu0 %v4986
      %5046 = vmatmul.mubr.bf16.gmra.mrb[0].mxu0 %v4985
      %v5047 = vpop.f32.mrb[0].mxu0
      %v5048 = vadd.f32 0.0, %v5047
      %v5049 = vpop.f32.mrb[0].mxu0
      %v5050 = vadd.f32 0.0, %v5049
      %v5051 = vpop.f32.mrb[0].mxu0
      %v5052 = vadd.f32 0.0, %v5051
      %v5053 = vpop.f32.mrb[0].mxu0
      %v5054 = vadd.f32 0.0, %v5053
      %5055 = vdwg.mxu0
      %5056 = vmatprep.subr.bf16.mxu0 %v1760
      %5057 = vmatpush1.bf16.msra.mxu0 %v1759
      %5058 = vmatprep.subr.bf16.mxu0 %v1763
      %5059 = vmatpush1.bf16.msra.mxu0 %v1762
      %5060 = vmatprep.subr.bf16.mxu0 %v1766
      %5061 = vmatpush1.bf16.msra.mxu0 %v1765
      %5062 = vmatprep.subr.bf16.mxu0 %v1769
      %5063 = vmatpush1.bf16.msra.mxu0 %v1768
      %5064 = vmatprep.subr.bf16.mxu0 %v1772
      %5065 = vmatpush1.bf16.msra.mxu0 %v1771
      %5066 = vmatprep.subr.bf16.mxu0 %v1775
      %5067 = vmatpush1.bf16.msra.mxu0 %v1774
      %5068 = vmatprep.subr.bf16.mxu0 %v1778
      %5069 = vmatpush1.bf16.msra.mxu0 %v1777
      %5070 = vmatprep.subr.bf16.mxu0 %v1781
      %5071 = vmatpush1.bf16.msra.mxu0 %v1780
      %5072 = vmatprep.subr.bf16.mxu0 %v1784
      %5073 = vmatpush1.bf16.msra.mxu0 %v1783
      %5074 = vmatprep.subr.bf16.mxu0 %v1787
      %5075 = vmatpush1.bf16.msra.mxu0 %v1786
      %5076 = vmatprep.subr.bf16.mxu0 %v1790
      %5077 = vmatpush1.bf16.msra.mxu0 %v1789
      %5078 = vmatprep.subr.bf16.mxu0 %v1793
      %5079 = vmatpush1.bf16.msra.mxu0 %v1792
      %5080 = vmatprep.subr.bf16.mxu0 %v1796
      %5081 = vmatpush1.bf16.msra.mxu0 %v1795
      %5082 = vmatprep.subr.bf16.mxu0 %v1799
      %5083 = vmatpush1.bf16.msra.mxu0 %v1798
      %5084 = vmatprep.subr.bf16.mxu0 %v1802
      %5085 = vmatpush1.bf16.msra.mxu0 %v1801
      %5086 = vmatprep.subr.bf16.mxu0 %v1805
      %5087 = vmatpush1.bf16.msra.mxu0 %v1804
      %5088 = vmatprep.mubr.bf16.mxu0 %v4988
      %5089 = vmatmul.mubr.bf16.gmra.mrb[0].mxu0 %v4987
      %v5090 = vpop.f32.mrb[0].mxu0
      %v5091 = vadd.f32 %v5048, %v5090
      %v5092 = vpop.f32.mrb[0].mxu0
      %v5093 = vadd.f32 %v5050, %v5092
      %v5094 = vpop.f32.mrb[0].mxu0
      %v5095 = vadd.f32 %v5052, %v5094
      %v5096 = vpop.f32.mrb[0].mxu0
      %v5097 = vadd.f32 %v5054, %v5096
      %5098 = vdwg.mxu0
      %5099 = vmatprep.subr.bf16.mxu0 %v1808
      %5100 = vmatpush1.bf16.msra.mxu0 %v1807
      %5101 = vmatprep.subr.bf16.mxu0 %v1811
      %5102 = vmatpush1.bf16.msra.mxu0 %v1810
      %5103 = vmatprep.subr.bf16.mxu0 %v1814
      %5104 = vmatpush1.bf16.msra.mxu0 %v1813
      %5105 = vmatprep.subr.bf16.mxu0 %v1817
      %5106 = vmatpush1.bf16.msra.mxu0 %v1816
      %5107 = vmatprep.subr.bf16.mxu0 %v1820
      %5108 = vmatpush1.bf16.msra.mxu0 %v1819
      %5109 = vmatprep.subr.bf16.mxu0 %v1823
      %5110 = vmatpush1.bf16.msra.mxu0 %v1822
      %5111 = vmatprep.subr.bf16.mxu0 %v1826
      %5112 = vmatpush1.bf16.msra.mxu0 %v1825
      %5113 = vmatprep.subr.bf16.mxu0 %v1829
      %5114 = vmatpush1.bf16.msra.mxu0 %v1828
      %5115 = vmatprep.subr.bf16.mxu0 %v1832
      %5116 = vmatpush1.bf16.msra.mxu0 %v1831
      %5117 = vmatprep.subr.bf16.mxu0 %v1835
      %5118 = vmatpush1.bf16.msra.mxu0 %v1834
      %5119 = vmatprep.subr.bf16.mxu0 %v1838
      %5120 = vmatpush1.bf16.msra.mxu0 %v1837
      %5121 = vmatprep.subr.bf16.mxu0 %v1841
      %5122 = vmatpush1.bf16.msra.mxu0 %v1840
      %5123 = vmatprep.subr.bf16.mxu0 %v1844
      %5124 = vmatpush1.bf16.msra.mxu0 %v1843
      %5125 = vmatprep.subr.bf16.mxu0 %v1847
      %5126 = vmatpush1.bf16.msra.mxu0 %v1846
      %5127 = vmatprep.subr.bf16.mxu0 %v1850
      %5128 = vmatpush1.bf16.msra.mxu0 %v1849
      %5129 = vmatprep.subr.bf16.mxu0 %v1853
      %5130 = vmatpush1.bf16.msra.mxu0 %v1852
      %5131 = vmatprep.mubr.bf16.mxu0 %v4990
      %5132 = vmatmul.mubr.bf16.gmra.mrb[0].mxu0 %v4989
      %v5133 = vpop.f32.mrb[0].mxu0
      %v5134 = vadd.f32 %v5091, %v5133
      %v5135 = vpop.f32.mrb[0].mxu0
      %v5136 = vadd.f32 %v5093, %v5135
      %v5137 = vpop.f32.mrb[0].mxu0
      %v5138 = vadd.f32 %v5095, %v5137
      %v5139 = vpop.f32.mrb[0].mxu0
      %v5140 = vadd.f32 %v5097, %v5139
      %5141 = vdwg.mxu0
      %5142 = vmatprep.subr.bf16.mxu0 %v1856
      %5143 = vmatpush1.bf16.msra.mxu0 %v1855
      %5144 = vmatprep.subr.bf16.mxu0 %v1859
      %5145 = vmatpush1.bf16.msra.mxu0 %v1858
      %5146 = vmatprep.subr.bf16.mxu0 %v1862
      %5147 = vmatpush1.bf16.msra.mxu0 %v1861
      %5148 = vmatprep.subr.bf16.mxu0 %v1865
      %5149 = vmatpush1.bf16.msra.mxu0 %v1864
      %5150 = vmatprep.subr.bf16.mxu0 %v1868
      %5151 = vmatpush1.bf16.msra.mxu0 %v1867
      %5152 = vmatprep.subr.bf16.mxu0 %v1871
      %5153 = vmatpush1.bf16.msra.mxu0 %v1870
      %5154 = vmatprep.subr.bf16.mxu0 %v1874
      %5155 = vmatpush1.bf16.msra.mxu0 %v1873
      %5156 = vmatprep.subr.bf16.mxu0 %v1877
      %5157 = vmatpush1.bf16.msra.mxu0 %v1876
      %5158 = vmatprep.subr.bf16.mxu0 %v1880
      %5159 = vmatpush1.bf16.msra.mxu0 %v1879
      %5160 = vmatprep.subr.bf16.mxu0 %v1883
      %5161 = vmatpush1.bf16.msra.mxu0 %v1882
      %5162 = vmatprep.subr.bf16.mxu0 %v1886
      %5163 = vmatpush1.bf16.msra.mxu0 %v1885
      %5164 = vmatprep.subr.bf16.mxu0 %v1889
      %5165 = vmatpush1.bf16.msra.mxu0 %v1888
      %5166 = vmatprep.subr.bf16.mxu0 %v1892
      %5167 = vmatpush1.bf16.msra.mxu0 %v1891
      %5168 = vmatprep.subr.bf16.mxu0 %v1895
      %5169 = vmatpush1.bf16.msra.mxu0 %v1894
      %5170 = vmatprep.subr.bf16.mxu0 %v1898
      %5171 = vmatpush1.bf16.msra.mxu0 %v1897
      %5172 = vmatprep.subr.bf16.mxu0 %v1901
      %5173 = vmatpush1.bf16.msra.mxu0 %v1900
      %5174 = vmatprep.mubr.bf16.mxu0 %v4992
      %5175 = vmatmul.mubr.bf16.gmra.mrb[0].mxu0 %v4991
      %v5176 = vpop.f32.mrb[0].mxu0
      %v5177 = vadd.f32 %v5134, %v5176
      %v5178 = vpop.f32.mrb[0].mxu0
      %v5179 = vadd.f32 %v5136, %v5178
      %v5180 = vpop.f32.mrb[0].mxu0
      %v5181 = vadd.f32 %v5138, %v5180
      %v5182 = vpop.f32.mrb[0].mxu0
      %v5183 = vadd.f32 %v5140, %v5182
      %5184 = vdwg.mxu0
      %5185 = vmatprep.subr.bf16.mxu0 %v1904
      %5186 = vmatpush1.bf16.msra.mxu0 %v1903
      %5187 = vmatprep.subr.bf16.mxu0 %v1907
      %5188 = vmatpush1.bf16.msra.mxu0 %v1906
      %5189 = vmatprep.subr.bf16.mxu0 %v1910
      %5190 = vmatpush1.bf16.msra.mxu0 %v1909
      %5191 = vmatprep.subr.bf16.mxu0 %v1913
      %5192 = vmatpush1.bf16.msra.mxu0 %v1912
      %5193 = vmatprep.subr.bf16.mxu0 %v1916
      %5194 = vmatpush1.bf16.msra.mxu0 %v1915
      %5195 = vmatprep.subr.bf16.mxu0 %v1919
      %5196 = vmatpush1.bf16.msra.mxu0 %v1918
      %5197 = vmatprep.subr.bf16.mxu0 %v1922
      %5198 = vmatpush1.bf16.msra.mxu0 %v1921
      %5199 = vmatprep.subr.bf16.mxu0 %v1925
      %5200 = vmatpush1.bf16.msra.mxu0 %v1924
      %5201 = vmatprep.subr.bf16.mxu0 %v1928
      %5202 = vmatpush1.bf16.msra.mxu0 %v1927
      %5203 = vmatprep.subr.bf16.mxu0 %v1931
      %5204 = vmatpush1.bf16.msra.mxu0 %v1930
      %5205 = vmatprep.subr.bf16.mxu0 %v1934
      %5206 = vmatpush1.bf16.msra.mxu0 %v1933
      %5207 = vmatprep.subr.bf16.mxu0 %v1937
      %5208 = vmatpush1.bf16.msra.mxu0 %v1936
      %5209 = vmatprep.subr.bf16.mxu0 %v1940
      %5210 = vmatpush1.bf16.msra.mxu0 %v1939
      %5211 = vmatprep.subr.bf16.mxu0 %v1943
      %5212 = vmatpush1.bf16.msra.mxu0 %v1942
      %5213 = vmatprep.subr.bf16.mxu0 %v1946
      %5214 = vmatpush1.bf16.msra.mxu0 %v1945
      %5215 = vmatprep.subr.bf16.mxu0 %v1949
      %5216 = vmatpush1.bf16.msra.mxu0 %v1948
      %5217 = vmatprep.mubr.bf16.mxu0 %v4994
      %5218 = vmatmul.mubr.bf16.gmra.mrb[0].mxu0 %v4993
      %v5219 = vpop.f32.mrb[0].mxu0
      %v5220 = vadd.f32 %v5177, %v5219
      %v5221 = vpop.f32.mrb[0].mxu0
      %v5222 = vadd.f32 %v5179, %v5221
      %v5223 = vpop.f32.mrb[0].mxu0
      %v5224 = vadd.f32 %v5181, %v5223
      %v5225 = vpop.f32.mrb[0].mxu0
      %v5226 = vadd.f32 %v5183, %v5225
      %5227 = vdwg.mxu0
      %5228 = vmatprep.subr.bf16.mxu0 %v1952
      %5229 = vmatpush1.bf16.msra.mxu0 %v1951
      %5230 = vmatprep.subr.bf16.mxu0 %v1955
      %5231 = vmatpush1.bf16.msra.mxu0 %v1954
      %5232 = vmatprep.subr.bf16.mxu0 %v1958
      %5233 = vmatpush1.bf16.msra.mxu0 %v1957
      %5234 = vmatprep.subr.bf16.mxu0 %v1961
      %5235 = vmatpush1.bf16.msra.mxu0 %v1960
      %5236 = vmatprep.subr.bf16.mxu0 %v1964
      %5237 = vmatpush1.bf16.msra.mxu0 %v1963
      %5238 = vmatprep.subr.bf16.mxu0 %v1967
      %5239 = vmatpush1.bf16.msra.mxu0 %v1966
      %5240 = vmatprep.subr.bf16.mxu0 %v1970
      %5241 = vmatpush1.bf16.msra.mxu0 %v1969
      %5242 = vmatprep.subr.bf16.mxu0 %v1973
      %5243 = vmatpush1.bf16.msra.mxu0 %v1972
      %5244 = vmatprep.subr.bf16.mxu0 %v1976
      %5245 = vmatpush1.bf16.msra.mxu0 %v1975
      %5246 = vmatprep.subr.bf16.mxu0 %v1979
      %5247 = vmatpush1.bf16.msra.mxu0 %v1978
      %5248 = vmatprep.subr.bf16.mxu0 %v1982
      %5249 = vmatpush1.bf16.msra.mxu0 %v1981
      %5250 = vmatprep.subr.bf16.mxu0 %v1985
      %5251 = vmatpush1.bf16.msra.mxu0 %v1984
      %5252 = vmatprep.subr.bf16.mxu0 %v1988
      %5253 = vmatpush1.bf16.msra.mxu0 %v1987
      %5254 = vmatprep.subr.bf16.mxu0 %v1991
      %5255 = vmatpush1.bf16.msra.mxu0 %v1990
      %5256 = vmatprep.subr.bf16.mxu0 %v1994
      %5257 = vmatpush1.bf16.msra.mxu0 %v1993
      %5258 = vmatprep.subr.bf16.mxu0 %v1997
      %5259 = vmatpush1.bf16.msra.mxu0 %v1996
      %5260 = vmatprep.mubr.bf16.mxu0 %v4996
      %5261 = vmatmul.mubr.bf16.gmra.mrb[0].mxu0 %v4995
      %v5262 = vpop.f32.mrb[0].mxu0
      %v5263 = vadd.f32 %v5220, %v5262
      %v5264 = vpop.f32.mrb[0].mxu0
      %v5265 = vadd.f32 %v5222, %v5264
      %v5266 = vpop.f32.mrb[0].mxu0
      %v5267 = vadd.f32 %v5224, %v5266
      %v5268 = vpop.f32.mrb[0].mxu0
      %v5269 = vadd.f32 %v5226, %v5268
      %5270 = vdwg.mxu0
      %5271 = vmatprep.subr.bf16.mxu0 %v2000
      %5272 = vmatpush1.bf16.msra.mxu0 %v1999
      %5273 = vmatprep.subr.bf16.mxu0 %v2003
      %5274 = vmatpush1.bf16.msra.mxu0 %v2002
      %5275 = vmatprep.subr.bf16.mxu0 %v2006
      %5276 = vmatpush1.bf16.msra.mxu0 %v2005
      %5277 = vmatprep.subr.bf16.mxu0 %v2009
      %5278 = vmatpush1.bf16.msra.mxu0 %v2008
      %5279 = vmatprep.subr.bf16.mxu0 0
      %5280 = vmatpush1.bf16.msra.mxu0 0
      %5281 = vmatprep.subr.bf16.mxu0 0
      %5282 = vmatpush1.bf16.msra.mxu0 0
      %5283 = vmatprep.subr.bf16.mxu0 0
      %5284 = vmatpush1.bf16.msra.mxu0 0
      %5285 = vmatprep.subr.bf16.mxu0 0
      %5286 = vmatpush1.bf16.msra.mxu0 0
      %5287 = vmatprep.subr.bf16.mxu0 0
      %5288 = vmatpush1.bf16.msra.mxu0 0
      %5289 = vmatprep.subr.bf16.mxu0 0
      %5290 = vmatpush1.bf16.msra.mxu0 0
      %5291 = vmatprep.subr.bf16.mxu0 0
      %5292 = vmatpush1.bf16.msra.mxu0 0
      %5293 = vmatprep.subr.bf16.mxu0 0
      %5294 = vmatpush1.bf16.msra.mxu0 0
      %5295 = vmatprep.subr.bf16.mxu0 0
      %5296 = vmatpush1.bf16.msra.mxu0 0
      %5297 = vmatprep.subr.bf16.mxu0 0
      %5298 = vmatpush1.bf16.msra.mxu0 0
      %5299 = vmatprep.subr.bf16.mxu0 0
      %5300 = vmatpush1.bf16.msra.mxu0 0
      %5301 = vmatprep.subr.bf16.mxu0 0
      %5302 = vmatpush1.bf16.msra.mxu0 0
      %5303 = vmatprep.mubr.bf16.mxu0 0
      %5304 = vmatmul.mubr.bf16.gmra.mrb[0].mxu0 %v5011
      %v5305 = vpop.f32.mrb[0].mxu0
      %v5306 = vadd.f32 %v5263, %v5305
      %v5307 = vpop.f32.mrb[0].mxu0
      %v5308 = vadd.f32 %v5265, %v5307
      %v5309 = vpop.f32.mrb[0].mxu0
      %v5310 = vadd.f32 %v5267, %v5309
      %v5311 = vpop.f32.mrb[0].mxu0
      %v5312 = vadd.f32 %v5269, %v5311
      %5313 = vdwg.mxu0
      %5314 = vmatprep.subr.bf16.mxu0 0
      %5315 = vmatpush1.bf16.msra.mxu0 %v1713
      %5316 = vmatprep.subr.bf16.mxu0 0
      %5317 = vmatpush1.bf16.msra.mxu0 %v1716
      %5318 = vmatprep.subr.bf16.mxu0 0
      %5319 = vmatpush1.bf16.msra.mxu0 %v1719
      %5320 = vmatprep.subr.bf16.mxu0 0
      %5321 = vmatpush1.bf16.msra.mxu0 %v1722
      %5322 = vmatprep.subr.bf16.mxu0 0
      %5323 = vmatpush1.bf16.msra.mxu0 %v1725
      %5324 = vmatprep.subr.bf16.mxu0 0
      %5325 = vmatpush1.bf16.msra.mxu0 %v1728
      %5326 = vmatprep.subr.bf16.mxu0 0
      %5327 = vmatpush1.bf16.msra.mxu0 %v1731
      %5328 = vmatprep.subr.bf16.mxu0 0
      %5329 = vmatpush1.bf16.msra.mxu0 %v1734
      %5330 = vmatprep.subr.bf16.mxu0 0
      %5331 = vmatpush1.bf16.msra.mxu0 %v1737
      %5332 = vmatprep.subr.bf16.mxu0 0
      %5333 = vmatpush1.bf16.msra.mxu0 %v1740
      %5334 = vmatprep.subr.bf16.mxu0 0
      %5335 = vmatpush1.bf16.msra.mxu0 %v1743
      %5336 = vmatprep.subr.bf16.mxu0 0
      %5337 = vmatpush1.bf16.msra.mxu0 %v1746
      %5338 = vmatprep.subr.bf16.mxu0 0
      %5339 = vmatpush1.bf16.msra.mxu0 %v1749
      %5340 = vmatprep.subr.bf16.mxu0 0
      %5341 = vmatpush1.bf16.msra.mxu0 %v1752
      %5342 = vmatprep.subr.bf16.mxu0 0
      %5343 = vmatpush1.bf16.msra.mxu0 %v1755
      %5344 = vmatprep.subr.bf16.mxu0 0
      %5345 = vmatpush1.bf16.msra.mxu0 %v1758
      %5346 = vmatprep.mubr.bf16.mxu0 %v4986
      %5347 = vmatmul.mubr.bf16.gmra.mrb[0].mxu0 %v4985
      %v5348 = vpop.f32.mrb[0].mxu0
      %v5349 = vadd.f32 0.0, %v5348
      %v5350 = vpop.f32.mrb[0].mxu0
      %v5351 = vpop.f32.mrb[0].mxu0
      %v5352 = vadd.f32 0.0, %v5351
      %v5353 = vpop.f32.mrb[0].mxu0
      %5354 = vdwg.mxu0
      %5355 = vmatprep.subr.bf16.mxu0 0
      %5356 = vmatpush1.bf16.msra.mxu0 %v1761
      %5357 = vmatprep.subr.bf16.mxu0 0
      %5358 = vmatpush1.bf16.msra.mxu0 %v1764
      %5359 = vmatprep.subr.bf16.mxu0 0
      %5360 = vmatpush1.bf16.msra.mxu0 %v1767
      %5361 = vmatprep.subr.bf16.mxu0 0
      %5362 = vmatpush1.bf16.msra.mxu0 %v1770
      %5363 = vmatprep.subr.bf16.mxu0 0
      %5364 = vmatpush1.bf16.msra.mxu0 %v1773
      %5365 = vmatprep.subr.bf16.mxu0 0
      %5366 = vmatpush1.bf16.msra.mxu0 %v1776
      %5367 = vmatprep.subr.bf16.mxu0 0
      %5368 = vmatpush1.bf16.msra.mxu0 %v1779
      %5369 = vmatprep.subr.bf16.mxu0 0
      %5370 = vmatpush1.bf16.msra.mxu0 %v1782
      %5371 = vmatprep.subr.bf16.mxu0 0
      %5372 = vmatpush1.bf16.msra.mxu0 %v1785
      %5373 = vmatprep.subr.bf16.mxu0 0
      %5374 = vmatpush1.bf16.msra.mxu0 %v1788
      %5375 = vmatprep.subr.bf16.mxu0 0
      %5376 = vmatpush1.bf16.msra.mxu0 %v1791
      %5377 = vmatprep.subr.bf16.mxu0 0
      %5378 = vmatpush1.bf16.msra.mxu0 %v1794
      %5379 = vmatprep.subr.bf16.mxu0 0
      %5380 = vmatpush1.bf16.msra.mxu0 %v1797
      %5381 = vmatprep.subr.bf16.mxu0 0
      %5382 = vmatpush1.bf16.msra.mxu0 %v1800
      %5383 = vmatprep.subr.bf16.mxu0 0
      %5384 = vmatpush1.bf16.msra.mxu0 %v1803
      %5385 = vmatprep.subr.bf16.mxu0 0
      %5386 = vmatpush1.bf16.msra.mxu0 %v1806
      %5387 = vmatprep.mubr.bf16.mxu0 %v4988
      %5388 = vmatmul.mubr.bf16.gmra.mrb[0].mxu0 %v4987
      %v5389 = vpop.f32.mrb[0].mxu0
      %v5390 = vadd.f32 %v5349, %v5389
      %v5391 = vpop.f32.mrb[0].mxu0
      %v5392 = vpop.f32.mrb[0].mxu0
      %v5393 = vadd.f32 %v5352, %v5392
      %v5394 = vpop.f32.mrb[0].mxu0
      %5395 = vdwg.mxu0
      %5396 = vmatprep.subr.bf16.mxu0 0
      %5397 = vmatpush1.bf16.msra.mxu0 %v1809
      %5398 = vmatprep.subr.bf16.mxu0 0
      %5399 = vmatpush1.bf16.msra.mxu0 %v1812
      %5400 = vmatprep.subr.bf16.mxu0 0
      %5401 = vmatpush1.bf16.msra.mxu0 %v1815
      %5402 = vmatprep.subr.bf16.mxu0 0
      %5403 = vmatpush1.bf16.msra.mxu0 %v1818
      %5404 = vmatprep.subr.bf16.mxu0 0
      %5405 = vmatpush1.bf16.msra.mxu0 %v1821
      %5406 = vmatprep.subr.bf16.mxu0 0
      %5407 = vmatpush1.bf16.msra.mxu0 %v1824
      %5408 = vmatprep.subr.bf16.mxu0 0
      %5409 = vmatpush1.bf16.msra.mxu0 %v1827
      %5410 = vmatprep.subr.bf16.mxu0 0
      %5411 = vmatpush1.bf16.msra.mxu0 %v1830
      %5412 = vmatprep.subr.bf16.mxu0 0
      %5413 = vmatpush1.bf16.msra.mxu0 %v1833
      %5414 = vmatprep.subr.bf16.mxu0 0
      %5415 = vmatpush1.bf16.msra.mxu0 %v1836
      %5416 = vmatprep.subr.bf16.mxu0 0
      %5417 = vmatpush1.bf16.msra.mxu0 %v1839
      %5418 = vmatprep.subr.bf16.mxu0 0
      %5419 = vmatpush1.bf16.msra.mxu0 %v1842
      %5420 = vmatprep.subr.bf16.mxu0 0
      %5421 = vmatpush1.bf16.msra.mxu0 %v1845
      %5422 = vmatprep.subr.bf16.mxu0 0
      %5423 = vmatpush1.bf16.msra.mxu0 %v1848
      %5424 = vmatprep.subr.bf16.mxu0 0
      %5425 = vmatpush1.bf16.msra.mxu0 %v1851
      %5426 = vmatprep.subr.bf16.mxu0 0
      %5427 = vmatpush1.bf16.msra.mxu0 %v1854
      %5428 = vmatprep.mubr.bf16.mxu0 %v4990
      %5429 = vmatmul.mubr.bf16.gmra.mrb[0].mxu0 %v4989
      %v5430 = vpop.f32.mrb[0].mxu0
      %v5431 = vadd.f32 %v5390, %v5430
      %v5432 = vpop.f32.mrb[0].mxu0
      %v5433 = vpop.f32.mrb[0].mxu0
      %v5434 = vadd.f32 %v5393, %v5433
      %v5435 = vpop.f32.mrb[0].mxu0
      %5436 = vdwg.mxu0
      %5437 = vmatprep.subr.bf16.mxu0 0
      %5438 = vmatpush1.bf16.msra.mxu0 %v1857
      %5439 = vmatprep.subr.bf16.mxu0 0
      %5440 = vmatpush1.bf16.msra.mxu0 %v1860
      %5441 = vmatprep.subr.bf16.mxu0 0
      %5442 = vmatpush1.bf16.msra.mxu0 %v1863
      %5443 = vmatprep.subr.bf16.mxu0 0
      %5444 = vmatpush1.bf16.msra.mxu0 %v1866
      %5445 = vmatprep.subr.bf16.mxu0 0
      %5446 = vmatpush1.bf16.msra.mxu0 %v1869
      %5447 = vmatprep.subr.bf16.mxu0 0
      %5448 = vmatpush1.bf16.msra.mxu0 %v1872
      %5449 = vmatprep.subr.bf16.mxu0 0
      %5450 = vmatpush1.bf16.msra.mxu0 %v1875
      %5451 = vmatprep.subr.bf16.mxu0 0
      %5452 = vmatpush1.bf16.msra.mxu0 %v1878
      %5453 = vmatprep.subr.bf16.mxu0 0
      %5454 = vmatpush1.bf16.msra.mxu0 %v1881
      %5455 = vmatprep.subr.bf16.mxu0 0
      %5456 = vmatpush1.bf16.msra.mxu0 %v1884
      %5457 = vmatprep.subr.bf16.mxu0 0
      %5458 = vmatpush1.bf16.msra.mxu0 %v1887
      %5459 = vmatprep.subr.bf16.mxu0 0
      %5460 = vmatpush1.bf16.msra.mxu0 %v1890
      %5461 = vmatprep.subr.bf16.mxu0 0
      %5462 = vmatpush1.bf16.msra.mxu0 %v1893
      %5463 = vmatprep.subr.bf16.mxu0 0
      %5464 = vmatpush1.bf16.msra.mxu0 %v1896
      %5465 = vmatprep.subr.bf16.mxu0 0
      %5466 = vmatpush1.bf16.msra.mxu0 %v1899
      %5467 = vmatprep.subr.bf16.mxu0 0
      %5468 = vmatpush1.bf16.msra.mxu0 %v1902
      %5469 = vmatprep.mubr.bf16.mxu0 %v4992
      %5470 = vmatmul.mubr.bf16.gmra.mrb[0].mxu0 %v4991
      %v5471 = vpop.f32.mrb[0].mxu0
      %v5472 = vadd.f32 %v5431, %v5471
      %v5473 = vpop.f32.mrb[0].mxu0
      %v5474 = vpop.f32.mrb[0].mxu0
      %v5475 = vadd.f32 %v5434, %v5474
      %v5476 = vpop.f32.mrb[0].mxu0
      %5477 = vdwg.mxu0
      %5478 = vmatprep.subr.bf16.mxu0 0
      %5479 = vmatpush1.bf16.msra.mxu0 %v1905
      %5480 = vmatprep.subr.bf16.mxu0 0
      %5481 = vmatpush1.bf16.msra.mxu0 %v1908
      %5482 = vmatprep.subr.bf16.mxu0 0
      %5483 = vmatpush1.bf16.msra.mxu0 %v1911
      %5484 = vmatprep.subr.bf16.mxu0 0
      %5485 = vmatpush1.bf16.msra.mxu0 %v1914
      %5486 = vmatprep.subr.bf16.mxu0 0
      %5487 = vmatpush1.bf16.msra.mxu0 %v1917
      %5488 = vmatprep.subr.bf16.mxu0 0
      %5489 = vmatpush1.bf16.msra.mxu0 %v1920
      %5490 = vmatprep.subr.bf16.mxu0 0
      %5491 = vmatpush1.bf16.msra.mxu0 %v1923
      %5492 = vmatprep.subr.bf16.mxu0 0
      %5493 = vmatpush1.bf16.msra.mxu0 %v1926
      %5494 = vmatprep.subr.bf16.mxu0 0
      %5495 = vmatpush1.bf16.msra.mxu0 %v1929
      %5496 = vmatprep.subr.bf16.mxu0 0
      %5497 = vmatpush1.bf16.msra.mxu0 %v1932
      %5498 = vmatprep.subr.bf16.mxu0 0
      %5499 = vmatpush1.bf16.msra.mxu0 %v1935
      %5500 = vmatprep.subr.bf16.mxu0 0
      %5501 = vmatpush1.bf16.msra.mxu0 %v1938
      %5502 = vmatprep.subr.bf16.mxu0 0
      %5503 = vmatpush1.bf16.msra.mxu0 %v1941
      %5504 = vmatprep.subr.bf16.mxu0 0
      %5505 = vmatpush1.bf16.msra.mxu0 %v1944
      %5506 = vmatprep.subr.bf16.mxu0 0
      %5507 = vmatpush1.bf16.msra.mxu0 %v1947
      %5508 = vmatprep.subr.bf16.mxu0 0
      %5509 = vmatpush1.bf16.msra.mxu0 %v1950
      %5510 = vmatprep.mubr.bf16.mxu0 %v4994
      %5511 = vmatmul.mubr.bf16.gmra.mrb[0].mxu0 %v4993
      %v5512 = vpop.f32.mrb[0].mxu0
      %v5513 = vadd.f32 %v5472, %v5512
      %v5514 = vpop.f32.mrb[0].mxu0
      %v5515 = vpop.f32.mrb[0].mxu0
      %v5516 = vadd.f32 %v5475, %v5515
      %v5517 = vpop.f32.mrb[0].mxu0
      %5518 = vdwg.mxu0
      %5519 = vmatprep.subr.bf16.mxu0 0
      %5520 = vmatpush1.bf16.msra.mxu0 %v1953
      %5521 = vmatprep.subr.bf16.mxu0 0
      %5522 = vmatpush1.bf16.msra.mxu0 %v1956
      %5523 = vmatprep.subr.bf16.mxu0 0
      %5524 = vmatpush1.bf16.msra.mxu0 %v1959
      %5525 = vmatprep.subr.bf16.mxu0 0
      %5526 = vmatpush1.bf16.msra.mxu0 %v1962
      %5527 = vmatprep.subr.bf16.mxu0 0
      %5528 = vmatpush1.bf16.msra.mxu0 %v1965
      %5529 = vmatprep.subr.bf16.mxu0 0
      %5530 = vmatpush1.bf16.msra.mxu0 %v1968
      %5531 = vmatprep.subr.bf16.mxu0 0
      %5532 = vmatpush1.bf16.msra.mxu0 %v1971
      %5533 = vmatprep.subr.bf16.mxu0 0
      %5534 = vmatpush1.bf16.msra.mxu0 %v1974
      %5535 = vmatprep.subr.bf16.mxu0 0
      %5536 = vmatpush1.bf16.msra.mxu0 %v1977
      %5537 = vmatprep.subr.bf16.mxu0 0
      %5538 = vmatpush1.bf16.msra.mxu0 %v1980
      %5539 = vmatprep.subr.bf16.mxu0 0
      %5540 = vmatpush1.bf16.msra.mxu0 %v1983
      %5541 = vmatprep.subr.bf16.mxu0 0
      %5542 = vmatpush1.bf16.msra.mxu0 %v1986
      %5543 = vmatprep.subr.bf16.mxu0 0
      %5544 = vmatpush1.bf16.msra.mxu0 %v1989
      %5545 = vmatprep.subr.bf16.mxu0 0
      %5546 = vmatpush1.bf16.msra.mxu0 %v1992
      %5547 = vmatprep.subr.bf16.mxu0 0
      %5548 = vmatpush1.bf16.msra.mxu0 %v1995
      %5549 = vmatprep.subr.bf16.mxu0 0
      %5550 = vmatpush1.bf16.msra.mxu0 %v1998
      %5551 = vmatprep.mubr.bf16.mxu0 %v4996
      %5552 = vmatmul.mubr.bf16.gmra.mrb[0].mxu0 %v4995
      %v5553 = vpop.f32.mrb[0].mxu0
      %v5554 = vadd.f32 %v5513, %v5553
      %v5555 = vpop.f32.mrb[0].mxu0
      %v5556 = vpop.f32.mrb[0].mxu0
      %v5557 = vadd.f32 %v5516, %v5556
      %v5558 = vpop.f32.mrb[0].mxu0
      %5559 = vdwg.mxu0
      %5560 = vmatprep.subr.bf16.mxu0 0
      %5561 = vmatpush1.bf16.msra.mxu0 %v2001
      %5562 = vmatprep.subr.bf16.mxu0 0
      %5563 = vmatpush1.bf16.msra.mxu0 %v2004
      %5564 = vmatprep.subr.bf16.mxu0 0
      %5565 = vmatpush1.bf16.msra.mxu0 %v2007
      %5566 = vmatprep.subr.bf16.mxu0 0
      %5567 = vmatpush1.bf16.msra.mxu0 %v2010
      %5568 = vmatprep.subr.bf16.mxu0 0
      %5569 = vmatpush1.bf16.msra.mxu0 0
      %5570 = vmatprep.subr.bf16.mxu0 0
      %5571 = vmatpush1.bf16.msra.mxu0 0
      %5572 = vmatprep.subr.bf16.mxu0 0
      %5573 = vmatpush1.bf16.msra.mxu0 0
      %5574 = vmatprep.subr.bf16.mxu0 0
      %5575 = vmatpush1.bf16.msra.mxu0 0
      %5576 = vmatprep.subr.bf16.mxu0 0
      %5577 = vmatpush1.bf16.msra.mxu0 0
      %5578 = vmatprep.subr.bf16.mxu0 0
      %5579 = vmatpush1.bf16.msra.mxu0 0
      %5580 = vmatprep.subr.bf16.mxu0 0
      %5581 = vmatpush1.bf16.msra.mxu0 0
      %5582 = vmatprep.subr.bf16.mxu0 0
      %5583 = vmatpush1.bf16.msra.mxu0 0
      %5584 = vmatprep.subr.bf16.mxu0 0
      %5585 = vmatpush1.bf16.msra.mxu0 0
      %5586 = vmatprep.subr.bf16.mxu0 0
      %5587 = vmatpush1.bf16.msra.mxu0 0
      %5588 = vmatprep.subr.bf16.mxu0 0
      %5589 = vmatpush1.bf16.msra.mxu0 0
      %5590 = vmatprep.subr.bf16.mxu0 0
      %5591 = vmatpush1.bf16.msra.mxu0 0
      %5592 = vmatprep.mubr.bf16.mxu0 0
      %5593 = vmatmul.mubr.bf16.gmra.mrb[0].mxu0 %v5011
      %v5594 = vpop.f32.mrb[0].mxu0
      %v5595 = vadd.f32 %v5554, %v5594
      %v5596 = vpop.f32.mrb[0].mxu0
      %v5597 = vpop.f32.mrb[0].mxu0
      %v5598 = vadd.f32 %v5557, %v5597
      %v5599 = vpop.f32.mrb[0].mxu0
      %5600 = vdwg.mxu0
      %v5601 = vmax.f32 %v4925, %v5306
      %v5602 = vmax.f32 %v4926, %v5308
      %v5603 = vmax.f32 %v4927, %v5595
      %v5604 = vmax.f32 %v4928, %v5310
      %v5605 = vmax.f32 %v4929, %v5312
      %v5606 = vmax.f32 %v4930, %v5598
      %v5607 = vld [vmem:[%s223 + $0x208] sm:$0xff]
      %v5608 = vld [vmem:[%s223 + $0x210] sm:$0xff]
      %v5609 = vld [vmem:[%s223 + $0x218] sm:$0xff]
      %v5610 = vld [vmem:[%s223 + $0x220] sm:$0xff]
      %v5611 = vld [vmem:[%s223 + $0x228] sm:$0xff]
      %v5612 = vld [vmem:[%s223 + $0x230] sm:$0xff]
      %v5613 = vld [vmem:[%s223 + $0x238] sm:$0xf]
      %v5614 = vld [vmem:[%s223 + $0x23c] sm:$0xff]
      %v5615 = vld [vmem:[%s223 + $0x244] sm:$0xff]
      %v5616 = vld [vmem:[%s223 + $0x24c] sm:$0xff]
      %v5617 = vld [vmem:[%s223 + $0x254] sm:$0xff]
      %v5618 = vld [vmem:[%s223 + $0x25c] sm:$0xff]
      %v5619 = vld [vmem:[%s223 + $0x264] sm:$0xff]
      %v5620 = vld [vmem:[%s223 + $0x26c] sm:$0xf]
      %v5635 = vunpack.c.l.b16 %v5607
      %v5636 = vunpack.c.h.b16 %v5607
      %v5637 = vunpack.c.l.b16 %v5608
      %v5638 = vunpack.c.h.b16 %v5608
      %v5639 = vunpack.c.l.b16 %v5609
      %v5640 = vunpack.c.h.b16 %v5609
      %v5641 = vunpack.c.l.b16 %v5610
      %v5642 = vunpack.c.h.b16 %v5610
      %v5643 = vunpack.c.l.b16 %v5611
      %v5644 = vunpack.c.h.b16 %v5611
      %v5645 = vunpack.c.l.b16 %v5612
      %v5646 = vunpack.c.h.b16 %v5612
      %v5647 = vunpack.c.l.b16 %v5613
      %v5648 = vunpack.c.l.b16 %v5614
      %v5649 = vunpack.c.h.b16 %v5614
      %v5650 = vunpack.c.l.b16 %v5615
      %v5651 = vunpack.c.h.b16 %v5615
      %v5652 = vunpack.c.l.b16 %v5616
      %v5653 = vunpack.c.h.b16 %v5616
      %v5654 = vunpack.c.l.b16 %v5617
      %v5655 = vunpack.c.h.b16 %v5617
      %v5656 = vunpack.c.l.b16 %v5618
      %v5657 = vunpack.c.h.b16 %v5618
      %v5658 = vunpack.c.l.b16 %v5619
      %v5659 = vunpack.c.h.b16 %v5619
      %v5660 = vunpack.c.l.b16 %v5620
      %v5661 = vpack.c.b16 %v5648, %v5635
      %v5662 = vpack.c.b16 %v5649, %v5636
      %v5663 = vpack.c.b16 %v5650, %v5637
      %v5664 = vpack.c.b16 %v5651, %v5638
      %v5665 = vpack.c.b16 %v5652, %v5639
      %v5666 = vpack.c.b16 %v5653, %v5640
      %v5667 = vpack.c.b16 %v5654, %v5641
      %v5668 = vpack.c.b16 %v5655, %v5642
      %v5669 = vpack.c.b16 %v5656, %v5643
      %v5670 = vpack.c.b16 %v5657, %v5644
      %v5671 = vpack.c.b16 %v5658, %v5645
      %v5672 = vpack.c.b16 %v5659, %v5646
      %v5673 = vpack.c.b16 %v5660, %v5647
      %v5687 = vsel %vm2311, %v5673, 0
      %5689 = vmatprep.subr.bf16.mxu0 %v1712
      %5690 = vmatpush1.bf16.msra.mxu0 %v1711
      %5691 = vmatprep.subr.bf16.mxu0 %v1715
      %5692 = vmatpush1.bf16.msra.mxu0 %v1714
      %5693 = vmatprep.subr.bf16.mxu0 %v1718
      %5694 = vmatpush1.bf16.msra.mxu0 %v1717
      %5695 = vmatprep.subr.bf16.mxu0 %v1721
      %5696 = vmatpush1.bf16.msra.mxu0 %v1720
      %5697 = vmatprep.subr.bf16.mxu0 %v1724
      %5698 = vmatpush1.bf16.msra.mxu0 %v1723
      %5699 = vmatprep.subr.bf16.mxu0 %v1727
      %5700 = vmatpush1.bf16.msra.mxu0 %v1726
      %5701 = vmatprep.subr.bf16.mxu0 %v1730
      %5702 = vmatpush1.bf16.msra.mxu0 %v1729
      %5703 = vmatprep.subr.bf16.mxu0 %v1733
      %5704 = vmatpush1.bf16.msra.mxu0 %v1732
      %5705 = vmatprep.subr.bf16.mxu0 %v1736
      %5706 = vmatpush1.bf16.msra.mxu0 %v1735
      %5707 = vmatprep.subr.bf16.mxu0 %v1739
      %5708 = vmatpush1.bf16.msra.mxu0 %v1738
      %5709 = vmatprep.subr.bf16.mxu0 %v1742
      %5710 = vmatpush1.bf16.msra.mxu0 %v1741
      %5711 = vmatprep.subr.bf16.mxu0 %v1745
      %5712 = vmatpush1.bf16.msra.mxu0 %v1744
      %5713 = vmatprep.subr.bf16.mxu0 %v1748
      %5714 = vmatpush1.bf16.msra.mxu0 %v1747
      %5715 = vmatprep.subr.bf16.mxu0 %v1751
      %5716 = vmatpush1.bf16.msra.mxu0 %v1750
      %5717 = vmatprep.subr.bf16.mxu0 %v1754
      %5718 = vmatpush1.bf16.msra.mxu0 %v1753
      %5719 = vmatprep.subr.bf16.mxu0 %v1757
      %5720 = vmatpush1.bf16.msra.mxu0 %v1756
      %5721 = vmatprep.mubr.bf16.mxu0 %v5662
      %5722 = vmatmul.mubr.bf16.gmra.mrb[0].mxu0 %v5661
      %v5723 = vpop.f32.mrb[0].mxu0
      %v5724 = vadd.f32 0.0, %v5723
      %v5725 = vpop.f32.mrb[0].mxu0
      %v5726 = vadd.f32 0.0, %v5725
      %v5727 = vpop.f32.mrb[0].mxu0
      %v5728 = vadd.f32 0.0, %v5727
      %v5729 = vpop.f32.mrb[0].mxu0
      %v5730 = vadd.f32 0.0, %v5729
      %5731 = vdwg.mxu0
      %5732 = vmatprep.subr.bf16.mxu0 %v1760
      %5733 = vmatpush1.bf16.msra.mxu0 %v1759
      %5734 = vmatprep.subr.bf16.mxu0 %v1763
      %5735 = vmatpush1.bf16.msra.mxu0 %v1762
      %5736 = vmatprep.subr.bf16.mxu0 %v1766
      %5737 = vmatpush1.bf16.msra.mxu0 %v1765
      %5738 = vmatprep.subr.bf16.mxu0 %v1769
      %5739 = vmatpush1.bf16.msra.mxu0 %v1768
      %5740 = vmatprep.subr.bf16.mxu0 %v1772
      %5741 = vmatpush1.bf16.msra.mxu0 %v1771
      %5742 = vmatprep.subr.bf16.mxu0 %v1775
      %5743 = vmatpush1.bf16.msra.mxu0 %v1774
      %5744 = vmatprep.subr.bf16.mxu0 %v1778
      %5745 = vmatpush1.bf16.msra.mxu0 %v1777
      %5746 = vmatprep.subr.bf16.mxu0 %v1781
      %5747 = vmatpush1.bf16.msra.mxu0 %v1780
      %5748 = vmatprep.subr.bf16.mxu0 %v1784
      %5749 = vmatpush1.bf16.msra.mxu0 %v1783
      %5750 = vmatprep.subr.bf16.mxu0 %v1787
      %5751 = vmatpush1.bf16.msra.mxu0 %v1786
      %5752 = vmatprep.subr.bf16.mxu0 %v1790
      %5753 = vmatpush1.bf16.msra.mxu0 %v1789
      %5754 = vmatprep.subr.bf16.mxu0 %v1793
      %5755 = vmatpush1.bf16.msra.mxu0 %v1792
      %5756 = vmatprep.subr.bf16.mxu0 %v1796
      %5757 = vmatpush1.bf16.msra.mxu0 %v1795
      %5758 = vmatprep.subr.bf16.mxu0 %v1799
      %5759 = vmatpush1.bf16.msra.mxu0 %v1798
      %5760 = vmatprep.subr.bf16.mxu0 %v1802
      %5761 = vmatpush1.bf16.msra.mxu0 %v1801
      %5762 = vmatprep.subr.bf16.mxu0 %v1805
      %5763 = vmatpush1.bf16.msra.mxu0 %v1804
      %5764 = vmatprep.mubr.bf16.mxu0 %v5664
      %5765 = vmatmul.mubr.bf16.gmra.mrb[0].mxu0 %v5663
      %v5766 = vpop.f32.mrb[0].mxu0
      %v5767 = vadd.f32 %v5724, %v5766
      %v5768 = vpop.f32.mrb[0].mxu0
      %v5769 = vadd.f32 %v5726, %v5768
      %v5770 = vpop.f32.mrb[0].mxu0
      %v5771 = vadd.f32 %v5728, %v5770
      %v5772 = vpop.f32.mrb[0].mxu0
      %v5773 = vadd.f32 %v5730, %v5772
      %5774 = vdwg.mxu0
      %5775 = vmatprep.subr.bf16.mxu0 %v1808
      %5776 = vmatpush1.bf16.msra.mxu0 %v1807
      %5777 = vmatprep.subr.bf16.mxu0 %v1811
      %5778 = vmatpush1.bf16.msra.mxu0 %v1810
      %5779 = vmatprep.subr.bf16.mxu0 %v1814
      %5780 = vmatpush1.bf16.msra.mxu0 %v1813
      %5781 = vmatprep.subr.bf16.mxu0 %v1817
      %5782 = vmatpush1.bf16.msra.mxu0 %v1816
      %5783 = vmatprep.subr.bf16.mxu0 %v1820
      %5784 = vmatpush1.bf16.msra.mxu0 %v1819
      %5785 = vmatprep.subr.bf16.mxu0 %v1823
      %5786 = vmatpush1.bf16.msra.mxu0 %v1822
      %5787 = vmatprep.subr.bf16.mxu0 %v1826
      %5788 = vmatpush1.bf16.msra.mxu0 %v1825
      %5789 = vmatprep.subr.bf16.mxu0 %v1829
      %5790 = vmatpush1.bf16.msra.mxu0 %v1828
      %5791 = vmatprep.subr.bf16.mxu0 %v1832
      %5792 = vmatpush1.bf16.msra.mxu0 %v1831
      %5793 = vmatprep.subr.bf16.mxu0 %v1835
      %5794 = vmatpush1.bf16.msra.mxu0 %v1834
      %5795 = vmatprep.subr.bf16.mxu0 %v1838
      %5796 = vmatpush1.bf16.msra.mxu0 %v1837
      %5797 = vmatprep.subr.bf16.mxu0 %v1841
      %5798 = vmatpush1.bf16.msra.mxu0 %v1840
      %5799 = vmatprep.subr.bf16.mxu0 %v1844
      %5800 = vmatpush1.bf16.msra.mxu0 %v1843
      %5801 = vmatprep.subr.bf16.mxu0 %v1847
      %5802 = vmatpush1.bf16.msra.mxu0 %v1846
      %5803 = vmatprep.subr.bf16.mxu0 %v1850
      %5804 = vmatpush1.bf16.msra.mxu0 %v1849
      %5805 = vmatprep.subr.bf16.mxu0 %v1853
      %5806 = vmatpush1.bf16.msra.mxu0 %v1852
      %5807 = vmatprep.mubr.bf16.mxu0 %v5666
      %5808 = vmatmul.mubr.bf16.gmra.mrb[0].mxu0 %v5665
      %v5809 = vpop.f32.mrb[0].mxu0
      %v5810 = vadd.f32 %v5767, %v5809
      %v5811 = vpop.f32.mrb[0].mxu0
      %v5812 = vadd.f32 %v5769, %v5811
      %v5813 = vpop.f32.mrb[0].mxu0
      %v5814 = vadd.f32 %v5771, %v5813
      %v5815 = vpop.f32.mrb[0].mxu0
      %v5816 = vadd.f32 %v5773, %v5815
      %5817 = vdwg.mxu0
      %5818 = vmatprep.subr.bf16.mxu0 %v1856
      %5819 = vmatpush1.bf16.msra.mxu0 %v1855
      %5820 = vmatprep.subr.bf16.mxu0 %v1859
      %5821 = vmatpush1.bf16.msra.mxu0 %v1858
      %5822 = vmatprep.subr.bf16.mxu0 %v1862
      %5823 = vmatpush1.bf16.msra.mxu0 %v1861
      %5824 = vmatprep.subr.bf16.mxu0 %v1865
      %5825 = vmatpush1.bf16.msra.mxu0 %v1864
      %5826 = vmatprep.subr.bf16.mxu0 %v1868
      %5827 = vmatpush1.bf16.msra.mxu0 %v1867
      %5828 = vmatprep.subr.bf16.mxu0 %v1871
      %5829 = vmatpush1.bf16.msra.mxu0 %v1870
      %5830 = vmatprep.subr.bf16.mxu0 %v1874
      %5831 = vmatpush1.bf16.msra.mxu0 %v1873
      %5832 = vmatprep.subr.bf16.mxu0 %v1877
      %5833 = vmatpush1.bf16.msra.mxu0 %v1876
      %5834 = vmatprep.subr.bf16.mxu0 %v1880
      %5835 = vmatpush1.bf16.msra.mxu0 %v1879
      %5836 = vmatprep.subr.bf16.mxu0 %v1883
      %5837 = vmatpush1.bf16.msra.mxu0 %v1882
      %5838 = vmatprep.subr.bf16.mxu0 %v1886
      %5839 = vmatpush1.bf16.msra.mxu0 %v1885
      %5840 = vmatprep.subr.bf16.mxu0 %v1889
      %5841 = vmatpush1.bf16.msra.mxu0 %v1888
      %5842 = vmatprep.subr.bf16.mxu0 %v1892
      %5843 = vmatpush1.bf16.msra.mxu0 %v1891
      %5844 = vmatprep.subr.bf16.mxu0 %v1895
      %5845 = vmatpush1.bf16.msra.mxu0 %v1894
      %5846 = vmatprep.subr.bf16.mxu0 %v1898
      %5847 = vmatpush1.bf16.msra.mxu0 %v1897
      %5848 = vmatprep.subr.bf16.mxu0 %v1901
      %5849 = vmatpush1.bf16.msra.mxu0 %v1900
      %5850 = vmatprep.mubr.bf16.mxu0 %v5668
      %5851 = vmatmul.mubr.bf16.gmra.mrb[0].mxu0 %v5667
      %v5852 = vpop.f32.mrb[0].mxu0
      %v5853 = vadd.f32 %v5810, %v5852
      %v5854 = vpop.f32.mrb[0].mxu0
      %v5855 = vadd.f32 %v5812, %v5854
      %v5856 = vpop.f32.mrb[0].mxu0
      %v5857 = vadd.f32 %v5814, %v5856
      %v5858 = vpop.f32.mrb[0].mxu0
      %v5859 = vadd.f32 %v5816, %v5858
      %5860 = vdwg.mxu0
      %5861 = vmatprep.subr.bf16.mxu0 %v1904
      %5862 = vmatpush1.bf16.msra.mxu0 %v1903
      %5863 = vmatprep.subr.bf16.mxu0 %v1907
      %5864 = vmatpush1.bf16.msra.mxu0 %v1906
      %5865 = vmatprep.subr.bf16.mxu0 %v1910
      %5866 = vmatpush1.bf16.msra.mxu0 %v1909
      %5867 = vmatprep.subr.bf16.mxu0 %v1913
      %5868 = vmatpush1.bf16.msra.mxu0 %v1912
      %5869 = vmatprep.subr.bf16.mxu0 %v1916
      %5870 = vmatpush1.bf16.msra.mxu0 %v1915
      %5871 = vmatprep.subr.bf16.mxu0 %v1919
      %5872 = vmatpush1.bf16.msra.mxu0 %v1918
      %5873 = vmatprep.subr.bf16.mxu0 %v1922
      %5874 = vmatpush1.bf16.msra.mxu0 %v1921
      %5875 = vmatprep.subr.bf16.mxu0 %v1925
      %5876 = vmatpush1.bf16.msra.mxu0 %v1924
      %5877 = vmatprep.subr.bf16.mxu0 %v1928
      %5878 = vmatpush1.bf16.msra.mxu0 %v1927
      %5879 = vmatprep.subr.bf16.mxu0 %v1931
      %5880 = vmatpush1.bf16.msra.mxu0 %v1930
      %5881 = vmatprep.subr.bf16.mxu0 %v1934
      %5882 = vmatpush1.bf16.msra.mxu0 %v1933
      %5883 = vmatprep.subr.bf16.mxu0 %v1937
      %5884 = vmatpush1.bf16.msra.mxu0 %v1936
      %5885 = vmatprep.subr.bf16.mxu0 %v1940
      %5886 = vmatpush1.bf16.msra.mxu0 %v1939
      %5887 = vmatprep.subr.bf16.mxu0 %v1943
      %5888 = vmatpush1.bf16.msra.mxu0 %v1942
      %5889 = vmatprep.subr.bf16.mxu0 %v1946
      %5890 = vmatpush1.bf16.msra.mxu0 %v1945
      %5891 = vmatprep.subr.bf16.mxu0 %v1949
      %5892 = vmatpush1.bf16.msra.mxu0 %v1948
      %5893 = vmatprep.mubr.bf16.mxu0 %v5670
      %5894 = vmatmul.mubr.bf16.gmra.mrb[0].mxu0 %v5669
      %v5895 = vpop.f32.mrb[0].mxu0
      %v5896 = vadd.f32 %v5853, %v5895
      %v5897 = vpop.f32.mrb[0].mxu0
      %v5898 = vadd.f32 %v5855, %v5897
      %v5899 = vpop.f32.mrb[0].mxu0
      %v5900 = vadd.f32 %v5857, %v5899
      %v5901 = vpop.f32.mrb[0].mxu0
      %v5902 = vadd.f32 %v5859, %v5901
      %5903 = vdwg.mxu0
      %5904 = vmatprep.subr.bf16.mxu0 %v1952
      %5905 = vmatpush1.bf16.msra.mxu0 %v1951
      %5906 = vmatprep.subr.bf16.mxu0 %v1955
      %5907 = vmatpush1.bf16.msra.mxu0 %v1954
      %5908 = vmatprep.subr.bf16.mxu0 %v1958
      %5909 = vmatpush1.bf16.msra.mxu0 %v1957
      %5910 = vmatprep.subr.bf16.mxu0 %v1961
      %5911 = vmatpush1.bf16.msra.mxu0 %v1960
      %5912 = vmatprep.subr.bf16.mxu0 %v1964
      %5913 = vmatpush1.bf16.msra.mxu0 %v1963
      %5914 = vmatprep.subr.bf16.mxu0 %v1967
      %5915 = vmatpush1.bf16.msra.mxu0 %v1966
      %5916 = vmatprep.subr.bf16.mxu0 %v1970
      %5917 = vmatpush1.bf16.msra.mxu0 %v1969
      %5918 = vmatprep.subr.bf16.mxu0 %v1973
      %5919 = vmatpush1.bf16.msra.mxu0 %v1972
      %5920 = vmatprep.subr.bf16.mxu0 %v1976
      %5921 = vmatpush1.bf16.msra.mxu0 %v1975
      %5922 = vmatprep.subr.bf16.mxu0 %v1979
      %5923 = vmatpush1.bf16.msra.mxu0 %v1978
      %5924 = vmatprep.subr.bf16.mxu0 %v1982
      %5925 = vmatpush1.bf16.msra.mxu0 %v1981
      %5926 = vmatprep.subr.bf16.mxu0 %v1985
      %5927 = vmatpush1.bf16.msra.mxu0 %v1984
      %5928 = vmatprep.subr.bf16.mxu0 %v1988
      %5929 = vmatpush1.bf16.msra.mxu0 %v1987
      %5930 = vmatprep.subr.bf16.mxu0 %v1991
      %5931 = vmatpush1.bf16.msra.mxu0 %v1990
      %5932 = vmatprep.subr.bf16.mxu0 %v1994
      %5933 = vmatpush1.bf16.msra.mxu0 %v1993
      %5934 = vmatprep.subr.bf16.mxu0 %v1997
      %5935 = vmatpush1.bf16.msra.mxu0 %v1996
      %5936 = vmatprep.mubr.bf16.mxu0 %v5672
      %5937 = vmatmul.mubr.bf16.gmra.mrb[0].mxu0 %v5671
      %v5938 = vpop.f32.mrb[0].mxu0
      %v5939 = vadd.f32 %v5896, %v5938
      %v5940 = vpop.f32.mrb[0].mxu0
      %v5941 = vadd.f32 %v5898, %v5940
      %v5942 = vpop.f32.mrb[0].mxu0
      %v5943 = vadd.f32 %v5900, %v5942
      %v5944 = vpop.f32.mrb[0].mxu0
      %v5945 = vadd.f32 %v5902, %v5944
      %5946 = vdwg.mxu0
      %5947 = vmatprep.subr.bf16.mxu0 %v2000
      %5948 = vmatpush1.bf16.msra.mxu0 %v1999
      %5949 = vmatprep.subr.bf16.mxu0 %v2003
      %5950 = vmatpush1.bf16.msra.mxu0 %v2002
      %5951 = vmatprep.subr.bf16.mxu0 %v2006
      %5952 = vmatpush1.bf16.msra.mxu0 %v2005
      %5953 = vmatprep.subr.bf16.mxu0 %v2009
      %5954 = vmatpush1.bf16.msra.mxu0 %v2008
      %5955 = vmatprep.subr.bf16.mxu0 0
      %5956 = vmatpush1.bf16.msra.mxu0 0
      %5957 = vmatprep.subr.bf16.mxu0 0
      %5958 = vmatpush1.bf16.msra.mxu0 0
      %5959 = vmatprep.subr.bf16.mxu0 0
      %5960 = vmatpush1.bf16.msra.mxu0 0
      %5961 = vmatprep.subr.bf16.mxu0 0
      %5962 = vmatpush1.bf16.msra.mxu0 0
      %5963 = vmatprep.subr.bf16.mxu0 0
      %5964 = vmatpush1.bf16.msra.mxu0 0
      %5965 = vmatprep.subr.bf16.mxu0 0
      %5966 = vmatpush1.bf16.msra.mxu0 0
      %5967 = vmatprep.subr.bf16.mxu0 0
      %5968 = vmatpush1.bf16.msra.mxu0 0
      %5969 = vmatprep.subr.bf16.mxu0 0
      %5970 = vmatpush1.bf16.msra.mxu0 0
      %5971 = vmatprep.subr.bf16.mxu0 0
      %5972 = vmatpush1.bf16.msra.mxu0 0
      %5973 = vmatprep.subr.bf16.mxu0 0
      %5974 = vmatpush1.bf16.msra.mxu0 0
      %5975 = vmatprep.subr.bf16.mxu0 0
      %5976 = vmatpush1.bf16.msra.mxu0 0
      %5977 = vmatprep.subr.bf16.mxu0 0
      %5978 = vmatpush1.bf16.msra.mxu0 0
      %5979 = vmatprep.mubr.bf16.mxu0 0
      %5980 = vmatmul.mubr.bf16.gmra.mrb[0].mxu0 %v5687
      %v5981 = vpop.f32.mrb[0].mxu0
      %v5982 = vadd.f32 %v5939, %v5981
      %v5983 = vpop.f32.mrb[0].mxu0
      %v5984 = vadd.f32 %v5941, %v5983
      %v5985 = vpop.f32.mrb[0].mxu0
      %v5986 = vadd.f32 %v5943, %v5985
      %v5987 = vpop.f32.mrb[0].mxu0
      %v5988 = vadd.f32 %v5945, %v5987
      %5989 = vdwg.mxu0
      %5990 = vmatprep.subr.bf16.mxu0 0
      %5991 = vmatpush1.bf16.msra.mxu0 %v1713
      %5992 = vmatprep.subr.bf16.mxu0 0
      %5993 = vmatpush1.bf16.msra.mxu0 %v1716
      %5994 = vmatprep.subr.bf16.mxu0 0
      %5995 = vmatpush1.bf16.msra.mxu0 %v1719
      %5996 = vmatprep.subr.bf16.mxu0 0
      %5997 = vmatpush1.bf16.msra.mxu0 %v1722
      %5998 = vmatprep.subr.bf16.mxu0 0
      %5999 = vmatpush1.bf16.msra.mxu0 %v1725
      %6000 = vmatprep.subr.bf16.mxu0 0
      %6001 = vmatpush1.bf16.msra.mxu0 %v1728
      %6002 = vmatprep.subr.bf16.mxu0 0
      %6003 = vmatpush1.bf16.msra.mxu0 %v1731
      %6004 = vmatprep.subr.bf16.mxu0 0
      %6005 = vmatpush1.bf16.msra.mxu0 %v1734
      %6006 = vmatprep.subr.bf16.mxu0 0
      %6007 = vmatpush1.bf16.msra.mxu0 %v1737
      %6008 = vmatprep.subr.bf16.mxu0 0
      %6009 = vmatpush1.bf16.msra.mxu0 %v1740
      %6010 = vmatprep.subr.bf16.mxu0 0
      %6011 = vmatpush1.bf16.msra.mxu0 %v1743
      %6012 = vmatprep.subr.bf16.mxu0 0
      %6013 = vmatpush1.bf16.msra.mxu0 %v1746
      %6014 = vmatprep.subr.bf16.mxu0 0
      %6015 = vmatpush1.bf16.msra.mxu0 %v1749
      %6016 = vmatprep.subr.bf16.mxu0 0
      %6017 = vmatpush1.bf16.msra.mxu0 %v1752
      %6018 = vmatprep.subr.bf16.mxu0 0
      %6019 = vmatpush1.bf16.msra.mxu0 %v1755
      %6020 = vmatprep.subr.bf16.mxu0 0
      %6021 = vmatpush1.bf16.msra.mxu0 %v1758
      %6022 = vmatprep.mubr.bf16.mxu0 %v5662
      %6023 = vmatmul.mubr.bf16.gmra.mrb[0].mxu0 %v5661
      %v6024 = vpop.f32.mrb[0].mxu0
      %v6025 = vadd.f32 0.0, %v6024
      %v6026 = vpop.f32.mrb[0].mxu0
      %v6027 = vpop.f32.mrb[0].mxu0
      %v6028 = vadd.f32 0.0, %v6027
      %v6029 = vpop.f32.mrb[0].mxu0
      %6030 = vdwg.mxu0
      %6031 = vmatprep.subr.bf16.mxu0 0
      %6032 = vmatpush1.bf16.msra.mxu0 %v1761
      %6033 = vmatprep.subr.bf16.mxu0 0
      %6034 = vmatpush1.bf16.msra.mxu0 %v1764
      %6035 = vmatprep.subr.bf16.mxu0 0
      %6036 = vmatpush1.bf16.msra.mxu0 %v1767
      %6037 = vmatprep.subr.bf16.mxu0 0
      %6038 = vmatpush1.bf16.msra.mxu0 %v1770
      %6039 = vmatprep.subr.bf16.mxu0 0
      %6040 = vmatpush1.bf16.msra.mxu0 %v1773
      %6041 = vmatprep.subr.bf16.mxu0 0
      %6042 = vmatpush1.bf16.msra.mxu0 %v1776
      %6043 = vmatprep.subr.bf16.mxu0 0
      %6044 = vmatpush1.bf16.msra.mxu0 %v1779
      %6045 = vmatprep.subr.bf16.mxu0 0
      %6046 = vmatpush1.bf16.msra.mxu0 %v1782
      %6047 = vmatprep.subr.bf16.mxu0 0
      %6048 = vmatpush1.bf16.msra.mxu0 %v1785
      %6049 = vmatprep.subr.bf16.mxu0 0
      %6050 = vmatpush1.bf16.msra.mxu0 %v1788
      %6051 = vmatprep.subr.bf16.mxu0 0
      %6052 = vmatpush1.bf16.msra.mxu0 %v1791
      %6053 = vmatprep.subr.bf16.mxu0 0
      %6054 = vmatpush1.bf16.msra.mxu0 %v1794
      %6055 = vmatprep.subr.bf16.mxu0 0
      %6056 = vmatpush1.bf16.msra.mxu0 %v1797
      %6057 = vmatprep.subr.bf16.mxu0 0
      %6058 = vmatpush1.bf16.msra.mxu0 %v1800
      %6059 = vmatprep.subr.bf16.mxu0 0
      %6060 = vmatpush1.bf16.msra.mxu0 %v1803
      %6061 = vmatprep.subr.bf16.mxu0 0
      %6062 = vmatpush1.bf16.msra.mxu0 %v1806
      %6063 = vmatprep.mubr.bf16.mxu0 %v5664
      %6064 = vmatmul.mubr.bf16.gmra.mrb[0].mxu0 %v5663
      %v6065 = vpop.f32.mrb[0].mxu0
      %v6066 = vadd.f32 %v6025, %v6065
      %v6067 = vpop.f32.mrb[0].mxu0
      %v6068 = vpop.f32.mrb[0].mxu0
      %v6069 = vadd.f32 %v6028, %v6068
      %v6070 = vpop.f32.mrb[0].mxu0
      %6071 = vdwg.mxu0
      %6072 = vmatprep.subr.bf16.mxu0 0
      %6073 = vmatpush1.bf16.msra.mxu0 %v1809
      %6074 = vmatprep.subr.bf16.mxu0 0
      %6075 = vmatpush1.bf16.msra.mxu0 %v1812
      %6076 = vmatprep.subr.bf16.mxu0 0
      %6077 = vmatpush1.bf16.msra.mxu0 %v1815
      %6078 = vmatprep.subr.bf16.mxu0 0
      %6079 = vmatpush1.bf16.msra.mxu0 %v1818
      %6080 = vmatprep.subr.bf16.mxu0 0
      %6081 = vmatpush1.bf16.msra.mxu0 %v1821
      %6082 = vmatprep.subr.bf16.mxu0 0
      %6083 = vmatpush1.bf16.msra.mxu0 %v1824
      %6084 = vmatprep.subr.bf16.mxu0 0
      %6085 = vmatpush1.bf16.msra.mxu0 %v1827
      %6086 = vmatprep.subr.bf16.mxu0 0
      %6087 = vmatpush1.bf16.msra.mxu0 %v1830
      %6088 = vmatprep.subr.bf16.mxu0 0
      %6089 = vmatpush1.bf16.msra.mxu0 %v1833
      %6090 = vmatprep.subr.bf16.mxu0 0
      %6091 = vmatpush1.bf16.msra.mxu0 %v1836
      %6092 = vmatprep.subr.bf16.mxu0 0
      %6093 = vmatpush1.bf16.msra.mxu0 %v1839
      %6094 = vmatprep.subr.bf16.mxu0 0
      %6095 = vmatpush1.bf16.msra.mxu0 %v1842
      %6096 = vmatprep.subr.bf16.mxu0 0
      %6097 = vmatpush1.bf16.msra.mxu0 %v1845
      %6098 = vmatprep.subr.bf16.mxu0 0
      %6099 = vmatpush1.bf16.msra.mxu0 %v1848
      %6100 = vmatprep.subr.bf16.mxu0 0
      %6101 = vmatpush1.bf16.msra.mxu0 %v1851
      %6102 = vmatprep.subr.bf16.mxu0 0
      %6103 = vmatpush1.bf16.msra.mxu0 %v1854
      %6104 = vmatprep.mubr.bf16.mxu0 %v5666
      %6105 = vmatmul.mubr.bf16.gmra.mrb[0].mxu0 %v5665
      %v6106 = vpop.f32.mrb[0].mxu0
      %v6107 = vadd.f32 %v6066, %v6106
      %v6108 = vpop.f32.mrb[0].mxu0
      %v6109 = vpop.f32.mrb[0].mxu0
      %v6110 = vadd.f32 %v6069, %v6109
      %v6111 = vpop.f32.mrb[0].mxu0
      %6112 = vdwg.mxu0
      %6113 = vmatprep.subr.bf16.mxu0 0
      %6114 = vmatpush1.bf16.msra.mxu0 %v1857
      %6115 = vmatprep.subr.bf16.mxu0 0
      %6116 = vmatpush1.bf16.msra.mxu0 %v1860
      %6117 = vmatprep.subr.bf16.mxu0 0
      %6118 = vmatpush1.bf16.msra.mxu0 %v1863
      %6119 = vmatprep.subr.bf16.mxu0 0
      %6120 = vmatpush1.bf16.msra.mxu0 %v1866
      %6121 = vmatprep.subr.bf16.mxu0 0
      %6122 = vmatpush1.bf16.msra.mxu0 %v1869
      %6123 = vmatprep.subr.bf16.mxu0 0
      %6124 = vmatpush1.bf16.msra.mxu0 %v1872
      %6125 = vmatprep.subr.bf16.mxu0 0
      %6126 = vmatpush1.bf16.msra.mxu0 %v1875
      %6127 = vmatprep.subr.bf16.mxu0 0
      %6128 = vmatpush1.bf16.msra.mxu0 %v1878
      %6129 = vmatprep.subr.bf16.mxu0 0
      %6130 = vmatpush1.bf16.msra.mxu0 %v1881
      %6131 = vmatprep.subr.bf16.mxu0 0
      %6132 = vmatpush1.bf16.msra.mxu0 %v1884
      %6133 = vmatprep.subr.bf16.mxu0 0
      %6134 = vmatpush1.bf16.msra.mxu0 %v1887
      %6135 = vmatprep.subr.bf16.mxu0 0
      %6136 = vmatpush1.bf16.msra.mxu0 %v1890
      %6137 = vmatprep.subr.bf16.mxu0 0
      %6138 = vmatpush1.bf16.msra.mxu0 %v1893
      %6139 = vmatprep.subr.bf16.mxu0 0
      %6140 = vmatpush1.bf16.msra.mxu0 %v1896
      %6141 = vmatprep.subr.bf16.mxu0 0
      %6142 = vmatpush1.bf16.msra.mxu0 %v1899
      %6143 = vmatprep.subr.bf16.mxu0 0
      %6144 = vmatpush1.bf16.msra.mxu0 %v1902
      %6145 = vmatprep.mubr.bf16.mxu0 %v5668
      %6146 = vmatmul.mubr.bf16.gmra.mrb[0].mxu0 %v5667
      %v6147 = vpop.f32.mrb[0].mxu0
      %v6148 = vadd.f32 %v6107, %v6147
      %v6149 = vpop.f32.mrb[0].mxu0
      %v6150 = vpop.f32.mrb[0].mxu0
      %v6151 = vadd.f32 %v6110, %v6150
      %v6152 = vpop.f32.mrb[0].mxu0
      %6153 = vdwg.mxu0
      %6154 = vmatprep.subr.bf16.mxu0 0
      %6155 = vmatpush1.bf16.msra.mxu0 %v1905
      %6156 = vmatprep.subr.bf16.mxu0 0
      %6157 = vmatpush1.bf16.msra.mxu0 %v1908
      %6158 = vmatprep.subr.bf16.mxu0 0
      %6159 = vmatpush1.bf16.msra.mxu0 %v1911
      %6160 = vmatprep.subr.bf16.mxu0 0
      %6161 = vmatpush1.bf16.msra.mxu0 %v1914
      %6162 = vmatprep.subr.bf16.mxu0 0
      %6163 = vmatpush1.bf16.msra.mxu0 %v1917
      %6164 = vmatprep.subr.bf16.mxu0 0
      %6165 = vmatpush1.bf16.msra.mxu0 %v1920
      %6166 = vmatprep.subr.bf16.mxu0 0
      %6167 = vmatpush1.bf16.msra.mxu0 %v1923
      %6168 = vmatprep.subr.bf16.mxu0 0
      %6169 = vmatpush1.bf16.msra.mxu0 %v1926
      %6170 = vmatprep.subr.bf16.mxu0 0
      %6171 = vmatpush1.bf16.msra.mxu0 %v1929
      %6172 = vmatprep.subr.bf16.mxu0 0
      %6173 = vmatpush1.bf16.msra.mxu0 %v1932
      %6174 = vmatprep.subr.bf16.mxu0 0
      %6175 = vmatpush1.bf16.msra.mxu0 %v1935
      %6176 = vmatprep.subr.bf16.mxu0 0
      %6177 = vmatpush1.bf16.msra.mxu0 %v1938
      %6178 = vmatprep.subr.bf16.mxu0 0
      %6179 = vmatpush1.bf16.msra.mxu0 %v1941
      %6180 = vmatprep.subr.bf16.mxu0 0
      %6181 = vmatpush1.bf16.msra.mxu0 %v1944
      %6182 = vmatprep.subr.bf16.mxu0 0
      %6183 = vmatpush1.bf16.msra.mxu0 %v1947
      %6184 = vmatprep.subr.bf16.mxu0 0
      %6185 = vmatpush1.bf16.msra.mxu0 %v1950
      %6186 = vmatprep.mubr.bf16.mxu0 %v5670
      %6187 = vmatmul.mubr.bf16.gmra.mrb[0].mxu0 %v5669
      %v6188 = vpop.f32.mrb[0].mxu0
      %v6189 = vadd.f32 %v6148, %v6188
      %v6190 = vpop.f32.mrb[0].mxu0
      %v6191 = vpop.f32.mrb[0].mxu0
      %v6192 = vadd.f32 %v6151, %v6191
      %v6193 = vpop.f32.mrb[0].mxu0
      %6194 = vdwg.mxu0
      %6195 = vmatprep.subr.bf16.mxu0 0
      %6196 = vmatpush1.bf16.msra.mxu0 %v1953
      %6197 = vmatprep.subr.bf16.mxu0 0
      %6198 = vmatpush1.bf16.msra.mxu0 %v1956
      %6199 = vmatprep.subr.bf16.mxu0 0
      %6200 = vmatpush1.bf16.msra.mxu0 %v1959
      %6201 = vmatprep.subr.bf16.mxu0 0
      %6202 = vmatpush1.bf16.msra.mxu0 %v1962
      %6203 = vmatprep.subr.bf16.mxu0 0
      %6204 = vmatpush1.bf16.msra.mxu0 %v1965
      %6205 = vmatprep.subr.bf16.mxu0 0
      %6206 = vmatpush1.bf16.msra.mxu0 %v1968
      %6207 = vmatprep.subr.bf16.mxu0 0
      %6208 = vmatpush1.bf16.msra.mxu0 %v1971
      %6209 = vmatprep.subr.bf16.mxu0 0
      %6210 = vmatpush1.bf16.msra.mxu0 %v1974
      %6211 = vmatprep.subr.bf16.mxu0 0
      %6212 = vmatpush1.bf16.msra.mxu0 %v1977
      %6213 = vmatprep.subr.bf16.mxu0 0
      %6214 = vmatpush1.bf16.msra.mxu0 %v1980
      %6215 = vmatprep.subr.bf16.mxu0 0
      %6216 = vmatpush1.bf16.msra.mxu0 %v1983
      %6217 = vmatprep.subr.bf16.mxu0 0
      %6218 = vmatpush1.bf16.msra.mxu0 %v1986
      %6219 = vmatprep.subr.bf16.mxu0 0
      %6220 = vmatpush1.bf16.msra.mxu0 %v1989
      %6221 = vmatprep.subr.bf16.mxu0 0
      %6222 = vmatpush1.bf16.msra.mxu0 %v1992
      %6223 = vmatprep.subr.bf16.mxu0 0
      %6224 = vmatpush1.bf16.msra.mxu0 %v1995
      %6225 = vmatprep.subr.bf16.mxu0 0
      %6226 = vmatpush1.bf16.msra.mxu0 %v1998
      %6227 = vmatprep.mubr.bf16.mxu0 %v5672
      %6228 = vmatmul.mubr.bf16.gmra.mrb[0].mxu0 %v5671
      %v6229 = vpop.f32.mrb[0].mxu0
      %v6230 = vadd.f32 %v6189, %v6229
      %v6231 = vpop.f32.mrb[0].mxu0
      %v6232 = vpop.f32.mrb[0].mxu0
      %v6233 = vadd.f32 %v6192, %v6232
      %v6234 = vpop.f32.mrb[0].mxu0
      %6235 = vdwg.mxu0
      %6236 = vmatprep.subr.bf16.mxu0 0
      %6237 = vmatpush1.bf16.msra.mxu0 %v2001
      %6238 = vmatprep.subr.bf16.mxu0 0
      %6239 = vmatpush1.bf16.msra.mxu0 %v2004
      %6240 = vmatprep.subr.bf16.mxu0 0
      %6241 = vmatpush1.bf16.msra.mxu0 %v2007
      %6242 = vmatprep.subr.bf16.mxu0 0
      %6243 = vmatpush1.bf16.msra.mxu0 %v2010
      %6244 = vmatprep.subr.bf16.mxu0 0
      %6245 = vmatpush1.bf16.msra.mxu0 0
      %6246 = vmatprep.subr.bf16.mxu0 0
      %6247 = vmatpush1.bf16.msra.mxu0 0
      %6248 = vmatprep.subr.bf16.mxu0 0
      %6249 = vmatpush1.bf16.msra.mxu0 0
      %6250 = vmatprep.subr.bf16.mxu0 0
      %6251 = vmatpush1.bf16.msra.mxu0 0
      %6252 = vmatprep.subr.bf16.mxu0 0
      %6253 = vmatpush1.bf16.msra.mxu0 0
      %6254 = vmatprep.subr.bf16.mxu0 0
      %6255 = vmatpush1.bf16.msra.mxu0 0
      %6256 = vmatprep.subr.bf16.mxu0 0
      %6257 = vmatpush1.bf16.msra.mxu0 0
      %6258 = vmatprep.subr.bf16.mxu0 0
      %6259 = vmatpush1.bf16.msra.mxu0 0
      %6260 = vmatprep.subr.bf16.mxu0 0
      %6261 = vmatpush1.bf16.msra.mxu0 0
      %6262 = vmatprep.subr.bf16.mxu0 0
      %6263 = vmatpush1.bf16.msra.mxu0 0
      %6264 = vmatprep.subr.bf16.mxu0 0
      %6265 = vmatpush1.bf16.msra.mxu0 0
      %6266 = vmatprep.subr.bf16.mxu0 0
      %6267 = vmatpush1.bf16.msra.mxu0 0
      %6268 = vmatprep.mubr.bf16.mxu0 0
      %6269 = vmatmul.mubr.bf16.gmra.mrb[0].mxu0 %v5687
      %v6270 = vpop.f32.mrb[0].mxu0
      %v6271 = vadd.f32 %v6230, %v6270
      %v6272 = vpop.f32.mrb[0].mxu0
      %v6273 = vpop.f32.mrb[0].mxu0
      %v6274 = vadd.f32 %v6233, %v6273
      %v6275 = vpop.f32.mrb[0].mxu0
      %6276 = vdwg.mxu0
      %v6277 = vmax.f32 %v5601, %v5982
      %v6278 = vmax.f32 %v5602, %v5984
      %v6279 = vmax.f32 %v5603, %v6271
      %v6280 = vmax.f32 %v5604, %v5986
      %v6281 = vmax.f32 %v5605, %v5988
      %v6282 = vmax.f32 %v5606, %v6274
      %v6283 = vld [vmem:[%s223 + $0x270] sm:$0xff]
      %v6284 = vld [vmem:[%s223 + $0x278] sm:$0xff]
      %v6285 = vld [vmem:[%s223 + $0x280] sm:$0xff]
      %v6286 = vld [vmem:[%s223 + $0x288] sm:$0xff]
      %v6287 = vld [vmem:[%s223 + $0x290] sm:$0xff]
      %v6288 = vld [vmem:[%s223 + $0x298] sm:$0xff]
      %v6289 = vld [vmem:[%s223 + $0x2a0] sm:$0xf]
      %v6290 = vld [vmem:[%s223 + $0x2a4] sm:$0xff]
      %v6291 = vld [vmem:[%s223 + $0x2ac] sm:$0xff]
      %v6292 = vld [vmem:[%s223 + $0x2b4] sm:$0xff]
      %v6293 = vld [vmem:[%s223 + $0x2bc] sm:$0xff]
      %v6294 = vld [vmem:[%s223 + $0x2c4] sm:$0xff]
      %v6295 = vld [vmem:[%s223 + $0x2cc] sm:$0xff]
      %v6296 = vld [vmem:[%s223 + $0x2d4] sm:$0xf]
      %v6311 = vunpack.c.l.b16 %v6283
      %v6312 = vunpack.c.h.b16 %v6283
      %v6313 = vunpack.c.l.b16 %v6284
      %v6314 = vunpack.c.h.b16 %v6284
      %v6315 = vunpack.c.l.b16 %v6285
      %v6316 = vunpack.c.h.b16 %v6285
      %v6317 = vunpack.c.l.b16 %v6286
      %v6318 = vunpack.c.h.b16 %v6286
      %v6319 = vunpack.c.l.b16 %v6287
      %v6320 = vunpack.c.h.b16 %v6287
      %v6321 = vunpack.c.l.b16 %v6288
      %v6322 = vunpack.c.h.b16 %v6288
      %v6323 = vunpack.c.l.b16 %v6289
      %v6324 = vunpack.c.l.b16 %v6290
      %v6325 = vunpack.c.h.b16 %v6290
      %v6326 = vunpack.c.l.b16 %v6291
      %v6327 = vunpack.c.h.b16 %v6291
      %v6328 = vunpack.c.l.b16 %v6292
      %v6329 = vunpack.c.h.b16 %v6292
      %v6330 = vunpack.c.l.b16 %v6293
      %v6331 = vunpack.c.h.b16 %v6293
      %v6332 = vunpack.c.l.b16 %v6294
      %v6333 = vunpack.c.h.b16 %v6294
      %v6334 = vunpack.c.l.b16 %v6295
      %v6335 = vunpack.c.h.b16 %v6295
      %v6336 = vunpack.c.l.b16 %v6296
      %v6337 = vpack.c.b16 %v6324, %v6311
      %v6338 = vpack.c.b16 %v6325, %v6312
      %v6339 = vpack.c.b16 %v6326, %v6313
      %v6340 = vpack.c.b16 %v6327, %v6314
      %v6341 = vpack.c.b16 %v6328, %v6315
      %v6342 = vpack.c.b16 %v6329, %v6316
      %v6343 = vpack.c.b16 %v6330, %v6317
      %v6344 = vpack.c.b16 %v6331, %v6318
      %v6345 = vpack.c.b16 %v6332, %v6319
      %v6346 = vpack.c.b16 %v6333, %v6320
      %v6347 = vpack.c.b16 %v6334, %v6321
      %v6348 = vpack.c.b16 %v6335, %v6322
      %v6349 = vpack.c.b16 %v6336, %v6323
      %v6363 = vsel %vm2311, %v6349, 0
      %6365 = vmatprep.subr.bf16.mxu0 %v1712
      %6366 = vmatpush1.bf16.msra.mxu0 %v1711
      %6367 = vmatprep.subr.bf16.mxu0 %v1715
      %6368 = vmatpush1.bf16.msra.mxu0 %v1714
      %6369 = vmatprep.subr.bf16.mxu0 %v1718
      %6370 = vmatpush1.bf16.msra.mxu0 %v1717
      %6371 = vmatprep.subr.bf16.mxu0 %v1721
      %6372 = vmatpush1.bf16.msra.mxu0 %v1720
      %6373 = vmatprep.subr.bf16.mxu0 %v1724
      %6374 = vmatpush1.bf16.msra.mxu0 %v1723
      %6375 = vmatprep.subr.bf16.mxu0 %v1727
      %6376 = vmatpush1.bf16.msra.mxu0 %v1726
      %6377 = vmatprep.subr.bf16.mxu0 %v1730
      %6378 = vmatpush1.bf16.msra.mxu0 %v1729
      %6379 = vmatprep.subr.bf16.mxu0 %v1733
      %6380 = vmatpush1.bf16.msra.mxu0 %v1732
      %6381 = vmatprep.subr.bf16.mxu0 %v1736
      %6382 = vmatpush1.bf16.msra.mxu0 %v1735
      %6383 = vmatprep.subr.bf16.mxu0 %v1739
      %6384 = vmatpush1.bf16.msra.mxu0 %v1738
      %6385 = vmatprep.subr.bf16.mxu0 %v1742
      %6386 = vmatpush1.bf16.msra.mxu0 %v1741
      %6387 = vmatprep.subr.bf16.mxu0 %v1745
      %6388 = vmatpush1.bf16.msra.mxu0 %v1744
      %6389 = vmatprep.subr.bf16.mxu0 %v1748
      %6390 = vmatpush1.bf16.msra.mxu0 %v1747
      %6391 = vmatprep.subr.bf16.mxu0 %v1751
      %6392 = vmatpush1.bf16.msra.mxu0 %v1750
      %6393 = vmatprep.subr.bf16.mxu0 %v1754
      %6394 = vmatpush1.bf16.msra.mxu0 %v1753
      %6395 = vmatprep.subr.bf16.mxu0 %v1757
      %6396 = vmatpush1.bf16.msra.mxu0 %v1756
      %6397 = vmatprep.mubr.bf16.mxu0 %v6338
      %6398 = vmatmul.mubr.bf16.gmra.mrb[0].mxu0 %v6337
      %v6399 = vpop.f32.mrb[0].mxu0
      %v6400 = vadd.f32 0.0, %v6399
      %v6401 = vpop.f32.mrb[0].mxu0
      %v6402 = vadd.f32 0.0, %v6401
      %v6403 = vpop.f32.mrb[0].mxu0
      %v6404 = vadd.f32 0.0, %v6403
      %v6405 = vpop.f32.mrb[0].mxu0
      %v6406 = vadd.f32 0.0, %v6405
      %6407 = vdwg.mxu0
      %6408 = vmatprep.subr.bf16.mxu0 %v1760
      %6409 = vmatpush1.bf16.msra.mxu0 %v1759
      %6410 = vmatprep.subr.bf16.mxu0 %v1763
      %6411 = vmatpush1.bf16.msra.mxu0 %v1762
      %6412 = vmatprep.subr.bf16.mxu0 %v1766
      %6413 = vmatpush1.bf16.msra.mxu0 %v1765
      %6414 = vmatprep.subr.bf16.mxu0 %v1769
      %6415 = vmatpush1.bf16.msra.mxu0 %v1768
      %6416 = vmatprep.subr.bf16.mxu0 %v1772
      %6417 = vmatpush1.bf16.msra.mxu0 %v1771
      %6418 = vmatprep.subr.bf16.mxu0 %v1775
      %6419 = vmatpush1.bf16.msra.mxu0 %v1774
      %6420 = vmatprep.subr.bf16.mxu0 %v1778
      %6421 = vmatpush1.bf16.msra.mxu0 %v1777
      %6422 = vmatprep.subr.bf16.mxu0 %v1781
      %6423 = vmatpush1.bf16.msra.mxu0 %v1780
      %6424 = vmatprep.subr.bf16.mxu0 %v1784
      %6425 = vmatpush1.bf16.msra.mxu0 %v1783
      %6426 = vmatprep.subr.bf16.mxu0 %v1787
      %6427 = vmatpush1.bf16.msra.mxu0 %v1786
      %6428 = vmatprep.subr.bf16.mxu0 %v1790
      %6429 = vmatpush1.bf16.msra.mxu0 %v1789
      %6430 = vmatprep.subr.bf16.mxu0 %v1793
      %6431 = vmatpush1.bf16.msra.mxu0 %v1792
      %6432 = vmatprep.subr.bf16.mxu0 %v1796
      %6433 = vmatpush1.bf16.msra.mxu0 %v1795
      %6434 = vmatprep.subr.bf16.mxu0 %v1799
      %6435 = vmatpush1.bf16.msra.mxu0 %v1798
      %6436 = vmatprep.subr.bf16.mxu0 %v1802
      %6437 = vmatpush1.bf16.msra.mxu0 %v1801
      %6438 = vmatprep.subr.bf16.mxu0 %v1805
      %6439 = vmatpush1.bf16.msra.mxu0 %v1804
      %6440 = vmatprep.mubr.bf16.mxu0 %v6340
      %6441 = vmatmul.mubr.bf16.gmra.mrb[0].mxu0 %v6339
      %v6442 = vpop.f32.mrb[0].mxu0
      %v6443 = vadd.f32 %v6400, %v6442
      %v6444 = vpop.f32.mrb[0].mxu0
      %v6445 = vadd.f32 %v6402, %v6444
      %v6446 = vpop.f32.mrb[0].mxu0
      %v6447 = vadd.f32 %v6404, %v6446
      %v6448 = vpop.f32.mrb[0].mxu0
      %v6449 = vadd.f32 %v6406, %v6448
      %6450 = vdwg.mxu0
      %6451 = vmatprep.subr.bf16.mxu0 %v1808
      %6452 = vmatpush1.bf16.msra.mxu0 %v1807
      %6453 = vmatprep.subr.bf16.mxu0 %v1811
      %6454 = vmatpush1.bf16.msra.mxu0 %v1810
      %6455 = vmatprep.subr.bf16.mxu0 %v1814
      %6456 = vmatpush1.bf16.msra.mxu0 %v1813
      %6457 = vmatprep.subr.bf16.mxu0 %v1817
      %6458 = vmatpush1.bf16.msra.mxu0 %v1816
      %6459 = vmatprep.subr.bf16.mxu0 %v1820
      %6460 = vmatpush1.bf16.msra.mxu0 %v1819
      %6461 = vmatprep.subr.bf16.mxu0 %v1823
      %6462 = vmatpush1.bf16.msra.mxu0 %v1822
      %6463 = vmatprep.subr.bf16.mxu0 %v1826
      %6464 = vmatpush1.bf16.msra.mxu0 %v1825
      %6465 = vmatprep.subr.bf16.mxu0 %v1829
      %6466 = vmatpush1.bf16.msra.mxu0 %v1828
      %6467 = vmatprep.subr.bf16.mxu0 %v1832
      %6468 = vmatpush1.bf16.msra.mxu0 %v1831
      %6469 = vmatprep.subr.bf16.mxu0 %v1835
      %6470 = vmatpush1.bf16.msra.mxu0 %v1834
      %6471 = vmatprep.subr.bf16.mxu0 %v1838
      %6472 = vmatpush1.bf16.msra.mxu0 %v1837
      %6473 = vmatprep.subr.bf16.mxu0 %v1841
      %6474 = vmatpush1.bf16.msra.mxu0 %v1840
      %6475 = vmatprep.subr.bf16.mxu0 %v1844
      %6476 = vmatpush1.bf16.msra.mxu0 %v1843
      %6477 = vmatprep.subr.bf16.mxu0 %v1847
      %6478 = vmatpush1.bf16.msra.mxu0 %v1846
      %6479 = vmatprep.subr.bf16.mxu0 %v1850
      %6480 = vmatpush1.bf16.msra.mxu0 %v1849
      %6481 = vmatprep.subr.bf16.mxu0 %v1853
      %6482 = vmatpush1.bf16.msra.mxu0 %v1852
      %6483 = vmatprep.mubr.bf16.mxu0 %v6342
      %6484 = vmatmul.mubr.bf16.gmra.mrb[0].mxu0 %v6341
      %v6485 = vpop.f32.mrb[0].mxu0
      %v6486 = vadd.f32 %v6443, %v6485
      %v6487 = vpop.f32.mrb[0].mxu0
      %v6488 = vadd.f32 %v6445, %v6487
      %v6489 = vpop.f32.mrb[0].mxu0
      %v6490 = vadd.f32 %v6447, %v6489
      %v6491 = vpop.f32.mrb[0].mxu0
      %v6492 = vadd.f32 %v6449, %v6491
      %6493 = vdwg.mxu0
      %6494 = vmatprep.subr.bf16.mxu0 %v1856
      %6495 = vmatpush1.bf16.msra.mxu0 %v1855
      %6496 = vmatprep.subr.bf16.mxu0 %v1859
      %6497 = vmatpush1.bf16.msra.mxu0 %v1858
      %6498 = vmatprep.subr.bf16.mxu0 %v1862
      %6499 = vmatpush1.bf16.msra.mxu0 %v1861
      %6500 = vmatprep.subr.bf16.mxu0 %v1865
      %6501 = vmatpush1.bf16.msra.mxu0 %v1864
      %6502 = vmatprep.subr.bf16.mxu0 %v1868
      %6503 = vmatpush1.bf16.msra.mxu0 %v1867
      %6504 = vmatprep.subr.bf16.mxu0 %v1871
      %6505 = vmatpush1.bf16.msra.mxu0 %v1870
      %6506 = vmatprep.subr.bf16.mxu0 %v1874
      %6507 = vmatpush1.bf16.msra.mxu0 %v1873
      %6508 = vmatprep.subr.bf16.mxu0 %v1877
      %6509 = vmatpush1.bf16.msra.mxu0 %v1876
      %6510 = vmatprep.subr.bf16.mxu0 %v1880
      %6511 = vmatpush1.bf16.msra.mxu0 %v1879
      %6512 = vmatprep.subr.bf16.mxu0 %v1883
      %6513 = vmatpush1.bf16.msra.mxu0 %v1882
      %6514 = vmatprep.subr.bf16.mxu0 %v1886
      %6515 = vmatpush1.bf16.msra.mxu0 %v1885
      %6516 = vmatprep.subr.bf16.mxu0 %v1889
      %6517 = vmatpush1.bf16.msra.mxu0 %v1888
      %6518 = vmatprep.subr.bf16.mxu0 %v1892
      %6519 = vmatpush1.bf16.msra.mxu0 %v1891
      %6520 = vmatprep.subr.bf16.mxu0 %v1895
      %6521 = vmatpush1.bf16.msra.mxu0 %v1894
      %6522 = vmatprep.subr.bf16.mxu0 %v1898
      %6523 = vmatpush1.bf16.msra.mxu0 %v1897
      %6524 = vmatprep.subr.bf16.mxu0 %v1901
      %6525 = vmatpush1.bf16.msra.mxu0 %v1900
      %6526 = vmatprep.mubr.bf16.mxu0 %v6344
      %6527 = vmatmul.mubr.bf16.gmra.mrb[0].mxu0 %v6343
      %v6528 = vpop.f32.mrb[0].mxu0
      %v6529 = vadd.f32 %v6486, %v6528
      %v6530 = vpop.f32.mrb[0].mxu0
      %v6531 = vadd.f32 %v6488, %v6530
      %v6532 = vpop.f32.mrb[0].mxu0
      %v6533 = vadd.f32 %v6490, %v6532
      %v6534 = vpop.f32.mrb[0].mxu0
      %v6535 = vadd.f32 %v6492, %v6534
      %6536 = vdwg.mxu0
      %6537 = vmatprep.subr.bf16.mxu0 %v1904
      %6538 = vmatpush1.bf16.msra.mxu0 %v1903
      %6539 = vmatprep.subr.bf16.mxu0 %v1907
      %6540 = vmatpush1.bf16.msra.mxu0 %v1906
      %6541 = vmatprep.subr.bf16.mxu0 %v1910
      %6542 = vmatpush1.bf16.msra.mxu0 %v1909
      %6543 = vmatprep.subr.bf16.mxu0 %v1913
      %6544 = vmatpush1.bf16.msra.mxu0 %v1912
      %6545 = vmatprep.subr.bf16.mxu0 %v1916
      %6546 = vmatpush1.bf16.msra.mxu0 %v1915
      %6547 = vmatprep.subr.bf16.mxu0 %v1919
      %6548 = vmatpush1.bf16.msra.mxu0 %v1918
      %6549 = vmatprep.subr.bf16.mxu0 %v1922
      %6550 = vmatpush1.bf16.msra.mxu0 %v1921
      %6551 = vmatprep.subr.bf16.mxu0 %v1925
      %6552 = vmatpush1.bf16.msra.mxu0 %v1924
      %6553 = vmatprep.subr.bf16.mxu0 %v1928
      %6554 = vmatpush1.bf16.msra.mxu0 %v1927
      %6555 = vmatprep.subr.bf16.mxu0 %v1931
      %6556 = vmatpush1.bf16.msra.mxu0 %v1930
      %6557 = vmatprep.subr.bf16.mxu0 %v1934
      %6558 = vmatpush1.bf16.msra.mxu0 %v1933
      %6559 = vmatprep.subr.bf16.mxu0 %v1937
      %6560 = vmatpush1.bf16.msra.mxu0 %v1936
      %6561 = vmatprep.subr.bf16.mxu0 %v1940
      %6562 = vmatpush1.bf16.msra.mxu0 %v1939
      %6563 = vmatprep.subr.bf16.mxu0 %v1943
      %6564 = vmatpush1.bf16.msra.mxu0 %v1942
      %6565 = vmatprep.subr.bf16.mxu0 %v1946
      %6566 = vmatpush1.bf16.msra.mxu0 %v1945
      %6567 = vmatprep.subr.bf16.mxu0 %v1949
      %6568 = vmatpush1.bf16.msra.mxu0 %v1948
      %6569 = vmatprep.mubr.bf16.mxu0 %v6346
      %6570 = vmatmul.mubr.bf16.gmra.mrb[0].mxu0 %v6345
      %v6571 = vpop.f32.mrb[0].mxu0
      %v6572 = vadd.f32 %v6529, %v6571
      %v6573 = vpop.f32.mrb[0].mxu0
      %v6574 = vadd.f32 %v6531, %v6573
      %v6575 = vpop.f32.mrb[0].mxu0
      %v6576 = vadd.f32 %v6533, %v6575
      %v6577 = vpop.f32.mrb[0].mxu0
      %v6578 = vadd.f32 %v6535, %v6577
      %6579 = vdwg.mxu0
      %6580 = vmatprep.subr.bf16.mxu0 %v1952
      %6581 = vmatpush1.bf16.msra.mxu0 %v1951
      %6582 = vmatprep.subr.bf16.mxu0 %v1955
      %6583 = vmatpush1.bf16.msra.mxu0 %v1954
      %6584 = vmatprep.subr.bf16.mxu0 %v1958
      %6585 = vmatpush1.bf16.msra.mxu0 %v1957
      %6586 = vmatprep.subr.bf16.mxu0 %v1961
      %6587 = vmatpush1.bf16.msra.mxu0 %v1960
      %6588 = vmatprep.subr.bf16.mxu0 %v1964
      %6589 = vmatpush1.bf16.msra.mxu0 %v1963
      %6590 = vmatprep.subr.bf16.mxu0 %v1967
      %6591 = vmatpush1.bf16.msra.mxu0 %v1966
      %6592 = vmatprep.subr.bf16.mxu0 %v1970
      %6593 = vmatpush1.bf16.msra.mxu0 %v1969
      %6594 = vmatprep.subr.bf16.mxu0 %v1973
      %6595 = vmatpush1.bf16.msra.mxu0 %v1972
      %6596 = vmatprep.subr.bf16.mxu0 %v1976
      %6597 = vmatpush1.bf16.msra.mxu0 %v1975
      %6598 = vmatprep.subr.bf16.mxu0 %v1979
      %6599 = vmatpush1.bf16.msra.mxu0 %v1978
      %6600 = vmatprep.subr.bf16.mxu0 %v1982
      %6601 = vmatpush1.bf16.msra.mxu0 %v1981
      %6602 = vmatprep.subr.bf16.mxu0 %v1985
      %6603 = vmatpush1.bf16.msra.mxu0 %v1984
      %6604 = vmatprep.subr.bf16.mxu0 %v1988
      %6605 = vmatpush1.bf16.msra.mxu0 %v1987
      %6606 = vmatprep.subr.bf16.mxu0 %v1991
      %6607 = vmatpush1.bf16.msra.mxu0 %v1990
      %6608 = vmatprep.subr.bf16.mxu0 %v1994
      %6609 = vmatpush1.bf16.msra.mxu0 %v1993
      %6610 = vmatprep.subr.bf16.mxu0 %v1997
      %6611 = vmatpush1.bf16.msra.mxu0 %v1996
      %6612 = vmatprep.mubr.bf16.mxu0 %v6348
      %6613 = vmatmul.mubr.bf16.gmra.mrb[0].mxu0 %v6347
      %v6614 = vpop.f32.mrb[0].mxu0
      %v6615 = vadd.f32 %v6572, %v6614
      %v6616 = vpop.f32.mrb[0].mxu0
      %v6617 = vadd.f32 %v6574, %v6616
      %v6618 = vpop.f32.mrb[0].mxu0
      %v6619 = vadd.f32 %v6576, %v6618
      %v6620 = vpop.f32.mrb[0].mxu0
      %v6621 = vadd.f32 %v6578, %v6620
      %6622 = vdwg.mxu0
      %6623 = vmatprep.subr.bf16.mxu0 %v2000
      %6624 = vmatpush1.bf16.msra.mxu0 %v1999
      %6625 = vmatprep.subr.bf16.mxu0 %v2003
      %6626 = vmatpush1.bf16.msra.mxu0 %v2002
      %6627 = vmatprep.subr.bf16.mxu0 %v2006
      %6628 = vmatpush1.bf16.msra.mxu0 %v2005
      %6629 = vmatprep.subr.bf16.mxu0 %v2009
      %6630 = vmatpush1.bf16.msra.mxu0 %v2008
      %6631 = vmatprep.subr.bf16.mxu0 0
      %6632 = vmatpush1.bf16.msra.mxu0 0
      %6633 = vmatprep.subr.bf16.mxu0 0
      %6634 = vmatpush1.bf16.msra.mxu0 0
      %6635 = vmatprep.subr.bf16.mxu0 0
      %6636 = vmatpush1.bf16.msra.mxu0 0
      %6637 = vmatprep.subr.bf16.mxu0 0
      %6638 = vmatpush1.bf16.msra.mxu0 0
      %6639 = vmatprep.subr.bf16.mxu0 0
      %6640 = vmatpush1.bf16.msra.mxu0 0
      %6641 = vmatprep.subr.bf16.mxu0 0
      %6642 = vmatpush1.bf16.msra.mxu0 0
      %6643 = vmatprep.subr.bf16.mxu0 0
      %6644 = vmatpush1.bf16.msra.mxu0 0
      %6645 = vmatprep.subr.bf16.mxu0 0
      %6646 = vmatpush1.bf16.msra.mxu0 0
      %6647 = vmatprep.subr.bf16.mxu0 0
      %6648 = vmatpush1.bf16.msra.mxu0 0
      %6649 = vmatprep.subr.bf16.mxu0 0
      %6650 = vmatpush1.bf16.msra.mxu0 0
      %6651 = vmatprep.subr.bf16.mxu0 0
      %6652 = vmatpush1.bf16.msra.mxu0 0
      %6653 = vmatprep.subr.bf16.mxu0 0
      %6654 = vmatpush1.bf16.msra.mxu0 0
      %6655 = vmatprep.mubr.bf16.mxu0 0
      %6656 = vmatmul.mubr.bf16.gmra.mrb[0].mxu0 %v6363
      %v6657 = vpop.f32.mrb[0].mxu0
      %v6658 = vadd.f32 %v6615, %v6657
      %v6659 = vpop.f32.mrb[0].mxu0
      %v6660 = vadd.f32 %v6617, %v6659
      %v6661 = vpop.f32.mrb[0].mxu0
      %v6662 = vadd.f32 %v6619, %v6661
      %v6663 = vpop.f32.mrb[0].mxu0
      %v6664 = vadd.f32 %v6621, %v6663
      %6665 = vdwg.mxu0
      %6666 = vmatprep.subr.bf16.mxu0 0
      %6667 = vmatpush1.bf16.msra.mxu0 %v1713
      %6668 = vmatprep.subr.bf16.mxu0 0
      %6669 = vmatpush1.bf16.msra.mxu0 %v1716
      %6670 = vmatprep.subr.bf16.mxu0 0
      %6671 = vmatpush1.bf16.msra.mxu0 %v1719
      %6672 = vmatprep.subr.bf16.mxu0 0
      %6673 = vmatpush1.bf16.msra.mxu0 %v1722
      %6674 = vmatprep.subr.bf16.mxu0 0
      %6675 = vmatpush1.bf16.msra.mxu0 %v1725
      %6676 = vmatprep.subr.bf16.mxu0 0
      %6677 = vmatpush1.bf16.msra.mxu0 %v1728
      %6678 = vmatprep.subr.bf16.mxu0 0
      %6679 = vmatpush1.bf16.msra.mxu0 %v1731
      %6680 = vmatprep.subr.bf16.mxu0 0
      %6681 = vmatpush1.bf16.msra.mxu0 %v1734
      %6682 = vmatprep.subr.bf16.mxu0 0
      %6683 = vmatpush1.bf16.msra.mxu0 %v1737
      %6684 = vmatprep.subr.bf16.mxu0 0
      %6685 = vmatpush1.bf16.msra.mxu0 %v1740
      %6686 = vmatprep.subr.bf16.mxu0 0
      %6687 = vmatpush1.bf16.msra.mxu0 %v1743
      %6688 = vmatprep.subr.bf16.mxu0 0
      %6689 = vmatpush1.bf16.msra.mxu0 %v1746
      %6690 = vmatprep.subr.bf16.mxu0 0
      %6691 = vmatpush1.bf16.msra.mxu0 %v1749
      %6692 = vmatprep.subr.bf16.mxu0 0
      %6693 = vmatpush1.bf16.msra.mxu0 %v1752
      %6694 = vmatprep.subr.bf16.mxu0 0
      %6695 = vmatpush1.bf16.msra.mxu0 %v1755
      %6696 = vmatprep.subr.bf16.mxu0 0
      %6697 = vmatpush1.bf16.msra.mxu0 %v1758
      %6698 = vmatprep.mubr.bf16.mxu0 %v6338
      %6699 = vmatmul.mubr.bf16.gmra.mrb[0].mxu0 %v6337
      %v6700 = vpop.f32.mrb[0].mxu0
      %v6701 = vadd.f32 0.0, %v6700
      %v6702 = vpop.f32.mrb[0].mxu0
      %v6703 = vpop.f32.mrb[0].mxu0
      %v6704 = vadd.f32 0.0, %v6703
      %v6705 = vpop.f32.mrb[0].mxu0
      %6706 = vdwg.mxu0
      %6707 = vmatprep.subr.bf16.mxu0 0
      %6708 = vmatpush1.bf16.msra.mxu0 %v1761
      %6709 = vmatprep.subr.bf16.mxu0 0
      %6710 = vmatpush1.bf16.msra.mxu0 %v1764
      %6711 = vmatprep.subr.bf16.mxu0 0
      %6712 = vmatpush1.bf16.msra.mxu0 %v1767
      %6713 = vmatprep.subr.bf16.mxu0 0
      %6714 = vmatpush1.bf16.msra.mxu0 %v1770
      %6715 = vmatprep.subr.bf16.mxu0 0
      %6716 = vmatpush1.bf16.msra.mxu0 %v1773
      %6717 = vmatprep.subr.bf16.mxu0 0
      %6718 = vmatpush1.bf16.msra.mxu0 %v1776
      %6719 = vmatprep.subr.bf16.mxu0 0
      %6720 = vmatpush1.bf16.msra.mxu0 %v1779
      %6721 = vmatprep.subr.bf16.mxu0 0
      %6722 = vmatpush1.bf16.msra.mxu0 %v1782
      %6723 = vmatprep.subr.bf16.mxu0 0
      %6724 = vmatpush1.bf16.msra.mxu0 %v1785
      %6725 = vmatprep.subr.bf16.mxu0 0
      %6726 = vmatpush1.bf16.msra.mxu0 %v1788
      %6727 = vmatprep.subr.bf16.mxu0 0
      %6728 = vmatpush1.bf16.msra.mxu0 %v1791
      %6729 = vmatprep.subr.bf16.mxu0 0
      %6730 = vmatpush1.bf16.msra.mxu0 %v1794
      %6731 = vmatprep.subr.bf16.mxu0 0
      %6732 = vmatpush1.bf16.msra.mxu0 %v1797
      %6733 = vmatprep.subr.bf16.mxu0 0
      %6734 = vmatpush1.bf16.msra.mxu0 %v1800
      %6735 = vmatprep.subr.bf16.mxu0 0
      %6736 = vmatpush1.bf16.msra.mxu0 %v1803
      %6737 = vmatprep.subr.bf16.mxu0 0
      %6738 = vmatpush1.bf16.msra.mxu0 %v1806
      %6739 = vmatprep.mubr.bf16.mxu0 %v6340
      %6740 = vmatmul.mubr.bf16.gmra.mrb[0].mxu0 %v6339
      %v6741 = vpop.f32.mrb[0].mxu0
      %v6742 = vadd.f32 %v6701, %v6741
      %v6743 = vpop.f32.mrb[0].mxu0
      %v6744 = vpop.f32.mrb[0].mxu0
      %v6745 = vadd.f32 %v6704, %v6744
      %v6746 = vpop.f32.mrb[0].mxu0
      %6747 = vdwg.mxu0
      %6748 = vmatprep.subr.bf16.mxu0 0
      %6749 = vmatpush1.bf16.msra.mxu0 %v1809
      %6750 = vmatprep.subr.bf16.mxu0 0
      %6751 = vmatpush1.bf16.msra.mxu0 %v1812
      %6752 = vmatprep.subr.bf16.mxu0 0
      %6753 = vmatpush1.bf16.msra.mxu0 %v1815
      %6754 = vmatprep.subr.bf16.mxu0 0
      %6755 = vmatpush1.bf16.msra.mxu0 %v1818
      %6756 = vmatprep.subr.bf16.mxu0 0
      %6757 = vmatpush1.bf16.msra.mxu0 %v1821
      %6758 = vmatprep.subr.bf16.mxu0 0
      %6759 = vmatpush1.bf16.msra.mxu0 %v1824
      %6760 = vmatprep.subr.bf16.mxu0 0
      %6761 = vmatpush1.bf16.msra.mxu0 %v1827
      %6762 = vmatprep.subr.bf16.mxu0 0
      %6763 = vmatpush1.bf16.msra.mxu0 %v1830
      %6764 = vmatprep.subr.bf16.mxu0 0
      %6765 = vmatpush1.bf16.msra.mxu0 %v1833
      %6766 = vmatprep.subr.bf16.mxu0 0
      %6767 = vmatpush1.bf16.msra.mxu0 %v1836
      %6768 = vmatprep.subr.bf16.mxu0 0
      %6769 = vmatpush1.bf16.msra.mxu0 %v1839
      %6770 = vmatprep.subr.bf16.mxu0 0
      %6771 = vmatpush1.bf16.msra.mxu0 %v1842
      %6772 = vmatprep.subr.bf16.mxu0 0
      %6773 = vmatpush1.bf16.msra.mxu0 %v1845
      %6774 = vmatprep.subr.bf16.mxu0 0
      %6775 = vmatpush1.bf16.msra.mxu0 %v1848
      %6776 = vmatprep.subr.bf16.mxu0 0
      %6777 = vmatpush1.bf16.msra.mxu0 %v1851
      %6778 = vmatprep.subr.bf16.mxu0 0
      %6779 = vmatpush1.bf16.msra.mxu0 %v1854
      %6780 = vmatprep.mubr.bf16.mxu0 %v6342
      %6781 = vmatmul.mubr.bf16.gmra.mrb[0].mxu0 %v6341
      %v6782 = vpop.f32.mrb[0].mxu0
      %v6783 = vadd.f32 %v6742, %v6782
      %v6784 = vpop.f32.mrb[0].mxu0
      %v6785 = vpop.f32.mrb[0].mxu0
      %v6786 = vadd.f32 %v6745, %v6785
      %v6787 = vpop.f32.mrb[0].mxu0
      %6788 = vdwg.mxu0
      %6789 = vmatprep.subr.bf16.mxu0 0
      %6790 = vmatpush1.bf16.msra.mxu0 %v1857
      %6791 = vmatprep.subr.bf16.mxu0 0
      %6792 = vmatpush1.bf16.msra.mxu0 %v1860
      %6793 = vmatprep.subr.bf16.mxu0 0
      %6794 = vmatpush1.bf16.msra.mxu0 %v1863
      %6795 = vmatprep.subr.bf16.mxu0 0
      %6796 = vmatpush1.bf16.msra.mxu0 %v1866
      %6797 = vmatprep.subr.bf16.mxu0 0
      %6798 = vmatpush1.bf16.msra.mxu0 %v1869
      %6799 = vmatprep.subr.bf16.mxu0 0
      %6800 = vmatpush1.bf16.msra.mxu0 %v1872
      %6801 = vmatprep.subr.bf16.mxu0 0
      %6802 = vmatpush1.bf16.msra.mxu0 %v1875
      %6803 = vmatprep.subr.bf16.mxu0 0
      %6804 = vmatpush1.bf16.msra.mxu0 %v1878
      %6805 = vmatprep.subr.bf16.mxu0 0
      %6806 = vmatpush1.bf16.msra.mxu0 %v1881
      %6807 = vmatprep.subr.bf16.mxu0 0
      %6808 = vmatpush1.bf16.msra.mxu0 %v1884
      %6809 = vmatprep.subr.bf16.mxu0 0
      %6810 = vmatpush1.bf16.msra.mxu0 %v1887
      %6811 = vmatprep.subr.bf16.mxu0 0
      %6812 = vmatpush1.bf16.msra.mxu0 %v1890
      %6813 = vmatprep.subr.bf16.mxu0 0
      %6814 = vmatpush1.bf16.msra.mxu0 %v1893
      %6815 = vmatprep.subr.bf16.mxu0 0
      %6816 = vmatpush1.bf16.msra.mxu0 %v1896
      %6817 = vmatprep.subr.bf16.mxu0 0
      %6818 = vmatpush1.bf16.msra.mxu0 %v1899
      %6819 = vmatprep.subr.bf16.mxu0 0
      %6820 = vmatpush1.bf16.msra.mxu0 %v1902
      %6821 = vmatprep.mubr.bf16.mxu0 %v6344
      %6822 = vmatmul.mubr.bf16.gmra.mrb[0].mxu0 %v6343
      %v6823 = vpop.f32.mrb[0].mxu0
      %v6824 = vadd.f32 %v6783, %v6823
      %v6825 = vpop.f32.mrb[0].mxu0
      %v6826 = vpop.f32.mrb[0].mxu0
      %v6827 = vadd.f32 %v6786, %v6826
      %v6828 = vpop.f32.mrb[0].mxu0
      %6829 = vdwg.mxu0
      %6830 = vmatprep.subr.bf16.mxu0 0
      %6831 = vmatpush1.bf16.msra.mxu0 %v1905
      %6832 = vmatprep.subr.bf16.mxu0 0
      %6833 = vmatpush1.bf16.msra.mxu0 %v1908
      %6834 = vmatprep.subr.bf16.mxu0 0
      %6835 = vmatpush1.bf16.msra.mxu0 %v1911
      %6836 = vmatprep.subr.bf16.mxu0 0
      %6837 = vmatpush1.bf16.msra.mxu0 %v1914
      %6838 = vmatprep.subr.bf16.mxu0 0
      %6839 = vmatpush1.bf16.msra.mxu0 %v1917
      %6840 = vmatprep.subr.bf16.mxu0 0
      %6841 = vmatpush1.bf16.msra.mxu0 %v1920
      %6842 = vmatprep.subr.bf16.mxu0 0
      %6843 = vmatpush1.bf16.msra.mxu0 %v1923
      %6844 = vmatprep.subr.bf16.mxu0 0
      %6845 = vmatpush1.bf16.msra.mxu0 %v1926
      %6846 = vmatprep.subr.bf16.mxu0 0
      %6847 = vmatpush1.bf16.msra.mxu0 %v1929
      %6848 = vmatprep.subr.bf16.mxu0 0
      %6849 = vmatpush1.bf16.msra.mxu0 %v1932
      %6850 = vmatprep.subr.bf16.mxu0 0
      %6851 = vmatpush1.bf16.msra.mxu0 %v1935
      %6852 = vmatprep.subr.bf16.mxu0 0
      %6853 = vmatpush1.bf16.msra.mxu0 %v1938
      %6854 = vmatprep.subr.bf16.mxu0 0
      %6855 = vmatpush1.bf16.msra.mxu0 %v1941
      %6856 = vmatprep.subr.bf16.mxu0 0
      %6857 = vmatpush1.bf16.msra.mxu0 %v1944
      %6858 = vmatprep.subr.bf16.mxu0 0
      %6859 = vmatpush1.bf16.msra.mxu0 %v1947
      %6860 = vmatprep.subr.bf16.mxu0 0
      %6861 = vmatpush1.bf16.msra.mxu0 %v1950
      %6862 = vmatprep.mubr.bf16.mxu0 %v6346
      %6863 = vmatmul.mubr.bf16.gmra.mrb[0].mxu0 %v6345
      %v6864 = vpop.f32.mrb[0].mxu0
      %v6865 = vadd.f32 %v6824, %v6864
      %v6866 = vpop.f32.mrb[0].mxu0
      %v6867 = vpop.f32.mrb[0].mxu0
      %v6868 = vadd.f32 %v6827, %v6867
      %v6869 = vpop.f32.mrb[0].mxu0
      %6870 = vdwg.mxu0
      %6871 = vmatprep.subr.bf16.mxu0 0
      %6872 = vmatpush1.bf16.msra.mxu0 %v1953
      %6873 = vmatprep.subr.bf16.mxu0 0
      %6874 = vmatpush1.bf16.msra.mxu0 %v1956
      %6875 = vmatprep.subr.bf16.mxu0 0
      %6876 = vmatpush1.bf16.msra.mxu0 %v1959
      %6877 = vmatprep.subr.bf16.mxu0 0
      %6878 = vmatpush1.bf16.msra.mxu0 %v1962
      %6879 = vmatprep.subr.bf16.mxu0 0
      %6880 = vmatpush1.bf16.msra.mxu0 %v1965
      %6881 = vmatprep.subr.bf16.mxu0 0
      %6882 = vmatpush1.bf16.msra.mxu0 %v1968
      %6883 = vmatprep.subr.bf16.mxu0 0
      %6884 = vmatpush1.bf16.msra.mxu0 %v1971
      %6885 = vmatprep.subr.bf16.mxu0 0
      %6886 = vmatpush1.bf16.msra.mxu0 %v1974
      %6887 = vmatprep.subr.bf16.mxu0 0
      %6888 = vmatpush1.bf16.msra.mxu0 %v1977
      %6889 = vmatprep.subr.bf16.mxu0 0
      %6890 = vmatpush1.bf16.msra.mxu0 %v1980
      %6891 = vmatprep.subr.bf16.mxu0 0
      %6892 = vmatpush1.bf16.msra.mxu0 %v1983
      %6893 = vmatprep.subr.bf16.mxu0 0
      %6894 = vmatpush1.bf16.msra.mxu0 %v1986
      %6895 = vmatprep.subr.bf16.mxu0 0
      %6896 = vmatpush1.bf16.msra.mxu0 %v1989
      %6897 = vmatprep.subr.bf16.mxu0 0
      %6898 = vmatpush1.bf16.msra.mxu0 %v1992
      %6899 = vmatprep.subr.bf16.mxu0 0
      %6900 = vmatpush1.bf16.msra.mxu0 %v1995
      %6901 = vmatprep.subr.bf16.mxu0 0
      %6902 = vmatpush1.bf16.msra.mxu0 %v1998
      %6903 = vmatprep.mubr.bf16.mxu0 %v6348
      %6904 = vmatmul.mubr.bf16.gmra.mrb[0].mxu0 %v6347
      %v6905 = vpop.f32.mrb[0].mxu0
      %v6906 = vadd.f32 %v6865, %v6905
      %v6907 = vpop.f32.mrb[0].mxu0
      %v6908 = vpop.f32.mrb[0].mxu0
      %v6909 = vadd.f32 %v6868, %v6908
      %v6910 = vpop.f32.mrb[0].mxu0
      %6911 = vdwg.mxu0
      %6912 = vmatprep.subr.bf16.mxu0 0
      %6913 = vmatpush1.bf16.msra.mxu0 %v2001
      %6914 = vmatprep.subr.bf16.mxu0 0
      %6915 = vmatpush1.bf16.msra.mxu0 %v2004
      %6916 = vmatprep.subr.bf16.mxu0 0
      %6917 = vmatpush1.bf16.msra.mxu0 %v2007
      %6918 = vmatprep.subr.bf16.mxu0 0
      %6919 = vmatpush1.bf16.msra.mxu0 %v2010
      %6920 = vmatprep.subr.bf16.mxu0 0
      %6921 = vmatpush1.bf16.msra.mxu0 0
      %6922 = vmatprep.subr.bf16.mxu0 0
      %6923 = vmatpush1.bf16.msra.mxu0 0
      %6924 = vmatprep.subr.bf16.mxu0 0
      %6925 = vmatpush1.bf16.msra.mxu0 0
      %6926 = vmatprep.subr.bf16.mxu0 0
      %6927 = vmatpush1.bf16.msra.mxu0 0
      %6928 = vmatprep.subr.bf16.mxu0 0
      %6929 = vmatpush1.bf16.msra.mxu0 0
      %6930 = vmatprep.subr.bf16.mxu0 0
      %6931 = vmatpush1.bf16.msra.mxu0 0
      %6932 = vmatprep.subr.bf16.mxu0 0
      %6933 = vmatpush1.bf16.msra.mxu0 0
      %6934 = vmatprep.subr.bf16.mxu0 0
      %6935 = vmatpush1.bf16.msra.mxu0 0
      %6936 = vmatprep.subr.bf16.mxu0 0
      %6937 = vmatpush1.bf16.msra.mxu0 0
      %6938 = vmatprep.subr.bf16.mxu0 0
      %6939 = vmatpush1.bf16.msra.mxu0 0
      %6940 = vmatprep.subr.bf16.mxu0 0
      %6941 = vmatpush1.bf16.msra.mxu0 0
      %6942 = vmatprep.subr.bf16.mxu0 0
      %6943 = vmatpush1.bf16.msra.mxu0 0
      %6944 = vmatprep.mubr.bf16.mxu0 0
      %6945 = vmatmul.mubr.bf16.gmra.mrb[0].mxu0 %v6363
      %v6946 = vpop.f32.mrb[0].mxu0
      %v6947 = vadd.f32 %v6906, %v6946
      %v6948 = vpop.f32.mrb[0].mxu0
      %v6949 = vpop.f32.mrb[0].mxu0
      %v6950 = vadd.f32 %v6909, %v6949
      %v6951 = vpop.f32.mrb[0].mxu0
      %6952 = vdwg.mxu0
      %v6953 = vmax.f32 %v6277, %v6658
      %v6954 = vmax.f32 %v6278, %v6660
      %v6955 = vmax.f32 %v6279, %v6947
      %v6956 = vmax.f32 %v6280, %v6662
      %v6957 = vmax.f32 %v6281, %v6664
      %v6958 = vmax.f32 %v6282, %v6950
      %v6959 = vld [vmem:[%s223 + $0x2d8] sm:$0xff]
      %v6960 = vld [vmem:[%s223 + $0x2e0] sm:$0xff]
      %v6961 = vld [vmem:[%s223 + $0x2e8] sm:$0xff]
      %v6962 = vld [vmem:[%s223 + $0x2f0] sm:$0xff]
      %v6963 = vld [vmem:[%s223 + $0x2f8] sm:$0xff]
      %v6964 = vld [vmem:[%s223 + $0x300] sm:$0xff]
      %v6965 = vld [vmem:[%s223 + $0x308] sm:$0xf]
      %v6966 = vld [vmem:[%s223 + $0x30c] sm:$0xff]
      %v6967 = vld [vmem:[%s223 + $0x314] sm:$0xff]
      %v6968 = vld [vmem:[%s223 + $0x31c] sm:$0xff]
      %v6969 = vld [vmem:[%s223 + $0x324] sm:$0xff]
      %v6970 = vld [vmem:[%s223 + $0x32c] sm:$0xff]
      %v6971 = vld [vmem:[%s223 + $0x334] sm:$0xff]
      %v6972 = vld [vmem:[%s223 + $0x33c] sm:$0xf]
      %v6987 = vunpack.c.l.b16 %v6959
      %v6988 = vunpack.c.h.b16 %v6959
      %v6989 = vunpack.c.l.b16 %v6960
      %v6990 = vunpack.c.h.b16 %v6960
      %v6991 = vunpack.c.l.b16 %v6961
      %v6992 = vunpack.c.h.b16 %v6961
      %v6993 = vunpack.c.l.b16 %v6962
      %v6994 = vunpack.c.h.b16 %v6962
      %v6995 = vunpack.c.l.b16 %v6963
      %v6996 = vunpack.c.h.b16 %v6963
      %v6997 = vunpack.c.l.b16 %v6964
      %v6998 = vunpack.c.h.b16 %v6964
      %v6999 = vunpack.c.l.b16 %v6965
      %v7000 = vunpack.c.l.b16 %v6966
      %v7001 = vunpack.c.h.b16 %v6966
      %v7002 = vunpack.c.l.b16 %v6967
      %v7003 = vunpack.c.h.b16 %v6967
      %v7004 = vunpack.c.l.b16 %v6968
      %v7005 = vunpack.c.h.b16 %v6968
      %v7006 = vunpack.c.l.b16 %v6969
      %v7007 = vunpack.c.h.b16 %v6969
      %v7008 = vunpack.c.l.b16 %v6970
      %v7009 = vunpack.c.h.b16 %v6970
      %v7010 = vunpack.c.l.b16 %v6971
      %v7011 = vunpack.c.h.b16 %v6971
      %v7012 = vunpack.c.l.b16 %v6972
      %v7013 = vpack.c.b16 %v7000, %v6987
      %v7014 = vpack.c.b16 %v7001, %v6988
      %v7015 = vpack.c.b16 %v7002, %v6989
      %v7016 = vpack.c.b16 %v7003, %v6990
      %v7017 = vpack.c.b16 %v7004, %v6991
      %v7018 = vpack.c.b16 %v7005, %v6992
      %v7019 = vpack.c.b16 %v7006, %v6993
      %v7020 = vpack.c.b16 %v7007, %v6994
      %v7021 = vpack.c.b16 %v7008, %v6995
      %v7022 = vpack.c.b16 %v7009, %v6996
      %v7023 = vpack.c.b16 %v7010, %v6997
      %v7024 = vpack.c.b16 %v7011, %v6998
      %v7025 = vpack.c.b16 %v7012, %v6999
      %v7039 = vsel %vm2311, %v7025, 0
      %7041 = vmatprep.subr.bf16.mxu0 %v1712
      %7042 = vmatpush1.bf16.msra.mxu0 %v1711
      %7043 = vmatprep.subr.bf16.mxu0 %v1715
      %7044 = vmatpush1.bf16.msra.mxu0 %v1714
      %7045 = vmatprep.subr.bf16.mxu0 %v1718
      %7046 = vmatpush1.bf16.msra.mxu0 %v1717
      %7047 = vmatprep.subr.bf16.mxu0 %v1721
      %7048 = vmatpush1.bf16.msra.mxu0 %v1720
      %7049 = vmatprep.subr.bf16.mxu0 %v1724
      %7050 = vmatpush1.bf16.msra.mxu0 %v1723
      %7051 = vmatprep.subr.bf16.mxu0 %v1727
      %7052 = vmatpush1.bf16.msra.mxu0 %v1726
      %7053 = vmatprep.subr.bf16.mxu0 %v1730
      %7054 = vmatpush1.bf16.msra.mxu0 %v1729
      %7055 = vmatprep.subr.bf16.mxu0 %v1733
      %7056 = vmatpush1.bf16.msra.mxu0 %v1732
      %7057 = vmatprep.subr.bf16.mxu0 %v1736
      %7058 = vmatpush1.bf16.msra.mxu0 %v1735
      %7059 = vmatprep.subr.bf16.mxu0 %v1739
      %7060 = vmatpush1.bf16.msra.mxu0 %v1738
      %7061 = vmatprep.subr.bf16.mxu0 %v1742
      %7062 = vmatpush1.bf16.msra.mxu0 %v1741
      %7063 = vmatprep.subr.bf16.mxu0 %v1745
      %7064 = vmatpush1.bf16.msra.mxu0 %v1744
      %7065 = vmatprep.subr.bf16.mxu0 %v1748
      %7066 = vmatpush1.bf16.msra.mxu0 %v1747
      %7067 = vmatprep.subr.bf16.mxu0 %v1751
      %7068 = vmatpush1.bf16.msra.mxu0 %v1750
      %7069 = vmatprep.subr.bf16.mxu0 %v1754
      %7070 = vmatpush1.bf16.msra.mxu0 %v1753
      %7071 = vmatprep.subr.bf16.mxu0 %v1757
      %7072 = vmatpush1.bf16.msra.mxu0 %v1756
      %7073 = vmatprep.mubr.bf16.mxu0 %v7014
      %7074 = vmatmul.mubr.bf16.gmra.mrb[0].mxu0 %v7013
      %v7075 = vpop.f32.mrb[0].mxu0
      %v7076 = vadd.f32 0.0, %v7075
      %v7077 = vpop.f32.mrb[0].mxu0
      %v7078 = vadd.f32 0.0, %v7077
      %v7079 = vpop.f32.mrb[0].mxu0
      %v7080 = vadd.f32 0.0, %v7079
      %v7081 = vpop.f32.mrb[0].mxu0
      %v7082 = vadd.f32 0.0, %v7081
      %7083 = vdwg.mxu0
      %7084 = vmatprep.subr.bf16.mxu0 %v1760
      %7085 = vmatpush1.bf16.msra.mxu0 %v1759
      %7086 = vmatprep.subr.bf16.mxu0 %v1763
      %7087 = vmatpush1.bf16.msra.mxu0 %v1762
      %7088 = vmatprep.subr.bf16.mxu0 %v1766
      %7089 = vmatpush1.bf16.msra.mxu0 %v1765
      %7090 = vmatprep.subr.bf16.mxu0 %v1769
      %7091 = vmatpush1.bf16.msra.mxu0 %v1768
      %7092 = vmatprep.subr.bf16.mxu0 %v1772
      %7093 = vmatpush1.bf16.msra.mxu0 %v1771
      %7094 = vmatprep.subr.bf16.mxu0 %v1775
      %7095 = vmatpush1.bf16.msra.mxu0 %v1774
      %7096 = vmatprep.subr.bf16.mxu0 %v1778
      %7097 = vmatpush1.bf16.msra.mxu0 %v1777
      %7098 = vmatprep.subr.bf16.mxu0 %v1781
      %7099 = vmatpush1.bf16.msra.mxu0 %v1780
      %7100 = vmatprep.subr.bf16.mxu0 %v1784
      %7101 = vmatpush1.bf16.msra.mxu0 %v1783
      %7102 = vmatprep.subr.bf16.mxu0 %v1787
      %7103 = vmatpush1.bf16.msra.mxu0 %v1786
      %7104 = vmatprep.subr.bf16.mxu0 %v1790
      %7105 = vmatpush1.bf16.msra.mxu0 %v1789
      %7106 = vmatprep.subr.bf16.mxu0 %v1793
      %7107 = vmatpush1.bf16.msra.mxu0 %v1792
      %7108 = vmatprep.subr.bf16.mxu0 %v1796
      %7109 = vmatpush1.bf16.msra.mxu0 %v1795
      %7110 = vmatprep.subr.bf16.mxu0 %v1799
      %7111 = vmatpush1.bf16.msra.mxu0 %v1798
      %7112 = vmatprep.subr.bf16.mxu0 %v1802
      %7113 = vmatpush1.bf16.msra.mxu0 %v1801
      %7114 = vmatprep.subr.bf16.mxu0 %v1805
      %7115 = vmatpush1.bf16.msra.mxu0 %v1804
      %7116 = vmatprep.mubr.bf16.mxu0 %v7016
      %7117 = vmatmul.mubr.bf16.gmra.mrb[0].mxu0 %v7015
      %v7118 = vpop.f32.mrb[0].mxu0
      %v7119 = vadd.f32 %v7076, %v7118
      %v7120 = vpop.f32.mrb[0].mxu0
      %v7121 = vadd.f32 %v7078, %v7120
      %v7122 = vpop.f32.mrb[0].mxu0
      %v7123 = vadd.f32 %v7080, %v7122
      %v7124 = vpop.f32.mrb[0].mxu0
      %v7125 = vadd.f32 %v7082, %v7124
      %7126 = vdwg.mxu0
      %7127 = vmatprep.subr.bf16.mxu0 %v1808
      %7128 = vmatpush1.bf16.msra.mxu0 %v1807
      %7129 = vmatprep.subr.bf16.mxu0 %v1811
      %7130 = vmatpush1.bf16.msra.mxu0 %v1810
      %7131 = vmatprep.subr.bf16.mxu0 %v1814
      %7132 = vmatpush1.bf16.msra.mxu0 %v1813
      %7133 = vmatprep.subr.bf16.mxu0 %v1817
      %7134 = vmatpush1.bf16.msra.mxu0 %v1816
      %7135 = vmatprep.subr.bf16.mxu0 %v1820
      %7136 = vmatpush1.bf16.msra.mxu0 %v1819
      %7137 = vmatprep.subr.bf16.mxu0 %v1823
      %7138 = vmatpush1.bf16.msra.mxu0 %v1822
      %7139 = vmatprep.subr.bf16.mxu0 %v1826
      %7140 = vmatpush1.bf16.msra.mxu0 %v1825
      %7141 = vmatprep.subr.bf16.mxu0 %v1829
      %7142 = vmatpush1.bf16.msra.mxu0 %v1828
      %7143 = vmatprep.subr.bf16.mxu0 %v1832
      %7144 = vmatpush1.bf16.msra.mxu0 %v1831
      %7145 = vmatprep.subr.bf16.mxu0 %v1835
      %7146 = vmatpush1.bf16.msra.mxu0 %v1834
      %7147 = vmatprep.subr.bf16.mxu0 %v1838
      %7148 = vmatpush1.bf16.msra.mxu0 %v1837
      %7149 = vmatprep.subr.bf16.mxu0 %v1841
      %7150 = vmatpush1.bf16.msra.mxu0 %v1840
      %7151 = vmatprep.subr.bf16.mxu0 %v1844
      %7152 = vmatpush1.bf16.msra.mxu0 %v1843
      %7153 = vmatprep.subr.bf16.mxu0 %v1847
      %7154 = vmatpush1.bf16.msra.mxu0 %v1846
      %7155 = vmatprep.subr.bf16.mxu0 %v1850
      %7156 = vmatpush1.bf16.msra.mxu0 %v1849
      %7157 = vmatprep.subr.bf16.mxu0 %v1853
      %7158 = vmatpush1.bf16.msra.mxu0 %v1852
      %7159 = vmatprep.mubr.bf16.mxu0 %v7018
      %7160 = vmatmul.mubr.bf16.gmra.mrb[0].mxu0 %v7017
      %v7161 = vpop.f32.mrb[0].mxu0
      %v7162 = vadd.f32 %v7119, %v7161
      %v7163 = vpop.f32.mrb[0].mxu0
      %v7164 = vadd.f32 %v7121, %v7163
      %v7165 = vpop.f32.mrb[0].mxu0
      %v7166 = vadd.f32 %v7123, %v7165
      %v7167 = vpop.f32.mrb[0].mxu0
      %v7168 = vadd.f32 %v7125, %v7167
      %7169 = vdwg.mxu0
      %7170 = vmatprep.subr.bf16.mxu0 %v1856
      %7171 = vmatpush1.bf16.msra.mxu0 %v1855
      %7172 = vmatprep.subr.bf16.mxu0 %v1859
      %7173 = vmatpush1.bf16.msra.mxu0 %v1858
      %7174 = vmatprep.subr.bf16.mxu0 %v1862
      %7175 = vmatpush1.bf16.msra.mxu0 %v1861
      %7176 = vmatprep.subr.bf16.mxu0 %v1865
      %7177 = vmatpush1.bf16.msra.mxu0 %v1864
      %7178 = vmatprep.subr.bf16.mxu0 %v1868
      %7179 = vmatpush1.bf16.msra.mxu0 %v1867
      %7180 = vmatprep.subr.bf16.mxu0 %v1871
      %7181 = vmatpush1.bf16.msra.mxu0 %v1870
      %7182 = vmatprep.subr.bf16.mxu0 %v1874
      %7183 = vmatpush1.bf16.msra.mxu0 %v1873
      %7184 = vmatprep.subr.bf16.mxu0 %v1877
      %7185 = vmatpush1.bf16.msra.mxu0 %v1876
      %7186 = vmatprep.subr.bf16.mxu0 %v1880
      %7187 = vmatpush1.bf16.msra.mxu0 %v1879
      %7188 = vmatprep.subr.bf16.mxu0 %v1883
      %7189 = vmatpush1.bf16.msra.mxu0 %v1882
      %7190 = vmatprep.subr.bf16.mxu0 %v1886
      %7191 = vmatpush1.bf16.msra.mxu0 %v1885
      %7192 = vmatprep.subr.bf16.mxu0 %v1889
      %7193 = vmatpush1.bf16.msra.mxu0 %v1888
      %7194 = vmatprep.subr.bf16.mxu0 %v1892
      %7195 = vmatpush1.bf16.msra.mxu0 %v1891
      %7196 = vmatprep.subr.bf16.mxu0 %v1895
      %7197 = vmatpush1.bf16.msra.mxu0 %v1894
      %7198 = vmatprep.subr.bf16.mxu0 %v1898
      %7199 = vmatpush1.bf16.msra.mxu0 %v1897
      %7200 = vmatprep.subr.bf16.mxu0 %v1901
      %7201 = vmatpush1.bf16.msra.mxu0 %v1900
      %7202 = vmatprep.mubr.bf16.mxu0 %v7020
      %7203 = vmatmul.mubr.bf16.gmra.mrb[0].mxu0 %v7019
      %v7204 = vpop.f32.mrb[0].mxu0
      %v7205 = vadd.f32 %v7162, %v7204
      %v7206 = vpop.f32.mrb[0].mxu0
      %v7207 = vadd.f32 %v7164, %v7206
      %v7208 = vpop.f32.mrb[0].mxu0
      %v7209 = vadd.f32 %v7166, %v7208
      %v7210 = vpop.f32.mrb[0].mxu0
      %v7211 = vadd.f32 %v7168, %v7210
      %7212 = vdwg.mxu0
      %7213 = vmatprep.subr.bf16.mxu0 %v1904
      %7214 = vmatpush1.bf16.msra.mxu0 %v1903
      %7215 = vmatprep.subr.bf16.mxu0 %v1907
      %7216 = vmatpush1.bf16.msra.mxu0 %v1906
      %7217 = vmatprep.subr.bf16.mxu0 %v1910
      %7218 = vmatpush1.bf16.msra.mxu0 %v1909
      %7219 = vmatprep.subr.bf16.mxu0 %v1913
      %7220 = vmatpush1.bf16.msra.mxu0 %v1912
      %7221 = vmatprep.subr.bf16.mxu0 %v1916
      %7222 = vmatpush1.bf16.msra.mxu0 %v1915
      %7223 = vmatprep.subr.bf16.mxu0 %v1919
      %7224 = vmatpush1.bf16.msra.mxu0 %v1918
      %7225 = vmatprep.subr.bf16.mxu0 %v1922
      %7226 = vmatpush1.bf16.msra.mxu0 %v1921
      %7227 = vmatprep.subr.bf16.mxu0 %v1925
      %7228 = vmatpush1.bf16.msra.mxu0 %v1924
      %7229 = vmatprep.subr.bf16.mxu0 %v1928
      %7230 = vmatpush1.bf16.msra.mxu0 %v1927
      %7231 = vmatprep.subr.bf16.mxu0 %v1931
      %7232 = vmatpush1.bf16.msra.mxu0 %v1930
      %7233 = vmatprep.subr.bf16.mxu0 %v1934
      %7234 = vmatpush1.bf16.msra.mxu0 %v1933
      %7235 = vmatprep.subr.bf16.mxu0 %v1937
      %7236 = vmatpush1.bf16.msra.mxu0 %v1936
      %7237 = vmatprep.subr.bf16.mxu0 %v1940
      %7238 = vmatpush1.bf16.msra.mxu0 %v1939
      %7239 = vmatprep.subr.bf16.mxu0 %v1943
      %7240 = vmatpush1.bf16.msra.mxu0 %v1942
      %7241 = vmatprep.subr.bf16.mxu0 %v1946
      %7242 = vmatpush1.bf16.msra.mxu0 %v1945
      %7243 = vmatprep.subr.bf16.mxu0 %v1949
      %7244 = vmatpush1.bf16.msra.mxu0 %v1948
      %7245 = vmatprep.mubr.bf16.mxu0 %v7022
      %7246 = vmatmul.mubr.bf16.gmra.mrb[0].mxu0 %v7021
      %v7247 = vpop.f32.mrb[0].mxu0
      %v7248 = vadd.f32 %v7205, %v7247
      %v7249 = vpop.f32.mrb[0].mxu0
      %v7250 = vadd.f32 %v7207, %v7249
      %v7251 = vpop.f32.mrb[0].mxu0
      %v7252 = vadd.f32 %v7209, %v7251
      %v7253 = vpop.f32.mrb[0].mxu0
      %v7254 = vadd.f32 %v7211, %v7253
      %7255 = vdwg.mxu0
      %7256 = vmatprep.subr.bf16.mxu0 %v1952
      %7257 = vmatpush1.bf16.msra.mxu0 %v1951
      %7258 = vmatprep.subr.bf16.mxu0 %v1955
      %7259 = vmatpush1.bf16.msra.mxu0 %v1954
      %7260 = vmatprep.subr.bf16.mxu0 %v1958
      %7261 = vmatpush1.bf16.msra.mxu0 %v1957
      %7262 = vmatprep.subr.bf16.mxu0 %v1961
      %7263 = vmatpush1.bf16.msra.mxu0 %v1960
      %7264 = vmatprep.subr.bf16.mxu0 %v1964
      %7265 = vmatpush1.bf16.msra.mxu0 %v1963
      %7266 = vmatprep.subr.bf16.mxu0 %v1967
      %7267 = vmatpush1.bf16.msra.mxu0 %v1966
      %7268 = vmatprep.subr.bf16.mxu0 %v1970
      %7269 = vmatpush1.bf16.msra.mxu0 %v1969
      %7270 = vmatprep.subr.bf16.mxu0 %v1973
      %7271 = vmatpush1.bf16.msra.mxu0 %v1972
      %7272 = vmatprep.subr.bf16.mxu0 %v1976
      %7273 = vmatpush1.bf16.msra.mxu0 %v1975
      %7274 = vmatprep.subr.bf16.mxu0 %v1979
      %7275 = vmatpush1.bf16.msra.mxu0 %v1978
      %7276 = vmatprep.subr.bf16.mxu0 %v1982
      %7277 = vmatpush1.bf16.msra.mxu0 %v1981
      %7278 = vmatprep.subr.bf16.mxu0 %v1985
      %7279 = vmatpush1.bf16.msra.mxu0 %v1984
      %7280 = vmatprep.subr.bf16.mxu0 %v1988
      %7281 = vmatpush1.bf16.msra.mxu0 %v1987
      %7282 = vmatprep.subr.bf16.mxu0 %v1991
      %7283 = vmatpush1.bf16.msra.mxu0 %v1990
      %7284 = vmatprep.subr.bf16.mxu0 %v1994
      %7285 = vmatpush1.bf16.msra.mxu0 %v1993
      %7286 = vmatprep.subr.bf16.mxu0 %v1997
      %7287 = vmatpush1.bf16.msra.mxu0 %v1996
      %7288 = vmatprep.mubr.bf16.mxu0 %v7024
      %7289 = vmatmul.mubr.bf16.gmra.mrb[0].mxu0 %v7023
      %v7290 = vpop.f32.mrb[0].mxu0
      %v7291 = vadd.f32 %v7248, %v7290
      %v7292 = vpop.f32.mrb[0].mxu0
      %v7293 = vadd.f32 %v7250, %v7292
      %v7294 = vpop.f32.mrb[0].mxu0
      %v7295 = vadd.f32 %v7252, %v7294
      %v7296 = vpop.f32.mrb[0].mxu0
      %v7297 = vadd.f32 %v7254, %v7296
      %7298 = vdwg.mxu0
      %7299 = vmatprep.subr.bf16.mxu0 %v2000
      %7300 = vmatpush1.bf16.msra.mxu0 %v1999
      %7301 = vmatprep.subr.bf16.mxu0 %v2003
      %7302 = vmatpush1.bf16.msra.mxu0 %v2002
      %7303 = vmatprep.subr.bf16.mxu0 %v2006
      %7304 = vmatpush1.bf16.msra.mxu0 %v2005
      %7305 = vmatprep.subr.bf16.mxu0 %v2009
      %7306 = vmatpush1.bf16.msra.mxu0 %v2008
      %7307 = vmatprep.subr.bf16.mxu0 0
      %7308 = vmatpush1.bf16.msra.mxu0 0
      %7309 = vmatprep.subr.bf16.mxu0 0
      %7310 = vmatpush1.bf16.msra.mxu0 0
      %7311 = vmatprep.subr.bf16.mxu0 0
      %7312 = vmatpush1.bf16.msra.mxu0 0
      %7313 = vmatprep.subr.bf16.mxu0 0
      %7314 = vmatpush1.bf16.msra.mxu0 0
      %7315 = vmatprep.subr.bf16.mxu0 0
      %7316 = vmatpush1.bf16.msra.mxu0 0
      %7317 = vmatprep.subr.bf16.mxu0 0
      %7318 = vmatpush1.bf16.msra.mxu0 0
      %7319 = vmatprep.subr.bf16.mxu0 0
      %7320 = vmatpush1.bf16.msra.mxu0 0
      %7321 = vmatprep.subr.bf16.mxu0 0
      %7322 = vmatpush1.bf16.msra.mxu0 0
      %7323 = vmatprep.subr.bf16.mxu0 0
      %7324 = vmatpush1.bf16.msra.mxu0 0
      %7325 = vmatprep.subr.bf16.mxu0 0
      %7326 = vmatpush1.bf16.msra.mxu0 0
      %7327 = vmatprep.subr.bf16.mxu0 0
      %7328 = vmatpush1.bf16.msra.mxu0 0
      %7329 = vmatprep.subr.bf16.mxu0 0
      %7330 = vmatpush1.bf16.msra.mxu0 0
      %7331 = vmatprep.mubr.bf16.mxu0 0
      %7332 = vmatmul.mubr.bf16.gmra.mrb[0].mxu0 %v7039
      %v7333 = vpop.f32.mrb[0].mxu0
      %v7334 = vadd.f32 %v7291, %v7333
      %v7335 = vpop.f32.mrb[0].mxu0
      %v7336 = vadd.f32 %v7293, %v7335
      %v7337 = vpop.f32.mrb[0].mxu0
      %v7338 = vadd.f32 %v7295, %v7337
      %v7339 = vpop.f32.mrb[0].mxu0
      %v7340 = vadd.f32 %v7297, %v7339
      %7341 = vdwg.mxu0
      %7342 = vmatprep.subr.bf16.mxu0 0
      %7343 = vmatpush1.bf16.msra.mxu0 %v1713
      %7344 = vmatprep.subr.bf16.mxu0 0
      %7345 = vmatpush1.bf16.msra.mxu0 %v1716
      %7346 = vmatprep.subr.bf16.mxu0 0
      %7347 = vmatpush1.bf16.msra.mxu0 %v1719
      %7348 = vmatprep.subr.bf16.mxu0 0
      %7349 = vmatpush1.bf16.msra.mxu0 %v1722
      %7350 = vmatprep.subr.bf16.mxu0 0
      %7351 = vmatpush1.bf16.msra.mxu0 %v1725
      %7352 = vmatprep.subr.bf16.mxu0 0
      %7353 = vmatpush1.bf16.msra.mxu0 %v1728
      %7354 = vmatprep.subr.bf16.mxu0 0
      %7355 = vmatpush1.bf16.msra.mxu0 %v1731
      %7356 = vmatprep.subr.bf16.mxu0 0
      %7357 = vmatpush1.bf16.msra.mxu0 %v1734
      %7358 = vmatprep.subr.bf16.mxu0 0
      %7359 = vmatpush1.bf16.msra.mxu0 %v1737
      %7360 = vmatprep.subr.bf16.mxu0 0
      %7361 = vmatpush1.bf16.msra.mxu0 %v1740
      %7362 = vmatprep.subr.bf16.mxu0 0
      %7363 = vmatpush1.bf16.msra.mxu0 %v1743
      %7364 = vmatprep.subr.bf16.mxu0 0
      %7365 = vmatpush1.bf16.msra.mxu0 %v1746
      %7366 = vmatprep.subr.bf16.mxu0 0
      %7367 = vmatpush1.bf16.msra.mxu0 %v1749
      %7368 = vmatprep.subr.bf16.mxu0 0
      %7369 = vmatpush1.bf16.msra.mxu0 %v1752
      %7370 = vmatprep.subr.bf16.mxu0 0
      %7371 = vmatpush1.bf16.msra.mxu0 %v1755
      %7372 = vmatprep.subr.bf16.mxu0 0
      %7373 = vmatpush1.bf16.msra.mxu0 %v1758
      %7374 = vmatprep.mubr.bf16.mxu0 %v7014
      %7375 = vmatmul.mubr.bf16.gmra.mrb[0].mxu0 %v7013
      %v7376 = vpop.f32.mrb[0].mxu0
      %v7377 = vadd.f32 0.0, %v7376
      %v7378 = vpop.f32.mrb[0].mxu0
      %v7379 = vpop.f32.mrb[0].mxu0
      %v7380 = vadd.f32 0.0, %v7379
      %v7381 = vpop.f32.mrb[0].mxu0
      %7382 = vdwg.mxu0
      %7383 = vmatprep.subr.bf16.mxu0 0
      %7384 = vmatpush1.bf16.msra.mxu0 %v1761
      %7385 = vmatprep.subr.bf16.mxu0 0
      %7386 = vmatpush1.bf16.msra.mxu0 %v1764
      %7387 = vmatprep.subr.bf16.mxu0 0
      %7388 = vmatpush1.bf16.msra.mxu0 %v1767
      %7389 = vmatprep.subr.bf16.mxu0 0
      %7390 = vmatpush1.bf16.msra.mxu0 %v1770
      %7391 = vmatprep.subr.bf16.mxu0 0
      %7392 = vmatpush1.bf16.msra.mxu0 %v1773
      %7393 = vmatprep.subr.bf16.mxu0 0
      %7394 = vmatpush1.bf16.msra.mxu0 %v1776
      %7395 = vmatprep.subr.bf16.mxu0 0
      %7396 = vmatpush1.bf16.msra.mxu0 %v1779
      %7397 = vmatprep.subr.bf16.mxu0 0
      %7398 = vmatpush1.bf16.msra.mxu0 %v1782
      %7399 = vmatprep.subr.bf16.mxu0 0
      %7400 = vmatpush1.bf16.msra.mxu0 %v1785
      %7401 = vmatprep.subr.bf16.mxu0 0
      %7402 = vmatpush1.bf16.msra.mxu0 %v1788
      %7403 = vmatprep.subr.bf16.mxu0 0
      %7404 = vmatpush1.bf16.msra.mxu0 %v1791
      %7405 = vmatprep.subr.bf16.mxu0 0
      %7406 = vmatpush1.bf16.msra.mxu0 %v1794
      %7407 = vmatprep.subr.bf16.mxu0 0
      %7408 = vmatpush1.bf16.msra.mxu0 %v1797
      %7409 = vmatprep.subr.bf16.mxu0 0
      %7410 = vmatpush1.bf16.msra.mxu0 %v1800
      %7411 = vmatprep.subr.bf16.mxu0 0
      %7412 = vmatpush1.bf16.msra.mxu0 %v1803
      %7413 = vmatprep.subr.bf16.mxu0 0
      %7414 = vmatpush1.bf16.msra.mxu0 %v1806
      %7415 = vmatprep.mubr.bf16.mxu0 %v7016
      %7416 = vmatmul.mubr.bf16.gmra.mrb[0].mxu0 %v7015
      %v7417 = vpop.f32.mrb[0].mxu0
      %v7418 = vadd.f32 %v7377, %v7417
      %v7419 = vpop.f32.mrb[0].mxu0
      %v7420 = vpop.f32.mrb[0].mxu0
      %v7421 = vadd.f32 %v7380, %v7420
      %v7422 = vpop.f32.mrb[0].mxu0
      %7423 = vdwg.mxu0
      %7424 = vmatprep.subr.bf16.mxu0 0
      %7425 = vmatpush1.bf16.msra.mxu0 %v1809
      %7426 = vmatprep.subr.bf16.mxu0 0
      %7427 = vmatpush1.bf16.msra.mxu0 %v1812
      %7428 = vmatprep.subr.bf16.mxu0 0
      %7429 = vmatpush1.bf16.msra.mxu0 %v1815
      %7430 = vmatprep.subr.bf16.mxu0 0
      %7431 = vmatpush1.bf16.msra.mxu0 %v1818
      %7432 = vmatprep.subr.bf16.mxu0 0
      %7433 = vmatpush1.bf16.msra.mxu0 %v1821
      %7434 = vmatprep.subr.bf16.mxu0 0
      %7435 = vmatpush1.bf16.msra.mxu0 %v1824
      %7436 = vmatprep.subr.bf16.mxu0 0
      %7437 = vmatpush1.bf16.msra.mxu0 %v1827
      %7438 = vmatprep.subr.bf16.mxu0 0
      %7439 = vmatpush1.bf16.msra.mxu0 %v1830
      %7440 = vmatprep.subr.bf16.mxu0 0
      %7441 = vmatpush1.bf16.msra.mxu0 %v1833
      %7442 = vmatprep.subr.bf16.mxu0 0
      %7443 = vmatpush1.bf16.msra.mxu0 %v1836
      %7444 = vmatprep.subr.bf16.mxu0 0
      %7445 = vmatpush1.bf16.msra.mxu0 %v1839
      %7446 = vmatprep.subr.bf16.mxu0 0
      %7447 = vmatpush1.bf16.msra.mxu0 %v1842
      %7448 = vmatprep.subr.bf16.mxu0 0
      %7449 = vmatpush1.bf16.msra.mxu0 %v1845
      %7450 = vmatprep.subr.bf16.mxu0 0
      %7451 = vmatpush1.bf16.msra.mxu0 %v1848
      %7452 = vmatprep.subr.bf16.mxu0 0
      %7453 = vmatpush1.bf16.msra.mxu0 %v1851
      %7454 = vmatprep.subr.bf16.mxu0 0
      %7455 = vmatpush1.bf16.msra.mxu0 %v1854
      %7456 = vmatprep.mubr.bf16.mxu0 %v7018
      %7457 = vmatmul.mubr.bf16.gmra.mrb[0].mxu0 %v7017
      %v7458 = vpop.f32.mrb[0].mxu0
      %v7459 = vadd.f32 %v7418, %v7458
      %v7460 = vpop.f32.mrb[0].mxu0
      %v7461 = vpop.f32.mrb[0].mxu0
      %v7462 = vadd.f32 %v7421, %v7461
      %v7463 = vpop.f32.mrb[0].mxu0
      %7464 = vdwg.mxu0
      %7465 = vmatprep.subr.bf16.mxu0 0
      %7466 = vmatpush1.bf16.msra.mxu0 %v1857
      %7467 = vmatprep.subr.bf16.mxu0 0
      %7468 = vmatpush1.bf16.msra.mxu0 %v1860
      %7469 = vmatprep.subr.bf16.mxu0 0
      %7470 = vmatpush1.bf16.msra.mxu0 %v1863
      %7471 = vmatprep.subr.bf16.mxu0 0
      %7472 = vmatpush1.bf16.msra.mxu0 %v1866
      %7473 = vmatprep.subr.bf16.mxu0 0
      %7474 = vmatpush1.bf16.msra.mxu0 %v1869
      %7475 = vmatprep.subr.bf16.mxu0 0
      %7476 = vmatpush1.bf16.msra.mxu0 %v1872
      %7477 = vmatprep.subr.bf16.mxu0 0
      %7478 = vmatpush1.bf16.msra.mxu0 %v1875
      %7479 = vmatprep.subr.bf16.mxu0 0
      %7480 = vmatpush1.bf16.msra.mxu0 %v1878
      %7481 = vmatprep.subr.bf16.mxu0 0
      %7482 = vmatpush1.bf16.msra.mxu0 %v1881
      %7483 = vmatprep.subr.bf16.mxu0 0
      %7484 = vmatpush1.bf16.msra.mxu0 %v1884
      %7485 = vmatprep.subr.bf16.mxu0 0
      %7486 = vmatpush1.bf16.msra.mxu0 %v1887
      %7487 = vmatprep.subr.bf16.mxu0 0
      %7488 = vmatpush1.bf16.msra.mxu0 %v1890
      %7489 = vmatprep.subr.bf16.mxu0 0
      %7490 = vmatpush1.bf16.msra.mxu0 %v1893
      %7491 = vmatprep.subr.bf16.mxu0 0
      %7492 = vmatpush1.bf16.msra.mxu0 %v1896
      %7493 = vmatprep.subr.bf16.mxu0 0
      %7494 = vmatpush1.bf16.msra.mxu0 %v1899
      %7495 = vmatprep.subr.bf16.mxu0 0
      %7496 = vmatpush1.bf16.msra.mxu0 %v1902
      %7497 = vmatprep.mubr.bf16.mxu0 %v7020
      %7498 = vmatmul.mubr.bf16.gmra.mrb[0].mxu0 %v7019
      %v7499 = vpop.f32.mrb[0].mxu0
      %v7500 = vadd.f32 %v7459, %v7499
      %v7501 = vpop.f32.mrb[0].mxu0
      %v7502 = vpop.f32.mrb[0].mxu0
      %v7503 = vadd.f32 %v7462, %v7502
      %v7504 = vpop.f32.mrb[0].mxu0
      %7505 = vdwg.mxu0
      %7506 = vmatprep.subr.bf16.mxu0 0
      %7507 = vmatpush1.bf16.msra.mxu0 %v1905
      %7508 = vmatprep.subr.bf16.mxu0 0
      %7509 = vmatpush1.bf16.msra.mxu0 %v1908
      %7510 = vmatprep.subr.bf16.mxu0 0
      %7511 = vmatpush1.bf16.msra.mxu0 %v1911
      %7512 = vmatprep.subr.bf16.mxu0 0
      %7513 = vmatpush1.bf16.msra.mxu0 %v1914
      %7514 = vmatprep.subr.bf16.mxu0 0
      %7515 = vmatpush1.bf16.msra.mxu0 %v1917
      %7516 = vmatprep.subr.bf16.mxu0 0
      %7517 = vmatpush1.bf16.msra.mxu0 %v1920
      %7518 = vmatprep.subr.bf16.mxu0 0
      %7519 = vmatpush1.bf16.msra.mxu0 %v1923
      %7520 = vmatprep.subr.bf16.mxu0 0
      %7521 = vmatpush1.bf16.msra.mxu0 %v1926
      %7522 = vmatprep.subr.bf16.mxu0 0
      %7523 = vmatpush1.bf16.msra.mxu0 %v1929
      %7524 = vmatprep.subr.bf16.mxu0 0
      %7525 = vmatpush1.bf16.msra.mxu0 %v1932
      %7526 = vmatprep.subr.bf16.mxu0 0
      %7527 = vmatpush1.bf16.msra.mxu0 %v1935
      %7528 = vmatprep.subr.bf16.mxu0 0
      %7529 = vmatpush1.bf16.msra.mxu0 %v1938
      %7530 = vmatprep.subr.bf16.mxu0 0
      %7531 = vmatpush1.bf16.msra.mxu0 %v1941
      %7532 = vmatprep.subr.bf16.mxu0 0
      %7533 = vmatpush1.bf16.msra.mxu0 %v1944
      %7534 = vmatprep.subr.bf16.mxu0 0
      %7535 = vmatpush1.bf16.msra.mxu0 %v1947
      %7536 = vmatprep.subr.bf16.mxu0 0
      %7537 = vmatpush1.bf16.msra.mxu0 %v1950
      %7538 = vmatprep.mubr.bf16.mxu0 %v7022
      %7539 = vmatmul.mubr.bf16.gmra.mrb[0].mxu0 %v7021
      %v7540 = vpop.f32.mrb[0].mxu0
      %v7541 = vadd.f32 %v7500, %v7540
      %v7542 = vpop.f32.mrb[0].mxu0
      %v7543 = vpop.f32.mrb[0].mxu0
      %v7544 = vadd.f32 %v7503, %v7543
      %v7545 = vpop.f32.mrb[0].mxu0
      %7546 = vdwg.mxu0
      %7547 = vmatprep.subr.bf16.mxu0 0
      %7548 = vmatpush1.bf16.msra.mxu0 %v1953
      %7549 = vmatprep.subr.bf16.mxu0 0
      %7550 = vmatpush1.bf16.msra.mxu0 %v1956
      %7551 = vmatprep.subr.bf16.mxu0 0
      %7552 = vmatpush1.bf16.msra.mxu0 %v1959
      %7553 = vmatprep.subr.bf16.mxu0 0
      %7554 = vmatpush1.bf16.msra.mxu0 %v1962
      %7555 = vmatprep.subr.bf16.mxu0 0
      %7556 = vmatpush1.bf16.msra.mxu0 %v1965
      %7557 = vmatprep.subr.bf16.mxu0 0
      %7558 = vmatpush1.bf16.msra.mxu0 %v1968
      %7559 = vmatprep.subr.bf16.mxu0 0
      %7560 = vmatpush1.bf16.msra.mxu0 %v1971
      %7561 = vmatprep.subr.bf16.mxu0 0
      %7562 = vmatpush1.bf16.msra.mxu0 %v1974
      %7563 = vmatprep.subr.bf16.mxu0 0
      %7564 = vmatpush1.bf16.msra.mxu0 %v1977
      %7565 = vmatprep.subr.bf16.mxu0 0
      %7566 = vmatpush1.bf16.msra.mxu0 %v1980
      %7567 = vmatprep.subr.bf16.mxu0 0
      %7568 = vmatpush1.bf16.msra.mxu0 %v1983
      %7569 = vmatprep.subr.bf16.mxu0 0
      %7570 = vmatpush1.bf16.msra.mxu0 %v1986
      %7571 = vmatprep.subr.bf16.mxu0 0
      %7572 = vmatpush1.bf16.msra.mxu0 %v1989
      %7573 = vmatprep.subr.bf16.mxu0 0
      %7574 = vmatpush1.bf16.msra.mxu0 %v1992
      %7575 = vmatprep.subr.bf16.mxu0 0
      %7576 = vmatpush1.bf16.msra.mxu0 %v1995
      %7577 = vmatprep.subr.bf16.mxu0 0
      %7578 = vmatpush1.bf16.msra.mxu0 %v1998
      %7579 = vmatprep.mubr.bf16.mxu0 %v7024
      %7580 = vmatmul.mubr.bf16.gmra.mrb[0].mxu0 %v7023
      %v7581 = vpop.f32.mrb[0].mxu0
      %v7582 = vadd.f32 %v7541, %v7581
      %v7583 = vpop.f32.mrb[0].mxu0
      %v7584 = vpop.f32.mrb[0].mxu0
      %v7585 = vadd.f32 %v7544, %v7584
      %v7586 = vpop.f32.mrb[0].mxu0
      %7587 = vdwg.mxu0
      %7588 = vmatprep.subr.bf16.mxu0 0
      %7589 = vmatpush1.bf16.msra.mxu0 %v2001
      %7590 = vmatprep.subr.bf16.mxu0 0
      %7591 = vmatpush1.bf16.msra.mxu0 %v2004
      %7592 = vmatprep.subr.bf16.mxu0 0
      %7593 = vmatpush1.bf16.msra.mxu0 %v2007
      %7594 = vmatprep.subr.bf16.mxu0 0
      %7595 = vmatpush1.bf16.msra.mxu0 %v2010
      %7596 = vmatprep.subr.bf16.mxu0 0
      %7597 = vmatpush1.bf16.msra.mxu0 0
      %7598 = vmatprep.subr.bf16.mxu0 0
      %7599 = vmatpush1.bf16.msra.mxu0 0
      %7600 = vmatprep.subr.bf16.mxu0 0
      %7601 = vmatpush1.bf16.msra.mxu0 0
      %7602 = vmatprep.subr.bf16.mxu0 0
      %7603 = vmatpush1.bf16.msra.mxu0 0
      %7604 = vmatprep.subr.bf16.mxu0 0
      %7605 = vmatpush1.bf16.msra.mxu0 0
      %7606 = vmatprep.subr.bf16.mxu0 0
      %7607 = vmatpush1.bf16.msra.mxu0 0
      %7608 = vmatprep.subr.bf16.mxu0 0
      %7609 = vmatpush1.bf16.msra.mxu0 0
      %7610 = vmatprep.subr.bf16.mxu0 0
      %7611 = vmatpush1.bf16.msra.mxu0 0
      %7612 = vmatprep.subr.bf16.mxu0 0
      %7613 = vmatpush1.bf16.msra.mxu0 0
      %7614 = vmatprep.subr.bf16.mxu0 0
      %7615 = vmatpush1.bf16.msra.mxu0 0
      %7616 = vmatprep.subr.bf16.mxu0 0
      %7617 = vmatpush1.bf16.msra.mxu0 0
      %7618 = vmatprep.subr.bf16.mxu0 0
      %7619 = vmatpush1.bf16.msra.mxu0 0
      %7620 = vmatprep.mubr.bf16.mxu0 0
      %7621 = vmatmul.mubr.bf16.gmra.mrb[0].mxu0 %v7039
      %v7622 = vpop.f32.mrb[0].mxu0
      %v7623 = vadd.f32 %v7582, %v7622
      %v7624 = vpop.f32.mrb[0].mxu0
      %v7625 = vpop.f32.mrb[0].mxu0
      %v7626 = vadd.f32 %v7585, %v7625
      %v7627 = vpop.f32.mrb[0].mxu0
      %7628 = vdwg.mxu0
      %v7629 = vmax.f32 %v6953, %v7334
      %v7630 = vmax.f32 %v6954, %v7336
      %v7631 = vmax.f32 %v6955, %v7623
      %v7632 = vmax.f32 %v6956, %v7338
      %v7633 = vmax.f32 %v6957, %v7340
      %v7634 = vmax.f32 %v6958, %v7626
      %v7635 = vld [vmem:[%s223 + $0x340] sm:$0xff]
      %v7636 = vld [vmem:[%s223 + $0x348] sm:$0xff]
      %v7637 = vld [vmem:[%s223 + $0x350] sm:$0xff]
      %v7638 = vld [vmem:[%s223 + $0x358] sm:$0xff]
      %v7639 = vld [vmem:[%s223 + $0x360] sm:$0xff]
      %v7640 = vld [vmem:[%s223 + $0x368] sm:$0xff]
      %v7641 = vld [vmem:[%s223 + $0x370] sm:$0xf]
      %v7642 = vld [vmem:[%s223 + $0x374] sm:$0xff]
      %v7643 = vld [vmem:[%s223 + $0x37c] sm:$0xff]
      %v7644 = vld [vmem:[%s223 + $0x384] sm:$0xff]
      %v7645 = vld [vmem:[%s223 + $0x38c] sm:$0xff]
      %v7646 = vld [vmem:[%s223 + $0x394] sm:$0xff]
      %v7647 = vld [vmem:[%s223 + $0x39c] sm:$0xff]
      %v7648 = vld [vmem:[%s223 + $0x3a4] sm:$0xf]
      %v7663 = vunpack.c.l.b16 %v7635
      %v7664 = vunpack.c.h.b16 %v7635
      %v7665 = vunpack.c.l.b16 %v7636
      %v7666 = vunpack.c.h.b16 %v7636
      %v7667 = vunpack.c.l.b16 %v7637
      %v7668 = vunpack.c.h.b16 %v7637
      %v7669 = vunpack.c.l.b16 %v7638
      %v7670 = vunpack.c.h.b16 %v7638
      %v7671 = vunpack.c.l.b16 %v7639
      %v7672 = vunpack.c.h.b16 %v7639
      %v7673 = vunpack.c.l.b16 %v7640
      %v7674 = vunpack.c.h.b16 %v7640
      %v7675 = vunpack.c.l.b16 %v7641
      %v7676 = vunpack.c.l.b16 %v7642
      %v7677 = vunpack.c.h.b16 %v7642
      %v7678 = vunpack.c.l.b16 %v7643
      %v7679 = vunpack.c.h.b16 %v7643
      %v7680 = vunpack.c.l.b16 %v7644
      %v7681 = vunpack.c.h.b16 %v7644
      %v7682 = vunpack.c.l.b16 %v7645
      %v7683 = vunpack.c.h.b16 %v7645
      %v7684 = vunpack.c.l.b16 %v7646
      %v7685 = vunpack.c.h.b16 %v7646
      %v7686 = vunpack.c.l.b16 %v7647
      %v7687 = vunpack.c.h.b16 %v7647
      %v7688 = vunpack.c.l.b16 %v7648
      %v7689 = vpack.c.b16 %v7676, %v7663
      %v7690 = vpack.c.b16 %v7677, %v7664
      %v7691 = vpack.c.b16 %v7678, %v7665
      %v7692 = vpack.c.b16 %v7679, %v7666
      %v7693 = vpack.c.b16 %v7680, %v7667
      %v7694 = vpack.c.b16 %v7681, %v7668
      %v7695 = vpack.c.b16 %v7682, %v7669
      %v7696 = vpack.c.b16 %v7683, %v7670
      %v7697 = vpack.c.b16 %v7684, %v7671
      %v7698 = vpack.c.b16 %v7685, %v7672
      %v7699 = vpack.c.b16 %v7686, %v7673
      %v7700 = vpack.c.b16 %v7687, %v7674
      %v7701 = vpack.c.b16 %v7688, %v7675
      %v7715 = vsel %vm2311, %v7701, 0
      %7717 = vmatprep.subr.bf16.mxu0 %v1712
      %7718 = vmatpush1.bf16.msra.mxu0 %v1711
      %7719 = vmatprep.subr.bf16.mxu0 %v1715
      %7720 = vmatpush1.bf16.msra.mxu0 %v1714
      %7721 = vmatprep.subr.bf16.mxu0 %v1718
      %7722 = vmatpush1.bf16.msra.mxu0 %v1717
      %7723 = vmatprep.subr.bf16.mxu0 %v1721
      %7724 = vmatpush1.bf16.msra.mxu0 %v1720
      %7725 = vmatprep.subr.bf16.mxu0 %v1724
      %7726 = vmatpush1.bf16.msra.mxu0 %v1723
      %7727 = vmatprep.subr.bf16.mxu0 %v1727
      %7728 = vmatpush1.bf16.msra.mxu0 %v1726
      %7729 = vmatprep.subr.bf16.mxu0 %v1730
      %7730 = vmatpush1.bf16.msra.mxu0 %v1729
      %7731 = vmatprep.subr.bf16.mxu0 %v1733
      %7732 = vmatpush1.bf16.msra.mxu0 %v1732
      %7733 = vmatprep.subr.bf16.mxu0 %v1736
      %7734 = vmatpush1.bf16.msra.mxu0 %v1735
      %7735 = vmatprep.subr.bf16.mxu0 %v1739
      %7736 = vmatpush1.bf16.msra.mxu0 %v1738
      %7737 = vmatprep.subr.bf16.mxu0 %v1742
      %7738 = vmatpush1.bf16.msra.mxu0 %v1741
      %7739 = vmatprep.subr.bf16.mxu0 %v1745
      %7740 = vmatpush1.bf16.msra.mxu0 %v1744
      %7741 = vmatprep.subr.bf16.mxu0 %v1748
      %7742 = vmatpush1.bf16.msra.mxu0 %v1747
      %7743 = vmatprep.subr.bf16.mxu0 %v1751
      %7744 = vmatpush1.bf16.msra.mxu0 %v1750
      %7745 = vmatprep.subr.bf16.mxu0 %v1754
      %7746 = vmatpush1.bf16.msra.mxu0 %v1753
      %7747 = vmatprep.subr.bf16.mxu0 %v1757
      %7748 = vmatpush1.bf16.msra.mxu0 %v1756
      %7749 = vmatprep.mubr.bf16.mxu0 %v7690
      %7750 = vmatmul.mubr.bf16.gmra.mrb[0].mxu0 %v7689
      %v7751 = vpop.f32.mrb[0].mxu0
      %v7752 = vadd.f32 0.0, %v7751
      %v7753 = vpop.f32.mrb[0].mxu0
      %v7754 = vadd.f32 0.0, %v7753
      %v7755 = vpop.f32.mrb[0].mxu0
      %v7756 = vadd.f32 0.0, %v7755
      %v7757 = vpop.f32.mrb[0].mxu0
      %v7758 = vadd.f32 0.0, %v7757
      %7759 = vdwg.mxu0
      %7760 = vmatprep.subr.bf16.mxu0 %v1760
      %7761 = vmatpush1.bf16.msra.mxu0 %v1759
      %7762 = vmatprep.subr.bf16.mxu0 %v1763
      %7763 = vmatpush1.bf16.msra.mxu0 %v1762
      %7764 = vmatprep.subr.bf16.mxu0 %v1766
      %7765 = vmatpush1.bf16.msra.mxu0 %v1765
      %7766 = vmatprep.subr.bf16.mxu0 %v1769
      %7767 = vmatpush1.bf16.msra.mxu0 %v1768
      %7768 = vmatprep.subr.bf16.mxu0 %v1772
      %7769 = vmatpush1.bf16.msra.mxu0 %v1771
      %7770 = vmatprep.subr.bf16.mxu0 %v1775
      %7771 = vmatpush1.bf16.msra.mxu0 %v1774
      %7772 = vmatprep.subr.bf16.mxu0 %v1778
      %7773 = vmatpush1.bf16.msra.mxu0 %v1777
      %7774 = vmatprep.subr.bf16.mxu0 %v1781
      %7775 = vmatpush1.bf16.msra.mxu0 %v1780
      %7776 = vmatprep.subr.bf16.mxu0 %v1784
      %7777 = vmatpush1.bf16.msra.mxu0 %v1783
      %7778 = vmatprep.subr.bf16.mxu0 %v1787
      %7779 = vmatpush1.bf16.msra.mxu0 %v1786
      %7780 = vmatprep.subr.bf16.mxu0 %v1790
      %7781 = vmatpush1.bf16.msra.mxu0 %v1789
      %7782 = vmatprep.subr.bf16.mxu0 %v1793
      %7783 = vmatpush1.bf16.msra.mxu0 %v1792
      %7784 = vmatprep.subr.bf16.mxu0 %v1796
      %7785 = vmatpush1.bf16.msra.mxu0 %v1795
      %7786 = vmatprep.subr.bf16.mxu0 %v1799
      %7787 = vmatpush1.bf16.msra.mxu0 %v1798
      %7788 = vmatprep.subr.bf16.mxu0 %v1802
      %7789 = vmatpush1.bf16.msra.mxu0 %v1801
      %7790 = vmatprep.subr.bf16.mxu0 %v1805
      %7791 = vmatpush1.bf16.msra.mxu0 %v1804
      %7792 = vmatprep.mubr.bf16.mxu0 %v7692
      %7793 = vmatmul.mubr.bf16.gmra.mrb[0].mxu0 %v7691
      %v7794 = vpop.f32.mrb[0].mxu0
      %v7795 = vadd.f32 %v7752, %v7794
      %v7796 = vpop.f32.mrb[0].mxu0
      %v7797 = vadd.f32 %v7754, %v7796
      %v7798 = vpop.f32.mrb[0].mxu0
      %v7799 = vadd.f32 %v7756, %v7798
      %v7800 = vpop.f32.mrb[0].mxu0
      %v7801 = vadd.f32 %v7758, %v7800
      %7802 = vdwg.mxu0
      %7803 = vmatprep.subr.bf16.mxu0 %v1808
      %7804 = vmatpush1.bf16.msra.mxu0 %v1807
      %7805 = vmatprep.subr.bf16.mxu0 %v1811
      %7806 = vmatpush1.bf16.msra.mxu0 %v1810
      %7807 = vmatprep.subr.bf16.mxu0 %v1814
      %7808 = vmatpush1.bf16.msra.mxu0 %v1813
      %7809 = vmatprep.subr.bf16.mxu0 %v1817
      %7810 = vmatpush1.bf16.msra.mxu0 %v1816
      %7811 = vmatprep.subr.bf16.mxu0 %v1820
      %7812 = vmatpush1.bf16.msra.mxu0 %v1819
      %7813 = vmatprep.subr.bf16.mxu0 %v1823
      %7814 = vmatpush1.bf16.msra.mxu0 %v1822
      %7815 = vmatprep.subr.bf16.mxu0 %v1826
      %7816 = vmatpush1.bf16.msra.mxu0 %v1825
      %7817 = vmatprep.subr.bf16.mxu0 %v1829
      %7818 = vmatpush1.bf16.msra.mxu0 %v1828
      %7819 = vmatprep.subr.bf16.mxu0 %v1832
      %7820 = vmatpush1.bf16.msra.mxu0 %v1831
      %7821 = vmatprep.subr.bf16.mxu0 %v1835
      %7822 = vmatpush1.bf16.msra.mxu0 %v1834
      %7823 = vmatprep.subr.bf16.mxu0 %v1838
      %7824 = vmatpush1.bf16.msra.mxu0 %v1837
      %7825 = vmatprep.subr.bf16.mxu0 %v1841
      %7826 = vmatpush1.bf16.msra.mxu0 %v1840
      %7827 = vmatprep.subr.bf16.mxu0 %v1844
      %7828 = vmatpush1.bf16.msra.mxu0 %v1843
      %7829 = vmatprep.subr.bf16.mxu0 %v1847
      %7830 = vmatpush1.bf16.msra.mxu0 %v1846
      %7831 = vmatprep.subr.bf16.mxu0 %v1850
      %7832 = vmatpush1.bf16.msra.mxu0 %v1849
      %7833 = vmatprep.subr.bf16.mxu0 %v1853
      %7834 = vmatpush1.bf16.msra.mxu0 %v1852
      %7835 = vmatprep.mubr.bf16.mxu0 %v7694
      %7836 = vmatmul.mubr.bf16.gmra.mrb[0].mxu0 %v7693
      %v7837 = vpop.f32.mrb[0].mxu0
      %v7838 = vadd.f32 %v7795, %v7837
      %v7839 = vpop.f32.mrb[0].mxu0
      %v7840 = vadd.f32 %v7797, %v7839
      %v7841 = vpop.f32.mrb[0].mxu0
      %v7842 = vadd.f32 %v7799, %v7841
      %v7843 = vpop.f32.mrb[0].mxu0
      %v7844 = vadd.f32 %v7801, %v7843
      %7845 = vdwg.mxu0
      %7846 = vmatprep.subr.bf16.mxu0 %v1856
      %7847 = vmatpush1.bf16.msra.mxu0 %v1855
      %7848 = vmatprep.subr.bf16.mxu0 %v1859
      %7849 = vmatpush1.bf16.msra.mxu0 %v1858
      %7850 = vmatprep.subr.bf16.mxu0 %v1862
      %7851 = vmatpush1.bf16.msra.mxu0 %v1861
      %7852 = vmatprep.subr.bf16.mxu0 %v1865
      %7853 = vmatpush1.bf16.msra.mxu0 %v1864
      %7854 = vmatprep.subr.bf16.mxu0 %v1868
      %7855 = vmatpush1.bf16.msra.mxu0 %v1867
      %7856 = vmatprep.subr.bf16.mxu0 %v1871
      %7857 = vmatpush1.bf16.msra.mxu0 %v1870
      %7858 = vmatprep.subr.bf16.mxu0 %v1874
      %7859 = vmatpush1.bf16.msra.mxu0 %v1873
      %7860 = vmatprep.subr.bf16.mxu0 %v1877
      %7861 = vmatpush1.bf16.msra.mxu0 %v1876
      %7862 = vmatprep.subr.bf16.mxu0 %v1880
      %7863 = vmatpush1.bf16.msra.mxu0 %v1879
      %7864 = vmatprep.subr.bf16.mxu0 %v1883
      %7865 = vmatpush1.bf16.msra.mxu0 %v1882
      %7866 = vmatprep.subr.bf16.mxu0 %v1886
      %7867 = vmatpush1.bf16.msra.mxu0 %v1885
      %7868 = vmatprep.subr.bf16.mxu0 %v1889
      %7869 = vmatpush1.bf16.msra.mxu0 %v1888
      %7870 = vmatprep.subr.bf16.mxu0 %v1892
      %7871 = vmatpush1.bf16.msra.mxu0 %v1891
      %7872 = vmatprep.subr.bf16.mxu0 %v1895
      %7873 = vmatpush1.bf16.msra.mxu0 %v1894
      %7874 = vmatprep.subr.bf16.mxu0 %v1898
      %7875 = vmatpush1.bf16.msra.mxu0 %v1897
      %7876 = vmatprep.subr.bf16.mxu0 %v1901
      %7877 = vmatpush1.bf16.msra.mxu0 %v1900
      %7878 = vmatprep.mubr.bf16.mxu0 %v7696
      %7879 = vmatmul.mubr.bf16.gmra.mrb[0].mxu0 %v7695
      %v7880 = vpop.f32.mrb[0].mxu0
      %v7881 = vadd.f32 %v7838, %v7880
      %v7882 = vpop.f32.mrb[0].mxu0
      %v7883 = vadd.f32 %v7840, %v7882
      %v7884 = vpop.f32.mrb[0].mxu0
      %v7885 = vadd.f32 %v7842, %v7884
      %v7886 = vpop.f32.mrb[0].mxu0
      %v7887 = vadd.f32 %v7844, %v7886
      %7888 = vdwg.mxu0
      %7889 = vmatprep.subr.bf16.mxu0 %v1904
      %7890 = vmatpush1.bf16.msra.mxu0 %v1903
      %7891 = vmatprep.subr.bf16.mxu0 %v1907
      %7892 = vmatpush1.bf16.msra.mxu0 %v1906
      %7893 = vmatprep.subr.bf16.mxu0 %v1910
      %7894 = vmatpush1.bf16.msra.mxu0 %v1909
      %7895 = vmatprep.subr.bf16.mxu0 %v1913
      %7896 = vmatpush1.bf16.msra.mxu0 %v1912
      %7897 = vmatprep.subr.bf16.mxu0 %v1916
      %7898 = vmatpush1.bf16.msra.mxu0 %v1915
      %7899 = vmatprep.subr.bf16.mxu0 %v1919
      %7900 = vmatpush1.bf16.msra.mxu0 %v1918
      %7901 = vmatprep.subr.bf16.mxu0 %v1922
      %7902 = vmatpush1.bf16.msra.mxu0 %v1921
      %7903 = vmatprep.subr.bf16.mxu0 %v1925
      %7904 = vmatpush1.bf16.msra.mxu0 %v1924
      %7905 = vmatprep.subr.bf16.mxu0 %v1928
      %7906 = vmatpush1.bf16.msra.mxu0 %v1927
      %7907 = vmatprep.subr.bf16.mxu0 %v1931
      %7908 = vmatpush1.bf16.msra.mxu0 %v1930
      %7909 = vmatprep.subr.bf16.mxu0 %v1934
      %7910 = vmatpush1.bf16.msra.mxu0 %v1933
      %7911 = vmatprep.subr.bf16.mxu0 %v1937
      %7912 = vmatpush1.bf16.msra.mxu0 %v1936
      %7913 = vmatprep.subr.bf16.mxu0 %v1940
      %7914 = vmatpush1.bf16.msra.mxu0 %v1939
      %7915 = vmatprep.subr.bf16.mxu0 %v1943
      %7916 = vmatpush1.bf16.msra.mxu0 %v1942
      %7917 = vmatprep.subr.bf16.mxu0 %v1946
      %7918 = vmatpush1.bf16.msra.mxu0 %v1945
      %7919 = vmatprep.subr.bf16.mxu0 %v1949
      %7920 = vmatpush1.bf16.msra.mxu0 %v1948
      %7921 = vmatprep.mubr.bf16.mxu0 %v7698
      %7922 = vmatmul.mubr.bf16.gmra.mrb[0].mxu0 %v7697
      %v7923 = vpop.f32.mrb[0].mxu0
      %v7924 = vadd.f32 %v7881, %v7923
      %v7925 = vpop.f32.mrb[0].mxu0
      %v7926 = vadd.f32 %v7883, %v7925
      %v7927 = vpop.f32.mrb[0].mxu0
      %v7928 = vadd.f32 %v7885, %v7927
      %v7929 = vpop.f32.mrb[0].mxu0
      %v7930 = vadd.f32 %v7887, %v7929
      %7931 = vdwg.mxu0
      %7932 = vmatprep.subr.bf16.mxu0 %v1952
      %7933 = vmatpush1.bf16.msra.mxu0 %v1951
      %7934 = vmatprep.subr.bf16.mxu0 %v1955
      %7935 = vmatpush1.bf16.msra.mxu0 %v1954
      %7936 = vmatprep.subr.bf16.mxu0 %v1958
      %7937 = vmatpush1.bf16.msra.mxu0 %v1957
      %7938 = vmatprep.subr.bf16.mxu0 %v1961
      %7939 = vmatpush1.bf16.msra.mxu0 %v1960
      %7940 = vmatprep.subr.bf16.mxu0 %v1964
      %7941 = vmatpush1.bf16.msra.mxu0 %v1963
      %7942 = vmatprep.subr.bf16.mxu0 %v1967
      %7943 = vmatpush1.bf16.msra.mxu0 %v1966
      %7944 = vmatprep.subr.bf16.mxu0 %v1970
      %7945 = vmatpush1.bf16.msra.mxu0 %v1969
      %7946 = vmatprep.subr.bf16.mxu0 %v1973
      %7947 = vmatpush1.bf16.msra.mxu0 %v1972
      %7948 = vmatprep.subr.bf16.mxu0 %v1976
      %7949 = vmatpush1.bf16.msra.mxu0 %v1975
      %7950 = vmatprep.subr.bf16.mxu0 %v1979
      %7951 = vmatpush1.bf16.msra.mxu0 %v1978
      %7952 = vmatprep.subr.bf16.mxu0 %v1982
      %7953 = vmatpush1.bf16.msra.mxu0 %v1981
      %7954 = vmatprep.subr.bf16.mxu0 %v1985
      %7955 = vmatpush1.bf16.msra.mxu0 %v1984
      %7956 = vmatprep.subr.bf16.mxu0 %v1988
      %7957 = vmatpush1.bf16.msra.mxu0 %v1987
      %7958 = vmatprep.subr.bf16.mxu0 %v1991
      %7959 = vmatpush1.bf16.msra.mxu0 %v1990
      %7960 = vmatprep.subr.bf16.mxu0 %v1994
      %7961 = vmatpush1.bf16.msra.mxu0 %v1993
      %7962 = vmatprep.subr.bf16.mxu0 %v1997
      %7963 = vmatpush1.bf16.msra.mxu0 %v1996
      %7964 = vmatprep.mubr.bf16.mxu0 %v7700
      %7965 = vmatmul.mubr.bf16.gmra.mrb[0].mxu0 %v7699
      %v7966 = vpop.f32.mrb[0].mxu0
      %v7967 = vadd.f32 %v7924, %v7966
      %v7968 = vpop.f32.mrb[0].mxu0
      %v7969 = vadd.f32 %v7926, %v7968
      %v7970 = vpop.f32.mrb[0].mxu0
      %v7971 = vadd.f32 %v7928, %v7970
      %v7972 = vpop.f32.mrb[0].mxu0
      %v7973 = vadd.f32 %v7930, %v7972
      %7974 = vdwg.mxu0
      %7975 = vmatprep.subr.bf16.mxu0 %v2000
      %7976 = vmatpush1.bf16.msra.mxu0 %v1999
      %7977 = vmatprep.subr.bf16.mxu0 %v2003
      %7978 = vmatpush1.bf16.msra.mxu0 %v2002
      %7979 = vmatprep.subr.bf16.mxu0 %v2006
      %7980 = vmatpush1.bf16.msra.mxu0 %v2005
      %7981 = vmatprep.subr.bf16.mxu0 %v2009
      %7982 = vmatpush1.bf16.msra.mxu0 %v2008
      %7983 = vmatprep.subr.bf16.mxu0 0
      %7984 = vmatpush1.bf16.msra.mxu0 0
      %7985 = vmatprep.subr.bf16.mxu0 0
      %7986 = vmatpush1.bf16.msra.mxu0 0
      %7987 = vmatprep.subr.bf16.mxu0 0
      %7988 = vmatpush1.bf16.msra.mxu0 0
      %7989 = vmatprep.subr.bf16.mxu0 0
      %7990 = vmatpush1.bf16.msra.mxu0 0
      %7991 = vmatprep.subr.bf16.mxu0 0
      %7992 = vmatpush1.bf16.msra.mxu0 0
      %7993 = vmatprep.subr.bf16.mxu0 0
      %7994 = vmatpush1.bf16.msra.mxu0 0
      %7995 = vmatprep.subr.bf16.mxu0 0
      %7996 = vmatpush1.bf16.msra.mxu0 0
      %7997 = vmatprep.subr.bf16.mxu0 0
      %7998 = vmatpush1.bf16.msra.mxu0 0
      %7999 = vmatprep.subr.bf16.mxu0 0
      %8000 = vmatpush1.bf16.msra.mxu0 0
      %8001 = vmatprep.subr.bf16.mxu0 0
      %8002 = vmatpush1.bf16.msra.mxu0 0
      %8003 = vmatprep.subr.bf16.mxu0 0
      %8004 = vmatpush1.bf16.msra.mxu0 0
      %8005 = vmatprep.subr.bf16.mxu0 0
      %8006 = vmatpush1.bf16.msra.mxu0 0
      %8007 = vmatprep.mubr.bf16.mxu0 0
      %8008 = vmatmul.mubr.bf16.gmra.mrb[0].mxu0 %v7715
      %v8009 = vpop.f32.mrb[0].mxu0
      %v8010 = vadd.f32 %v7967, %v8009
      %v8011 = vpop.f32.mrb[0].mxu0
      %v8012 = vadd.f32 %v7969, %v8011
      %v8013 = vpop.f32.mrb[0].mxu0
      %v8014 = vadd.f32 %v7971, %v8013
      %v8015 = vpop.f32.mrb[0].mxu0
      %v8016 = vadd.f32 %v7973, %v8015
      %8017 = vdwg.mxu0
      %8018 = vmatprep.subr.bf16.mxu0 0
      %8019 = vmatpush1.bf16.msra.mxu0 %v1713
      %8020 = vmatprep.subr.bf16.mxu0 0
      %8021 = vmatpush1.bf16.msra.mxu0 %v1716
      %8022 = vmatprep.subr.bf16.mxu0 0
      %8023 = vmatpush1.bf16.msra.mxu0 %v1719
      %8024 = vmatprep.subr.bf16.mxu0 0
      %8025 = vmatpush1.bf16.msra.mxu0 %v1722
      %8026 = vmatprep.subr.bf16.mxu0 0
      %8027 = vmatpush1.bf16.msra.mxu0 %v1725
      %8028 = vmatprep.subr.bf16.mxu0 0
      %8029 = vmatpush1.bf16.msra.mxu0 %v1728
      %8030 = vmatprep.subr.bf16.mxu0 0
      %8031 = vmatpush1.bf16.msra.mxu0 %v1731
      %8032 = vmatprep.subr.bf16.mxu0 0
      %8033 = vmatpush1.bf16.msra.mxu0 %v1734
      %8034 = vmatprep.subr.bf16.mxu0 0
      %8035 = vmatpush1.bf16.msra.mxu0 %v1737
      %8036 = vmatprep.subr.bf16.mxu0 0
      %8037 = vmatpush1.bf16.msra.mxu0 %v1740
      %8038 = vmatprep.subr.bf16.mxu0 0
      %8039 = vmatpush1.bf16.msra.mxu0 %v1743
      %8040 = vmatprep.subr.bf16.mxu0 0
      %8041 = vmatpush1.bf16.msra.mxu0 %v1746
      %8042 = vmatprep.subr.bf16.mxu0 0
      %8043 = vmatpush1.bf16.msra.mxu0 %v1749
      %8044 = vmatprep.subr.bf16.mxu0 0
      %8045 = vmatpush1.bf16.msra.mxu0 %v1752
      %8046 = vmatprep.subr.bf16.mxu0 0
      %8047 = vmatpush1.bf16.msra.mxu0 %v1755
      %8048 = vmatprep.subr.bf16.mxu0 0
      %8049 = vmatpush1.bf16.msra.mxu0 %v1758
      %8050 = vmatprep.mubr.bf16.mxu0 %v7690
      %8051 = vmatmul.mubr.bf16.gmra.mrb[0].mxu0 %v7689
      %v8052 = vpop.f32.mrb[0].mxu0
      %v8053 = vadd.f32 0.0, %v8052
      %v8054 = vpop.f32.mrb[0].mxu0
      %v8055 = vpop.f32.mrb[0].mxu0
      %v8056 = vadd.f32 0.0, %v8055
      %v8057 = vpop.f32.mrb[0].mxu0
      %8058 = vdwg.mxu0
      %8059 = vmatprep.subr.bf16.mxu0 0
      %8060 = vmatpush1.bf16.msra.mxu0 %v1761
      %8061 = vmatprep.subr.bf16.mxu0 0
      %8062 = vmatpush1.bf16.msra.mxu0 %v1764
      %8063 = vmatprep.subr.bf16.mxu0 0
      %8064 = vmatpush1.bf16.msra.mxu0 %v1767
      %8065 = vmatprep.subr.bf16.mxu0 0
      %8066 = vmatpush1.bf16.msra.mxu0 %v1770
      %8067 = vmatprep.subr.bf16.mxu0 0
      %8068 = vmatpush1.bf16.msra.mxu0 %v1773
      %8069 = vmatprep.subr.bf16.mxu0 0
      %8070 = vmatpush1.bf16.msra.mxu0 %v1776
      %8071 = vmatprep.subr.bf16.mxu0 0
      %8072 = vmatpush1.bf16.msra.mxu0 %v1779
      %8073 = vmatprep.subr.bf16.mxu0 0
      %8074 = vmatpush1.bf16.msra.mxu0 %v1782
      %8075 = vmatprep.subr.bf16.mxu0 0
      %8076 = vmatpush1.bf16.msra.mxu0 %v1785
      %8077 = vmatprep.subr.bf16.mxu0 0
      %8078 = vmatpush1.bf16.msra.mxu0 %v1788
      %8079 = vmatprep.subr.bf16.mxu0 0
      %8080 = vmatpush1.bf16.msra.mxu0 %v1791
      %8081 = vmatprep.subr.bf16.mxu0 0
      %8082 = vmatpush1.bf16.msra.mxu0 %v1794
      %8083 = vmatprep.subr.bf16.mxu0 0
      %8084 = vmatpush1.bf16.msra.mxu0 %v1797
      %8085 = vmatprep.subr.bf16.mxu0 0
      %8086 = vmatpush1.bf16.msra.mxu0 %v1800
      %8087 = vmatprep.subr.bf16.mxu0 0
      %8088 = vmatpush1.bf16.msra.mxu0 %v1803
      %8089 = vmatprep.subr.bf16.mxu0 0
      %8090 = vmatpush1.bf16.msra.mxu0 %v1806
      %8091 = vmatprep.mubr.bf16.mxu0 %v7692
      %8092 = vmatmul.mubr.bf16.gmra.mrb[0].mxu0 %v7691
      %v8093 = vpop.f32.mrb[0].mxu0
      %v8094 = vadd.f32 %v8053, %v8093
      %v8095 = vpop.f32.mrb[0].mxu0
      %v8096 = vpop.f32.mrb[0].mxu0
      %v8097 = vadd.f32 %v8056, %v8096
      %v8098 = vpop.f32.mrb[0].mxu0
      %8099 = vdwg.mxu0
      %8100 = vmatprep.subr.bf16.mxu0 0
      %8101 = vmatpush1.bf16.msra.mxu0 %v1809
      %8102 = vmatprep.subr.bf16.mxu0 0
      %8103 = vmatpush1.bf16.msra.mxu0 %v1812
      %8104 = vmatprep.subr.bf16.mxu0 0
      %8105 = vmatpush1.bf16.msra.mxu0 %v1815
      %8106 = vmatprep.subr.bf16.mxu0 0
      %8107 = vmatpush1.bf16.msra.mxu0 %v1818
      %8108 = vmatprep.subr.bf16.mxu0 0
      %8109 = vmatpush1.bf16.msra.mxu0 %v1821
      %8110 = vmatprep.subr.bf16.mxu0 0
      %8111 = vmatpush1.bf16.msra.mxu0 %v1824
      %8112 = vmatprep.subr.bf16.mxu0 0
      %8113 = vmatpush1.bf16.msra.mxu0 %v1827
      %8114 = vmatprep.subr.bf16.mxu0 0
      %8115 = vmatpush1.bf16.msra.mxu0 %v1830
      %8116 = vmatprep.subr.bf16.mxu0 0
      %8117 = vmatpush1.bf16.msra.mxu0 %v1833
      %8118 = vmatprep.subr.bf16.mxu0 0
      %8119 = vmatpush1.bf16.msra.mxu0 %v1836
      %8120 = vmatprep.subr.bf16.mxu0 0
      %8121 = vmatpush1.bf16.msra.mxu0 %v1839
      %8122 = vmatprep.subr.bf16.mxu0 0
      %8123 = vmatpush1.bf16.msra.mxu0 %v1842
      %8124 = vmatprep.subr.bf16.mxu0 0
      %8125 = vmatpush1.bf16.msra.mxu0 %v1845
      %8126 = vmatprep.subr.bf16.mxu0 0
      %8127 = vmatpush1.bf16.msra.mxu0 %v1848
      %8128 = vmatprep.subr.bf16.mxu0 0
      %8129 = vmatpush1.bf16.msra.mxu0 %v1851
      %8130 = vmatprep.subr.bf16.mxu0 0
      %8131 = vmatpush1.bf16.msra.mxu0 %v1854
      %8132 = vmatprep.mubr.bf16.mxu0 %v7694
      %8133 = vmatmul.mubr.bf16.gmra.mrb[0].mxu0 %v7693
      %v8134 = vpop.f32.mrb[0].mxu0
      %v8135 = vadd.f32 %v8094, %v8134
      %v8136 = vpop.f32.mrb[0].mxu0
      %v8137 = vpop.f32.mrb[0].mxu0
      %v8138 = vadd.f32 %v8097, %v8137
      %v8139 = vpop.f32.mrb[0].mxu0
      %8140 = vdwg.mxu0
      %8141 = vmatprep.subr.bf16.mxu0 0
      %8142 = vmatpush1.bf16.msra.mxu0 %v1857
      %8143 = vmatprep.subr.bf16.mxu0 0
      %8144 = vmatpush1.bf16.msra.mxu0 %v1860
      %8145 = vmatprep.subr.bf16.mxu0 0
      %8146 = vmatpush1.bf16.msra.mxu0 %v1863
      %8147 = vmatprep.subr.bf16.mxu0 0
      %8148 = vmatpush1.bf16.msra.mxu0 %v1866
      %8149 = vmatprep.subr.bf16.mxu0 0
      %8150 = vmatpush1.bf16.msra.mxu0 %v1869
      %8151 = vmatprep.subr.bf16.mxu0 0
      %8152 = vmatpush1.bf16.msra.mxu0 %v1872
      %8153 = vmatprep.subr.bf16.mxu0 0
      %8154 = vmatpush1.bf16.msra.mxu0 %v1875
      %8155 = vmatprep.subr.bf16.mxu0 0
      %8156 = vmatpush1.bf16.msra.mxu0 %v1878
      %8157 = vmatprep.subr.bf16.mxu0 0
      %8158 = vmatpush1.bf16.msra.mxu0 %v1881
      %8159 = vmatprep.subr.bf16.mxu0 0
      %8160 = vmatpush1.bf16.msra.mxu0 %v1884
      %8161 = vmatprep.subr.bf16.mxu0 0
      %8162 = vmatpush1.bf16.msra.mxu0 %v1887
      %8163 = vmatprep.subr.bf16.mxu0 0
      %8164 = vmatpush1.bf16.msra.mxu0 %v1890
      %8165 = vmatprep.subr.bf16.mxu0 0
      %8166 = vmatpush1.bf16.msra.mxu0 %v1893
      %8167 = vmatprep.subr.bf16.mxu0 0
      %8168 = vmatpush1.bf16.msra.mxu0 %v1896
      %8169 = vmatprep.subr.bf16.mxu0 0
      %8170 = vmatpush1.bf16.msra.mxu0 %v1899
      %8171 = vmatprep.subr.bf16.mxu0 0
      %8172 = vmatpush1.bf16.msra.mxu0 %v1902
      %8173 = vmatprep.mubr.bf16.mxu0 %v7696
      %8174 = vmatmul.mubr.bf16.gmra.mrb[0].mxu0 %v7695
      %v8175 = vpop.f32.mrb[0].mxu0
      %v8176 = vadd.f32 %v8135, %v8175
      %v8177 = vpop.f32.mrb[0].mxu0
      %v8178 = vpop.f32.mrb[0].mxu0
      %v8179 = vadd.f32 %v8138, %v8178
      %v8180 = vpop.f32.mrb[0].mxu0
      %8181 = vdwg.mxu0
      %8182 = vmatprep.subr.bf16.mxu0 0
      %8183 = vmatpush1.bf16.msra.mxu0 %v1905
      %8184 = vmatprep.subr.bf16.mxu0 0
      %8185 = vmatpush1.bf16.msra.mxu0 %v1908
      %8186 = vmatprep.subr.bf16.mxu0 0
      %8187 = vmatpush1.bf16.msra.mxu0 %v1911
      %8188 = vmatprep.subr.bf16.mxu0 0
      %8189 = vmatpush1.bf16.msra.mxu0 %v1914
      %8190 = vmatprep.subr.bf16.mxu0 0
      %8191 = vmatpush1.bf16.msra.mxu0 %v1917
      %8192 = vmatprep.subr.bf16.mxu0 0
      %8193 = vmatpush1.bf16.msra.mxu0 %v1920
      %8194 = vmatprep.subr.bf16.mxu0 0
      %8195 = vmatpush1.bf16.msra.mxu0 %v1923
      %8196 = vmatprep.subr.bf16.mxu0 0
      %8197 = vmatpush1.bf16.msra.mxu0 %v1926
      %8198 = vmatprep.subr.bf16.mxu0 0
      %8199 = vmatpush1.bf16.msra.mxu0 %v1929
      %8200 = vmatprep.subr.bf16.mxu0 0
      %8201 = vmatpush1.bf16.msra.mxu0 %v1932
      %8202 = vmatprep.subr.bf16.mxu0 0
      %8203 = vmatpush1.bf16.msra.mxu0 %v1935
      %8204 = vmatprep.subr.bf16.mxu0 0
      %8205 = vmatpush1.bf16.msra.mxu0 %v1938
      %8206 = vmatprep.subr.bf16.mxu0 0
      %8207 = vmatpush1.bf16.msra.mxu0 %v1941
      %8208 = vmatprep.subr.bf16.mxu0 0
      %8209 = vmatpush1.bf16.msra.mxu0 %v1944
      %8210 = vmatprep.subr.bf16.mxu0 0
      %8211 = vmatpush1.bf16.msra.mxu0 %v1947
      %8212 = vmatprep.subr.bf16.mxu0 0
      %8213 = vmatpush1.bf16.msra.mxu0 %v1950
      %8214 = vmatprep.mubr.bf16.mxu0 %v7698
      %8215 = vmatmul.mubr.bf16.gmra.mrb[0].mxu0 %v7697
      %v8216 = vpop.f32.mrb[0].mxu0
      %v8217 = vadd.f32 %v8176, %v8216
      %v8218 = vpop.f32.mrb[0].mxu0
      %v8219 = vpop.f32.mrb[0].mxu0
      %v8220 = vadd.f32 %v8179, %v8219
      %v8221 = vpop.f32.mrb[0].mxu0
      %8222 = vdwg.mxu0
      %8223 = vmatprep.subr.bf16.mxu0 0
      %8224 = vmatpush1.bf16.msra.mxu0 %v1953
      %8225 = vmatprep.subr.bf16.mxu0 0
      %8226 = vmatpush1.bf16.msra.mxu0 %v1956
      %8227 = vmatprep.subr.bf16.mxu0 0
      %8228 = vmatpush1.bf16.msra.mxu0 %v1959
      %8229 = vmatprep.subr.bf16.mxu0 0
      %8230 = vmatpush1.bf16.msra.mxu0 %v1962
      %8231 = vmatprep.subr.bf16.mxu0 0
      %8232 = vmatpush1.bf16.msra.mxu0 %v1965
      %8233 = vmatprep.subr.bf16.mxu0 0
      %8234 = vmatpush1.bf16.msra.mxu0 %v1968
      %8235 = vmatprep.subr.bf16.mxu0 0
      %8236 = vmatpush1.bf16.msra.mxu0 %v1971
      %8237 = vmatprep.subr.bf16.mxu0 0
      %8238 = vmatpush1.bf16.msra.mxu0 %v1974
      %8239 = vmatprep.subr.bf16.mxu0 0
      %8240 = vmatpush1.bf16.msra.mxu0 %v1977
      %8241 = vmatprep.subr.bf16.mxu0 0
      %8242 = vmatpush1.bf16.msra.mxu0 %v1980
      %8243 = vmatprep.subr.bf16.mxu0 0
      %8244 = vmatpush1.bf16.msra.mxu0 %v1983
      %8245 = vmatprep.subr.bf16.mxu0 0
      %8246 = vmatpush1.bf16.msra.mxu0 %v1986
      %8247 = vmatprep.subr.bf16.mxu0 0
      %8248 = vmatpush1.bf16.msra.mxu0 %v1989
      %8249 = vmatprep.subr.bf16.mxu0 0
      %8250 = vmatpush1.bf16.msra.mxu0 %v1992
      %8251 = vmatprep.subr.bf16.mxu0 0
      %8252 = vmatpush1.bf16.msra.mxu0 %v1995
      %8253 = vmatprep.subr.bf16.mxu0 0
      %8254 = vmatpush1.bf16.msra.mxu0 %v1998
      %8255 = vmatprep.mubr.bf16.mxu0 %v7700
      %8256 = vmatmul.mubr.bf16.gmra.mrb[0].mxu0 %v7699
      %v8257 = vpop.f32.mrb[0].mxu0
      %v8258 = vadd.f32 %v8217, %v8257
      %v8259 = vpop.f32.mrb[0].mxu0
      %v8260 = vpop.f32.mrb[0].mxu0
      %v8261 = vadd.f32 %v8220, %v8260
      %v8262 = vpop.f32.mrb[0].mxu0
      %8263 = vdwg.mxu0
      %8264 = vmatprep.subr.bf16.mxu0 0
      %8265 = vmatpush1.bf16.msra.mxu0 %v2001
      %8266 = vmatprep.subr.bf16.mxu0 0
      %8267 = vmatpush1.bf16.msra.mxu0 %v2004
      %8268 = vmatprep.subr.bf16.mxu0 0
      %8269 = vmatpush1.bf16.msra.mxu0 %v2007
      %8270 = vmatprep.subr.bf16.mxu0 0
      %8271 = vmatpush1.bf16.msra.mxu0 %v2010
      %8272 = vmatprep.subr.bf16.mxu0 0
      %8273 = vmatpush1.bf16.msra.mxu0 0
      %8274 = vmatprep.subr.bf16.mxu0 0
      %8275 = vmatpush1.bf16.msra.mxu0 0
      %8276 = vmatprep.subr.bf16.mxu0 0
      %8277 = vmatpush1.bf16.msra.mxu0 0
      %8278 = vmatprep.subr.bf16.mxu0 0
      %8279 = vmatpush1.bf16.msra.mxu0 0
      %8280 = vmatprep.subr.bf16.mxu0 0
      %8281 = vmatpush1.bf16.msra.mxu0 0
      %8282 = vmatprep.subr.bf16.mxu0 0
      %8283 = vmatpush1.bf16.msra.mxu0 0
      %8284 = vmatprep.subr.bf16.mxu0 0
      %8285 = vmatpush1.bf16.msra.mxu0 0
      %8286 = vmatprep.subr.bf16.mxu0 0
      %8287 = vmatpush1.bf16.msra.mxu0 0
      %8288 = vmatprep.subr.bf16.mxu0 0
      %8289 = vmatpush1.bf16.msra.mxu0 0
      %8290 = vmatprep.subr.bf16.mxu0 0
      %8291 = vmatpush1.bf16.msra.mxu0 0
      %8292 = vmatprep.subr.bf16.mxu0 0
      %8293 = vmatpush1.bf16.msra.mxu0 0
      %8294 = vmatprep.subr.bf16.mxu0 0
      %8295 = vmatpush1.bf16.msra.mxu0 0
      %8296 = vmatprep.mubr.bf16.mxu0 0
      %8297 = vmatmul.mubr.bf16.gmra.mrb[0].mxu0 %v7715
      %v8298 = vpop.f32.mrb[0].mxu0
      %v8299 = vadd.f32 %v8258, %v8298
      %v8300 = vpop.f32.mrb[0].mxu0
      %v8301 = vpop.f32.mrb[0].mxu0
      %v8302 = vadd.f32 %v8261, %v8301
      %v8303 = vpop.f32.mrb[0].mxu0
      %8304 = vdwg.mxu0
      %v8305 = vmax.f32 %v7629, %v8010
      %v8306 = vmax.f32 %v7630, %v8012
      %v8307 = vmax.f32 %v7631, %v8299
      %v8308 = vmax.f32 %v7632, %v8014
      %v8309 = vmax.f32 %v7633, %v8016
      %v8310 = vmax.f32 %v7634, %v8302
      %v8311 = vld [vmem:[%s2] sm:$0x7]
      %v8313 = vlaneseq
      %v8314 = vshrl.u32 %v8313, 7
      %v8315 = vsub.s32 0, %v8314
      %v8316 = vrot.slane %v8311, %v8315
      %v8317 = vlaneseq
      %v8318 = vshrl.u32 %v8317, 7
      %v8319 = vsub.s32 1, %v8318
      %v8320 = vrot.slane %v8311, %v8319
      %v8321 = vlaneseq
      %v8322 = vshrl.u32 %v8321, 7
      %v8323 = vsub.s32 2, %v8322
      %v8324 = vrot.slane %v8311, %v8323
      %v8328 = vadd.f32 %v8305, %v8316
      %v8329 = vadd.f32 %v8306, %v8320
      %v8330 = vadd.f32 %v8307, %v8324
      %v8331 = vadd.f32 %v8308, %v8316
      %v8332 = vadd.f32 %v8309, %v8320
      %v8333 = vadd.f32 %v8310, %v8324
      %v8334 = vld [vmem:[%s3] sm:$0xff]
      %v8335 = vld [vmem:[%s3 + $0x8] sm:$0xff]
      %v8336 = vld [vmem:[%s3 + $0x10] sm:$0xff]
      %v8337 = vld [vmem:[%s3 + $0x18] sm:$0xff]
      %v8338 = vld [vmem:[%s3 + $0x20] sm:$0xff]
      %v8339 = vld [vmem:[%s3 + $0x28] sm:$0xff]
      %v8340 = vld [vmem:[%s3 + $0x30] sm:$0xff]
      %v8341 = vld [vmem:[%s3 + $0x38] sm:$0xff]
      %v8342 = vld [vmem:[%s3 + $0x40] sm:$0xff]
      %v8343 = vld [vmem:[%s3 + $0x48] sm:$0xff]
      %v8344 = vld [vmem:[%s3 + $0x50] sm:$0xff]
      %v8345 = vld [vmem:[%s3 + $0x58] sm:$0xff]
      %v8346 = vld [vmem:[%s3 + $0x60] sm:$0xff]
      %v8347 = vld [vmem:[%s3 + $0x68] sm:$0xff]
      %v8348 = vld [vmem:[%s3 + $0x70] sm:$0xff]
      %v8349 = vld [vmem:[%s3 + $0x78] sm:$0xff]
      %v8350 = vld [vmem:[%s3 + $0x80] sm:$0xff]
      %v8351 = vld [vmem:[%s3 + $0x88] sm:$0xff]
      %v8352 = vld [vmem:[%s3 + $0x90] sm:$0xff]
      %v8353 = vld [vmem:[%s3 + $0x98] sm:$0xff]
      %v8354 = vld [vmem:[%s3 + $0xa0] sm:$0xff]
      %v8355 = vld [vmem:[%s3 + $0xa8] sm:$0xff]
      %v8356 = vld [vmem:[%s3 + $0xb0] sm:$0xff]
      %v8357 = vld [vmem:[%s3 + $0xb8] sm:$0xff]
      %v8358 = vld [vmem:[%s3 + $0xc0] sm:$0xff]
      %v8359 = vld [vmem:[%s3 + $0xc8] sm:$0xff]
      %v8360 = vld [vmem:[%s3 + $0xd0] sm:$0xff]
      %v8361 = vld [vmem:[%s3 + $0xd8] sm:$0xff]
      %v8362 = vld [vmem:[%s3 + $0xe0] sm:$0xff]
      %v8363 = vld [vmem:[%s3 + $0xe8] sm:$0xff]
      %v8364 = vld [vmem:[%s3 + $0xf0] sm:$0xff]
      %v8365 = vld [vmem:[%s3 + $0xf8] sm:$0xff]
      %v8366 = vld [vmem:[%s3 + $0x100] sm:$0xff]
      %v8367 = vld [vmem:[%s3 + $0x108] sm:$0xff]
      %v8368 = vld [vmem:[%s3 + $0x110] sm:$0xff]
      %v8369 = vld [vmem:[%s3 + $0x118] sm:$0xff]
      %v8370 = vld [vmem:[%s3 + $0x120] sm:$0xff]
      %v8371 = vld [vmem:[%s3 + $0x128] sm:$0xff]
      %v8372 = vld [vmem:[%s3 + $0x130] sm:$0xff]
      %v8373 = vld [vmem:[%s3 + $0x138] sm:$0xff]
      %v8374 = vld [vmem:[%s4] sm:$0x1]
      %v8376 = vlaneseq
      %v8377 = vshrl.u32 %v8376, 7
      %v8378 = vsub.s32 0, %v8377
      %v8379 = vrot.slane %v8374, %v8378
      %v8382 = vsel %vm2311, %v8330, 0
      %v8385 = vsel %vm2311, %v8333, 0
      %8387 = vmatprep.subr.mxu0 0.0
      %8388 = vmatpush1.msra.mxu0 %v8334
      %8389 = vmatprep.subr.mxu0 0.0
      %8390 = vmatpush1.msra.mxu0 %v8335
      %8391 = vmatprep.subr.mxu0 0.0
      %8392 = vmatpush1.msra.mxu0 %v8336
      %8393 = vmatprep.subr.mxu0 0.0
      %8394 = vmatpush1.msra.mxu0 %v8337
      %8395 = vmatprep.subr.mxu0 0.0
      %8396 = vmatpush1.msra.mxu0 %v8338
      %8397 = vmatprep.subr.mxu0 0.0
      %8398 = vmatpush1.msra.mxu0 %v8339
      %8399 = vmatprep.subr.mxu0 0.0
      %8400 = vmatpush1.msra.mxu0 %v8340
      %8401 = vmatprep.subr.mxu0 0.0
      %8402 = vmatpush1.msra.mxu0 %v8341
      %8403 = vmatprep.subr.mxu0 0.0
      %8404 = vmatpush1.msra.mxu0 %v8342
      %8405 = vmatprep.subr.mxu0 0.0
      %8406 = vmatpush1.msra.mxu0 %v8343
      %8407 = vmatprep.subr.mxu0 0.0
      %8408 = vmatpush1.msra.mxu0 %v8344
      %8409 = vmatprep.subr.mxu0 0.0
      %8410 = vmatpush1.msra.mxu0 %v8345
      %8411 = vmatprep.subr.mxu0 0.0
      %8412 = vmatpush1.msra.mxu0 %v8346
      %8413 = vmatprep.subr.mxu0 0.0
      %8414 = vmatpush1.msra.mxu0 %v8347
      %8415 = vmatprep.subr.mxu0 0.0
      %8416 = vmatpush1.msra.mxu0 %v8348
      %8417 = vmatprep.subr.mxu0 0.0
      %8418 = vmatpush1.msra.mxu0 %v8349
      %8419 = vmatprep.subr.mxu0 0.0
      %8420 = vmatpush1.msra.mxu0 %v8350
      %8421 = vmatprep.subr.mxu0 0.0
      %8422 = vmatpush1.msra.mxu0 %v8351
      %8423 = vmatprep.subr.mxu0 0.0
      %8424 = vmatpush1.msra.mxu0 %v8352
      %8425 = vmatprep.subr.mxu0 0.0
      %8426 = vmatpush1.msra.mxu0 %v8353
      %8427 = vmatprep.subr.mxu0 0.0
      %8428 = vmatpush1.msra.mxu0 %v8354
      %8429 = vmatprep.subr.mxu0 0.0
      %8430 = vmatpush1.msra.mxu0 %v8355
      %8431 = vmatprep.subr.mxu0 0.0
      %8432 = vmatpush1.msra.mxu0 %v8356
      %8433 = vmatprep.subr.mxu0 0.0
      %8434 = vmatpush1.msra.mxu0 %v8357
      %8435 = vmatprep.subr.mxu0 0.0
      %8436 = vmatpush1.msra.mxu0 %v8358
      %8437 = vmatprep.subr.mxu0 0.0
      %8438 = vmatpush1.msra.mxu0 %v8359
      %8439 = vmatprep.subr.mxu0 0.0
      %8440 = vmatpush1.msra.mxu0 %v8360
      %8441 = vmatprep.subr.mxu0 0.0
      %8442 = vmatpush1.msra.mxu0 %v8361
      %8443 = vmatprep.subr.mxu0 0.0
      %8444 = vmatpush1.msra.mxu0 %v8362
      %8445 = vmatprep.subr.mxu0 0.0
      %8446 = vmatpush1.msra.mxu0 %v8363
      %8447 = vmatprep.subr.mxu0 0.0
      %8448 = vmatpush1.msra.mxu0 %v8364
      %8449 = vmatprep.subr.mxu0 0.0
      %8450 = vmatpush1.msra.mxu0 %v8365
      %8451 = vmatprep.mubr.f32.mxu0 %v8329
      %8452 = vmatmul.mubr.f32.gmra.mrb[0].mxu0 %v8328
      %v8453 = vpop.f32.mrb[0].mxu0
      %v8454 = vadd.f32 %v8379, %v8453
      %v8455 = vpop.f32.mrb[0].mxu0
      %8456 = vmatprep.mubr.f32.mxu0 %v8332
      %8457 = vmatmul.mubr.f32.gmra.mrb[0].mxu0 %v8331
      %v8458 = vpop.f32.mrb[0].mxu0
      %v8459 = vadd.f32 %v8379, %v8458
      %v8460 = vpop.f32.mrb[0].mxu0
      %8461 = vdwg.mxu0
      %8462 = vmatprep.subr.mxu0 0.0
      %8463 = vmatpush1.msra.mxu0 %v8366
      %8464 = vmatprep.subr.mxu0 0.0
      %8465 = vmatpush1.msra.mxu0 %v8367
      %8466 = vmatprep.subr.mxu0 0.0
      %8467 = vmatpush1.msra.mxu0 %v8368
      %8468 = vmatprep.subr.mxu0 0.0
      %8469 = vmatpush1.msra.mxu0 %v8369
      %8470 = vmatprep.subr.mxu0 0.0
      %8471 = vmatpush1.msra.mxu0 %v8370
      %8472 = vmatprep.subr.mxu0 0.0
      %8473 = vmatpush1.msra.mxu0 %v8371
      %8474 = vmatprep.subr.mxu0 0.0
      %8475 = vmatpush1.msra.mxu0 %v8372
      %8476 = vmatprep.subr.mxu0 0.0
      %8477 = vmatpush1.msra.mxu0 %v8373
      %8478 = vmatprep.subr.mxu0 0.0
      %8479 = vmatpush1.msra.mxu0 0.0
      %8480 = vmatprep.subr.mxu0 0.0
      %8481 = vmatpush1.msra.mxu0 0.0
      %8482 = vmatprep.subr.mxu0 0.0
      %8483 = vmatpush1.msra.mxu0 0.0
      %8484 = vmatprep.subr.mxu0 0.0
      %8485 = vmatpush1.msra.mxu0 0.0
      %8486 = vmatprep.subr.mxu0 0.0
      %8487 = vmatpush1.msra.mxu0 0.0
      %8488 = vmatprep.subr.mxu0 0.0
      %8489 = vmatpush1.msra.mxu0 0.0
      %8490 = vmatprep.subr.mxu0 0.0
      %8491 = vmatpush1.msra.mxu0 0.0
      %8492 = vmatprep.subr.mxu0 0.0
      %8493 = vmatpush1.msra.mxu0 0.0
      %8494 = vmatprep.subr.mxu0 0.0
      %8495 = vmatpush1.msra.mxu0 0.0
      %8496 = vmatprep.subr.mxu0 0.0
      %8497 = vmatpush1.msra.mxu0 0.0
      %8498 = vmatprep.subr.mxu0 0.0
      %8499 = vmatpush1.msra.mxu0 0.0
      %8500 = vmatprep.subr.mxu0 0.0
      %8501 = vmatpush1.msra.mxu0 0.0
      %8502 = vmatprep.subr.mxu0 0.0
      %8503 = vmatpush1.msra.mxu0 0.0
      %8504 = vmatprep.subr.mxu0 0.0
      %8505 = vmatpush1.msra.mxu0 0.0
      %8506 = vmatprep.subr.mxu0 0.0
      %8507 = vmatpush1.msra.mxu0 0.0
      %8508 = vmatprep.subr.mxu0 0.0
      %8509 = vmatpush1.msra.mxu0 0.0
      %8510 = vmatprep.subr.mxu0 0.0
      %8511 = vmatpush1.msra.mxu0 0.0
      %8512 = vmatprep.subr.mxu0 0.0
      %8513 = vmatpush1.msra.mxu0 0.0
      %8514 = vmatprep.subr.mxu0 0.0
      %8515 = vmatpush1.msra.mxu0 0.0
      %8516 = vmatprep.subr.mxu0 0.0
      %8517 = vmatpush1.msra.mxu0 0.0
      %8518 = vmatprep.subr.mxu0 0.0
      %8519 = vmatpush1.msra.mxu0 0.0
      %8520 = vmatprep.subr.mxu0 0.0
      %8521 = vmatpush1.msra.mxu0 0.0
      %8522 = vmatprep.subr.mxu0 0.0
      %8523 = vmatpush1.msra.mxu0 0.0
      %8524 = vmatprep.subr.mxu0 0.0
      %8525 = vmatpush1.msra.mxu0 0.0
      %8526 = vmatprep.mubr.f32.mxu0 0.0
      %8527 = vmatmul.mubr.f32.gmra.mrb[0].mxu0 %v8382
      %v8528 = vpop.f32.mrb[0].mxu0
      %v8529 = vadd.f32 %v8454, %v8528
      %v8530 = vpop.f32.mrb[0].mxu0
      %8531 = vmatprep.mubr.f32.mxu0 0.0
      %8532 = vmatmul.mubr.f32.gmra.mrb[0].mxu0 %v8385
      %v8533 = vpop.f32.mrb[0].mxu0
      %v8534 = vadd.f32 %v8459, %v8533
      %v8535 = vpop.f32.mrb[0].mxu0
      %8536 = vdwg.mxu0
      %8537 = vmax.xlane.f32.xlu0 %v8529
      %v8538 = vpop.xlane.xlu0 %8537
      %8539 = vmax.xlane.f32.xlu0 %v8534
      %v8540 = vpop.xlane.xlu0 %8539
      %v8541 = vsub.f32 %v8529, %v8538
      %v8542 = vsub.f32 %v8534, %v8540
      %v8543 = vmul.f32 %v8541, 1.442695
      %v8544 = vpow.pop %v8543
      %v8545 = vmul.f32 %v8542, 1.442695
      %v8546 = vpow.pop %v8545
      %8547 = vadd.xlane.f32.xlu0 %v8544
      %v8548 = vpop.xlane.xlu0 %8547
      %8549 = vadd.xlane.f32.xlu0 %v8546
      %v8550 = vpop.xlane.xlu0 %8549
      %v8551 = vlog2.pop %v8548
      %v8552 = vmul.f32 %v8551, 0.6931472
      %v8553 = vlog2.pop %v8550
      %v8554 = vmul.f32 %v8553, 0.6931472
      %v8555 = vsub.f32 %v8541, %v8552
      %v8556 = vsub.f32 %v8542, %v8554
      %8557 = vst [vmem:[%s229] sm:$0xff] %v8555
      %8558 = vst [vmem:[%s229 + $0x8] sm:$0xff] %v8556
      %s8559 = smul.u32 2, %s16
      %p8560 = scmp.lt.s32.totalorder %s8559, 3
      %s8561 = scalar_select %p8560, %s8559, 3
      %s8562 = smul.addr %s8561, 8
      %s8563 = scalar_lea.vmem %s5, %s8562
      // Predicated region
      $region41: #{mnist_forward.1} parent=39 // pred_check
        %p8564 = pneg %p144
      $region42: #{mnist_forward.1} parent=39 // pred_check_branch
        %8566 = sbr.rel (%p8564) target = $region44
      $region43: #{mnist_forward.1} parent=39 // pred_region
        %s8567 = smul.u32 2, %s16
      $region44: #{mnist_forward.1} parent=39 // pred_fallthru
        _
    $region40: #{mnist_forward.1} parent=5 // pred_fallthru
      _
    %p8568 = scmp.le.s32.totalorder 2, %s11
    // Predicated region
    $region45: #{mnist_forward.1} parent=5 // pred_check
      %p8569 = pneg %p8568
    $region46: #{mnist_forward.1} parent=5 // pred_check_branch
      %8571 = sbr.rel (%p8569) target = $region48
    $region47: #{mnist_forward.1} parent=5 // pred_region
      %s8572 = ssub.s32 %s11, 2
      // Predicated region
      $region49: #{mnist_forward.1} parent=47 // pred_check
        %p8573 = pneg %p150
      $region50: #{mnist_forward.1} parent=47 // pred_check_branch
        %8575 = sbr.rel (%p8573) target = $region52
      $region51: #{mnist_forward.1} parent=47 // pred_region
        %s8576 = smul.u32 2, %s17
        %p8577 = scmp.lt.s32.totalorder %s8576, 3
        %s8578 = scalar_select %p8577, %s8576, 3
        %s8579 = smul.addr %s8578, 8
        %s8580 = scalar_lea.vmem %s5, %s8579
      $region52: #{mnist_forward.1} parent=47 // pred_fallthru
        _
    $region48: #{mnist_forward.1} parent=5 // pred_fallthru
      _
  $region6: #{mnist_forward.1} parent=0 // loop_footer
    %s15 = sadd.s32 1, %s11
  $region7: #{mnist_forward.1} parent=0 // loop_footer_branch
    %10 = sbr.rel target = $region3
  $region8: #{mnist_forward.1} parent=0 // loop_exit
    _

</llo_original>
